<compile_context>
chip_gen: v5e
topology: v5e:2x2
jax: 0.10.0
libtpu: 0.0.40
codegen_flags: <defaults>
</compile_context>

<pallas_src>
import jax
import jax.numpy as jnp
from jax.experimental import pallas as pl
from jax.experimental.pallas import tpu as pltpu

NUM_CLASSES = 10


# -----------------------------------------------------------------------------
# Pallas kernels
# -----------------------------------------------------------------------------
def _conv_relu_kernel(p_ref, w_ref, b_ref, o_ref):
    """Single K-folded matmul + bias + ReLU."""
    acc = jnp.dot(p_ref[...], w_ref[...], preferred_element_type=jnp.float32)
    o_ref[...] = jnp.maximum(acc + b_ref[...], 0.0).astype(o_ref.dtype)


def _conv_relu_pool_kernel(p_ref, w_ref, b_ref, o_ref):
    """Conv (K-folded matmul) fused with bias, ReLU and 2x2 max-pool.

    p_ref: [4, Mp, K] -- one im2col slab per 2x2 pool-window position.
    Pool(ReLU(conv+b)) == ReLU(max_t(conv_t) + b) since bias is uniform over
    the pool window and ReLU is monotone.
    """
    w = w_ref[...]
    acc = jnp.dot(p_ref[0], w, preferred_element_type=jnp.float32)
    for t in range(1, 4):  # unrolled at trace time
        acc = jnp.maximum(
            acc, jnp.dot(p_ref[t], w, preferred_element_type=jnp.float32))
    o_ref[...] = jnp.maximum(acc + b_ref[...], 0.0).astype(o_ref.dtype)


def _conv_relu_pool_fc_kernel(p_ref, w_ref, b_ref, wf_ref, bf_ref, o_ref):
    """Network tail fused: conv4 + bias + ReLU + 2x2 pool + flatten + fc."""
    w = w_ref[...]
    acc = jnp.dot(p_ref[0], w, preferred_element_type=jnp.float32)
    for t in range(1, 4):
        acc = jnp.maximum(
            acc, jnp.dot(p_ref[t], w, preferred_element_type=jnp.float32))
    feat = jnp.maximum(acc + b_ref[...], 0.0)            # [N, Cout] f32
    logits = jnp.dot(feat, wf_ref[...],
                     preferred_element_type=jnp.float32) + bf_ref[...]
    o_ref[...] = logits.astype(o_ref.dtype)


# -----------------------------------------------------------------------------
# Wrappers (im2col / layout glue + pallas_call plumbing)
# -----------------------------------------------------------------------------
def _im2col(x_nhwc, KH, KW, stride, padding):
    """Return K-folded patches [N, Ho, Wo, KH*KW*Cin] (tap-major then Cin,
    matching w_hwio.reshape(KH*KW*Cin, Cout))."""
    N, H, W, Cin = x_nhwc.shape
    Ho = (H + 2 * padding - KH) // stride + 1
    Wo = (W + 2 * padding - KW) // stride + 1
    xp = jnp.pad(x_nhwc,
                 ((0, 0), (padding, padding), (padding, padding), (0, 0)))
    taps = []
    for kh in range(KH):
        for kw in range(KW):
            taps.append(
                xp[:, kh:kh + stride * Ho:stride,
                   kw:kw + stride * Wo:stride, :])
    patches = jnp.stack(taps, axis=3).reshape(N, Ho, Wo, KH * KW * Cin)
    return patches, Ho, Wo


def _pool_tap_patches(p_full, Hp, Wp, K):
    """Reorder K-folded patches into pool-tap-major [4, N*Hp*Wp, K]."""
    N = p_full.shape[0]
    Mp = N * Hp * Wp
    taps = [
        p_full[:, dh:2 * Hp:2, dw:2 * Wp:2, :].reshape(Mp, K)
        for dh in (0, 1) for dw in (0, 1)
    ]
    return jnp.stack(taps, axis=0), Mp


def conv_relu_pool(x_nhwc, w_hwio, b, *, stride, padding):
    """Conv2d + ReLU + MaxPool2d(2,2) in one pallas_call."""
    N, H, W, Cin = x_nhwc.shape
    KH, KW, _, Cout = w_hwio.shape
    K = KH * KW * Cin
    p_full, Ho, Wo = _im2col(x_nhwc, KH, KW, stride, padding)
    Hp, Wp = Ho // 2, Wo // 2
    patches, Mp = _pool_tap_patches(p_full, Hp, Wp, K)

    patches = patches.astype(jnp.bfloat16)                 # [4, Mp, K]
    wmat = w_hwio.reshape(K, Cout).astype(jnp.bfloat16)    # [K, Cout]
    bias = b.reshape(1, Cout).astype(jnp.float32)

    # Split M across 2 grid blocks when big enough (uses both v7x TCs).
    grid_m = 2 if (Mp >= 16 and Mp % 16 == 0) else 1
    bm = Mp // grid_m

    out = pl.pallas_call(
        _conv_relu_pool_kernel,
        out_shape=jax.ShapeDtypeStruct((Mp, Cout), jnp.float32),
        grid=(grid_m,),
        in_specs=[
            pl.BlockSpec((4, bm, K), lambda i: (0, i, 0)),
            pl.BlockSpec((K, Cout), lambda i: (0, 0)),
            pl.BlockSpec((1, Cout), lambda i: (0, 0)),
        ],
        out_specs=pl.BlockSpec((bm, Cout), lambda i: (i, 0)),
        compiler_params=pltpu.CompilerParams(
            dimension_semantics=("parallel",)),
    )(patches, wmat, bias)
    return out.reshape(N, Hp, Wp, Cout)


def conv_relu(x_nhwc, w_hwio, b, *, stride, padding):
    """Conv2d + ReLU (no pool) in one pallas_call."""
    N, H, W, Cin = x_nhwc.shape
    KH, KW, _, Cout = w_hwio.shape
    K = KH * KW * Cin
    p_full, Ho, Wo = _im2col(x_nhwc, KH, KW, stride, padding)
    M = N * Ho * Wo

    patches = p_full.reshape(M, K).astype(jnp.bfloat16)
    wmat = w_hwio.reshape(K, Cout).astype(jnp.bfloat16)
    bias = b.reshape(1, Cout).astype(jnp.float32)

    out = pl.pallas_call(
        _conv_relu_kernel,
        out_shape=jax.ShapeDtypeStruct((M, Cout), jnp.float32),
        grid=(1,),
        in_specs=[
            pl.BlockSpec((M, K), lambda i: (0, 0)),
            pl.BlockSpec((K, Cout), lambda i: (0, 0)),
            pl.BlockSpec((1, Cout), lambda i: (0, 0)),
        ],
        out_specs=pl.BlockSpec((M, Cout), lambda i: (0, 0)),
        compiler_params=pltpu.CompilerParams(
            dimension_semantics=("arbitrary",)),
    )(patches, wmat, bias)
    return out.reshape(N, Ho, Wo, Cout)


def conv_relu_pool_fc(x_nhwc, w_hwio, b, wf, bf, *, stride, padding):
    """Fused tail: Conv2d + ReLU + MaxPool2d(2,2) + flatten + Linear."""
    N, H, W, Cin = x_nhwc.shape
    KH, KW, _, Cout = w_hwio.shape
    K = KH * KW * Cin
    p_full, Ho, Wo = _im2col(x_nhwc, KH, KW, stride, padding)
    Hp, Wp = Ho // 2, Wo // 2
    # Flatten order matches PyTorch x.view(N, -1) only because spatial is 1x1.
    assert Hp == 1 and Wp == 1, "fused tail assumes 1x1 spatial after pool"
    patches, Mp = _pool_tap_patches(p_full, Hp, Wp, K)     # Mp == N

    patches = patches.astype(jnp.bfloat16)
    wmat = w_hwio.reshape(K, Cout).astype(jnp.bfloat16)
    bias = b.reshape(1, Cout).astype(jnp.float32)
    n_cls = wf.shape[1]
    wf32 = wf.astype(jnp.float32)
    bf32 = bf.reshape(1, n_cls).astype(jnp.float32)

    return pl.pallas_call(
        _conv_relu_pool_fc_kernel,
        out_shape=jax.ShapeDtypeStruct((Mp, n_cls), jnp.float32),
        grid=(1,),
        in_specs=[
            pl.BlockSpec((4, Mp, K), lambda i: (0, 0, 0)),
            pl.BlockSpec((K, Cout), lambda i: (0, 0)),
            pl.BlockSpec((1, Cout), lambda i: (0, 0)),
            pl.BlockSpec((Cout, n_cls), lambda i: (0, 0)),
            pl.BlockSpec((1, n_cls), lambda i: (0, 0)),
        ],
        out_specs=pl.BlockSpec((Mp, n_cls), lambda i: (0, 0)),
        compiler_params=pltpu.CompilerParams(
            dimension_semantics=("arbitrary",)),
    )(patches, wmat, bias, wf32, bf32)


# -----------------------------------------------------------------------------
# Model
# -----------------------------------------------------------------------------
def init_params(key):
    """Deterministic synthetic weights. Conv weights HWIO, linear (in, out)."""
    def conv_p(k, kh, kw, cin, cout):
        k1, k2 = jax.random.split(k)
        scale = 1.0 / jnp.sqrt(kh * kw * cin)
        return (
            jax.random.uniform(k1, (kh, kw, cin, cout), jnp.float32,
                               -scale, scale),
            jax.random.uniform(k2, (cout,), jnp.float32, -scale, scale),
        )

    keys = jax.random.split(key, 5)
    params = {
        "conv1": conv_p(keys[0], 11, 11, 3, 64),
        "conv2": conv_p(keys[1], 5, 5, 64, 192),
        "conv3": conv_p(keys[2], 3, 3, 192, 384),
        "conv4": conv_p(keys[3], 3, 3, 384, 256),
    }
    k1, k2 = jax.random.split(keys[4])
    scale = 1.0 / jnp.sqrt(256.0)
    params["fc"] = (
        jax.random.uniform(k1, (256, NUM_CLASSES), jnp.float32, -scale, scale),
        jax.random.uniform(k2, (NUM_CLASSES,), jnp.float32, -scale, scale),
    )
    return params


@jax.jit
def alexnet_forward(params, x_nchw):
    # NCHW (PyTorch) -> NHWC (channels on the 128-lane minor axis).
    x = jnp.transpose(x_nchw, (0, 2, 3, 1)).astype(jnp.float32)

    w, b = params["conv1"]
    x = conv_relu_pool(x, w, b, stride=4, padding=5)   # [N, 4, 4, 64]

    w, b = params["conv2"]
    x = conv_relu_pool(x, w, b, stride=1, padding=2)   # [N, 2, 2, 192]

    w, b = params["conv3"]
    x = conv_relu(x, w, b, stride=1, padding=1)        # [N, 2, 2, 384]

    w4, b4 = params["conv4"]
    wf, bf = params["fc"]
    # conv4 + ReLU + pool + flatten + fc, fused.
    return conv_relu_pool_fc(x, w4, b4, wf, bf, stride=1, padding=1)


if __name__ == "__main__":
    key = jax.random.PRNGKey(0)
    pkey, xkey = jax.random.split(key)
    params = init_params(pkey)
    # CIFAR-sized input implied by the 256-feature classifier: [2, 3, 32, 32]
    x = jax.random.normal(xkey, (2, 3, 32, 32), dtype=jnp.float32)
    out = alexnet_forward(params, x)
    jax.block_until_ready(out)
    assert out.shape == (2, NUM_CLASSES), out.shape
    print("KERNEL_OK")
</pallas_src>

<mosaic_0001>
module attributes {stable_mosaic.version = 11 : i64} {
  func.func @_conv_relu_pool_kernel(%arg0: i32, %arg1: memref<4x16x363xbf16, #tpu.memory_space<vmem>>, %arg2: memref<363x64xbf16, #tpu.memory_space<vmem>>, %arg3: memref<1x64xf32, #tpu.memory_space<vmem>>, %arg4: memref<16x64xf32, #tpu.memory_space<vmem>>) attributes {dimension_semantics = [#tpu.dimension_semantics<parallel>], iteration_bounds = array<i64: 2>, scalar_prefetch = 0 : i64, scratch_operands = 0 : i64, tpu.core_type = #tpu.core_type<tc>, window_params = [{transform_indices = @transform_0, window_bounds = array<i64: 4, 16, 363>}, {pipeline_mode = #tpu.pipeline_mode<synchronous>, transform_indices = @transform_1, window_bounds = array<i64: 363, 64>}, {pipeline_mode = #tpu.pipeline_mode<synchronous>, transform_indices = @transform_2, window_bounds = array<i64: 1, 64>}, {transform_indices = @transform_3, window_bounds = array<i64: 16, 64>}]} {
    %c0 = arith.constant 0 : index
    %c0_0 = arith.constant 0 : index
    %0 = vector.load %arg2[%c0, %c0_0] : memref<363x64xbf16, #tpu.memory_space<vmem>>, vector<363x64xbf16>
    %c0_1 = arith.constant 0 : index
    %c0_2 = arith.constant 0 : index
    %c0_3 = arith.constant 0 : index
    %1 = vector.load %arg1[%c0_1, %c0_2, %c0_3] : memref<4x16x363xbf16, #tpu.memory_space<vmem>>, vector<1x16x363xbf16>
    %2 = vector.shape_cast %1 : vector<1x16x363xbf16> to vector<16x363xbf16>
    %cst = arith.constant dense<0.000000e+00> : vector<16x64xf32>
    %3 = tpu.matmul %2, %0, %cst {dimension_numbers = #tpu.dot_dimension_numbers<[1], [0], [0], [1], [0, 0, 1, 1], [], []>} : vector<16x363xbf16>, vector<363x64xbf16>, vector<16x64xf32> -> vector<16x64xf32>
    %c1 = arith.constant 1 : index
    %c0_4 = arith.constant 0 : index
    %c0_5 = arith.constant 0 : index
    %4 = vector.load %arg1[%c1, %c0_4, %c0_5] : memref<4x16x363xbf16, #tpu.memory_space<vmem>>, vector<1x16x363xbf16>
    %5 = vector.shape_cast %4 : vector<1x16x363xbf16> to vector<16x363xbf16>
    %cst_6 = arith.constant dense<0.000000e+00> : vector<16x64xf32>
    %6 = tpu.matmul %5, %0, %cst_6 {dimension_numbers = #tpu.dot_dimension_numbers<[1], [0], [0], [1], [0, 0, 1, 1], [], []>} : vector<16x363xbf16>, vector<363x64xbf16>, vector<16x64xf32> -> vector<16x64xf32>
    %7 = arith.maximumf %3, %6 : vector<16x64xf32>
    %c2 = arith.constant 2 : index
    %c0_7 = arith.constant 0 : index
    %c0_8 = arith.constant 0 : index
    %8 = vector.load %arg1[%c2, %c0_7, %c0_8] : memref<4x16x363xbf16, #tpu.memory_space<vmem>>, vector<1x16x363xbf16>
    %9 = vector.shape_cast %8 : vector<1x16x363xbf16> to vector<16x363xbf16>
    %cst_9 = arith.constant dense<0.000000e+00> : vector<16x64xf32>
    %10 = tpu.matmul %9, %0, %cst_9 {dimension_numbers = #tpu.dot_dimension_numbers<[1], [0], [0], [1], [0, 0, 1, 1], [], []>} : vector<16x363xbf16>, vector<363x64xbf16>, vector<16x64xf32> -> vector<16x64xf32>
    %11 = arith.maximumf %7, %10 : vector<16x64xf32>
    %c3 = arith.constant 3 : index
    %c0_10 = arith.constant 0 : index
    %c0_11 = arith.constant 0 : index
    %12 = vector.load %arg1[%c3, %c0_10, %c0_11] : memref<4x16x363xbf16, #tpu.memory_space<vmem>>, vector<1x16x363xbf16>
    %13 = vector.shape_cast %12 : vector<1x16x363xbf16> to vector<16x363xbf16>
    %cst_12 = arith.constant dense<0.000000e+00> : vector<16x64xf32>
    %14 = tpu.matmul %13, %0, %cst_12 {dimension_numbers = #tpu.dot_dimension_numbers<[1], [0], [0], [1], [0, 0, 1, 1], [], []>} : vector<16x363xbf16>, vector<363x64xbf16>, vector<16x64xf32> -> vector<16x64xf32>
    %15 = arith.maximumf %11, %14 : vector<16x64xf32>
    %c0_13 = arith.constant 0 : index
    %c0_14 = arith.constant 0 : index
    %16 = vector.load %arg3[%c0_13, %c0_14] : memref<1x64xf32, #tpu.memory_space<vmem>>, vector<1x64xf32>
    %17 = vector.broadcast %16 : vector<1x64xf32> to vector<16x64xf32>
    %18 = arith.addf %15, %17 : vector<16x64xf32>
    %cst_15 = arith.constant 0.000000e+00 : f32
    %19 = vector.broadcast %cst_15 : f32 to vector<16x64xf32>
    %20 = arith.maximumf %18, %19 : vector<16x64xf32>
    %c0_16 = arith.constant 0 : index
    %c0_17 = arith.constant 0 : index
    %21 = vector.load %arg4[%c0_16, %c0_17] : memref<16x64xf32, #tpu.memory_space<vmem>>, vector<16x64xf32>
    tpu.vector_store %arg4[%c0_16, %c0_17], %20 {strides = array<i32>} : memref<16x64xf32, #tpu.memory_space<vmem>>, vector<16x64xf32>,
    return
  }
  func.func @transform_0(%arg0: i32) -> (i32, i32, i32) {
    %c0_i32 = arith.constant 0 : i32
    %c0_i32_0 = arith.constant 0 : i32
    %c0_i32_1 = arith.constant 0 : i32
    return %c0_i32, %arg0, %c0_i32_0 : i32, i32, i32
  }
  func.func @transform_1(%arg0: i32) -> (i32, i32) {
    %c0_i32 = arith.constant 0 : i32
    %c0_i32_0 = arith.constant 0 : i32
    %c0_i32_1 = arith.constant 0 : i32
    return %c0_i32, %c0_i32_0 : i32, i32
  }
  func.func @transform_2(%arg0: i32) -> (i32, i32) {
    %c0_i32 = arith.constant 0 : i32
    %c0_i32_0 = arith.constant 0 : i32
    %c0_i32_1 = arith.constant 0 : i32
    return %c0_i32, %c0_i32_0 : i32, i32
  }
  func.func @transform_3(%arg0: i32) -> (i32, i32) {
    %c0_i32 = arith.constant 0 : i32
    %c0_i32_0 = arith.constant 0 : i32
    return %arg0, %c0_i32 : i32, i32
  }
}

module attributes {stable_mosaic.version = 11 : i64} {
  func.func @_conv_relu_pool_kernel(%arg0: i32, %arg1: memref<4x8x1600xbf16, #tpu.memory_space<vmem>>, %arg2: memref<1600x192xbf16, #tpu.memory_space<vmem>>, %arg3: memref<1x192xf32, #tpu.memory_space<vmem>>, %arg4: memref<8x192xf32, #tpu.memory_space<vmem>>) attributes {dimension_semantics = [#tpu.dimension_semantics<parallel>], iteration_bounds = array<i64: 1>, scalar_prefetch = 0 : i64, scratch_operands = 0 : i64, tpu.core_type = #tpu.core_type<tc>, window_params = [{transform_indices = @transform_0, window_bounds = array<i64: 4, 8, 1600>}, {pipeline_mode = #tpu.pipeline_mode<synchronous>, transform_indices = @transform_1, window_bounds = array<i64: 1600, 192>}, {pipeline_mode = #tpu.pipeline_mode<synchronous>, transform_indices = @transform_2, window_bounds = array<i64: 1, 192>}, {transform_indices = @transform_3, window_bounds = array<i64: 8, 192>}]} {
    %c0 = arith.constant 0 : index
    %c0_0 = arith.constant 0 : index
    %0 = vector.load %arg2[%c0, %c0_0] : memref<1600x192xbf16, #tpu.memory_space<vmem>>, vector<1600x192xbf16>
    %c0_1 = arith.constant 0 : index
    %c0_2 = arith.constant 0 : index
    %c0_3 = arith.constant 0 : index
    %1 = vector.load %arg1[%c0_1, %c0_2, %c0_3] : memref<4x8x1600xbf16, #tpu.memory_space<vmem>>, vector<1x8x1600xbf16>
    %2 = vector.shape_cast %1 : vector<1x8x1600xbf16> to vector<8x1600xbf16>
    %cst = arith.constant dense<0.000000e+00> : vector<8x192xf32>
    %3 = tpu.matmul %2, %0, %cst {dimension_numbers = #tpu.dot_dimension_numbers<[1], [0], [0], [1], [0, 0, 1, 1], [], []>} : vector<8x1600xbf16>, vector<1600x192xbf16>, vector<8x192xf32> -> vector<8x192xf32>
    %c1 = arith.constant 1 : index
    %c0_4 = arith.constant 0 : index
    %c0_5 = arith.constant 0 : index
    %4 = vector.load %arg1[%c1, %c0_4, %c0_5] : memref<4x8x1600xbf16, #tpu.memory_space<vmem>>, vector<1x8x1600xbf16>
    %5 = vector.shape_cast %4 : vector<1x8x1600xbf16> to vector<8x1600xbf16>
    %cst_6 = arith.constant dense<0.000000e+00> : vector<8x192xf32>
    %6 = tpu.matmul %5, %0, %cst_6 {dimension_numbers = #tpu.dot_dimension_numbers<[1], [0], [0], [1], [0, 0, 1, 1], [], []>} : vector<8x1600xbf16>, vector<1600x192xbf16>, vector<8x192xf32> -> vector<8x192xf32>
    %7 = arith.maximumf %3, %6 : vector<8x192xf32>
    %c2 = arith.constant 2 : index
    %c0_7 = arith.constant 0 : index
    %c0_8 = arith.constant 0 : index
    %8 = vector.load %arg1[%c2, %c0_7, %c0_8] : memref<4x8x1600xbf16, #tpu.memory_space<vmem>>, vector<1x8x1600xbf16>
    %9 = vector.shape_cast %8 : vector<1x8x1600xbf16> to vector<8x1600xbf16>
    %cst_9 = arith.constant dense<0.000000e+00> : vector<8x192xf32>
    %10 = tpu.matmul %9, %0, %cst_9 {dimension_numbers = #tpu.dot_dimension_numbers<[1], [0], [0], [1], [0, 0, 1, 1], [], []>} : vector<8x1600xbf16>, vector<1600x192xbf16>, vector<8x192xf32> -> vector<8x192xf32>
    %11 = arith.maximumf %7, %10 : vector<8x192xf32>
    %c3 = arith.constant 3 : index
    %c0_10 = arith.constant 0 : index
    %c0_11 = arith.constant 0 : index
    %12 = vector.load %arg1[%c3, %c0_10, %c0_11] : memref<4x8x1600xbf16, #tpu.memory_space<vmem>>, vector<1x8x1600xbf16>
    %13 = vector.shape_cast %12 : vector<1x8x1600xbf16> to vector<8x1600xbf16>
    %cst_12 = arith.constant dense<0.000000e+00> : vector<8x192xf32>
    %14 = tpu.matmul %13, %0, %cst_12 {dimension_numbers = #tpu.dot_dimension_numbers<[1], [0], [0], [1], [0, 0, 1, 1], [], []>} : vector<8x1600xbf16>, vector<1600x192xbf16>, vector<8x192xf32> -> vector<8x192xf32>
    %15 = arith.maximumf %11, %14 : vector<8x192xf32>
    %c0_13 = arith.constant 0 : index
    %c0_14 = arith.constant 0 : index
    %16 = vector.load %arg3[%c0_13, %c0_14] : memref<1x192xf32, #tpu.memory_space<vmem>>, vector<1x192xf32>
    %17 = vector.broadcast %16 : vector<1x192xf32> to vector<8x192xf32>
    %18 = arith.addf %15, %17 : vector<8x192xf32>
    %cst_15 = arith.constant 0.000000e+00 : f32
    %19 = vector.broadcast %cst_15 : f32 to vector<8x192xf32>
    %20 = arith.maximumf %18, %19 : vector<8x192xf32>
    %c0_16 = arith.constant 0 : index
    %c0_17 = arith.constant 0 : index
    %21 = vector.load %arg4[%c0_16, %c0_17] : memref<8x192xf32, #tpu.memory_space<vmem>>, vector<8x192xf32>
    tpu.vector_store %arg4[%c0_16, %c0_17], %20 {strides = array<i32>} : memref<8x192xf32, #tpu.memory_space<vmem>>, vector<8x192xf32>,
    return
  }
  func.func @transform_0(%arg0: i32) -> (i32, i32, i32) {
    %c0_i32 = arith.constant 0 : i32
    %c0_i32_0 = arith.constant 0 : i32
    %c0_i32_1 = arith.constant 0 : i32
    return %c0_i32, %arg0, %c0_i32_0 : i32, i32, i32
  }
  func.func @transform_1(%arg0: i32) -> (i32, i32) {
    %c0_i32 = arith.constant 0 : i32
    %c0_i32_0 = arith.constant 0 : i32
    %c0_i32_1 = arith.constant 0 : i32
    return %c0_i32, %c0_i32_0 : i32, i32
  }
  func.func @transform_2(%arg0: i32) -> (i32, i32) {
    %c0_i32 = arith.constant 0 : i32
    %c0_i32_0 = arith.constant 0 : i32
    %c0_i32_1 = arith.constant 0 : i32
    return %c0_i32, %c0_i32_0 : i32, i32
  }
  func.func @transform_3(%arg0: i32) -> (i32, i32) {
    %c0_i32 = arith.constant 0 : i32
    %c0_i32_0 = arith.constant 0 : i32
    return %arg0, %c0_i32 : i32, i32
  }
}

module attributes {stable_mosaic.version = 11 : i64} {
  func.func @_conv_relu_kernel(%arg0: i32, %arg1: memref<8x1728xbf16, #tpu.memory_space<vmem>>, %arg2: memref<1728x384xbf16, #tpu.memory_space<vmem>>, %arg3: memref<1x384xf32, #tpu.memory_space<vmem>>, %arg4: memref<8x384xf32, #tpu.memory_space<vmem>>) attributes {dimension_semantics = [#tpu.dimension_semantics<arbitrary>], iteration_bounds = array<i64: 1>, scalar_prefetch = 0 : i64, scratch_operands = 0 : i64, tpu.core_type = #tpu.core_type<tc>, window_params = [{pipeline_mode = #tpu.pipeline_mode<synchronous>, transform_indices = @transform_0, window_bounds = array<i64: 8, 1728>}, {pipeline_mode = #tpu.pipeline_mode<synchronous>, transform_indices = @transform_1, window_bounds = array<i64: 1728, 384>}, {pipeline_mode = #tpu.pipeline_mode<synchronous>, transform_indices = @transform_2, window_bounds = array<i64: 1, 384>}, {pipeline_mode = #tpu.pipeline_mode<synchronous>, transform_indices = @transform_3, window_bounds = array<i64: 8, 384>}]} {
    %c0 = arith.constant 0 : index
    %c0_0 = arith.constant 0 : index
    %0 = vector.load %arg1[%c0, %c0_0] : memref<8x1728xbf16, #tpu.memory_space<vmem>>, vector<8x1728xbf16>
    %c0_1 = arith.constant 0 : index
    %c0_2 = arith.constant 0 : index
    %1 = vector.load %arg2[%c0_1, %c0_2] : memref<1728x384xbf16, #tpu.memory_space<vmem>>, vector<1728x384xbf16>
    %cst = arith.constant dense<0.000000e+00> : vector<8x384xf32>
    %2 = tpu.matmul %0, %1, %cst {dimension_numbers = #tpu.dot_dimension_numbers<[1], [0], [0], [1], [0, 0, 1, 1], [], []>} : vector<8x1728xbf16>, vector<1728x384xbf16>, vector<8x384xf32> -> vector<8x384xf32>
    %c0_3 = arith.constant 0 : index
    %c0_4 = arith.constant 0 : index
    %3 = vector.load %arg3[%c0_3, %c0_4] : memref<1x384xf32, #tpu.memory_space<vmem>>, vector<1x384xf32>
    %4 = vector.broadcast %3 : vector<1x384xf32> to vector<8x384xf32>
    %5 = arith.addf %2, %4 : vector<8x384xf32>
    %cst_5 = arith.constant 0.000000e+00 : f32
    %6 = vector.broadcast %cst_5 : f32 to vector<8x384xf32>
    %7 = arith.maximumf %5, %6 : vector<8x384xf32>
    %c0_6 = arith.constant 0 : index
    %c0_7 = arith.constant 0 : index
    %8 = vector.load %arg4[%c0_6, %c0_7] : memref<8x384xf32, #tpu.memory_space<vmem>>, vector<8x384xf32>
    tpu.vector_store %arg4[%c0_6, %c0_7], %7 {strides = array<i32>} : memref<8x384xf32, #tpu.memory_space<vmem>>, vector<8x384xf32>,
    return
  }
  func.func @transform_0(%arg0: i32) -> (i32, i32) {
    %c0_i32 = arith.constant 0 : i32
    %c0_i32_0 = arith.constant 0 : i32
    %c0_i32_1 = arith.constant 0 : i32
    return %c0_i32, %c0_i32_0 : i32, i32
  }
  func.func @transform_1(%arg0: i32) -> (i32, i32) {
    %c0_i32 = arith.constant 0 : i32
    %c0_i32_0 = arith.constant 0 : i32
    %c0_i32_1 = arith.constant 0 : i32
    return %c0_i32, %c0_i32_0 : i32, i32
  }
  func.func @transform_2(%arg0: i32) -> (i32, i32) {
    %c0_i32 = arith.constant 0 : i32
    %c0_i32_0 = arith.constant 0 : i32
    %c0_i32_1 = arith.constant 0 : i32
    return %c0_i32, %c0_i32_0 : i32, i32
  }
  func.func @transform_3(%arg0: i32) -> (i32, i32) {
    %c0_i32 = arith.constant 0 : i32
    %c0_i32_0 = arith.constant 0 : i32
    %c0_i32_1 = arith.constant 0 : i32
    return %c0_i32, %c0_i32_0 : i32, i32
  }
}

module attributes {stable_mosaic.version = 11 : i64} {
  func.func @_conv_relu_pool_fc_kernel(%arg0: i32, %arg1: memref<4x2x3456xbf16, #tpu.memory_space<vmem>>, %arg2: memref<3456x256xbf16, #tpu.memory_space<vmem>>, %arg3: memref<1x256xf32, #tpu.memory_space<vmem>>, %arg4: memref<256x10xf32, #tpu.memory_space<vmem>>, %arg5: memref<1x10xf32, #tpu.memory_space<vmem>>, %arg6: memref<2x10xf32, #tpu.memory_space<vmem>>) attributes {dimension_semantics = [#tpu.dimension_semantics<arbitrary>], iteration_bounds = array<i64: 1>, scalar_prefetch = 0 : i64, scratch_operands = 0 : i64, tpu.core_type = #tpu.core_type<tc>, window_params = [{pipeline_mode = #tpu.pipeline_mode<synchronous>, transform_indices = @transform_0, window_bounds = array<i64: 4, 2, 3456>}, {pipeline_mode = #tpu.pipeline_mode<synchronous>, transform_indices = @transform_1, window_bounds = array<i64: 3456, 256>}, {pipeline_mode = #tpu.pipeline_mode<synchronous>, transform_indices = @transform_2, window_bounds = array<i64: 1, 256>}, {pipeline_mode = #tpu.pipeline_mode<synchronous>, transform_indices = @transform_3, window_bounds = array<i64: 256, 10>}, {pipeline_mode = #tpu.pipeline_mode<synchronous>, transform_indices = @transform_4, window_bounds = array<i64: 1, 10>}, {pipeline_mode = #tpu.pipeline_mode<synchronous>, transform_indices = @transform_5, window_bounds = array<i64: 2, 10>}]} {
    %c0 = arith.constant 0 : index
    %c0_0 = arith.constant 0 : index
    %0 = vector.load %arg2[%c0, %c0_0] : memref<3456x256xbf16, #tpu.memory_space<vmem>>, vector<3456x256xbf16>
    %c0_1 = arith.constant 0 : index
    %c0_2 = arith.constant 0 : index
    %c0_3 = arith.constant 0 : index
    %1 = vector.load %arg1[%c0_1, %c0_2, %c0_3] : memref<4x2x3456xbf16, #tpu.memory_space<vmem>>, vector<1x2x3456xbf16>
    %2 = vector.shape_cast %1 : vector<1x2x3456xbf16> to vector<2x3456xbf16>
    %cst = arith.constant dense<0.000000e+00> : vector<2x256xf32>
    %3 = tpu.matmul %2, %0, %cst {dimension_numbers = #tpu.dot_dimension_numbers<[1], [0], [0], [1], [0, 0, 1, 1], [], []>} : vector<2x3456xbf16>, vector<3456x256xbf16>, vector<2x256xf32> -> vector<2x256xf32>
    %c1 = arith.constant 1 : index
    %c0_4 = arith.constant 0 : index
    %c0_5 = arith.constant 0 : index
    %4 = vector.load %arg1[%c1, %c0_4, %c0_5] : memref<4x2x3456xbf16, #tpu.memory_space<vmem>>, vector<1x2x3456xbf16>
    %5 = vector.shape_cast %4 : vector<1x2x3456xbf16> to vector<2x3456xbf16>
    %cst_6 = arith.constant dense<0.000000e+00> : vector<2x256xf32>
    %6 = tpu.matmul %5, %0, %cst_6 {dimension_numbers = #tpu.dot_dimension_numbers<[1], [0], [0], [1], [0, 0, 1, 1], [], []>} : vector<2x3456xbf16>, vector<3456x256xbf16>, vector<2x256xf32> -> vector<2x256xf32>
    %7 = arith.maximumf %3, %6 : vector<2x256xf32>
    %c2 = arith.constant 2 : index
    %c0_7 = arith.constant 0 : index
    %c0_8 = arith.constant 0 : index
    %8 = vector.load %arg1[%c2, %c0_7, %c0_8] : memref<4x2x3456xbf16, #tpu.memory_space<vmem>>, vector<1x2x3456xbf16>
    %9 = vector.shape_cast %8 : vector<1x2x3456xbf16> to vector<2x3456xbf16>
    %cst_9 = arith.constant dense<0.000000e+00> : vector<2x256xf32>
    %10 = tpu.matmul %9, %0, %cst_9 {dimension_numbers = #tpu.dot_dimension_numbers<[1], [0], [0], [1], [0, 0, 1, 1], [], []>} : vector<2x3456xbf16>, vector<3456x256xbf16>, vector<2x256xf32> -> vector<2x256xf32>
    %11 = arith.maximumf %7, %10 : vector<2x256xf32>
    %c3 = arith.constant 3 : index
    %c0_10 = arith.constant 0 : index
    %c0_11 = arith.constant 0 : index
    %12 = vector.load %arg1[%c3, %c0_10, %c0_11] : memref<4x2x3456xbf16, #tpu.memory_space<vmem>>, vector<1x2x3456xbf16>
    %13 = vector.shape_cast %12 : vector<1x2x3456xbf16> to vector<2x3456xbf16>
    %cst_12 = arith.constant dense<0.000000e+00> : vector<2x256xf32>
    %14 = tpu.matmul %13, %0, %cst_12 {dimension_numbers = #tpu.dot_dimension_numbers<[1], [0], [0], [1], [0, 0, 1, 1], [], []>} : vector<2x3456xbf16>, vector<3456x256xbf16>, vector<2x256xf32> -> vector<2x256xf32>
    %15 = arith.maximumf %11, %14 : vector<2x256xf32>
    %c0_13 = arith.constant 0 : index
    %c0_14 = arith.constant 0 : index
    %16 = vector.load %arg3[%c0_13, %c0_14] : memref<1x256xf32, #tpu.memory_space<vmem>>, vector<1x256xf32>
    %17 = vector.broadcast %16 : vector<1x256xf32> to vector<2x256xf32>
    %18 = arith.addf %15, %17 : vector<2x256xf32>
    %cst_15 = arith.constant 0.000000e+00 : f32
    %19 = vector.broadcast %cst_15 : f32 to vector<2x256xf32>
    %20 = arith.maximumf %18, %19 : vector<2x256xf32>
    %c0_16 = arith.constant 0 : index
    %c0_17 = arith.constant 0 : index
    %21 = vector.load %arg4[%c0_16, %c0_17] : memref<256x10xf32, #tpu.memory_space<vmem>>, vector<256x10xf32>
    %cst_18 = arith.constant dense<0.000000e+00> : vector<2x10xf32>
    %22 = tpu.matmul %20, %21, %cst_18 {dimension_numbers = #tpu.dot_dimension_numbers<[1], [0], [0], [1], [0, 0, 1, 1], [], []>} : vector<2x256xf32>, vector<256x10xf32>, vector<2x10xf32> -> vector<2x10xf32>
    %c0_19 = arith.constant 0 : index
    %c0_20 = arith.constant 0 : index
    %23 = vector.load %arg5[%c0_19, %c0_20] : memref<1x10xf32, #tpu.memory_space<vmem>>, vector<1x10xf32>
    %24 = vector.broadcast %23 : vector<1x10xf32> to vector<2x10xf32>
    %25 = arith.addf %22, %24 : vector<2x10xf32>
    %c0_21 = arith.constant 0 : index
    %c0_22 = arith.constant 0 : index
    %26 = vector.load %arg6[%c0_21, %c0_22] : memref<2x10xf32, #tpu.memory_space<vmem>>, vector<2x10xf32>
    tpu.vector_store %arg6[%c0_21, %c0_22], %25 {strides = array<i32>} : memref<2x10xf32, #tpu.memory_space<vmem>>, vector<2x10xf32>,
    return
  }
  func.func @transform_0(%arg0: i32) -> (i32, i32, i32) {
    %c0_i32 = arith.constant 0 : i32
    %c0_i32_0 = arith.constant 0 : i32
    %c0_i32_1 = arith.constant 0 : i32
    %c0_i32_2 = arith.constant 0 : i32
    return %c0_i32, %c0_i32_0, %c0_i32_1 : i32, i32, i32
  }
  func.func @transform_1(%arg0: i32) -> (i32, i32) {
    %c0_i32 = arith.constant 0 : i32
    %c0_i32_0 = arith.constant 0 : i32
    %c0_i32_1 = arith.constant 0 : i32
    return %c0_i32, %c0_i32_0 : i32, i32
  }
  func.func @transform_2(%arg0: i32) -> (i32, i32) {
    %c0_i32 = arith.constant 0 : i32
    %c0_i32_0 = arith.constant 0 : i32
    %c0_i32_1 = arith.constant 0 : i32
    return %c0_i32, %c0_i32_0 : i32, i32
  }
  func.func @transform_3(%arg0: i32) -> (i32, i32) {
    %c0_i32 = arith.constant 0 : i32
    %c0_i32_0 = arith.constant 0 : i32
    %c0_i32_1 = arith.constant 0 : i32
    return %c0_i32, %c0_i32_0 : i32, i32
  }
  func.func @transform_4(%arg0: i32) -> (i32, i32) {
    %c0_i32 = arith.constant 0 : i32
    %c0_i32_0 = arith.constant 0 : i32
    %c0_i32_1 = arith.constant 0 : i32
    return %c0_i32, %c0_i32_0 : i32, i32
  }
  func.func @transform_5(%arg0: i32) -> (i32, i32) {
    %c0_i32 = arith.constant 0 : i32
    %c0_i32_0 = arith.constant 0 : i32
    %c0_i32_1 = arith.constant 0 : i32
    return %c0_i32, %c0_i32_0 : i32, i32
  }
}

</mosaic_0001>

<llo_original>
// kernel: alexnet_forward.4
$region0: #{alexnet_forward.4}
  #allocation0 [shape = 'u32[]', space=smem, size = 0x4, offset = 0x4, fixed_abs, tag = 'smem constant byte address 0x4 - core index']
  #allocation1 [shape = 'u32[72,128]{1,0:T(1,128)}', space=vmem, size = 0x9000, scoped, tag = 'internal scratch']
  %s0 = inlined_call_operand.vmem [shape: bf16[4,32,363], index: 0, kind: input, shape index: {}]
  %s1 = inlined_call_operand.vmem [shape: bf16[363,64], index: 1, kind: input, shape index: {}]
  %s2 = inlined_call_operand.vmem [shape: f32[1,64], index: 2, kind: input, shape index: {}]
  %s3 = inlined_call_operand.vmem [shape: f32[32,64], index: 3, kind: output, shape index: {}]
  %s4 = sld [smem:[#allocation0]]
  $region71: #{alexnet_forward.4} parent=0
    _
  %s6 = ssub.s32 1, %s4
  %s7 = scalar_select 0, %s6, %s4
  $region1: #{alexnet_forward.4} parent=0
    #allocation2 [shape = 'u8[98304]{0}', space=vmem, size = 0x18000, scoped, tag = 'input window, operand 0']
    loop: start=0, step=1, limit=4
    $region2: #{alexnet_forward.4} parent=1 // loop_pre_header
      _
    $region3: #{alexnet_forward.4} parent=1 // loop_header
      %s9 = sphi 0, %s13
      %p10 = scmp.ge.s32.totalorder %s9, 4
      %s19 = sphi 0, %s21
      %s22 = sphi 0, %s19
      %s23 = sphi 0, %s22
      %s39 = sphi 0, %s23
      %s43 = sphi 0, %s43
      %s45 = sphi 0, %s43
      %s46 = sphi 0, %s45
      %s60 = sphi 0, %s46
      %s64 = sphi 0, %s64
      %s66 = sphi 0, %s64
      %s67 = sphi 0, %s66
      %s81 = sphi 0, %s67
      %s87 = sphi 0, %s89
      %s90 = sphi 0, %s87
      %s91 = sphi 0, %s90
      %s107 = sphi 0, %s91
    $region4: #{alexnet_forward.4} parent=1 // loop_header_branch
      %12 = sbr.rel (%p10) target = $region8
    $region5: #{alexnet_forward.4} parent=1 // loop_body
      %s14 = ssub.s32 %s9, 1
      %s15 = ssub.s32 %s9, 2
      %s16 = sadd.s32 %s9, 1
      %s17 = ssub.s32 %s9, %s16
      %p18 = scmp.eq.s32.totalorder %s17, 0
      %s20 = sadd.s32 %s19, 1
      %s21 = scalar_select %p18, %s19, %s20
      %p24 = pneg %p18
      %p25 = scmp.eq.s32.totalorder %s9, 1
      %p26 = por %p24, %p25
      %p27 = scmp.ne.s32.totalorder %s19, %s22
      %p28 = scmp.eq.s32.totalorder %s9, 0
      %p29 = por %p27, %p28
      %p30 = scmp.ne.s32.totalorder %s19, %s22
      %p31 = scmp.eq.s32.totalorder %s14, 1
      %p32 = por %p30, %p31
      %p33 = scmp.ne.s32.totalorder %s22, %s23
      %p34 = scmp.eq.s32.totalorder %s14, 0
      %p35 = por %p33, %p34
      %p36 = scmp.ne.s32.totalorder %s22, %s23
      %p37 = scmp.eq.s32.totalorder %s15, 1
      %p38 = por %p36, %p37
      %p40 = scmp.ne.s32.totalorder %s23, %s39
      %p41 = scmp.eq.s32.totalorder %s15, 0
      %p42 = por %p40, %p41
      %s44 = sadd.s32 %s43, 1
      %p47 = scmp.eq.s32.totalorder %s9, 1
      %p48 = scmp.ne.s32.totalorder %s43, %s45
      %p49 = scmp.eq.s32.totalorder %s9, 0
      %p50 = por %p48, %p49
      %p51 = scmp.ne.s32.totalorder %s43, %s45
      %p52 = scmp.eq.s32.totalorder %s14, 1
      %p53 = por %p51, %p52
      %p54 = scmp.ne.s32.totalorder %s45, %s46
      %p55 = scmp.eq.s32.totalorder %s14, 0
      %p56 = por %p54, %p55
      %p57 = scmp.ne.s32.totalorder %s45, %s46
      %p58 = scmp.eq.s32.totalorder %s15, 1
      %p59 = por %p57, %p58
      %p61 = scmp.ne.s32.totalorder %s46, %s60
      %p62 = scmp.eq.s32.totalorder %s15, 0
      %p63 = por %p61, %p62
      %s65 = sadd.s32 %s64, 1
      %p68 = scmp.eq.s32.totalorder %s9, 1
      %p69 = scmp.ne.s32.totalorder %s64, %s66
      %p70 = scmp.eq.s32.totalorder %s9, 0
      %p71 = por %p69, %p70
      %p72 = scmp.ne.s32.totalorder %s64, %s66
      %p73 = scmp.eq.s32.totalorder %s14, 1
      %p74 = por %p72, %p73
      %p75 = scmp.ne.s32.totalorder %s66, %s67
      %p76 = scmp.eq.s32.totalorder %s14, 0
      %p77 = por %p75, %p76
      %p78 = scmp.ne.s32.totalorder %s66, %s67
      %p79 = scmp.eq.s32.totalorder %s15, 1
      %p80 = por %p78, %p79
      %p82 = scmp.ne.s32.totalorder %s67, %s81
      %p83 = scmp.eq.s32.totalorder %s15, 0
      %p84 = por %p82, %p83
      %s85 = ssub.s32 %s9, %s16
      %p86 = scmp.eq.s32.totalorder %s85, 0
      %s88 = sadd.s32 %s87, 1
      %s89 = scalar_select %p86, %s87, %s88
      %p92 = pneg %p86
      %p93 = scmp.eq.s32.totalorder %s9, 1
      %p94 = por %p92, %p93
      %p95 = scmp.ne.s32.totalorder %s87, %s90
      %p96 = scmp.eq.s32.totalorder %s9, 0
      %p97 = por %p95, %p96
      %p98 = scmp.ne.s32.totalorder %s87, %s90
      %p99 = scmp.eq.s32.totalorder %s14, 1
      %p100 = por %p98, %p99
      %p101 = scmp.ne.s32.totalorder %s90, %s91
      %p102 = scmp.eq.s32.totalorder %s14, 0
      %p103 = por %p101, %p102
      %p104 = scmp.ne.s32.totalorder %s90, %s91
      %p105 = scmp.eq.s32.totalorder %s15, 1
      %p106 = por %p104, %p105
      %p108 = scmp.ne.s32.totalorder %s91, %s107
      %p109 = scmp.eq.s32.totalorder %s15, 0
      %p110 = por %p108, %p109
      %p111 = scmp.le.s32.totalorder 1, %s9
      %p112 = scmp.lt.s32.totalorder %s9, 3
      %p113 = pnand %p111, %p112
      %p114 = pneg %p113
      // Predicated region
      $region9: #{alexnet_forward.4} parent=5 // pred_check
        _
      $region10: #{alexnet_forward.4} parent=5 // pred_check_branch
        %116 = sbr.rel (%p113) target = $region12
      $region11: #{alexnet_forward.4} parent=5 // pred_region
        %s117 = ssub.s32 %s9, 1
        // Predicated region
        $region13: #{alexnet_forward.4} parent=11 // pred_check
          %p118 = pneg %p56
        $region14: #{alexnet_forward.4} parent=11 // pred_check_branch
          %120 = sbr.rel (%p118) target = $region16
        $region15: #{alexnet_forward.4} parent=11 // pred_region
          _
        $region16: #{alexnet_forward.4} parent=11 // pred_fallthru
          _
        // Predicated region
        $region17: #{alexnet_forward.4} parent=11 // pred_check
          %p121 = pneg %p77
        $region18: #{alexnet_forward.4} parent=11 // pred_check_branch
          %123 = sbr.rel (%p121) target = $region20
        $region19: #{alexnet_forward.4} parent=11 // pred_region
          _
        $region20: #{alexnet_forward.4} parent=11 // pred_fallthru
          _
      $region12: #{alexnet_forward.4} parent=5 // pred_fallthru
        _
      %p124 = scmp.lt.s32.totalorder %s9, 2
      // Predicated region
      $region21: #{alexnet_forward.4} parent=5 // pred_check
        %p125 = pneg %p124
      $region22: #{alexnet_forward.4} parent=5 // pred_check_branch
        %127 = sbr.rel (%p125) target = $region24
      $region23: #{alexnet_forward.4} parent=5 // pred_region
        // Predicated region
        $region25: #{alexnet_forward.4} parent=23 // pred_check
          %p128 = pneg %p29
        $region26: #{alexnet_forward.4} parent=23 // pred_check_branch
          %130 = sbr.rel (%p128) target = $region28
        $region27: #{alexnet_forward.4} parent=23 // pred_region
          %s131 = sand.u32 %s19, 1
          %s132 = sand.u32 %s19, 1
          %s133 = smul.addr %s132, 96
          %s134 = scalar_lea.vmem [#allocation2], %s133
          %s135 = smul.u32 2, %s9
          %s136 = smul.addr %s135, 3
          %s137 = smul.addr %s136, 4
          %s138 = scalar_lea.vmem %s0, %s137
          // Predicated region
          $region29: #{alexnet_forward.4} parent=27 // pred_check
            _
          $region30: #{alexnet_forward.4} parent=27 // pred_check_branch
            %140 = sbr.rel (0) target = $region32
          $region31: #{alexnet_forward.4} parent=27 // pred_region
            // Predicated region
            $region33: #{alexnet_forward.4} parent=31 // pred_check
              _
            $region34: #{alexnet_forward.4} parent=31 // pred_check_branch
              %142 = sbr.rel (0) target = $region36
            $region35: #{alexnet_forward.4} parent=31 // pred_region
              %s143 = scalar_lea.vmem %s138, 8
              %s144 = scalar_lea.vmem %s134, 8 [#allocation2]
              loop: start=0, step=1, limit=1
              $region37: #{alexnet_forward.4} parent=35 // loop_pre_header
                _
              $region38: #{alexnet_forward.4} parent=35 // loop_header
                %s146 = sphi 0, %s150
                %p147 = scmp.ge.s32.totalorder %s146, 1
                %s151 = sphi %s138, %s138
                %s152 = sphi %s134, %s134
              $region39: #{alexnet_forward.4} parent=35 // loop_header_branch
                %149 = sbr.rel (%p147) target = $region43
              $region40: #{alexnet_forward.4} parent=35 // loop_body
                %v153 = vld [vmem:[%s151] sm:$0xff]
                %154 = vst [vmem:[%s152] sm:$0xff] %v153
                %v155 = vld [vmem:[%s151 + $0xc] sm:$0xff]
                %156 = vst [vmem:[%s152 + $0xc] sm:$0xff] %v155
                %v157 = vld [vmem:[%s151 + $0x30] sm:$0xff]
                %158 = vst [vmem:[%s152 + $0x18] sm:$0xff] %v157
                %v159 = vld [vmem:[%s151 + $0x3c] sm:$0xff]
                %160 = vst [vmem:[%s152 + $0x24] sm:$0xff] %v159
                %v161 = vld [vmem:[%s151 + $0x60] sm:$0xff]
                %162 = vst [vmem:[%s152 + $0x30] sm:$0xff] %v161
                %v163 = vld [vmem:[%s151 + $0x6c] sm:$0xff]
                %164 = vst [vmem:[%s152 + $0x3c] sm:$0xff] %v163
                %v165 = vld [vmem:[%s151 + $0x90] sm:$0xff]
                %166 = vst [vmem:[%s152 + $0x48] sm:$0xff] %v165
                %v167 = vld [vmem:[%s151 + $0x9c] sm:$0xff]
                %168 = vst [vmem:[%s152 + $0x54] sm:$0xff] %v167
              $region41: #{alexnet_forward.4} parent=35 // loop_footer
                %s150 = sadd.s32 1, %s146
              $region42: #{alexnet_forward.4} parent=35 // loop_footer_branch
                %145 = sbr.rel target = $region38
              $region43: #{alexnet_forward.4} parent=35 // loop_exit
                _
              %s170 = ssub.s32 16, 1
              loop: start=0, step=1, limit=1
              $region44: #{alexnet_forward.4} parent=35 // loop_pre_header
                _
              $region45: #{alexnet_forward.4} parent=35 // loop_header
                %s172 = sphi 0, %s176
                %p173 = scmp.ge.s32.totalorder %s172, 1
                %s177 = sphi %s143, %s143
                %s178 = sphi %s144, %s144
              $region46: #{alexnet_forward.4} parent=35 // loop_header_branch
                %175 = sbr.rel (%p173) target = $region50
              $region47: #{alexnet_forward.4} parent=35 // loop_body
                %v179 = vld [vmem:[%s177] sm:%s170]
                %180 = vst [vmem:[%s178] sm:%s170] %v179
                %v181 = vld [vmem:[%s177 + $0xc] sm:%s170]
                %182 = vst [vmem:[%s178 + $0xc] sm:%s170] %v181
                %v183 = vld [vmem:[%s177 + $0x30] sm:%s170]
                %184 = vst [vmem:[%s178 + $0x18] sm:%s170] %v183
                %v185 = vld [vmem:[%s177 + $0x3c] sm:%s170]
                %186 = vst [vmem:[%s178 + $0x24] sm:%s170] %v185
                %v187 = vld [vmem:[%s177 + $0x60] sm:%s170]
                %188 = vst [vmem:[%s178 + $0x30] sm:%s170] %v187
                %v189 = vld [vmem:[%s177 + $0x6c] sm:%s170]
                %190 = vst [vmem:[%s178 + $0x3c] sm:%s170] %v189
                %v191 = vld [vmem:[%s177 + $0x90] sm:%s170]
                %192 = vst [vmem:[%s178 + $0x48] sm:%s170] %v191
                %v193 = vld [vmem:[%s177 + $0x9c] sm:%s170]
                %194 = vst [vmem:[%s178 + $0x54] sm:%s170] %v193
              $region48: #{alexnet_forward.4} parent=35 // loop_footer
                %s176 = sadd.s32 1, %s172
              $region49: #{alexnet_forward.4} parent=35 // loop_footer_branch
                %171 = sbr.rel target = $region45
              $region50: #{alexnet_forward.4} parent=35 // loop_exit
                _
            $region36: #{alexnet_forward.4} parent=31 // pred_fallthru
              _
          $region32: #{alexnet_forward.4} parent=27 // pred_fallthru
            _
          %195 = vnop
        $region28: #{alexnet_forward.4} parent=23 // pred_fallthru
          _
      $region24: #{alexnet_forward.4} parent=5 // pred_fallthru
        _
      %p196 = scmp.le.s32.totalorder 1, %s9
      %p197 = scmp.lt.s32.totalorder %s9, 3
      %p198 = pnand %p196, %p197
      %p199 = pneg %p198
      // Predicated region
      $region51: #{alexnet_forward.4} parent=5 // pred_check
        _
      $region52: #{alexnet_forward.4} parent=5 // pred_check_branch
        %201 = sbr.rel (%p198) target = $region54
      $region53: #{alexnet_forward.4} parent=5 // pred_region
        %s202 = ssub.s32 %s9, 1
        %s203 = sand.u32 %s22, 1
        %s204 = sand.u32 %s22, 1
        %s205 = smul.addr %s204, 96
        %s206 = scalar_lea.vmem [#allocation2], %s205
        // Predicated region
        $region55: #{alexnet_forward.4} parent=53 // pred_check
          %p207 = pneg %p35
        $region56: #{alexnet_forward.4} parent=53 // pred_check_branch
          %209 = sbr.rel (%p207) target = $region58
        $region57: #{alexnet_forward.4} parent=53 // pred_region
          _
        $region58: #{alexnet_forward.4} parent=53 // pred_fallthru
          _
        %s210 = sand.u32 %s22, 1
        %s211 = sand.u32 %s22, 1
        %s212 = smul.addr %s211, 96
        %s213 = scalar_lea.vmem [#allocation2], %s212
        %p214 = pneg %p35
        %p215 = pneg %p32
        %p216 = pneg %p56
        %p217 = pneg %p53
        %p218 = pneg %p77
        %p219 = pneg %p74
        %p220 = pneg %p103
        %p221 = pneg %p100
        %s222 = smul.u32 2, %s14
        %p223 = scmp.lt.s32.totalorder %s222, 3
        %s224 = scalar_select %p223, %s222, 3
        %s225 = smul.addr %s224, 8
        %s226 = scalar_lea.vmem %s3, %s225
        %s227 = smul.u32 2, %s14
        %s228 = smul.u32 2, %s14
        %p229 = scmp.lt.s32.totalorder %s228, 3
        %s230 = scalar_select %p229, %s228, 3
        %s231 = smul.addr %s230, 8
        %s232 = scalar_lea.vmem %s3, %s231
        %s233 = smul.u32 2, %s14
        %v235 = vld [vmem:[%s1] sm:$0xf]
        %v236 = vld [vmem:[%s1 + $0x4] sm:$0xf]
        %v237 = vld [vmem:[%s1 + $0x8] sm:$0xf]
        %v238 = vld [vmem:[%s1 + $0xc] sm:$0xf]
        %v239 = vld [vmem:[%s1 + $0x10] sm:$0xf]
        %v240 = vld [vmem:[%s1 + $0x14] sm:$0xf]
        %v241 = vld [vmem:[%s1 + $0x18] sm:$0xf]
        %v242 = vld [vmem:[%s1 + $0x1c] sm:$0xf]
        %v243 = vld [vmem:[%s1 + $0x20] sm:$0xf]
        %v244 = vld [vmem:[%s1 + $0x24] sm:$0xf]
        %v245 = vld [vmem:[%s1 + $0x28] sm:$0xf]
        %v246 = vld [vmem:[%s1 + $0x2c] sm:$0xf]
        %v247 = vld [vmem:[%s1 + $0x30] sm:$0xf]
        %v248 = vld [vmem:[%s1 + $0x34] sm:$0xf]
        %v249 = vld [vmem:[%s1 + $0x38] sm:$0xf]
        %v250 = vld [vmem:[%s1 + $0x3c] sm:$0xf]
        %v251 = vld [vmem:[%s1 + $0x40] sm:$0xf]
        %v252 = vld [vmem:[%s1 + $0x44] sm:$0xf]
        %v253 = vld [vmem:[%s1 + $0x48] sm:$0xf]
        %v254 = vld [vmem:[%s1 + $0x4c] sm:$0xf]
        %v255 = vld [vmem:[%s1 + $0x50] sm:$0xf]
        %v256 = vld [vmem:[%s1 + $0x54] sm:$0xf]
        %v257 = vld [vmem:[%s1 + $0x58] sm:$0xf]
        %v258 = vld [vmem:[%s1 + $0x5c] sm:$0xf]
        %v259 = vld [vmem:[%s1 + $0x60] sm:$0xf]
        %v260 = vld [vmem:[%s1 + $0x64] sm:$0xf]
        %v261 = vld [vmem:[%s1 + $0x68] sm:$0xf]
        %v262 = vld [vmem:[%s1 + $0x6c] sm:$0xf]
        %v263 = vld [vmem:[%s1 + $0x70] sm:$0xf]
        %v264 = vld [vmem:[%s1 + $0x74] sm:$0xf]
        %v265 = vld [vmem:[%s1 + $0x78] sm:$0xf]
        %v266 = vld [vmem:[%s1 + $0x7c] sm:$0xf]
        %v267 = vld [vmem:[%s1 + $0x80] sm:$0xf]
        %v268 = vld [vmem:[%s1 + $0x84] sm:$0xf]
        %v269 = vld [vmem:[%s1 + $0x88] sm:$0xf]
        %v270 = vld [vmem:[%s1 + $0x8c] sm:$0xf]
        %v271 = vld [vmem:[%s1 + $0x90] sm:$0xf]
        %v272 = vld [vmem:[%s1 + $0x94] sm:$0xf]
        %v273 = vld [vmem:[%s1 + $0x98] sm:$0xf]
        %v274 = vld [vmem:[%s1 + $0x9c] sm:$0xf]
        %v275 = vld [vmem:[%s1 + $0xa0] sm:$0xf]
        %v276 = vld [vmem:[%s1 + $0xa4] sm:$0xf]
        %v277 = vld [vmem:[%s1 + $0xa8] sm:$0xf]
        %v278 = vld [vmem:[%s1 + $0xac] sm:$0xf]
        %v279 = vld [vmem:[%s1 + $0xb0] sm:$0xf]
        %v280 = vld [vmem:[%s1 + $0xb4] sm:$0x3]
        %v281 = vld [vmem:[%s206] sm:$0xff]
        %v282 = vld [vmem:[%s206 + $0x8] sm:$0xf]
        %v283 = vld [vmem:[%s206 + $0xc] sm:$0xff]
        %v284 = vld [vmem:[%s206 + $0x14] sm:$0xf]
        %v289 = vunpack.c.l.b16 %v281
        %v290 = vunpack.c.h.b16 %v281
        %v291 = vunpack.c.l.b16 %v282
        %v292 = vunpack.c.l.b16 %v283
        %v293 = vunpack.c.h.b16 %v283
        %v294 = vunpack.c.l.b16 %v284
        %v295 = vpack.c.b16 %v292, %v289
        %v296 = vpack.c.b16 %v293, %v290
        %v297 = vpack.c.b16 %v294, %v291
        %v346 = vunpack.c.l.b16 %v235
        %v347 = vunpack.c.l.b16 %v236
        %v348 = vunpack.c.l.b16 %v237
        %v349 = vunpack.c.l.b16 %v238
        %v350 = vunpack.c.l.b16 %v239
        %v351 = vunpack.c.l.b16 %v240
        %v352 = vunpack.c.l.b16 %v241
        %v353 = vunpack.c.l.b16 %v242
        %v354 = vunpack.c.l.b16 %v243
        %v355 = vunpack.c.l.b16 %v244
        %v356 = vunpack.c.l.b16 %v245
        %v357 = vunpack.c.l.b16 %v246
        %v358 = vunpack.c.l.b16 %v247
        %v359 = vunpack.c.l.b16 %v248
        %v360 = vunpack.c.l.b16 %v249
        %v361 = vunpack.c.l.b16 %v250
        %v362 = vunpack.c.l.b16 %v251
        %v363 = vunpack.c.l.b16 %v252
        %v364 = vunpack.c.l.b16 %v253
        %v365 = vunpack.c.l.b16 %v254
        %v366 = vunpack.c.l.b16 %v255
        %v367 = vunpack.c.l.b16 %v256
        %v368 = vunpack.c.l.b16 %v257
        %v369 = vunpack.c.l.b16 %v258
        %v370 = vunpack.c.l.b16 %v259
        %v371 = vunpack.c.l.b16 %v260
        %v372 = vunpack.c.l.b16 %v261
        %v373 = vunpack.c.l.b16 %v262
        %v374 = vunpack.c.l.b16 %v263
        %v375 = vunpack.c.l.b16 %v264
        %v376 = vunpack.c.l.b16 %v265
        %v377 = vunpack.c.l.b16 %v266
        %v378 = vunpack.c.l.b16 %v267
        %v379 = vunpack.c.l.b16 %v268
        %v380 = vunpack.c.l.b16 %v269
        %v381 = vunpack.c.l.b16 %v270
        %v382 = vunpack.c.l.b16 %v271
        %v383 = vunpack.c.l.b16 %v272
        %v384 = vunpack.c.l.b16 %v273
        %v385 = vunpack.c.l.b16 %v274
        %v386 = vunpack.c.l.b16 %v275
        %v387 = vunpack.c.l.b16 %v276
        %v388 = vunpack.c.l.b16 %v277
        %v389 = vunpack.c.l.b16 %v278
        %v390 = vunpack.c.l.b16 %v279
        %v391 = vunpack.c.l.b16 %v280
        %v392 = vpack.c.b16 %v347, %v346
        %v393 = vpack.c.b16 %v349, %v348
        %v394 = vpack.c.b16 %v351, %v350
        %v395 = vpack.c.b16 %v353, %v352
        %v396 = vpack.c.b16 %v355, %v354
        %v397 = vpack.c.b16 %v357, %v356
        %v398 = vpack.c.b16 %v359, %v358
        %v399 = vpack.c.b16 %v361, %v360
        %v400 = vpack.c.b16 %v363, %v362
        %v401 = vpack.c.b16 %v365, %v364
        %v402 = vpack.c.b16 %v367, %v366
        %v403 = vpack.c.b16 %v369, %v368
        %v404 = vpack.c.b16 %v371, %v370
        %v405 = vpack.c.b16 %v373, %v372
        %v406 = vpack.c.b16 %v375, %v374
        %v407 = vpack.c.b16 %v377, %v376
        %v408 = vpack.c.b16 %v379, %v378
        %v409 = vpack.c.b16 %v381, %v380
        %v410 = vpack.c.b16 %v383, %v382
        %v411 = vpack.c.b16 %v385, %v384
        %v412 = vpack.c.b16 %v387, %v386
        %v413 = vpack.c.b16 %v389, %v388
        %v414 = vpack.c.b16 %v391, %v390
        %vm437 = vcmask 875520
        %v439 = vsel %vm437, %v297, 0
        %vm441 = vcmask 1044480
        %vm442 = vcmask 1045504
        %v443 = vsel %vm441, 4294967295, 65535
        %v444 = vsel %vm442, %v443, 0
        %v446 = vand.u32 %v414, %v444
        %448 = vmatpush.bf16.msra.mxu0 %v399
        %449 = vmatpush.bf16.msra.mxu0 %v398
        %450 = vmatpush.bf16.msra.mxu0 %v397
        %451 = vmatpush.bf16.msra.mxu0 %v396
        %452 = vmatpush.bf16.msra.mxu0 %v395
        %453 = vmatpush.bf16.msra.mxu0 %v394
        %454 = vmatpush.bf16.msra.mxu0 %v393
        %455 = vmatpush.bf16.msra.mxu0 %v392
        %456 = vmatmul.bf16.gmra.mxu0 %v295
        %v457 = vpop.f32.mrf.mxu0
        %v458 = vadd.f32 0.0, %v457
        %v459 = vpop.f32.mrf.mxu0
        %v460 = vadd.f32 0.0, %v459
        %461 = vdwg.mxu0
        %462 = vmatpush.bf16.msra.mxu0 %v407
        %463 = vmatpush.bf16.msra.mxu0 %v406
        %464 = vmatpush.bf16.msra.mxu0 %v405
        %465 = vmatpush.bf16.msra.mxu0 %v404
        %466 = vmatpush.bf16.msra.mxu0 %v403
        %467 = vmatpush.bf16.msra.mxu0 %v402
        %468 = vmatpush.bf16.msra.mxu0 %v401
        %469 = vmatpush.bf16.msra.mxu0 %v400
        %470 = vmatmul.bf16.gmra.mxu0 %v296
        %v471 = vpop.f32.mrf.mxu0
        %v472 = vadd.f32 %v458, %v471
        %v473 = vpop.f32.mrf.mxu0
        %v474 = vadd.f32 %v460, %v473
        %475 = vdwg.mxu0
        %476 = vmatpush.bf16.msra.mxu0 0
        %477 = vmatpush.bf16.msra.mxu0 %v446
        %478 = vmatpush.bf16.msra.mxu0 %v413
        %479 = vmatpush.bf16.msra.mxu0 %v412
        %480 = vmatpush.bf16.msra.mxu0 %v411
        %481 = vmatpush.bf16.msra.mxu0 %v410
        %482 = vmatpush.bf16.msra.mxu0 %v409
        %483 = vmatpush.bf16.msra.mxu0 %v408
        %484 = vmatmul.bf16.gmra.mxu0 %v439
        %v485 = vpop.f32.mrf.mxu0
        %v486 = vadd.f32 %v472, %v485
        %v487 = vpop.f32.mrf.mxu0
        %v488 = vadd.f32 %v474, %v487
        %489 = vdwg.mxu0
        %s490 = scalar_lea.vmem %s206, 24 [#allocation2]
        %v491 = vld [vmem:[%s490] sm:$0xff]
        %v492 = vld [vmem:[%s490 + $0x8] sm:$0xf]
        %v493 = vld [vmem:[%s490 + $0xc] sm:$0xff]
        %v494 = vld [vmem:[%s490 + $0x14] sm:$0xf]
        %v499 = vunpack.c.l.b16 %v491
        %v500 = vunpack.c.h.b16 %v491
        %v501 = vunpack.c.l.b16 %v492
        %v502 = vunpack.c.l.b16 %v493
        %v503 = vunpack.c.h.b16 %v493
        %v504 = vunpack.c.l.b16 %v494
        %v505 = vpack.c.b16 %v502, %v499
        %v506 = vpack.c.b16 %v503, %v500
        %v507 = vpack.c.b16 %v504, %v501
        %v511 = vsel %vm437, %v507, 0
        %513 = vmatpush.bf16.msra.mxu0 %v399
        %514 = vmatpush.bf16.msra.mxu0 %v398
        %515 = vmatpush.bf16.msra.mxu0 %v397
        %516 = vmatpush.bf16.msra.mxu0 %v396
        %517 = vmatpush.bf16.msra.mxu0 %v395
        %518 = vmatpush.bf16.msra.mxu0 %v394
        %519 = vmatpush.bf16.msra.mxu0 %v393
        %520 = vmatpush.bf16.msra.mxu0 %v392
        %521 = vmatmul.bf16.gmra.mxu0 %v505
        %v522 = vpop.f32.mrf.mxu0
        %v523 = vadd.f32 0.0, %v522
        %v524 = vpop.f32.mrf.mxu0
        %v525 = vadd.f32 0.0, %v524
        %526 = vdwg.mxu0
        %527 = vmatpush.bf16.msra.mxu0 %v407
        %528 = vmatpush.bf16.msra.mxu0 %v406
        %529 = vmatpush.bf16.msra.mxu0 %v405
        %530 = vmatpush.bf16.msra.mxu0 %v404
        %531 = vmatpush.bf16.msra.mxu0 %v403
        %532 = vmatpush.bf16.msra.mxu0 %v402
        %533 = vmatpush.bf16.msra.mxu0 %v401
        %534 = vmatpush.bf16.msra.mxu0 %v400
        %535 = vmatmul.bf16.gmra.mxu0 %v506
        %v536 = vpop.f32.mrf.mxu0
        %v537 = vadd.f32 %v523, %v536
        %v538 = vpop.f32.mrf.mxu0
        %v539 = vadd.f32 %v525, %v538
        %540 = vdwg.mxu0
        %541 = vmatpush.bf16.msra.mxu0 0
        %542 = vmatpush.bf16.msra.mxu0 %v446
        %543 = vmatpush.bf16.msra.mxu0 %v413
        %544 = vmatpush.bf16.msra.mxu0 %v412
        %545 = vmatpush.bf16.msra.mxu0 %v411
        %546 = vmatpush.bf16.msra.mxu0 %v410
        %547 = vmatpush.bf16.msra.mxu0 %v409
        %548 = vmatpush.bf16.msra.mxu0 %v408
        %549 = vmatmul.bf16.gmra.mxu0 %v511
        %v550 = vpop.f32.mrf.mxu0
        %v551 = vadd.f32 %v537, %v550
        %v552 = vpop.f32.mrf.mxu0
        %v553 = vadd.f32 %v539, %v552
        %554 = vdwg.mxu0
        %v555 = vmax.f32 %v486, %v551
        %v556 = vmax.f32 %v488, %v553
        %s557 = scalar_lea.vmem %s206, 48 [#allocation2]
        %v558 = vld [vmem:[%s557] sm:$0xff]
        %v559 = vld [vmem:[%s557 + $0x8] sm:$0xf]
        %v560 = vld [vmem:[%s557 + $0xc] sm:$0xff]
        %v561 = vld [vmem:[%s557 + $0x14] sm:$0xf]
        %v566 = vunpack.c.l.b16 %v558
        %v567 = vunpack.c.h.b16 %v558
        %v568 = vunpack.c.l.b16 %v559
        %v569 = vunpack.c.l.b16 %v560
        %v570 = vunpack.c.h.b16 %v560
        %v571 = vunpack.c.l.b16 %v561
        %v572 = vpack.c.b16 %v569, %v566
        %v573 = vpack.c.b16 %v570, %v567
        %v574 = vpack.c.b16 %v571, %v568
        %v578 = vsel %vm437, %v574, 0
        %580 = vmatpush.bf16.msra.mxu0 %v399
        %581 = vmatpush.bf16.msra.mxu0 %v398
        %582 = vmatpush.bf16.msra.mxu0 %v397
        %583 = vmatpush.bf16.msra.mxu0 %v396
        %584 = vmatpush.bf16.msra.mxu0 %v395
        %585 = vmatpush.bf16.msra.mxu0 %v394
        %586 = vmatpush.bf16.msra.mxu0 %v393
        %587 = vmatpush.bf16.msra.mxu0 %v392
        %588 = vmatmul.bf16.gmra.mxu0 %v572
        %v589 = vpop.f32.mrf.mxu0
        %v590 = vadd.f32 0.0, %v589
        %v591 = vpop.f32.mrf.mxu0
        %v592 = vadd.f32 0.0, %v591
        %593 = vdwg.mxu0
        %594 = vmatpush.bf16.msra.mxu0 %v407
        %595 = vmatpush.bf16.msra.mxu0 %v406
        %596 = vmatpush.bf16.msra.mxu0 %v405
        %597 = vmatpush.bf16.msra.mxu0 %v404
        %598 = vmatpush.bf16.msra.mxu0 %v403
        %599 = vmatpush.bf16.msra.mxu0 %v402
        %600 = vmatpush.bf16.msra.mxu0 %v401
        %601 = vmatpush.bf16.msra.mxu0 %v400
        %602 = vmatmul.bf16.gmra.mxu0 %v573
        %v603 = vpop.f32.mrf.mxu0
        %v604 = vadd.f32 %v590, %v603
        %v605 = vpop.f32.mrf.mxu0
        %v606 = vadd.f32 %v592, %v605
        %607 = vdwg.mxu0
        %608 = vmatpush.bf16.msra.mxu0 0
        %609 = vmatpush.bf16.msra.mxu0 %v446
        %610 = vmatpush.bf16.msra.mxu0 %v413
        %611 = vmatpush.bf16.msra.mxu0 %v412
        %612 = vmatpush.bf16.msra.mxu0 %v411
        %613 = vmatpush.bf16.msra.mxu0 %v410
        %614 = vmatpush.bf16.msra.mxu0 %v409
        %615 = vmatpush.bf16.msra.mxu0 %v408
        %616 = vmatmul.bf16.gmra.mxu0 %v578
        %v617 = vpop.f32.mrf.mxu0
        %v618 = vadd.f32 %v604, %v617
        %v619 = vpop.f32.mrf.mxu0
        %v620 = vadd.f32 %v606, %v619
        %621 = vdwg.mxu0
        %v622 = vmax.f32 %v555, %v618
        %v623 = vmax.f32 %v556, %v620
        %s624 = scalar_lea.vmem %s206, 72 [#allocation2]
        %v625 = vld [vmem:[%s624] sm:$0xff]
        %v626 = vld [vmem:[%s624 + $0x8] sm:$0xf]
        %v627 = vld [vmem:[%s624 + $0xc] sm:$0xff]
        %v628 = vld [vmem:[%s624 + $0x14] sm:$0xf]
        %v633 = vunpack.c.l.b16 %v625
        %v634 = vunpack.c.h.b16 %v625
        %v635 = vunpack.c.l.b16 %v626
        %v636 = vunpack.c.l.b16 %v627
        %v637 = vunpack.c.h.b16 %v627
        %v638 = vunpack.c.l.b16 %v628
        %v639 = vpack.c.b16 %v636, %v633
        %v640 = vpack.c.b16 %v637, %v634
        %v641 = vpack.c.b16 %v638, %v635
        %v645 = vsel %vm437, %v641, 0
        %647 = vmatpush.bf16.msra.mxu0 %v399
        %648 = vmatpush.bf16.msra.mxu0 %v398
        %649 = vmatpush.bf16.msra.mxu0 %v397
        %650 = vmatpush.bf16.msra.mxu0 %v396
        %651 = vmatpush.bf16.msra.mxu0 %v395
        %652 = vmatpush.bf16.msra.mxu0 %v394
        %653 = vmatpush.bf16.msra.mxu0 %v393
        %654 = vmatpush.bf16.msra.mxu0 %v392
        %655 = vmatmul.bf16.gmra.mxu0 %v639
        %v656 = vpop.f32.mrf.mxu0
        %v657 = vadd.f32 0.0, %v656
        %v658 = vpop.f32.mrf.mxu0
        %v659 = vadd.f32 0.0, %v658
        %660 = vdwg.mxu0
        %661 = vmatpush.bf16.msra.mxu0 %v407
        %662 = vmatpush.bf16.msra.mxu0 %v406
        %663 = vmatpush.bf16.msra.mxu0 %v405
        %664 = vmatpush.bf16.msra.mxu0 %v404
        %665 = vmatpush.bf16.msra.mxu0 %v403
        %666 = vmatpush.bf16.msra.mxu0 %v402
        %667 = vmatpush.bf16.msra.mxu0 %v401
        %668 = vmatpush.bf16.msra.mxu0 %v400
        %669 = vmatmul.bf16.gmra.mxu0 %v640
        %v670 = vpop.f32.mrf.mxu0
        %v671 = vadd.f32 %v657, %v670
        %v672 = vpop.f32.mrf.mxu0
        %v673 = vadd.f32 %v659, %v672
        %674 = vdwg.mxu0
        %675 = vmatpush.bf16.msra.mxu0 0
        %676 = vmatpush.bf16.msra.mxu0 %v446
        %677 = vmatpush.bf16.msra.mxu0 %v413
        %678 = vmatpush.bf16.msra.mxu0 %v412
        %679 = vmatpush.bf16.msra.mxu0 %v411
        %680 = vmatpush.bf16.msra.mxu0 %v410
        %681 = vmatpush.bf16.msra.mxu0 %v409
        %682 = vmatpush.bf16.msra.mxu0 %v408
        %683 = vmatmul.bf16.gmra.mxu0 %v645
        %v684 = vpop.f32.mrf.mxu0
        %v685 = vadd.f32 %v671, %v684
        %v686 = vpop.f32.mrf.mxu0
        %v687 = vadd.f32 %v673, %v686
        %688 = vdwg.mxu0
        %v689 = vmax.f32 %v622, %v685
        %v690 = vmax.f32 %v623, %v687
        %v691 = vld [vmem:[%s2] sm:$0x1]
        %v693 = vperm.slane %v691, 0
        %v695 = vadd.f32 %v689, %v693
        %v696 = vadd.f32 %v690, %v693
        %v697 = vmax.f32 %v695, 0.0
        %v698 = vmax.f32 %v696, 0.0
        %vm699 = vcmask 523264
        %700 = vst.msk [vmem:[%s232] sm:$0xff] %vm699, %v697
        %701 = vst.msk [vmem:[%s232 + $0x8] sm:$0xff] %vm699, %v698
        %s702 = smul.u32 2, %s14
        %p703 = scmp.lt.s32.totalorder %s702, 3
        %s704 = scalar_select %p703, %s702, 3
        %s705 = smul.addr %s704, 8
        %s706 = scalar_lea.vmem %s3, %s705
        // Predicated region
        $region59: #{alexnet_forward.4} parent=53 // pred_check
          %p707 = pneg %p100
        $region60: #{alexnet_forward.4} parent=53 // pred_check_branch
          %709 = sbr.rel (%p707) target = $region62
        $region61: #{alexnet_forward.4} parent=53 // pred_region
          %s710 = smul.u32 2, %s14
        $region62: #{alexnet_forward.4} parent=53 // pred_fallthru
          _
      $region54: #{alexnet_forward.4} parent=5 // pred_fallthru
        _
      %p711 = scmp.le.s32.totalorder 2, %s9
      // Predicated region
      $region63: #{alexnet_forward.4} parent=5 // pred_check
        %p712 = pneg %p711
      $region64: #{alexnet_forward.4} parent=5 // pred_check_branch
        %714 = sbr.rel (%p712) target = $region66
      $region65: #{alexnet_forward.4} parent=5 // pred_region
        %s715 = ssub.s32 %s9, 2
        // Predicated region
        $region67: #{alexnet_forward.4} parent=65 // pred_check
          %p716 = pneg %p106
        $region68: #{alexnet_forward.4} parent=65 // pred_check_branch
          %718 = sbr.rel (%p716) target = $region70
        $region69: #{alexnet_forward.4} parent=65 // pred_region
          %s719 = smul.u32 2, %s15
          %p720 = scmp.lt.s32.totalorder %s719, 3
          %s721 = scalar_select %p720, %s719, 3
          %s722 = smul.addr %s721, 8
          %s723 = scalar_lea.vmem %s3, %s722
        $region70: #{alexnet_forward.4} parent=65 // pred_fallthru
          _
      $region66: #{alexnet_forward.4} parent=5 // pred_fallthru
        _
    $region6: #{alexnet_forward.4} parent=1 // loop_footer
      %s13 = sadd.s32 1, %s9
    $region7: #{alexnet_forward.4} parent=1 // loop_footer_branch
      %8 = sbr.rel target = $region3
    $region8: #{alexnet_forward.4} parent=1 // loop_exit
      _

// kernel: alexnet_forward.5
$region0: #{alexnet_forward.5}
  #allocation0 [shape = 'u32[]', space=smem, size = 0x4, offset = 0x4, fixed_abs, tag = 'smem constant byte address 0x4 - core index']
  #allocation1 [shape = 'u32[72,128]{1,0:T(1,128)}', space=vmem, size = 0x9000, scoped, tag = 'internal scratch']
  %s0 = inlined_call_operand.vmem [shape: bf16[4,8,1600], index: 0, kind: input, shape index: {}]
  %s1 = inlined_call_operand.vmem [shape: bf16[1600,192], index: 1, kind: input, shape index: {}]
  %s2 = inlined_call_operand.vmem [shape: f32[1,192], index: 2, kind: input, shape index: {}]
  %s3 = inlined_call_operand.vmem [shape: f32[8,192], index: 3, kind: output, shape index: {}]
  %s4 = sld [smem:[#allocation0]]
  $region22: #{alexnet_forward.5} parent=0
    _
  %s6 = ssub.s32 1, %s4
  %s7 = scalar_select 0, %s6, %s4
  // Predicated region
  $region2: #{alexnet_forward.5} parent=0 // pred_check
    _
  $region3: #{alexnet_forward.5} parent=0 // pred_check_branch
    %9 = sbr.rel (0) target = $region5
  $region4: #{alexnet_forward.5} parent=0 // pred_region
    _
  $region5: #{alexnet_forward.5} parent=0 // pred_fallthru
    _
  // Predicated region
  $region6: #{alexnet_forward.5} parent=0 // pred_check
    _
  $region7: #{alexnet_forward.5} parent=0 // pred_check_branch
    %11 = sbr.rel (0) target = $region9
  $region8: #{alexnet_forward.5} parent=0 // pred_region
    _
  $region9: #{alexnet_forward.5} parent=0 // pred_fallthru
    _
  // Predicated region
  $region10: #{alexnet_forward.5} parent=0 // pred_check
    _
  $region11: #{alexnet_forward.5} parent=0 // pred_check_branch
    %13 = sbr.rel (0) target = $region13
  $region12: #{alexnet_forward.5} parent=0 // pred_region
    _
  $region13: #{alexnet_forward.5} parent=0 // pred_fallthru
    _
  %v15 = vld [vmem:[%s1] sm:$0xff]
  %v16 = vld [vmem:[%s1 + $0x8] sm:$0xff]
  %v17 = vld [vmem:[%s1 + $0x10] sm:$0xff]
  %v18 = vld [vmem:[%s1 + $0x18] sm:$0xff]
  %v19 = vld [vmem:[%s1 + $0x20] sm:$0xff]
  %v20 = vld [vmem:[%s1 + $0x28] sm:$0xff]
  %v21 = vld [vmem:[%s1 + $0x30] sm:$0xff]
  %v22 = vld [vmem:[%s1 + $0x38] sm:$0xff]
  %v23 = vld [vmem:[%s1 + $0x40] sm:$0xff]
  %v24 = vld [vmem:[%s1 + $0x48] sm:$0xff]
  %v25 = vld [vmem:[%s1 + $0x50] sm:$0xff]
  %v26 = vld [vmem:[%s1 + $0x58] sm:$0xff]
  %v27 = vld [vmem:[%s1 + $0x60] sm:$0xff]
  %v28 = vld [vmem:[%s1 + $0x68] sm:$0xff]
  %v29 = vld [vmem:[%s1 + $0x70] sm:$0xff]
  %v30 = vld [vmem:[%s1 + $0x78] sm:$0xff]
  %v31 = vld [vmem:[%s1 + $0x80] sm:$0xff]
  %v32 = vld [vmem:[%s1 + $0x88] sm:$0xff]
  %v33 = vld [vmem:[%s1 + $0x90] sm:$0xff]
  %v34 = vld [vmem:[%s1 + $0x98] sm:$0xff]
  %v35 = vld [vmem:[%s1 + $0xa0] sm:$0xff]
  %v36 = vld [vmem:[%s1 + $0xa8] sm:$0xff]
  %v37 = vld [vmem:[%s1 + $0xb0] sm:$0xff]
  %v38 = vld [vmem:[%s1 + $0xb8] sm:$0xff]
  %v39 = vld [vmem:[%s1 + $0xc0] sm:$0xff]
  %v40 = vld [vmem:[%s1 + $0xc8] sm:$0xff]
  %v41 = vld [vmem:[%s1 + $0xd0] sm:$0xff]
  %v42 = vld [vmem:[%s1 + $0xd8] sm:$0xff]
  %v43 = vld [vmem:[%s1 + $0xe0] sm:$0xff]
  %v44 = vld [vmem:[%s1 + $0xe8] sm:$0xff]
  %v45 = vld [vmem:[%s1 + $0xf0] sm:$0xff]
  %v46 = vld [vmem:[%s1 + $0xf8] sm:$0xff]
  %v47 = vld [vmem:[%s1 + $0x100] sm:$0xff]
  %v48 = vld [vmem:[%s1 + $0x108] sm:$0xff]
  %v49 = vld [vmem:[%s1 + $0x110] sm:$0xff]
  %v50 = vld [vmem:[%s1 + $0x118] sm:$0xff]
  %v51 = vld [vmem:[%s1 + $0x120] sm:$0xff]
  %v52 = vld [vmem:[%s1 + $0x128] sm:$0xff]
  %v53 = vld [vmem:[%s1 + $0x130] sm:$0xff]
  %v54 = vld [vmem:[%s1 + $0x138] sm:$0xff]
  %v55 = vld [vmem:[%s1 + $0x140] sm:$0xff]
  %v56 = vld [vmem:[%s1 + $0x148] sm:$0xff]
  %v57 = vld [vmem:[%s1 + $0x150] sm:$0xff]
  %v58 = vld [vmem:[%s1 + $0x158] sm:$0xff]
  %v59 = vld [vmem:[%s1 + $0x160] sm:$0xff]
  %v60 = vld [vmem:[%s1 + $0x168] sm:$0xff]
  %v61 = vld [vmem:[%s1 + $0x170] sm:$0xff]
  %v62 = vld [vmem:[%s1 + $0x178] sm:$0xff]
  %v63 = vld [vmem:[%s1 + $0x180] sm:$0xff]
  %v64 = vld [vmem:[%s1 + $0x188] sm:$0xff]
  %v65 = vld [vmem:[%s1 + $0x190] sm:$0xff]
  %v66 = vld [vmem:[%s1 + $0x198] sm:$0xff]
  %v67 = vld [vmem:[%s1 + $0x1a0] sm:$0xff]
  %v68 = vld [vmem:[%s1 + $0x1a8] sm:$0xff]
  %v69 = vld [vmem:[%s1 + $0x1b0] sm:$0xff]
  %v70 = vld [vmem:[%s1 + $0x1b8] sm:$0xff]
  %v71 = vld [vmem:[%s1 + $0x1c0] sm:$0xff]
  %v72 = vld [vmem:[%s1 + $0x1c8] sm:$0xff]
  %v73 = vld [vmem:[%s1 + $0x1d0] sm:$0xff]
  %v74 = vld [vmem:[%s1 + $0x1d8] sm:$0xff]
  %v75 = vld [vmem:[%s1 + $0x1e0] sm:$0xff]
  %v76 = vld [vmem:[%s1 + $0x1e8] sm:$0xff]
  %v77 = vld [vmem:[%s1 + $0x1f0] sm:$0xff]
  %v78 = vld [vmem:[%s1 + $0x1f8] sm:$0xff]
  %v79 = vld [vmem:[%s1 + $0x200] sm:$0xff]
  %v80 = vld [vmem:[%s1 + $0x208] sm:$0xff]
  %v81 = vld [vmem:[%s1 + $0x210] sm:$0xff]
  %v82 = vld [vmem:[%s1 + $0x218] sm:$0xff]
  %v83 = vld [vmem:[%s1 + $0x220] sm:$0xff]
  %v84 = vld [vmem:[%s1 + $0x228] sm:$0xff]
  %v85 = vld [vmem:[%s1 + $0x230] sm:$0xff]
  %v86 = vld [vmem:[%s1 + $0x238] sm:$0xff]
  %v87 = vld [vmem:[%s1 + $0x240] sm:$0xff]
  %v88 = vld [vmem:[%s1 + $0x248] sm:$0xff]
  %v89 = vld [vmem:[%s1 + $0x250] sm:$0xff]
  %v90 = vld [vmem:[%s1 + $0x258] sm:$0xff]
  %v91 = vld [vmem:[%s1 + $0x260] sm:$0xff]
  %v92 = vld [vmem:[%s1 + $0x268] sm:$0xff]
  %v93 = vld [vmem:[%s1 + $0x270] sm:$0xff]
  %v94 = vld [vmem:[%s1 + $0x278] sm:$0xff]
  %v95 = vld [vmem:[%s1 + $0x280] sm:$0xff]
  %v96 = vld [vmem:[%s1 + $0x288] sm:$0xff]
  %v97 = vld [vmem:[%s1 + $0x290] sm:$0xff]
  %v98 = vld [vmem:[%s1 + $0x298] sm:$0xff]
  %v99 = vld [vmem:[%s1 + $0x2a0] sm:$0xff]
  %v100 = vld [vmem:[%s1 + $0x2a8] sm:$0xff]
  %v101 = vld [vmem:[%s1 + $0x2b0] sm:$0xff]
  %v102 = vld [vmem:[%s1 + $0x2b8] sm:$0xff]
  %v103 = vld [vmem:[%s1 + $0x2c0] sm:$0xff]
  %v104 = vld [vmem:[%s1 + $0x2c8] sm:$0xff]
  %v105 = vld [vmem:[%s1 + $0x2d0] sm:$0xff]
  %v106 = vld [vmem:[%s1 + $0x2d8] sm:$0xff]
  %v107 = vld [vmem:[%s1 + $0x2e0] sm:$0xff]
  %v108 = vld [vmem:[%s1 + $0x2e8] sm:$0xff]
  %v109 = vld [vmem:[%s1 + $0x2f0] sm:$0xff]
  %v110 = vld [vmem:[%s1 + $0x2f8] sm:$0xff]
  %v111 = vld [vmem:[%s1 + $0x300] sm:$0xff]
  %v112 = vld [vmem:[%s1 + $0x308] sm:$0xff]
  %v113 = vld [vmem:[%s1 + $0x310] sm:$0xff]
  %v114 = vld [vmem:[%s1 + $0x318] sm:$0xff]
  %v115 = vld [vmem:[%s1 + $0x320] sm:$0xff]
  %v116 = vld [vmem:[%s1 + $0x328] sm:$0xff]
  %v117 = vld [vmem:[%s1 + $0x330] sm:$0xff]
  %v118 = vld [vmem:[%s1 + $0x338] sm:$0xff]
  %v119 = vld [vmem:[%s1 + $0x340] sm:$0xff]
  %v120 = vld [vmem:[%s1 + $0x348] sm:$0xff]
  %v121 = vld [vmem:[%s1 + $0x350] sm:$0xff]
  %v122 = vld [vmem:[%s1 + $0x358] sm:$0xff]
  %v123 = vld [vmem:[%s1 + $0x360] sm:$0xff]
  %v124 = vld [vmem:[%s1 + $0x368] sm:$0xff]
  %v125 = vld [vmem:[%s1 + $0x370] sm:$0xff]
  %v126 = vld [vmem:[%s1 + $0x378] sm:$0xff]
  %v127 = vld [vmem:[%s1 + $0x380] sm:$0xff]
  %v128 = vld [vmem:[%s1 + $0x388] sm:$0xff]
  %v129 = vld [vmem:[%s1 + $0x390] sm:$0xff]
  %v130 = vld [vmem:[%s1 + $0x398] sm:$0xff]
  %v131 = vld [vmem:[%s1 + $0x3a0] sm:$0xff]
  %v132 = vld [vmem:[%s1 + $0x3a8] sm:$0xff]
  %v133 = vld [vmem:[%s1 + $0x3b0] sm:$0xff]
  %v134 = vld [vmem:[%s1 + $0x3b8] sm:$0xff]
  %v135 = vld [vmem:[%s1 + $0x3c0] sm:$0xff]
  %v136 = vld [vmem:[%s1 + $0x3c8] sm:$0xff]
  %v137 = vld [vmem:[%s1 + $0x3d0] sm:$0xff]
  %v138 = vld [vmem:[%s1 + $0x3d8] sm:$0xff]
  %v139 = vld [vmem:[%s1 + $0x3e0] sm:$0xff]
  %v140 = vld [vmem:[%s1 + $0x3e8] sm:$0xff]
  %v141 = vld [vmem:[%s1 + $0x3f0] sm:$0xff]
  %v142 = vld [vmem:[%s1 + $0x3f8] sm:$0xff]
  %v143 = vld [vmem:[%s1 + $0x400] sm:$0xff]
  %v144 = vld [vmem:[%s1 + $0x408] sm:$0xff]
  %v145 = vld [vmem:[%s1 + $0x410] sm:$0xff]
  %v146 = vld [vmem:[%s1 + $0x418] sm:$0xff]
  %v147 = vld [vmem:[%s1 + $0x420] sm:$0xff]
  %v148 = vld [vmem:[%s1 + $0x428] sm:$0xff]
  %v149 = vld [vmem:[%s1 + $0x430] sm:$0xff]
  %v150 = vld [vmem:[%s1 + $0x438] sm:$0xff]
  %v151 = vld [vmem:[%s1 + $0x440] sm:$0xff]
  %v152 = vld [vmem:[%s1 + $0x448] sm:$0xff]
  %v153 = vld [vmem:[%s1 + $0x450] sm:$0xff]
  %v154 = vld [vmem:[%s1 + $0x458] sm:$0xff]
  %v155 = vld [vmem:[%s1 + $0x460] sm:$0xff]
  %v156 = vld [vmem:[%s1 + $0x468] sm:$0xff]
  %v157 = vld [vmem:[%s1 + $0x470] sm:$0xff]
  %v158 = vld [vmem:[%s1 + $0x478] sm:$0xff]
  %v159 = vld [vmem:[%s1 + $0x480] sm:$0xff]
  %v160 = vld [vmem:[%s1 + $0x488] sm:$0xff]
  %v161 = vld [vmem:[%s1 + $0x490] sm:$0xff]
  %v162 = vld [vmem:[%s1 + $0x498] sm:$0xff]
  %v163 = vld [vmem:[%s1 + $0x4a0] sm:$0xff]
  %v164 = vld [vmem:[%s1 + $0x4a8] sm:$0xff]
  %v165 = vld [vmem:[%s1 + $0x4b0] sm:$0xff]
  %v166 = vld [vmem:[%s1 + $0x4b8] sm:$0xff]
  %v167 = vld [vmem:[%s1 + $0x4c0] sm:$0xff]
  %v168 = vld [vmem:[%s1 + $0x4c8] sm:$0xff]
  %v169 = vld [vmem:[%s1 + $0x4d0] sm:$0xff]
  %v170 = vld [vmem:[%s1 + $0x4d8] sm:$0xff]
  %v171 = vld [vmem:[%s1 + $0x4e0] sm:$0xff]
  %v172 = vld [vmem:[%s1 + $0x4e8] sm:$0xff]
  %v173 = vld [vmem:[%s1 + $0x4f0] sm:$0xff]
  %v174 = vld [vmem:[%s1 + $0x4f8] sm:$0xff]
  %v175 = vld [vmem:[%s1 + $0x500] sm:$0xff]
  %v176 = vld [vmem:[%s1 + $0x508] sm:$0xff]
  %v177 = vld [vmem:[%s1 + $0x510] sm:$0xff]
  %v178 = vld [vmem:[%s1 + $0x518] sm:$0xff]
  %v179 = vld [vmem:[%s1 + $0x520] sm:$0xff]
  %v180 = vld [vmem:[%s1 + $0x528] sm:$0xff]
  %v181 = vld [vmem:[%s1 + $0x530] sm:$0xff]
  %v182 = vld [vmem:[%s1 + $0x538] sm:$0xff]
  %v183 = vld [vmem:[%s1 + $0x540] sm:$0xff]
  %v184 = vld [vmem:[%s1 + $0x548] sm:$0xff]
  %v185 = vld [vmem:[%s1 + $0x550] sm:$0xff]
  %v186 = vld [vmem:[%s1 + $0x558] sm:$0xff]
  %v187 = vld [vmem:[%s1 + $0x560] sm:$0xff]
  %v188 = vld [vmem:[%s1 + $0x568] sm:$0xff]
  %v189 = vld [vmem:[%s1 + $0x570] sm:$0xff]
  %v190 = vld [vmem:[%s1 + $0x578] sm:$0xff]
  %v191 = vld [vmem:[%s1 + $0x580] sm:$0xff]
  %v192 = vld [vmem:[%s1 + $0x588] sm:$0xff]
  %v193 = vld [vmem:[%s1 + $0x590] sm:$0xff]
  %v194 = vld [vmem:[%s1 + $0x598] sm:$0xff]
  %v195 = vld [vmem:[%s1 + $0x5a0] sm:$0xff]
  %v196 = vld [vmem:[%s1 + $0x5a8] sm:$0xff]
  %v197 = vld [vmem:[%s1 + $0x5b0] sm:$0xff]
  %v198 = vld [vmem:[%s1 + $0x5b8] sm:$0xff]
  %v199 = vld [vmem:[%s1 + $0x5c0] sm:$0xff]
  %v200 = vld [vmem:[%s1 + $0x5c8] sm:$0xff]
  %v201 = vld [vmem:[%s1 + $0x5d0] sm:$0xff]
  %v202 = vld [vmem:[%s1 + $0x5d8] sm:$0xff]
  %v203 = vld [vmem:[%s1 + $0x5e0] sm:$0xff]
  %v204 = vld [vmem:[%s1 + $0x5e8] sm:$0xff]
  %v205 = vld [vmem:[%s1 + $0x5f0] sm:$0xff]
  %v206 = vld [vmem:[%s1 + $0x5f8] sm:$0xff]
  %v207 = vld [vmem:[%s1 + $0x600] sm:$0xff]
  %v208 = vld [vmem:[%s1 + $0x608] sm:$0xff]
  %v209 = vld [vmem:[%s1 + $0x610] sm:$0xff]
  %v210 = vld [vmem:[%s1 + $0x618] sm:$0xff]
  %v211 = vld [vmem:[%s1 + $0x620] sm:$0xff]
  %v212 = vld [vmem:[%s1 + $0x628] sm:$0xff]
  %v213 = vld [vmem:[%s1 + $0x630] sm:$0xff]
  %v214 = vld [vmem:[%s1 + $0x638] sm:$0xff]
  %v215 = vld [vmem:[%s0] sm:$0xff]
  %v216 = vld [vmem:[%s0 + $0x8] sm:$0xff]
  %v217 = vld [vmem:[%s0 + $0x10] sm:$0xff]
  %v218 = vld [vmem:[%s0 + $0x18] sm:$0xff]
  %v219 = vld [vmem:[%s0 + $0x20] sm:$0xff]
  %v220 = vld [vmem:[%s0 + $0x28] sm:$0xff]
  %v221 = vld [vmem:[%s0 + $0x30] sm:$0xf]
  %v229 = vunpack.c.l.b16 %v215
  %v230 = vunpack.c.h.b16 %v215
  %v231 = vunpack.c.l.b16 %v216
  %v232 = vunpack.c.h.b16 %v216
  %v233 = vunpack.c.l.b16 %v217
  %v234 = vunpack.c.h.b16 %v217
  %v235 = vunpack.c.l.b16 %v218
  %v236 = vunpack.c.h.b16 %v218
  %v237 = vunpack.c.l.b16 %v219
  %v238 = vunpack.c.h.b16 %v219
  %v239 = vunpack.c.l.b16 %v220
  %v240 = vunpack.c.h.b16 %v220
  %v241 = vunpack.c.l.b16 %v221
  %v242 = vpack.c.b16 %v229, %v229
  %v243 = vpack.c.b16 %v230, %v230
  %v244 = vpack.c.b16 %v231, %v231
  %v245 = vpack.c.b16 %v232, %v232
  %v246 = vpack.c.b16 %v233, %v233
  %v247 = vpack.c.b16 %v234, %v234
  %v248 = vpack.c.b16 %v235, %v235
  %v249 = vpack.c.b16 %v236, %v236
  %v250 = vpack.c.b16 %v237, %v237
  %v251 = vpack.c.b16 %v238, %v238
  %v252 = vpack.c.b16 %v239, %v239
  %v253 = vpack.c.b16 %v240, %v240
  %v254 = vpack.c.b16 %v241, %v241
  %v467 = vunpack.c.l.b16 %v15
  %v468 = vunpack.c.h.b16 %v15
  %v469 = vunpack.c.l.b16 %v16
  %v470 = vunpack.c.h.b16 %v16
  %v471 = vunpack.c.l.b16 %v17
  %v472 = vunpack.c.h.b16 %v17
  %v473 = vunpack.c.l.b16 %v18
  %v474 = vunpack.c.h.b16 %v18
  %v475 = vunpack.c.l.b16 %v19
  %v476 = vunpack.c.h.b16 %v19
  %v477 = vunpack.c.l.b16 %v20
  %v478 = vunpack.c.h.b16 %v20
  %v479 = vunpack.c.l.b16 %v21
  %v480 = vunpack.c.h.b16 %v21
  %v481 = vunpack.c.l.b16 %v22
  %v482 = vunpack.c.h.b16 %v22
  %v483 = vunpack.c.l.b16 %v23
  %v484 = vunpack.c.h.b16 %v23
  %v485 = vunpack.c.l.b16 %v24
  %v486 = vunpack.c.h.b16 %v24
  %v487 = vunpack.c.l.b16 %v25
  %v488 = vunpack.c.h.b16 %v25
  %v489 = vunpack.c.l.b16 %v26
  %v490 = vunpack.c.h.b16 %v26
  %v491 = vunpack.c.l.b16 %v27
  %v492 = vunpack.c.h.b16 %v27
  %v493 = vunpack.c.l.b16 %v28
  %v494 = vunpack.c.h.b16 %v28
  %v495 = vunpack.c.l.b16 %v29
  %v496 = vunpack.c.h.b16 %v29
  %v497 = vunpack.c.l.b16 %v30
  %v498 = vunpack.c.h.b16 %v30
  %v499 = vunpack.c.l.b16 %v31
  %v500 = vunpack.c.h.b16 %v31
  %v501 = vunpack.c.l.b16 %v32
  %v502 = vunpack.c.h.b16 %v32
  %v503 = vunpack.c.l.b16 %v33
  %v504 = vunpack.c.h.b16 %v33
  %v505 = vunpack.c.l.b16 %v34
  %v506 = vunpack.c.h.b16 %v34
  %v507 = vunpack.c.l.b16 %v35
  %v508 = vunpack.c.h.b16 %v35
  %v509 = vunpack.c.l.b16 %v36
  %v510 = vunpack.c.h.b16 %v36
  %v511 = vunpack.c.l.b16 %v37
  %v512 = vunpack.c.h.b16 %v37
  %v513 = vunpack.c.l.b16 %v38
  %v514 = vunpack.c.h.b16 %v38
  %v515 = vunpack.c.l.b16 %v39
  %v516 = vunpack.c.h.b16 %v39
  %v517 = vunpack.c.l.b16 %v40
  %v518 = vunpack.c.h.b16 %v40
  %v519 = vunpack.c.l.b16 %v41
  %v520 = vunpack.c.h.b16 %v41
  %v521 = vunpack.c.l.b16 %v42
  %v522 = vunpack.c.h.b16 %v42
  %v523 = vunpack.c.l.b16 %v43
  %v524 = vunpack.c.h.b16 %v43
  %v525 = vunpack.c.l.b16 %v44
  %v526 = vunpack.c.h.b16 %v44
  %v527 = vunpack.c.l.b16 %v45
  %v528 = vunpack.c.h.b16 %v45
  %v529 = vunpack.c.l.b16 %v46
  %v530 = vunpack.c.h.b16 %v46
  %v531 = vunpack.c.l.b16 %v47
  %v532 = vunpack.c.h.b16 %v47
  %v533 = vunpack.c.l.b16 %v48
  %v534 = vunpack.c.h.b16 %v48
  %v535 = vunpack.c.l.b16 %v49
  %v536 = vunpack.c.h.b16 %v49
  %v537 = vunpack.c.l.b16 %v50
  %v538 = vunpack.c.h.b16 %v50
  %v539 = vunpack.c.l.b16 %v51
  %v540 = vunpack.c.h.b16 %v51
  %v541 = vunpack.c.l.b16 %v52
  %v542 = vunpack.c.h.b16 %v52
  %v543 = vunpack.c.l.b16 %v53
  %v544 = vunpack.c.h.b16 %v53
  %v545 = vunpack.c.l.b16 %v54
  %v546 = vunpack.c.h.b16 %v54
  %v547 = vunpack.c.l.b16 %v55
  %v548 = vunpack.c.h.b16 %v55
  %v549 = vunpack.c.l.b16 %v56
  %v550 = vunpack.c.h.b16 %v56
  %v551 = vunpack.c.l.b16 %v57
  %v552 = vunpack.c.h.b16 %v57
  %v553 = vunpack.c.l.b16 %v58
  %v554 = vunpack.c.h.b16 %v58
  %v555 = vunpack.c.l.b16 %v59
  %v556 = vunpack.c.h.b16 %v59
  %v557 = vunpack.c.l.b16 %v60
  %v558 = vunpack.c.h.b16 %v60
  %v559 = vunpack.c.l.b16 %v61
  %v560 = vunpack.c.h.b16 %v61
  %v561 = vunpack.c.l.b16 %v62
  %v562 = vunpack.c.h.b16 %v62
  %v563 = vunpack.c.l.b16 %v63
  %v564 = vunpack.c.h.b16 %v63
  %v565 = vunpack.c.l.b16 %v64
  %v566 = vunpack.c.h.b16 %v64
  %v567 = vunpack.c.l.b16 %v65
  %v568 = vunpack.c.h.b16 %v65
  %v569 = vunpack.c.l.b16 %v66
  %v570 = vunpack.c.h.b16 %v66
  %v571 = vunpack.c.l.b16 %v67
  %v572 = vunpack.c.h.b16 %v67
  %v573 = vunpack.c.l.b16 %v68
  %v574 = vunpack.c.h.b16 %v68
  %v575 = vunpack.c.l.b16 %v69
  %v576 = vunpack.c.h.b16 %v69
  %v577 = vunpack.c.l.b16 %v70
  %v578 = vunpack.c.h.b16 %v70
  %v579 = vunpack.c.l.b16 %v71
  %v580 = vunpack.c.h.b16 %v71
  %v581 = vunpack.c.l.b16 %v72
  %v582 = vunpack.c.h.b16 %v72
  %v583 = vunpack.c.l.b16 %v73
  %v584 = vunpack.c.h.b16 %v73
  %v585 = vunpack.c.l.b16 %v74
  %v586 = vunpack.c.h.b16 %v74
  %v587 = vunpack.c.l.b16 %v75
  %v588 = vunpack.c.h.b16 %v75
  %v589 = vunpack.c.l.b16 %v76
  %v590 = vunpack.c.h.b16 %v76
  %v591 = vunpack.c.l.b16 %v77
  %v592 = vunpack.c.h.b16 %v77
  %v593 = vunpack.c.l.b16 %v78
  %v594 = vunpack.c.h.b16 %v78
  %v595 = vunpack.c.l.b16 %v79
  %v596 = vunpack.c.h.b16 %v79
  %v597 = vunpack.c.l.b16 %v80
  %v598 = vunpack.c.h.b16 %v80
  %v599 = vunpack.c.l.b16 %v81
  %v600 = vunpack.c.h.b16 %v81
  %v601 = vunpack.c.l.b16 %v82
  %v602 = vunpack.c.h.b16 %v82
  %v603 = vunpack.c.l.b16 %v83
  %v604 = vunpack.c.h.b16 %v83
  %v605 = vunpack.c.l.b16 %v84
  %v606 = vunpack.c.h.b16 %v84
  %v607 = vunpack.c.l.b16 %v85
  %v608 = vunpack.c.h.b16 %v85
  %v609 = vunpack.c.l.b16 %v86
  %v610 = vunpack.c.h.b16 %v86
  %v611 = vunpack.c.l.b16 %v87
  %v612 = vunpack.c.h.b16 %v87
  %v613 = vunpack.c.l.b16 %v88
  %v614 = vunpack.c.h.b16 %v88
  %v615 = vunpack.c.l.b16 %v89
  %v616 = vunpack.c.h.b16 %v89
  %v617 = vunpack.c.l.b16 %v90
  %v618 = vunpack.c.h.b16 %v90
  %v619 = vunpack.c.l.b16 %v91
  %v620 = vunpack.c.h.b16 %v91
  %v621 = vunpack.c.l.b16 %v92
  %v622 = vunpack.c.h.b16 %v92
  %v623 = vunpack.c.l.b16 %v93
  %v624 = vunpack.c.h.b16 %v93
  %v625 = vunpack.c.l.b16 %v94
  %v626 = vunpack.c.h.b16 %v94
  %v627 = vunpack.c.l.b16 %v95
  %v628 = vunpack.c.h.b16 %v95
  %v629 = vunpack.c.l.b16 %v96
  %v630 = vunpack.c.h.b16 %v96
  %v631 = vunpack.c.l.b16 %v97
  %v632 = vunpack.c.h.b16 %v97
  %v633 = vunpack.c.l.b16 %v98
  %v634 = vunpack.c.h.b16 %v98
  %v635 = vunpack.c.l.b16 %v99
  %v636 = vunpack.c.h.b16 %v99
  %v637 = vunpack.c.l.b16 %v100
  %v638 = vunpack.c.h.b16 %v100
  %v639 = vunpack.c.l.b16 %v101
  %v640 = vunpack.c.h.b16 %v101
  %v641 = vunpack.c.l.b16 %v102
  %v642 = vunpack.c.h.b16 %v102
  %v643 = vunpack.c.l.b16 %v103
  %v644 = vunpack.c.h.b16 %v103
  %v645 = vunpack.c.l.b16 %v104
  %v646 = vunpack.c.h.b16 %v104
  %v647 = vunpack.c.l.b16 %v105
  %v648 = vunpack.c.h.b16 %v105
  %v649 = vunpack.c.l.b16 %v106
  %v650 = vunpack.c.h.b16 %v106
  %v651 = vunpack.c.l.b16 %v107
  %v652 = vunpack.c.h.b16 %v107
  %v653 = vunpack.c.l.b16 %v108
  %v654 = vunpack.c.h.b16 %v108
  %v655 = vunpack.c.l.b16 %v109
  %v656 = vunpack.c.h.b16 %v109
  %v657 = vunpack.c.l.b16 %v110
  %v658 = vunpack.c.h.b16 %v110
  %v659 = vunpack.c.l.b16 %v111
  %v660 = vunpack.c.h.b16 %v111
  %v661 = vunpack.c.l.b16 %v112
  %v662 = vunpack.c.h.b16 %v112
  %v663 = vunpack.c.l.b16 %v113
  %v664 = vunpack.c.h.b16 %v113
  %v665 = vunpack.c.l.b16 %v114
  %v666 = vunpack.c.h.b16 %v114
  %v667 = vunpack.c.l.b16 %v115
  %v668 = vunpack.c.h.b16 %v115
  %v669 = vunpack.c.l.b16 %v116
  %v670 = vunpack.c.h.b16 %v116
  %v671 = vunpack.c.l.b16 %v117
  %v672 = vunpack.c.h.b16 %v117
  %v673 = vunpack.c.l.b16 %v118
  %v674 = vunpack.c.h.b16 %v118
  %v675 = vunpack.c.l.b16 %v119
  %v676 = vunpack.c.h.b16 %v119
  %v677 = vunpack.c.l.b16 %v120
  %v678 = vunpack.c.h.b16 %v120
  %v679 = vunpack.c.l.b16 %v121
  %v680 = vunpack.c.h.b16 %v121
  %v681 = vunpack.c.l.b16 %v122
  %v682 = vunpack.c.h.b16 %v122
  %v683 = vunpack.c.l.b16 %v123
  %v684 = vunpack.c.h.b16 %v123
  %v685 = vunpack.c.l.b16 %v124
  %v686 = vunpack.c.h.b16 %v124
  %v687 = vunpack.c.l.b16 %v125
  %v688 = vunpack.c.h.b16 %v125
  %v689 = vunpack.c.l.b16 %v126
  %v690 = vunpack.c.h.b16 %v126
  %v691 = vunpack.c.l.b16 %v127
  %v692 = vunpack.c.h.b16 %v127
  %v693 = vunpack.c.l.b16 %v128
  %v694 = vunpack.c.h.b16 %v128
  %v695 = vunpack.c.l.b16 %v129
  %v696 = vunpack.c.h.b16 %v129
  %v697 = vunpack.c.l.b16 %v130
  %v698 = vunpack.c.h.b16 %v130
  %v699 = vunpack.c.l.b16 %v131
  %v700 = vunpack.c.h.b16 %v131
  %v701 = vunpack.c.l.b16 %v132
  %v702 = vunpack.c.h.b16 %v132
  %v703 = vunpack.c.l.b16 %v133
  %v704 = vunpack.c.h.b16 %v133
  %v705 = vunpack.c.l.b16 %v134
  %v706 = vunpack.c.h.b16 %v134
  %v707 = vunpack.c.l.b16 %v135
  %v708 = vunpack.c.h.b16 %v135
  %v709 = vunpack.c.l.b16 %v136
  %v710 = vunpack.c.h.b16 %v136
  %v711 = vunpack.c.l.b16 %v137
  %v712 = vunpack.c.h.b16 %v137
  %v713 = vunpack.c.l.b16 %v138
  %v714 = vunpack.c.h.b16 %v138
  %v715 = vunpack.c.l.b16 %v139
  %v716 = vunpack.c.h.b16 %v139
  %v717 = vunpack.c.l.b16 %v140
  %v718 = vunpack.c.h.b16 %v140
  %v719 = vunpack.c.l.b16 %v141
  %v720 = vunpack.c.h.b16 %v141
  %v721 = vunpack.c.l.b16 %v142
  %v722 = vunpack.c.h.b16 %v142
  %v723 = vunpack.c.l.b16 %v143
  %v724 = vunpack.c.h.b16 %v143
  %v725 = vunpack.c.l.b16 %v144
  %v726 = vunpack.c.h.b16 %v144
  %v727 = vunpack.c.l.b16 %v145
  %v728 = vunpack.c.h.b16 %v145
  %v729 = vunpack.c.l.b16 %v146
  %v730 = vunpack.c.h.b16 %v146
  %v731 = vunpack.c.l.b16 %v147
  %v732 = vunpack.c.h.b16 %v147
  %v733 = vunpack.c.l.b16 %v148
  %v734 = vunpack.c.h.b16 %v148
  %v735 = vunpack.c.l.b16 %v149
  %v736 = vunpack.c.h.b16 %v149
  %v737 = vunpack.c.l.b16 %v150
  %v738 = vunpack.c.h.b16 %v150
  %v739 = vunpack.c.l.b16 %v151
  %v740 = vunpack.c.h.b16 %v151
  %v741 = vunpack.c.l.b16 %v152
  %v742 = vunpack.c.h.b16 %v152
  %v743 = vunpack.c.l.b16 %v153
  %v744 = vunpack.c.h.b16 %v153
  %v745 = vunpack.c.l.b16 %v154
  %v746 = vunpack.c.h.b16 %v154
  %v747 = vunpack.c.l.b16 %v155
  %v748 = vunpack.c.h.b16 %v155
  %v749 = vunpack.c.l.b16 %v156
  %v750 = vunpack.c.h.b16 %v156
  %v751 = vunpack.c.l.b16 %v157
  %v752 = vunpack.c.h.b16 %v157
  %v753 = vunpack.c.l.b16 %v158
  %v754 = vunpack.c.h.b16 %v158
  %v755 = vunpack.c.l.b16 %v159
  %v756 = vunpack.c.h.b16 %v159
  %v757 = vunpack.c.l.b16 %v160
  %v758 = vunpack.c.h.b16 %v160
  %v759 = vunpack.c.l.b16 %v161
  %v760 = vunpack.c.h.b16 %v161
  %v761 = vunpack.c.l.b16 %v162
  %v762 = vunpack.c.h.b16 %v162
  %v763 = vunpack.c.l.b16 %v163
  %v764 = vunpack.c.h.b16 %v163
  %v765 = vunpack.c.l.b16 %v164
  %v766 = vunpack.c.h.b16 %v164
  %v767 = vunpack.c.l.b16 %v165
  %v768 = vunpack.c.h.b16 %v165
  %v769 = vunpack.c.l.b16 %v166
  %v770 = vunpack.c.h.b16 %v166
  %v771 = vunpack.c.l.b16 %v167
  %v772 = vunpack.c.h.b16 %v167
  %v773 = vunpack.c.l.b16 %v168
  %v774 = vunpack.c.h.b16 %v168
  %v775 = vunpack.c.l.b16 %v169
  %v776 = vunpack.c.h.b16 %v169
  %v777 = vunpack.c.l.b16 %v170
  %v778 = vunpack.c.h.b16 %v170
  %v779 = vunpack.c.l.b16 %v171
  %v780 = vunpack.c.h.b16 %v171
  %v781 = vunpack.c.l.b16 %v172
  %v782 = vunpack.c.h.b16 %v172
  %v783 = vunpack.c.l.b16 %v173
  %v784 = vunpack.c.h.b16 %v173
  %v785 = vunpack.c.l.b16 %v174
  %v786 = vunpack.c.h.b16 %v174
  %v787 = vunpack.c.l.b16 %v175
  %v788 = vunpack.c.h.b16 %v175
  %v789 = vunpack.c.l.b16 %v176
  %v790 = vunpack.c.h.b16 %v176
  %v791 = vunpack.c.l.b16 %v177
  %v792 = vunpack.c.h.b16 %v177
  %v793 = vunpack.c.l.b16 %v178
  %v794 = vunpack.c.h.b16 %v178
  %v795 = vunpack.c.l.b16 %v179
  %v796 = vunpack.c.h.b16 %v179
  %v797 = vunpack.c.l.b16 %v180
  %v798 = vunpack.c.h.b16 %v180
  %v799 = vunpack.c.l.b16 %v181
  %v800 = vunpack.c.h.b16 %v181
  %v801 = vunpack.c.l.b16 %v182
  %v802 = vunpack.c.h.b16 %v182
  %v803 = vunpack.c.l.b16 %v183
  %v804 = vunpack.c.h.b16 %v183
  %v805 = vunpack.c.l.b16 %v184
  %v806 = vunpack.c.h.b16 %v184
  %v807 = vunpack.c.l.b16 %v185
  %v808 = vunpack.c.h.b16 %v185
  %v809 = vunpack.c.l.b16 %v186
  %v810 = vunpack.c.h.b16 %v186
  %v811 = vunpack.c.l.b16 %v187
  %v812 = vunpack.c.h.b16 %v187
  %v813 = vunpack.c.l.b16 %v188
  %v814 = vunpack.c.h.b16 %v188
  %v815 = vunpack.c.l.b16 %v189
  %v816 = vunpack.c.h.b16 %v189
  %v817 = vunpack.c.l.b16 %v190
  %v818 = vunpack.c.h.b16 %v190
  %v819 = vunpack.c.l.b16 %v191
  %v820 = vunpack.c.h.b16 %v191
  %v821 = vunpack.c.l.b16 %v192
  %v822 = vunpack.c.h.b16 %v192
  %v823 = vunpack.c.l.b16 %v193
  %v824 = vunpack.c.h.b16 %v193
  %v825 = vunpack.c.l.b16 %v194
  %v826 = vunpack.c.h.b16 %v194
  %v827 = vunpack.c.l.b16 %v195
  %v828 = vunpack.c.h.b16 %v195
  %v829 = vunpack.c.l.b16 %v196
  %v830 = vunpack.c.h.b16 %v196
  %v831 = vunpack.c.l.b16 %v197
  %v832 = vunpack.c.h.b16 %v197
  %v833 = vunpack.c.l.b16 %v198
  %v834 = vunpack.c.h.b16 %v198
  %v835 = vunpack.c.l.b16 %v199
  %v836 = vunpack.c.h.b16 %v199
  %v837 = vunpack.c.l.b16 %v200
  %v838 = vunpack.c.h.b16 %v200
  %v839 = vunpack.c.l.b16 %v201
  %v840 = vunpack.c.h.b16 %v201
  %v841 = vunpack.c.l.b16 %v202
  %v842 = vunpack.c.h.b16 %v202
  %v843 = vunpack.c.l.b16 %v203
  %v844 = vunpack.c.h.b16 %v203
  %v845 = vunpack.c.l.b16 %v204
  %v846 = vunpack.c.h.b16 %v204
  %v847 = vunpack.c.l.b16 %v205
  %v848 = vunpack.c.h.b16 %v205
  %v849 = vunpack.c.l.b16 %v206
  %v850 = vunpack.c.h.b16 %v206
  %v851 = vunpack.c.l.b16 %v207
  %v852 = vunpack.c.h.b16 %v207
  %v853 = vunpack.c.l.b16 %v208
  %v854 = vunpack.c.h.b16 %v208
  %v855 = vunpack.c.l.b16 %v209
  %v856 = vunpack.c.h.b16 %v209
  %v857 = vunpack.c.l.b16 %v210
  %v858 = vunpack.c.h.b16 %v210
  %v859 = vunpack.c.l.b16 %v211
  %v860 = vunpack.c.h.b16 %v211
  %v861 = vunpack.c.l.b16 %v212
  %v862 = vunpack.c.h.b16 %v212
  %v863 = vunpack.c.l.b16 %v213
  %v864 = vunpack.c.h.b16 %v213
  %v865 = vunpack.c.l.b16 %v214
  %v866 = vunpack.c.h.b16 %v214
  %v867 = vpack.c.b16 %v469, %v467
  %v868 = vpack.c.b16 %v470, %v468
  %v869 = vpack.c.b16 %v473, %v471
  %v870 = vpack.c.b16 %v474, %v472
  %v871 = vpack.c.b16 %v477, %v475
  %v872 = vpack.c.b16 %v478, %v476
  %v873 = vpack.c.b16 %v481, %v479
  %v874 = vpack.c.b16 %v482, %v480
  %v875 = vpack.c.b16 %v485, %v483
  %v876 = vpack.c.b16 %v486, %v484
  %v877 = vpack.c.b16 %v489, %v487
  %v878 = vpack.c.b16 %v490, %v488
  %v879 = vpack.c.b16 %v493, %v491
  %v880 = vpack.c.b16 %v494, %v492
  %v881 = vpack.c.b16 %v497, %v495
  %v882 = vpack.c.b16 %v498, %v496
  %v883 = vpack.c.b16 %v501, %v499
  %v884 = vpack.c.b16 %v502, %v500
  %v885 = vpack.c.b16 %v505, %v503
  %v886 = vpack.c.b16 %v506, %v504
  %v887 = vpack.c.b16 %v509, %v507
  %v888 = vpack.c.b16 %v510, %v508
  %v889 = vpack.c.b16 %v513, %v511
  %v890 = vpack.c.b16 %v514, %v512
  %v891 = vpack.c.b16 %v517, %v515
  %v892 = vpack.c.b16 %v518, %v516
  %v893 = vpack.c.b16 %v521, %v519
  %v894 = vpack.c.b16 %v522, %v520
  %v895 = vpack.c.b16 %v525, %v523
  %v896 = vpack.c.b16 %v526, %v524
  %v897 = vpack.c.b16 %v529, %v527
  %v898 = vpack.c.b16 %v530, %v528
  %v899 = vpack.c.b16 %v533, %v531
  %v900 = vpack.c.b16 %v534, %v532
  %v901 = vpack.c.b16 %v537, %v535
  %v902 = vpack.c.b16 %v538, %v536
  %v903 = vpack.c.b16 %v541, %v539
  %v904 = vpack.c.b16 %v542, %v540
  %v905 = vpack.c.b16 %v545, %v543
  %v906 = vpack.c.b16 %v546, %v544
  %v907 = vpack.c.b16 %v549, %v547
  %v908 = vpack.c.b16 %v550, %v548
  %v909 = vpack.c.b16 %v553, %v551
  %v910 = vpack.c.b16 %v554, %v552
  %v911 = vpack.c.b16 %v557, %v555
  %v912 = vpack.c.b16 %v558, %v556
  %v913 = vpack.c.b16 %v561, %v559
  %v914 = vpack.c.b16 %v562, %v560
  %v915 = vpack.c.b16 %v565, %v563
  %v916 = vpack.c.b16 %v566, %v564
  %v917 = vpack.c.b16 %v569, %v567
  %v918 = vpack.c.b16 %v570, %v568
  %v919 = vpack.c.b16 %v573, %v571
  %v920 = vpack.c.b16 %v574, %v572
  %v921 = vpack.c.b16 %v577, %v575
  %v922 = vpack.c.b16 %v578, %v576
  %v923 = vpack.c.b16 %v581, %v579
  %v924 = vpack.c.b16 %v582, %v580
  %v925 = vpack.c.b16 %v585, %v583
  %v926 = vpack.c.b16 %v586, %v584
  %v927 = vpack.c.b16 %v589, %v587
  %v928 = vpack.c.b16 %v590, %v588
  %v929 = vpack.c.b16 %v593, %v591
  %v930 = vpack.c.b16 %v594, %v592
  %v931 = vpack.c.b16 %v597, %v595
  %v932 = vpack.c.b16 %v598, %v596
  %v933 = vpack.c.b16 %v601, %v599
  %v934 = vpack.c.b16 %v602, %v600
  %v935 = vpack.c.b16 %v605, %v603
  %v936 = vpack.c.b16 %v606, %v604
  %v937 = vpack.c.b16 %v609, %v607
  %v938 = vpack.c.b16 %v610, %v608
  %v939 = vpack.c.b16 %v613, %v611
  %v940 = vpack.c.b16 %v614, %v612
  %v941 = vpack.c.b16 %v617, %v615
  %v942 = vpack.c.b16 %v618, %v616
  %v943 = vpack.c.b16 %v621, %v619
  %v944 = vpack.c.b16 %v622, %v620
  %v945 = vpack.c.b16 %v625, %v623
  %v946 = vpack.c.b16 %v626, %v624
  %v947 = vpack.c.b16 %v629, %v627
  %v948 = vpack.c.b16 %v630, %v628
  %v949 = vpack.c.b16 %v633, %v631
  %v950 = vpack.c.b16 %v634, %v632
  %v951 = vpack.c.b16 %v637, %v635
  %v952 = vpack.c.b16 %v638, %v636
  %v953 = vpack.c.b16 %v641, %v639
  %v954 = vpack.c.b16 %v642, %v640
  %v955 = vpack.c.b16 %v645, %v643
  %v956 = vpack.c.b16 %v646, %v644
  %v957 = vpack.c.b16 %v649, %v647
  %v958 = vpack.c.b16 %v650, %v648
  %v959 = vpack.c.b16 %v653, %v651
  %v960 = vpack.c.b16 %v654, %v652
  %v961 = vpack.c.b16 %v657, %v655
  %v962 = vpack.c.b16 %v658, %v656
  %v963 = vpack.c.b16 %v661, %v659
  %v964 = vpack.c.b16 %v662, %v660
  %v965 = vpack.c.b16 %v665, %v663
  %v966 = vpack.c.b16 %v666, %v664
  %v967 = vpack.c.b16 %v669, %v667
  %v968 = vpack.c.b16 %v670, %v668
  %v969 = vpack.c.b16 %v673, %v671
  %v970 = vpack.c.b16 %v674, %v672
  %v971 = vpack.c.b16 %v677, %v675
  %v972 = vpack.c.b16 %v678, %v676
  %v973 = vpack.c.b16 %v681, %v679
  %v974 = vpack.c.b16 %v682, %v680
  %v975 = vpack.c.b16 %v685, %v683
  %v976 = vpack.c.b16 %v686, %v684
  %v977 = vpack.c.b16 %v689, %v687
  %v978 = vpack.c.b16 %v690, %v688
  %v979 = vpack.c.b16 %v693, %v691
  %v980 = vpack.c.b16 %v694, %v692
  %v981 = vpack.c.b16 %v697, %v695
  %v982 = vpack.c.b16 %v698, %v696
  %v983 = vpack.c.b16 %v701, %v699
  %v984 = vpack.c.b16 %v702, %v700
  %v985 = vpack.c.b16 %v705, %v703
  %v986 = vpack.c.b16 %v706, %v704
  %v987 = vpack.c.b16 %v709, %v707
  %v988 = vpack.c.b16 %v710, %v708
  %v989 = vpack.c.b16 %v713, %v711
  %v990 = vpack.c.b16 %v714, %v712
  %v991 = vpack.c.b16 %v717, %v715
  %v992 = vpack.c.b16 %v718, %v716
  %v993 = vpack.c.b16 %v721, %v719
  %v994 = vpack.c.b16 %v722, %v720
  %v995 = vpack.c.b16 %v725, %v723
  %v996 = vpack.c.b16 %v726, %v724
  %v997 = vpack.c.b16 %v729, %v727
  %v998 = vpack.c.b16 %v730, %v728
  %v999 = vpack.c.b16 %v733, %v731
  %v1000 = vpack.c.b16 %v734, %v732
  %v1001 = vpack.c.b16 %v737, %v735
  %v1002 = vpack.c.b16 %v738, %v736
  %v1003 = vpack.c.b16 %v741, %v739
  %v1004 = vpack.c.b16 %v742, %v740
  %v1005 = vpack.c.b16 %v745, %v743
  %v1006 = vpack.c.b16 %v746, %v744
  %v1007 = vpack.c.b16 %v749, %v747
  %v1008 = vpack.c.b16 %v750, %v748
  %v1009 = vpack.c.b16 %v753, %v751
  %v1010 = vpack.c.b16 %v754, %v752
  %v1011 = vpack.c.b16 %v757, %v755
  %v1012 = vpack.c.b16 %v758, %v756
  %v1013 = vpack.c.b16 %v761, %v759
  %v1014 = vpack.c.b16 %v762, %v760
  %v1015 = vpack.c.b16 %v765, %v763
  %v1016 = vpack.c.b16 %v766, %v764
  %v1017 = vpack.c.b16 %v769, %v767
  %v1018 = vpack.c.b16 %v770, %v768
  %v1019 = vpack.c.b16 %v773, %v771
  %v1020 = vpack.c.b16 %v774, %v772
  %v1021 = vpack.c.b16 %v777, %v775
  %v1022 = vpack.c.b16 %v778, %v776
  %v1023 = vpack.c.b16 %v781, %v779
  %v1024 = vpack.c.b16 %v782, %v780
  %v1025 = vpack.c.b16 %v785, %v783
  %v1026 = vpack.c.b16 %v786, %v784
  %v1027 = vpack.c.b16 %v789, %v787
  %v1028 = vpack.c.b16 %v790, %v788
  %v1029 = vpack.c.b16 %v793, %v791
  %v1030 = vpack.c.b16 %v794, %v792
  %v1031 = vpack.c.b16 %v797, %v795
  %v1032 = vpack.c.b16 %v798, %v796
  %v1033 = vpack.c.b16 %v801, %v799
  %v1034 = vpack.c.b16 %v802, %v800
  %v1035 = vpack.c.b16 %v805, %v803
  %v1036 = vpack.c.b16 %v806, %v804
  %v1037 = vpack.c.b16 %v809, %v807
  %v1038 = vpack.c.b16 %v810, %v808
  %v1039 = vpack.c.b16 %v813, %v811
  %v1040 = vpack.c.b16 %v814, %v812
  %v1041 = vpack.c.b16 %v817, %v815
  %v1042 = vpack.c.b16 %v818, %v816
  %v1043 = vpack.c.b16 %v821, %v819
  %v1044 = vpack.c.b16 %v822, %v820
  %v1045 = vpack.c.b16 %v825, %v823
  %v1046 = vpack.c.b16 %v826, %v824
  %v1047 = vpack.c.b16 %v829, %v827
  %v1048 = vpack.c.b16 %v830, %v828
  %v1049 = vpack.c.b16 %v833, %v831
  %v1050 = vpack.c.b16 %v834, %v832
  %v1051 = vpack.c.b16 %v837, %v835
  %v1052 = vpack.c.b16 %v838, %v836
  %v1053 = vpack.c.b16 %v841, %v839
  %v1054 = vpack.c.b16 %v842, %v840
  %v1055 = vpack.c.b16 %v845, %v843
  %v1056 = vpack.c.b16 %v846, %v844
  %v1057 = vpack.c.b16 %v849, %v847
  %v1058 = vpack.c.b16 %v850, %v848
  %v1059 = vpack.c.b16 %v853, %v851
  %v1060 = vpack.c.b16 %v854, %v852
  %v1061 = vpack.c.b16 %v857, %v855
  %v1062 = vpack.c.b16 %v858, %v856
  %v1063 = vpack.c.b16 %v861, %v859
  %v1064 = vpack.c.b16 %v862, %v860
  %v1065 = vpack.c.b16 %v865, %v863
  %v1066 = vpack.c.b16 %v866, %v864
  %vm1267 = vcmask 523264
  %v1269 = vsel %vm1267, %v254, 0
  %1271 = vmatpush.bf16.msra.mxu0 %v881
  %1272 = vmatpush.bf16.msra.mxu0 %v879
  %1273 = vmatpush.bf16.msra.mxu0 %v877
  %1274 = vmatpush.bf16.msra.mxu0 %v875
  %1275 = vmatpush.bf16.msra.mxu0 %v873
  %1276 = vmatpush.bf16.msra.mxu0 %v871
  %1277 = vmatpush.bf16.msra.mxu0 %v869
  %1278 = vmatpush.bf16.msra.mxu0 %v867
  %1279 = vmatmul.bf16.gmra.mxu0 %v242
  %v1280 = vpop.f32.mrf.mxu0
  %v1281 = vadd.f32 0.0, %v1280
  %v1282 = vpop.f32.mrf.mxu0
  %1283 = vdwg.mxu0
  %1284 = vmatpush.bf16.msra.mxu0 %v897
  %1285 = vmatpush.bf16.msra.mxu0 %v895
  %1286 = vmatpush.bf16.msra.mxu0 %v893
  %1287 = vmatpush.bf16.msra.mxu0 %v891
  %1288 = vmatpush.bf16.msra.mxu0 %v889
  %1289 = vmatpush.bf16.msra.mxu0 %v887
  %1290 = vmatpush.bf16.msra.mxu0 %v885
  %1291 = vmatpush.bf16.msra.mxu0 %v883
  %1292 = vmatmul.bf16.gmra.mxu0 %v243
  %v1293 = vpop.f32.mrf.mxu0
  %v1294 = vadd.f32 %v1281, %v1293
  %v1295 = vpop.f32.mrf.mxu0
  %1296 = vdwg.mxu0
  %1297 = vmatpush.bf16.msra.mxu0 %v913
  %1298 = vmatpush.bf16.msra.mxu0 %v911
  %1299 = vmatpush.bf16.msra.mxu0 %v909
  %1300 = vmatpush.bf16.msra.mxu0 %v907
  %1301 = vmatpush.bf16.msra.mxu0 %v905
  %1302 = vmatpush.bf16.msra.mxu0 %v903
  %1303 = vmatpush.bf16.msra.mxu0 %v901
  %1304 = vmatpush.bf16.msra.mxu0 %v899
  %1305 = vmatmul.bf16.gmra.mxu0 %v244
  %v1306 = vpop.f32.mrf.mxu0
  %v1307 = vadd.f32 %v1294, %v1306
  %v1308 = vpop.f32.mrf.mxu0
  %1309 = vdwg.mxu0
  %1310 = vmatpush.bf16.msra.mxu0 %v929
  %1311 = vmatpush.bf16.msra.mxu0 %v927
  %1312 = vmatpush.bf16.msra.mxu0 %v925
  %1313 = vmatpush.bf16.msra.mxu0 %v923
  %1314 = vmatpush.bf16.msra.mxu0 %v921
  %1315 = vmatpush.bf16.msra.mxu0 %v919
  %1316 = vmatpush.bf16.msra.mxu0 %v917
  %1317 = vmatpush.bf16.msra.mxu0 %v915
  %1318 = vmatmul.bf16.gmra.mxu0 %v245
  %v1319 = vpop.f32.mrf.mxu0
  %v1320 = vadd.f32 %v1307, %v1319
  %v1321 = vpop.f32.mrf.mxu0
  %1322 = vdwg.mxu0
  %1323 = vmatpush.bf16.msra.mxu0 %v945
  %1324 = vmatpush.bf16.msra.mxu0 %v943
  %1325 = vmatpush.bf16.msra.mxu0 %v941
  %1326 = vmatpush.bf16.msra.mxu0 %v939
  %1327 = vmatpush.bf16.msra.mxu0 %v937
  %1328 = vmatpush.bf16.msra.mxu0 %v935
  %1329 = vmatpush.bf16.msra.mxu0 %v933
  %1330 = vmatpush.bf16.msra.mxu0 %v931
  %1331 = vmatmul.bf16.gmra.mxu0 %v246
  %v1332 = vpop.f32.mrf.mxu0
  %v1333 = vadd.f32 %v1320, %v1332
  %v1334 = vpop.f32.mrf.mxu0
  %1335 = vdwg.mxu0
  %1336 = vmatpush.bf16.msra.mxu0 %v961
  %1337 = vmatpush.bf16.msra.mxu0 %v959
  %1338 = vmatpush.bf16.msra.mxu0 %v957
  %1339 = vmatpush.bf16.msra.mxu0 %v955
  %1340 = vmatpush.bf16.msra.mxu0 %v953
  %1341 = vmatpush.bf16.msra.mxu0 %v951
  %1342 = vmatpush.bf16.msra.mxu0 %v949
  %1343 = vmatpush.bf16.msra.mxu0 %v947
  %1344 = vmatmul.bf16.gmra.mxu0 %v247
  %v1345 = vpop.f32.mrf.mxu0
  %v1346 = vadd.f32 %v1333, %v1345
  %v1347 = vpop.f32.mrf.mxu0
  %1348 = vdwg.mxu0
  %1349 = vmatpush.bf16.msra.mxu0 %v977
  %1350 = vmatpush.bf16.msra.mxu0 %v975
  %1351 = vmatpush.bf16.msra.mxu0 %v973
  %1352 = vmatpush.bf16.msra.mxu0 %v971
  %1353 = vmatpush.bf16.msra.mxu0 %v969
  %1354 = vmatpush.bf16.msra.mxu0 %v967
  %1355 = vmatpush.bf16.msra.mxu0 %v965
  %1356 = vmatpush.bf16.msra.mxu0 %v963
  %1357 = vmatmul.bf16.gmra.mxu0 %v248
  %v1358 = vpop.f32.mrf.mxu0
  %v1359 = vadd.f32 %v1346, %v1358
  %v1360 = vpop.f32.mrf.mxu0
  %1361 = vdwg.mxu0
  %1362 = vmatpush.bf16.msra.mxu0 %v993
  %1363 = vmatpush.bf16.msra.mxu0 %v991
  %1364 = vmatpush.bf16.msra.mxu0 %v989
  %1365 = vmatpush.bf16.msra.mxu0 %v987
  %1366 = vmatpush.bf16.msra.mxu0 %v985
  %1367 = vmatpush.bf16.msra.mxu0 %v983
  %1368 = vmatpush.bf16.msra.mxu0 %v981
  %1369 = vmatpush.bf16.msra.mxu0 %v979
  %1370 = vmatmul.bf16.gmra.mxu0 %v249
  %v1371 = vpop.f32.mrf.mxu0
  %v1372 = vadd.f32 %v1359, %v1371
  %v1373 = vpop.f32.mrf.mxu0
  %1374 = vdwg.mxu0
  %1375 = vmatpush.bf16.msra.mxu0 %v1009
  %1376 = vmatpush.bf16.msra.mxu0 %v1007
  %1377 = vmatpush.bf16.msra.mxu0 %v1005
  %1378 = vmatpush.bf16.msra.mxu0 %v1003
  %1379 = vmatpush.bf16.msra.mxu0 %v1001
  %1380 = vmatpush.bf16.msra.mxu0 %v999
  %1381 = vmatpush.bf16.msra.mxu0 %v997
  %1382 = vmatpush.bf16.msra.mxu0 %v995
  %1383 = vmatmul.bf16.gmra.mxu0 %v250
  %v1384 = vpop.f32.mrf.mxu0
  %v1385 = vadd.f32 %v1372, %v1384
  %v1386 = vpop.f32.mrf.mxu0
  %1387 = vdwg.mxu0
  %1388 = vmatpush.bf16.msra.mxu0 %v1025
  %1389 = vmatpush.bf16.msra.mxu0 %v1023
  %1390 = vmatpush.bf16.msra.mxu0 %v1021
  %1391 = vmatpush.bf16.msra.mxu0 %v1019
  %1392 = vmatpush.bf16.msra.mxu0 %v1017
  %1393 = vmatpush.bf16.msra.mxu0 %v1015
  %1394 = vmatpush.bf16.msra.mxu0 %v1013
  %1395 = vmatpush.bf16.msra.mxu0 %v1011
  %1396 = vmatmul.bf16.gmra.mxu0 %v251
  %v1397 = vpop.f32.mrf.mxu0
  %v1398 = vadd.f32 %v1385, %v1397
  %v1399 = vpop.f32.mrf.mxu0
  %1400 = vdwg.mxu0
  %1401 = vmatpush.bf16.msra.mxu0 %v1041
  %1402 = vmatpush.bf16.msra.mxu0 %v1039
  %1403 = vmatpush.bf16.msra.mxu0 %v1037
  %1404 = vmatpush.bf16.msra.mxu0 %v1035
  %1405 = vmatpush.bf16.msra.mxu0 %v1033
  %1406 = vmatpush.bf16.msra.mxu0 %v1031
  %1407 = vmatpush.bf16.msra.mxu0 %v1029
  %1408 = vmatpush.bf16.msra.mxu0 %v1027
  %1409 = vmatmul.bf16.gmra.mxu0 %v252
  %v1410 = vpop.f32.mrf.mxu0
  %v1411 = vadd.f32 %v1398, %v1410
  %v1412 = vpop.f32.mrf.mxu0
  %1413 = vdwg.mxu0
  %1414 = vmatpush.bf16.msra.mxu0 %v1057
  %1415 = vmatpush.bf16.msra.mxu0 %v1055
  %1416 = vmatpush.bf16.msra.mxu0 %v1053
  %1417 = vmatpush.bf16.msra.mxu0 %v1051
  %1418 = vmatpush.bf16.msra.mxu0 %v1049
  %1419 = vmatpush.bf16.msra.mxu0 %v1047
  %1420 = vmatpush.bf16.msra.mxu0 %v1045
  %1421 = vmatpush.bf16.msra.mxu0 %v1043
  %1422 = vmatmul.bf16.gmra.mxu0 %v253
  %v1423 = vpop.f32.mrf.mxu0
  %v1424 = vadd.f32 %v1411, %v1423
  %v1425 = vpop.f32.mrf.mxu0
  %1426 = vdwg.mxu0
  %1427 = vmatpush.bf16.msra.mxu0 0
  %1428 = vmatpush.bf16.msra.mxu0 0
  %1429 = vmatpush.bf16.msra.mxu0 0
  %1430 = vmatpush.bf16.msra.mxu0 0
  %1431 = vmatpush.bf16.msra.mxu0 %v1065
  %1432 = vmatpush.bf16.msra.mxu0 %v1063
  %1433 = vmatpush.bf16.msra.mxu0 %v1061
  %1434 = vmatpush.bf16.msra.mxu0 %v1059
  %1435 = vmatmul.bf16.gmra.mxu0 %v1269
  %v1436 = vpop.f32.mrf.mxu0
  %v1437 = vadd.f32 %v1424, %v1436
  %v1438 = vpop.f32.mrf.mxu0
  %1439 = vdwg.mxu0
  %1440 = vmatpush.bf16.msra.mxu0 %v882
  %1441 = vmatpush.bf16.msra.mxu0 %v880
  %1442 = vmatpush.bf16.msra.mxu0 %v878
  %1443 = vmatpush.bf16.msra.mxu0 %v876
  %1444 = vmatpush.bf16.msra.mxu0 %v874
  %1445 = vmatpush.bf16.msra.mxu0 %v872
  %1446 = vmatpush.bf16.msra.mxu0 %v870
  %1447 = vmatpush.bf16.msra.mxu0 %v868
  %1448 = vmatmul.bf16.gmra.mxu0 %v242
  %v1449 = vpop.f32.mrf.mxu0
  %v1450 = vadd.f32 0.0, %v1449
  %v1451 = vpop.f32.mrf.mxu0
  %1452 = vdwg.mxu0
  %1453 = vmatpush.bf16.msra.mxu0 %v898
  %1454 = vmatpush.bf16.msra.mxu0 %v896
  %1455 = vmatpush.bf16.msra.mxu0 %v894
  %1456 = vmatpush.bf16.msra.mxu0 %v892
  %1457 = vmatpush.bf16.msra.mxu0 %v890
  %1458 = vmatpush.bf16.msra.mxu0 %v888
  %1459 = vmatpush.bf16.msra.mxu0 %v886
  %1460 = vmatpush.bf16.msra.mxu0 %v884
  %1461 = vmatmul.bf16.gmra.mxu0 %v243
  %v1462 = vpop.f32.mrf.mxu0
  %v1463 = vadd.f32 %v1450, %v1462
  %v1464 = vpop.f32.mrf.mxu0
  %1465 = vdwg.mxu0
  %1466 = vmatpush.bf16.msra.mxu0 %v914
  %1467 = vmatpush.bf16.msra.mxu0 %v912
  %1468 = vmatpush.bf16.msra.mxu0 %v910
  %1469 = vmatpush.bf16.msra.mxu0 %v908
  %1470 = vmatpush.bf16.msra.mxu0 %v906
  %1471 = vmatpush.bf16.msra.mxu0 %v904
  %1472 = vmatpush.bf16.msra.mxu0 %v902
  %1473 = vmatpush.bf16.msra.mxu0 %v900
  %1474 = vmatmul.bf16.gmra.mxu0 %v244
  %v1475 = vpop.f32.mrf.mxu0
  %v1476 = vadd.f32 %v1463, %v1475
  %v1477 = vpop.f32.mrf.mxu0
  %1478 = vdwg.mxu0
  %1479 = vmatpush.bf16.msra.mxu0 %v930
  %1480 = vmatpush.bf16.msra.mxu0 %v928
  %1481 = vmatpush.bf16.msra.mxu0 %v926
  %1482 = vmatpush.bf16.msra.mxu0 %v924
  %1483 = vmatpush.bf16.msra.mxu0 %v922
  %1484 = vmatpush.bf16.msra.mxu0 %v920
  %1485 = vmatpush.bf16.msra.mxu0 %v918
  %1486 = vmatpush.bf16.msra.mxu0 %v916
  %1487 = vmatmul.bf16.gmra.mxu0 %v245
  %v1488 = vpop.f32.mrf.mxu0
  %v1489 = vadd.f32 %v1476, %v1488
  %v1490 = vpop.f32.mrf.mxu0
  %1491 = vdwg.mxu0
  %1492 = vmatpush.bf16.msra.mxu0 %v946
  %1493 = vmatpush.bf16.msra.mxu0 %v944
  %1494 = vmatpush.bf16.msra.mxu0 %v942
  %1495 = vmatpush.bf16.msra.mxu0 %v940
  %1496 = vmatpush.bf16.msra.mxu0 %v938
  %1497 = vmatpush.bf16.msra.mxu0 %v936
  %1498 = vmatpush.bf16.msra.mxu0 %v934
  %1499 = vmatpush.bf16.msra.mxu0 %v932
  %1500 = vmatmul.bf16.gmra.mxu0 %v246
  %v1501 = vpop.f32.mrf.mxu0
  %v1502 = vadd.f32 %v1489, %v1501
  %v1503 = vpop.f32.mrf.mxu0
  %1504 = vdwg.mxu0
  %1505 = vmatpush.bf16.msra.mxu0 %v962
  %1506 = vmatpush.bf16.msra.mxu0 %v960
  %1507 = vmatpush.bf16.msra.mxu0 %v958
  %1508 = vmatpush.bf16.msra.mxu0 %v956
  %1509 = vmatpush.bf16.msra.mxu0 %v954
  %1510 = vmatpush.bf16.msra.mxu0 %v952
  %1511 = vmatpush.bf16.msra.mxu0 %v950
  %1512 = vmatpush.bf16.msra.mxu0 %v948
  %1513 = vmatmul.bf16.gmra.mxu0 %v247
  %v1514 = vpop.f32.mrf.mxu0
  %v1515 = vadd.f32 %v1502, %v1514
  %v1516 = vpop.f32.mrf.mxu0
  %1517 = vdwg.mxu0
  %1518 = vmatpush.bf16.msra.mxu0 %v978
  %1519 = vmatpush.bf16.msra.mxu0 %v976
  %1520 = vmatpush.bf16.msra.mxu0 %v974
  %1521 = vmatpush.bf16.msra.mxu0 %v972
  %1522 = vmatpush.bf16.msra.mxu0 %v970
  %1523 = vmatpush.bf16.msra.mxu0 %v968
  %1524 = vmatpush.bf16.msra.mxu0 %v966
  %1525 = vmatpush.bf16.msra.mxu0 %v964
  %1526 = vmatmul.bf16.gmra.mxu0 %v248
  %v1527 = vpop.f32.mrf.mxu0
  %v1528 = vadd.f32 %v1515, %v1527
  %v1529 = vpop.f32.mrf.mxu0
  %1530 = vdwg.mxu0
  %1531 = vmatpush.bf16.msra.mxu0 %v994
  %1532 = vmatpush.bf16.msra.mxu0 %v992
  %1533 = vmatpush.bf16.msra.mxu0 %v990
  %1534 = vmatpush.bf16.msra.mxu0 %v988
  %1535 = vmatpush.bf16.msra.mxu0 %v986
  %1536 = vmatpush.bf16.msra.mxu0 %v984
  %1537 = vmatpush.bf16.msra.mxu0 %v982
  %1538 = vmatpush.bf16.msra.mxu0 %v980
  %1539 = vmatmul.bf16.gmra.mxu0 %v249
  %v1540 = vpop.f32.mrf.mxu0
  %v1541 = vadd.f32 %v1528, %v1540
  %v1542 = vpop.f32.mrf.mxu0
  %1543 = vdwg.mxu0
  %1544 = vmatpush.bf16.msra.mxu0 %v1010
  %1545 = vmatpush.bf16.msra.mxu0 %v1008
  %1546 = vmatpush.bf16.msra.mxu0 %v1006
  %1547 = vmatpush.bf16.msra.mxu0 %v1004
  %1548 = vmatpush.bf16.msra.mxu0 %v1002
  %1549 = vmatpush.bf16.msra.mxu0 %v1000
  %1550 = vmatpush.bf16.msra.mxu0 %v998
  %1551 = vmatpush.bf16.msra.mxu0 %v996
  %1552 = vmatmul.bf16.gmra.mxu0 %v250
  %v1553 = vpop.f32.mrf.mxu0
  %v1554 = vadd.f32 %v1541, %v1553
  %v1555 = vpop.f32.mrf.mxu0
  %1556 = vdwg.mxu0
  %1557 = vmatpush.bf16.msra.mxu0 %v1026
  %1558 = vmatpush.bf16.msra.mxu0 %v1024
  %1559 = vmatpush.bf16.msra.mxu0 %v1022
  %1560 = vmatpush.bf16.msra.mxu0 %v1020
  %1561 = vmatpush.bf16.msra.mxu0 %v1018
  %1562 = vmatpush.bf16.msra.mxu0 %v1016
  %1563 = vmatpush.bf16.msra.mxu0 %v1014
  %1564 = vmatpush.bf16.msra.mxu0 %v1012
  %1565 = vmatmul.bf16.gmra.mxu0 %v251
  %v1566 = vpop.f32.mrf.mxu0
  %v1567 = vadd.f32 %v1554, %v1566
  %v1568 = vpop.f32.mrf.mxu0
  %1569 = vdwg.mxu0
  %1570 = vmatpush.bf16.msra.mxu0 %v1042
  %1571 = vmatpush.bf16.msra.mxu0 %v1040
  %1572 = vmatpush.bf16.msra.mxu0 %v1038
  %1573 = vmatpush.bf16.msra.mxu0 %v1036
  %1574 = vmatpush.bf16.msra.mxu0 %v1034
  %1575 = vmatpush.bf16.msra.mxu0 %v1032
  %1576 = vmatpush.bf16.msra.mxu0 %v1030
  %1577 = vmatpush.bf16.msra.mxu0 %v1028
  %1578 = vmatmul.bf16.gmra.mxu0 %v252
  %v1579 = vpop.f32.mrf.mxu0
  %v1580 = vadd.f32 %v1567, %v1579
  %v1581 = vpop.f32.mrf.mxu0
  %1582 = vdwg.mxu0
  %1583 = vmatpush.bf16.msra.mxu0 %v1058
  %1584 = vmatpush.bf16.msra.mxu0 %v1056
  %1585 = vmatpush.bf16.msra.mxu0 %v1054
  %1586 = vmatpush.bf16.msra.mxu0 %v1052
  %1587 = vmatpush.bf16.msra.mxu0 %v1050
  %1588 = vmatpush.bf16.msra.mxu0 %v1048
  %1589 = vmatpush.bf16.msra.mxu0 %v1046
  %1590 = vmatpush.bf16.msra.mxu0 %v1044
  %1591 = vmatmul.bf16.gmra.mxu0 %v253
  %v1592 = vpop.f32.mrf.mxu0
  %v1593 = vadd.f32 %v1580, %v1592
  %v1594 = vpop.f32.mrf.mxu0
  %1595 = vdwg.mxu0
  %1596 = vmatpush.bf16.msra.mxu0 0
  %1597 = vmatpush.bf16.msra.mxu0 0
  %1598 = vmatpush.bf16.msra.mxu0 0
  %1599 = vmatpush.bf16.msra.mxu0 0
  %1600 = vmatpush.bf16.msra.mxu0 %v1066
  %1601 = vmatpush.bf16.msra.mxu0 %v1064
  %1602 = vmatpush.bf16.msra.mxu0 %v1062
  %1603 = vmatpush.bf16.msra.mxu0 %v1060
  %1604 = vmatmul.bf16.gmra.mxu0 %v1269
  %v1605 = vpop.f32.mrf.mxu0
  %v1606 = vadd.f32 %v1593, %v1605
  %v1607 = vpop.f32.mrf.mxu0
  %1608 = vdwg.mxu0
  %s1609 = scalar_lea.vmem %s0, 52
  %v1610 = vld [vmem:[%s1609] sm:$0xff]
  %v1611 = vld [vmem:[%s1609 + $0x8] sm:$0xff]
  %v1612 = vld [vmem:[%s1609 + $0x10] sm:$0xff]
  %v1613 = vld [vmem:[%s1609 + $0x18] sm:$0xff]
  %v1614 = vld [vmem:[%s1609 + $0x20] sm:$0xff]
  %v1615 = vld [vmem:[%s1609 + $0x28] sm:$0xff]
  %v1616 = vld [vmem:[%s1609 + $0x30] sm:$0xf]
  %v1624 = vunpack.c.l.b16 %v1610
  %v1625 = vunpack.c.h.b16 %v1610
  %v1626 = vunpack.c.l.b16 %v1611
  %v1627 = vunpack.c.h.b16 %v1611
  %v1628 = vunpack.c.l.b16 %v1612
  %v1629 = vunpack.c.h.b16 %v1612
  %v1630 = vunpack.c.l.b16 %v1613
  %v1631 = vunpack.c.h.b16 %v1613
  %v1632 = vunpack.c.l.b16 %v1614
  %v1633 = vunpack.c.h.b16 %v1614
  %v1634 = vunpack.c.l.b16 %v1615
  %v1635 = vunpack.c.h.b16 %v1615
  %v1636 = vunpack.c.l.b16 %v1616
  %v1637 = vpack.c.b16 %v1624, %v1624
  %v1638 = vpack.c.b16 %v1625, %v1625
  %v1639 = vpack.c.b16 %v1626, %v1626
  %v1640 = vpack.c.b16 %v1627, %v1627
  %v1641 = vpack.c.b16 %v1628, %v1628
  %v1642 = vpack.c.b16 %v1629, %v1629
  %v1643 = vpack.c.b16 %v1630, %v1630
  %v1644 = vpack.c.b16 %v1631, %v1631
  %v1645 = vpack.c.b16 %v1632, %v1632
  %v1646 = vpack.c.b16 %v1633, %v1633
  %v1647 = vpack.c.b16 %v1634, %v1634
  %v1648 = vpack.c.b16 %v1635, %v1635
  %v1649 = vpack.c.b16 %v1636, %v1636
  %v1663 = vsel %vm1267, %v1649, 0
  %1665 = vmatpush.bf16.msra.mxu0 %v881
  %1666 = vmatpush.bf16.msra.mxu0 %v879
  %1667 = vmatpush.bf16.msra.mxu0 %v877
  %1668 = vmatpush.bf16.msra.mxu0 %v875
  %1669 = vmatpush.bf16.msra.mxu0 %v873
  %1670 = vmatpush.bf16.msra.mxu0 %v871
  %1671 = vmatpush.bf16.msra.mxu0 %v869
  %1672 = vmatpush.bf16.msra.mxu0 %v867
  %1673 = vmatmul.bf16.gmra.mxu0 %v1637
  %v1674 = vpop.f32.mrf.mxu0
  %v1675 = vadd.f32 0.0, %v1674
  %v1676 = vpop.f32.mrf.mxu0
  %1677 = vdwg.mxu0
  %1678 = vmatpush.bf16.msra.mxu0 %v897
  %1679 = vmatpush.bf16.msra.mxu0 %v895
  %1680 = vmatpush.bf16.msra.mxu0 %v893
  %1681 = vmatpush.bf16.msra.mxu0 %v891
  %1682 = vmatpush.bf16.msra.mxu0 %v889
  %1683 = vmatpush.bf16.msra.mxu0 %v887
  %1684 = vmatpush.bf16.msra.mxu0 %v885
  %1685 = vmatpush.bf16.msra.mxu0 %v883
  %1686 = vmatmul.bf16.gmra.mxu0 %v1638
  %v1687 = vpop.f32.mrf.mxu0
  %v1688 = vadd.f32 %v1675, %v1687
  %v1689 = vpop.f32.mrf.mxu0
  %1690 = vdwg.mxu0
  %1691 = vmatpush.bf16.msra.mxu0 %v913
  %1692 = vmatpush.bf16.msra.mxu0 %v911
  %1693 = vmatpush.bf16.msra.mxu0 %v909
  %1694 = vmatpush.bf16.msra.mxu0 %v907
  %1695 = vmatpush.bf16.msra.mxu0 %v905
  %1696 = vmatpush.bf16.msra.mxu0 %v903
  %1697 = vmatpush.bf16.msra.mxu0 %v901
  %1698 = vmatpush.bf16.msra.mxu0 %v899
  %1699 = vmatmul.bf16.gmra.mxu0 %v1639
  %v1700 = vpop.f32.mrf.mxu0
  %v1701 = vadd.f32 %v1688, %v1700
  %v1702 = vpop.f32.mrf.mxu0
  %1703 = vdwg.mxu0
  %1704 = vmatpush.bf16.msra.mxu0 %v929
  %1705 = vmatpush.bf16.msra.mxu0 %v927
  %1706 = vmatpush.bf16.msra.mxu0 %v925
  %1707 = vmatpush.bf16.msra.mxu0 %v923
  %1708 = vmatpush.bf16.msra.mxu0 %v921
  %1709 = vmatpush.bf16.msra.mxu0 %v919
  %1710 = vmatpush.bf16.msra.mxu0 %v917
  %1711 = vmatpush.bf16.msra.mxu0 %v915
  %1712 = vmatmul.bf16.gmra.mxu0 %v1640
  %v1713 = vpop.f32.mrf.mxu0
  %v1714 = vadd.f32 %v1701, %v1713
  %v1715 = vpop.f32.mrf.mxu0
  %1716 = vdwg.mxu0
  %1717 = vmatpush.bf16.msra.mxu0 %v945
  %1718 = vmatpush.bf16.msra.mxu0 %v943
  %1719 = vmatpush.bf16.msra.mxu0 %v941
  %1720 = vmatpush.bf16.msra.mxu0 %v939
  %1721 = vmatpush.bf16.msra.mxu0 %v937
  %1722 = vmatpush.bf16.msra.mxu0 %v935
  %1723 = vmatpush.bf16.msra.mxu0 %v933
  %1724 = vmatpush.bf16.msra.mxu0 %v931
  %1725 = vmatmul.bf16.gmra.mxu0 %v1641
  %v1726 = vpop.f32.mrf.mxu0
  %v1727 = vadd.f32 %v1714, %v1726
  %v1728 = vpop.f32.mrf.mxu0
  %1729 = vdwg.mxu0
  %1730 = vmatpush.bf16.msra.mxu0 %v961
  %1731 = vmatpush.bf16.msra.mxu0 %v959
  %1732 = vmatpush.bf16.msra.mxu0 %v957
  %1733 = vmatpush.bf16.msra.mxu0 %v955
  %1734 = vmatpush.bf16.msra.mxu0 %v953
  %1735 = vmatpush.bf16.msra.mxu0 %v951
  %1736 = vmatpush.bf16.msra.mxu0 %v949
  %1737 = vmatpush.bf16.msra.mxu0 %v947
  %1738 = vmatmul.bf16.gmra.mxu0 %v1642
  %v1739 = vpop.f32.mrf.mxu0
  %v1740 = vadd.f32 %v1727, %v1739
  %v1741 = vpop.f32.mrf.mxu0
  %1742 = vdwg.mxu0
  %1743 = vmatpush.bf16.msra.mxu0 %v977
  %1744 = vmatpush.bf16.msra.mxu0 %v975
  %1745 = vmatpush.bf16.msra.mxu0 %v973
  %1746 = vmatpush.bf16.msra.mxu0 %v971
  %1747 = vmatpush.bf16.msra.mxu0 %v969
  %1748 = vmatpush.bf16.msra.mxu0 %v967
  %1749 = vmatpush.bf16.msra.mxu0 %v965
  %1750 = vmatpush.bf16.msra.mxu0 %v963
  %1751 = vmatmul.bf16.gmra.mxu0 %v1643
  %v1752 = vpop.f32.mrf.mxu0
  %v1753 = vadd.f32 %v1740, %v1752
  %v1754 = vpop.f32.mrf.mxu0
  %1755 = vdwg.mxu0
  %1756 = vmatpush.bf16.msra.mxu0 %v993
  %1757 = vmatpush.bf16.msra.mxu0 %v991
  %1758 = vmatpush.bf16.msra.mxu0 %v989
  %1759 = vmatpush.bf16.msra.mxu0 %v987
  %1760 = vmatpush.bf16.msra.mxu0 %v985
  %1761 = vmatpush.bf16.msra.mxu0 %v983
  %1762 = vmatpush.bf16.msra.mxu0 %v981
  %1763 = vmatpush.bf16.msra.mxu0 %v979
  %1764 = vmatmul.bf16.gmra.mxu0 %v1644
  %v1765 = vpop.f32.mrf.mxu0
  %v1766 = vadd.f32 %v1753, %v1765
  %v1767 = vpop.f32.mrf.mxu0
  %1768 = vdwg.mxu0
  %1769 = vmatpush.bf16.msra.mxu0 %v1009
  %1770 = vmatpush.bf16.msra.mxu0 %v1007
  %1771 = vmatpush.bf16.msra.mxu0 %v1005
  %1772 = vmatpush.bf16.msra.mxu0 %v1003
  %1773 = vmatpush.bf16.msra.mxu0 %v1001
  %1774 = vmatpush.bf16.msra.mxu0 %v999
  %1775 = vmatpush.bf16.msra.mxu0 %v997
  %1776 = vmatpush.bf16.msra.mxu0 %v995
  %1777 = vmatmul.bf16.gmra.mxu0 %v1645
  %v1778 = vpop.f32.mrf.mxu0
  %v1779 = vadd.f32 %v1766, %v1778
  %v1780 = vpop.f32.mrf.mxu0
  %1781 = vdwg.mxu0
  %1782 = vmatpush.bf16.msra.mxu0 %v1025
  %1783 = vmatpush.bf16.msra.mxu0 %v1023
  %1784 = vmatpush.bf16.msra.mxu0 %v1021
  %1785 = vmatpush.bf16.msra.mxu0 %v1019
  %1786 = vmatpush.bf16.msra.mxu0 %v1017
  %1787 = vmatpush.bf16.msra.mxu0 %v1015
  %1788 = vmatpush.bf16.msra.mxu0 %v1013
  %1789 = vmatpush.bf16.msra.mxu0 %v1011
  %1790 = vmatmul.bf16.gmra.mxu0 %v1646
  %v1791 = vpop.f32.mrf.mxu0
  %v1792 = vadd.f32 %v1779, %v1791
  %v1793 = vpop.f32.mrf.mxu0
  %1794 = vdwg.mxu0
  %1795 = vmatpush.bf16.msra.mxu0 %v1041
  %1796 = vmatpush.bf16.msra.mxu0 %v1039
  %1797 = vmatpush.bf16.msra.mxu0 %v1037
  %1798 = vmatpush.bf16.msra.mxu0 %v1035
  %1799 = vmatpush.bf16.msra.mxu0 %v1033
  %1800 = vmatpush.bf16.msra.mxu0 %v1031
  %1801 = vmatpush.bf16.msra.mxu0 %v1029
  %1802 = vmatpush.bf16.msra.mxu0 %v1027
  %1803 = vmatmul.bf16.gmra.mxu0 %v1647
  %v1804 = vpop.f32.mrf.mxu0
  %v1805 = vadd.f32 %v1792, %v1804
  %v1806 = vpop.f32.mrf.mxu0
  %1807 = vdwg.mxu0
  %1808 = vmatpush.bf16.msra.mxu0 %v1057
  %1809 = vmatpush.bf16.msra.mxu0 %v1055
  %1810 = vmatpush.bf16.msra.mxu0 %v1053
  %1811 = vmatpush.bf16.msra.mxu0 %v1051
  %1812 = vmatpush.bf16.msra.mxu0 %v1049
  %1813 = vmatpush.bf16.msra.mxu0 %v1047
  %1814 = vmatpush.bf16.msra.mxu0 %v1045
  %1815 = vmatpush.bf16.msra.mxu0 %v1043
  %1816 = vmatmul.bf16.gmra.mxu0 %v1648
  %v1817 = vpop.f32.mrf.mxu0
  %v1818 = vadd.f32 %v1805, %v1817
  %v1819 = vpop.f32.mrf.mxu0
  %1820 = vdwg.mxu0
  %1821 = vmatpush.bf16.msra.mxu0 0
  %1822 = vmatpush.bf16.msra.mxu0 0
  %1823 = vmatpush.bf16.msra.mxu0 0
  %1824 = vmatpush.bf16.msra.mxu0 0
  %1825 = vmatpush.bf16.msra.mxu0 %v1065
  %1826 = vmatpush.bf16.msra.mxu0 %v1063
  %1827 = vmatpush.bf16.msra.mxu0 %v1061
  %1828 = vmatpush.bf16.msra.mxu0 %v1059
  %1829 = vmatmul.bf16.gmra.mxu0 %v1663
  %v1830 = vpop.f32.mrf.mxu0
  %v1831 = vadd.f32 %v1818, %v1830
  %v1832 = vpop.f32.mrf.mxu0
  %1833 = vdwg.mxu0
  %1834 = vmatpush.bf16.msra.mxu0 %v882
  %1835 = vmatpush.bf16.msra.mxu0 %v880
  %1836 = vmatpush.bf16.msra.mxu0 %v878
  %1837 = vmatpush.bf16.msra.mxu0 %v876
  %1838 = vmatpush.bf16.msra.mxu0 %v874
  %1839 = vmatpush.bf16.msra.mxu0 %v872
  %1840 = vmatpush.bf16.msra.mxu0 %v870
  %1841 = vmatpush.bf16.msra.mxu0 %v868
  %1842 = vmatmul.bf16.gmra.mxu0 %v1637
  %v1843 = vpop.f32.mrf.mxu0
  %v1844 = vadd.f32 0.0, %v1843
  %v1845 = vpop.f32.mrf.mxu0
  %1846 = vdwg.mxu0
  %1847 = vmatpush.bf16.msra.mxu0 %v898
  %1848 = vmatpush.bf16.msra.mxu0 %v896
  %1849 = vmatpush.bf16.msra.mxu0 %v894
  %1850 = vmatpush.bf16.msra.mxu0 %v892
  %1851 = vmatpush.bf16.msra.mxu0 %v890
  %1852 = vmatpush.bf16.msra.mxu0 %v888
  %1853 = vmatpush.bf16.msra.mxu0 %v886
  %1854 = vmatpush.bf16.msra.mxu0 %v884
  %1855 = vmatmul.bf16.gmra.mxu0 %v1638
  %v1856 = vpop.f32.mrf.mxu0
  %v1857 = vadd.f32 %v1844, %v1856
  %v1858 = vpop.f32.mrf.mxu0
  %1859 = vdwg.mxu0
  %1860 = vmatpush.bf16.msra.mxu0 %v914
  %1861 = vmatpush.bf16.msra.mxu0 %v912
  %1862 = vmatpush.bf16.msra.mxu0 %v910
  %1863 = vmatpush.bf16.msra.mxu0 %v908
  %1864 = vmatpush.bf16.msra.mxu0 %v906
  %1865 = vmatpush.bf16.msra.mxu0 %v904
  %1866 = vmatpush.bf16.msra.mxu0 %v902
  %1867 = vmatpush.bf16.msra.mxu0 %v900
  %1868 = vmatmul.bf16.gmra.mxu0 %v1639
  %v1869 = vpop.f32.mrf.mxu0
  %v1870 = vadd.f32 %v1857, %v1869
  %v1871 = vpop.f32.mrf.mxu0
  %1872 = vdwg.mxu0
  %1873 = vmatpush.bf16.msra.mxu0 %v930
  %1874 = vmatpush.bf16.msra.mxu0 %v928
  %1875 = vmatpush.bf16.msra.mxu0 %v926
  %1876 = vmatpush.bf16.msra.mxu0 %v924
  %1877 = vmatpush.bf16.msra.mxu0 %v922
  %1878 = vmatpush.bf16.msra.mxu0 %v920
  %1879 = vmatpush.bf16.msra.mxu0 %v918
  %1880 = vmatpush.bf16.msra.mxu0 %v916
  %1881 = vmatmul.bf16.gmra.mxu0 %v1640
  %v1882 = vpop.f32.mrf.mxu0
  %v1883 = vadd.f32 %v1870, %v1882
  %v1884 = vpop.f32.mrf.mxu0
  %1885 = vdwg.mxu0
  %1886 = vmatpush.bf16.msra.mxu0 %v946
  %1887 = vmatpush.bf16.msra.mxu0 %v944
  %1888 = vmatpush.bf16.msra.mxu0 %v942
  %1889 = vmatpush.bf16.msra.mxu0 %v940
  %1890 = vmatpush.bf16.msra.mxu0 %v938
  %1891 = vmatpush.bf16.msra.mxu0 %v936
  %1892 = vmatpush.bf16.msra.mxu0 %v934
  %1893 = vmatpush.bf16.msra.mxu0 %v932
  %1894 = vmatmul.bf16.gmra.mxu0 %v1641
  %v1895 = vpop.f32.mrf.mxu0
  %v1896 = vadd.f32 %v1883, %v1895
  %v1897 = vpop.f32.mrf.mxu0
  %1898 = vdwg.mxu0
  %1899 = vmatpush.bf16.msra.mxu0 %v962
  %1900 = vmatpush.bf16.msra.mxu0 %v960
  %1901 = vmatpush.bf16.msra.mxu0 %v958
  %1902 = vmatpush.bf16.msra.mxu0 %v956
  %1903 = vmatpush.bf16.msra.mxu0 %v954
  %1904 = vmatpush.bf16.msra.mxu0 %v952
  %1905 = vmatpush.bf16.msra.mxu0 %v950
  %1906 = vmatpush.bf16.msra.mxu0 %v948
  %1907 = vmatmul.bf16.gmra.mxu0 %v1642
  %v1908 = vpop.f32.mrf.mxu0
  %v1909 = vadd.f32 %v1896, %v1908
  %v1910 = vpop.f32.mrf.mxu0
  %1911 = vdwg.mxu0
  %1912 = vmatpush.bf16.msra.mxu0 %v978
  %1913 = vmatpush.bf16.msra.mxu0 %v976
  %1914 = vmatpush.bf16.msra.mxu0 %v974
  %1915 = vmatpush.bf16.msra.mxu0 %v972
  %1916 = vmatpush.bf16.msra.mxu0 %v970
  %1917 = vmatpush.bf16.msra.mxu0 %v968
  %1918 = vmatpush.bf16.msra.mxu0 %v966
  %1919 = vmatpush.bf16.msra.mxu0 %v964
  %1920 = vmatmul.bf16.gmra.mxu0 %v1643
  %v1921 = vpop.f32.mrf.mxu0
  %v1922 = vadd.f32 %v1909, %v1921
  %v1923 = vpop.f32.mrf.mxu0
  %1924 = vdwg.mxu0
  %1925 = vmatpush.bf16.msra.mxu0 %v994
  %1926 = vmatpush.bf16.msra.mxu0 %v992
  %1927 = vmatpush.bf16.msra.mxu0 %v990
  %1928 = vmatpush.bf16.msra.mxu0 %v988
  %1929 = vmatpush.bf16.msra.mxu0 %v986
  %1930 = vmatpush.bf16.msra.mxu0 %v984
  %1931 = vmatpush.bf16.msra.mxu0 %v982
  %1932 = vmatpush.bf16.msra.mxu0 %v980
  %1933 = vmatmul.bf16.gmra.mxu0 %v1644
  %v1934 = vpop.f32.mrf.mxu0
  %v1935 = vadd.f32 %v1922, %v1934
  %v1936 = vpop.f32.mrf.mxu0
  %1937 = vdwg.mxu0
  %1938 = vmatpush.bf16.msra.mxu0 %v1010
  %1939 = vmatpush.bf16.msra.mxu0 %v1008
  %1940 = vmatpush.bf16.msra.mxu0 %v1006
  %1941 = vmatpush.bf16.msra.mxu0 %v1004
  %1942 = vmatpush.bf16.msra.mxu0 %v1002
  %1943 = vmatpush.bf16.msra.mxu0 %v1000
  %1944 = vmatpush.bf16.msra.mxu0 %v998
  %1945 = vmatpush.bf16.msra.mxu0 %v996
  %1946 = vmatmul.bf16.gmra.mxu0 %v1645
  %v1947 = vpop.f32.mrf.mxu0
  %v1948 = vadd.f32 %v1935, %v1947
  %v1949 = vpop.f32.mrf.mxu0
  %1950 = vdwg.mxu0
  %1951 = vmatpush.bf16.msra.mxu0 %v1026
  %1952 = vmatpush.bf16.msra.mxu0 %v1024
  %1953 = vmatpush.bf16.msra.mxu0 %v1022
  %1954 = vmatpush.bf16.msra.mxu0 %v1020
  %1955 = vmatpush.bf16.msra.mxu0 %v1018
  %1956 = vmatpush.bf16.msra.mxu0 %v1016
  %1957 = vmatpush.bf16.msra.mxu0 %v1014
  %1958 = vmatpush.bf16.msra.mxu0 %v1012
  %1959 = vmatmul.bf16.gmra.mxu0 %v1646
  %v1960 = vpop.f32.mrf.mxu0
  %v1961 = vadd.f32 %v1948, %v1960
  %v1962 = vpop.f32.mrf.mxu0
  %1963 = vdwg.mxu0
  %1964 = vmatpush.bf16.msra.mxu0 %v1042
  %1965 = vmatpush.bf16.msra.mxu0 %v1040
  %1966 = vmatpush.bf16.msra.mxu0 %v1038
  %1967 = vmatpush.bf16.msra.mxu0 %v1036
  %1968 = vmatpush.bf16.msra.mxu0 %v1034
  %1969 = vmatpush.bf16.msra.mxu0 %v1032
  %1970 = vmatpush.bf16.msra.mxu0 %v1030
  %1971 = vmatpush.bf16.msra.mxu0 %v1028
  %1972 = vmatmul.bf16.gmra.mxu0 %v1647
  %v1973 = vpop.f32.mrf.mxu0
  %v1974 = vadd.f32 %v1961, %v1973
  %v1975 = vpop.f32.mrf.mxu0
  %1976 = vdwg.mxu0
  %1977 = vmatpush.bf16.msra.mxu0 %v1058
  %1978 = vmatpush.bf16.msra.mxu0 %v1056
  %1979 = vmatpush.bf16.msra.mxu0 %v1054
  %1980 = vmatpush.bf16.msra.mxu0 %v1052
  %1981 = vmatpush.bf16.msra.mxu0 %v1050
  %1982 = vmatpush.bf16.msra.mxu0 %v1048
  %1983 = vmatpush.bf16.msra.mxu0 %v1046
  %1984 = vmatpush.bf16.msra.mxu0 %v1044
  %1985 = vmatmul.bf16.gmra.mxu0 %v1648
  %v1986 = vpop.f32.mrf.mxu0
  %v1987 = vadd.f32 %v1974, %v1986
  %v1988 = vpop.f32.mrf.mxu0
  %1989 = vdwg.mxu0
  %1990 = vmatpush.bf16.msra.mxu0 0
  %1991 = vmatpush.bf16.msra.mxu0 0
  %1992 = vmatpush.bf16.msra.mxu0 0
  %1993 = vmatpush.bf16.msra.mxu0 0
  %1994 = vmatpush.bf16.msra.mxu0 %v1066
  %1995 = vmatpush.bf16.msra.mxu0 %v1064
  %1996 = vmatpush.bf16.msra.mxu0 %v1062
  %1997 = vmatpush.bf16.msra.mxu0 %v1060
  %1998 = vmatmul.bf16.gmra.mxu0 %v1663
  %v1999 = vpop.f32.mrf.mxu0
  %v2000 = vadd.f32 %v1987, %v1999
  %v2001 = vpop.f32.mrf.mxu0
  %2002 = vdwg.mxu0
  %v2003 = vmax.f32 %v1437, %v1831
  %v2004 = vmax.f32 %v1606, %v2000
  %s2005 = scalar_lea.vmem %s0, 104
  %v2006 = vld [vmem:[%s2005] sm:$0xff]
  %v2007 = vld [vmem:[%s2005 + $0x8] sm:$0xff]
  %v2008 = vld [vmem:[%s2005 + $0x10] sm:$0xff]
  %v2009 = vld [vmem:[%s2005 + $0x18] sm:$0xff]
  %v2010 = vld [vmem:[%s2005 + $0x20] sm:$0xff]
  %v2011 = vld [vmem:[%s2005 + $0x28] sm:$0xff]
  %v2012 = vld [vmem:[%s2005 + $0x30] sm:$0xf]
  %v2020 = vunpack.c.l.b16 %v2006
  %v2021 = vunpack.c.h.b16 %v2006
  %v2022 = vunpack.c.l.b16 %v2007
  %v2023 = vunpack.c.h.b16 %v2007
  %v2024 = vunpack.c.l.b16 %v2008
  %v2025 = vunpack.c.h.b16 %v2008
  %v2026 = vunpack.c.l.b16 %v2009
  %v2027 = vunpack.c.h.b16 %v2009
  %v2028 = vunpack.c.l.b16 %v2010
  %v2029 = vunpack.c.h.b16 %v2010
  %v2030 = vunpack.c.l.b16 %v2011
  %v2031 = vunpack.c.h.b16 %v2011
  %v2032 = vunpack.c.l.b16 %v2012
  %v2033 = vpack.c.b16 %v2020, %v2020
  %v2034 = vpack.c.b16 %v2021, %v2021
  %v2035 = vpack.c.b16 %v2022, %v2022
  %v2036 = vpack.c.b16 %v2023, %v2023
  %v2037 = vpack.c.b16 %v2024, %v2024
  %v2038 = vpack.c.b16 %v2025, %v2025
  %v2039 = vpack.c.b16 %v2026, %v2026
  %v2040 = vpack.c.b16 %v2027, %v2027
  %v2041 = vpack.c.b16 %v2028, %v2028
  %v2042 = vpack.c.b16 %v2029, %v2029
  %v2043 = vpack.c.b16 %v2030, %v2030
  %v2044 = vpack.c.b16 %v2031, %v2031
  %v2045 = vpack.c.b16 %v2032, %v2032
  %v2059 = vsel %vm1267, %v2045, 0
  %2061 = vmatpush.bf16.msra.mxu0 %v881
  %2062 = vmatpush.bf16.msra.mxu0 %v879
  %2063 = vmatpush.bf16.msra.mxu0 %v877
  %2064 = vmatpush.bf16.msra.mxu0 %v875
  %2065 = vmatpush.bf16.msra.mxu0 %v873
  %2066 = vmatpush.bf16.msra.mxu0 %v871
  %2067 = vmatpush.bf16.msra.mxu0 %v869
  %2068 = vmatpush.bf16.msra.mxu0 %v867
  %2069 = vmatmul.bf16.gmra.mxu0 %v2033
  %v2070 = vpop.f32.mrf.mxu0
  %v2071 = vadd.f32 0.0, %v2070
  %v2072 = vpop.f32.mrf.mxu0
  %2073 = vdwg.mxu0
  %2074 = vmatpush.bf16.msra.mxu0 %v897
  %2075 = vmatpush.bf16.msra.mxu0 %v895
  %2076 = vmatpush.bf16.msra.mxu0 %v893
  %2077 = vmatpush.bf16.msra.mxu0 %v891
  %2078 = vmatpush.bf16.msra.mxu0 %v889
  %2079 = vmatpush.bf16.msra.mxu0 %v887
  %2080 = vmatpush.bf16.msra.mxu0 %v885
  %2081 = vmatpush.bf16.msra.mxu0 %v883
  %2082 = vmatmul.bf16.gmra.mxu0 %v2034
  %v2083 = vpop.f32.mrf.mxu0
  %v2084 = vadd.f32 %v2071, %v2083
  %v2085 = vpop.f32.mrf.mxu0
  %2086 = vdwg.mxu0
  %2087 = vmatpush.bf16.msra.mxu0 %v913
  %2088 = vmatpush.bf16.msra.mxu0 %v911
  %2089 = vmatpush.bf16.msra.mxu0 %v909
  %2090 = vmatpush.bf16.msra.mxu0 %v907
  %2091 = vmatpush.bf16.msra.mxu0 %v905
  %2092 = vmatpush.bf16.msra.mxu0 %v903
  %2093 = vmatpush.bf16.msra.mxu0 %v901
  %2094 = vmatpush.bf16.msra.mxu0 %v899
  %2095 = vmatmul.bf16.gmra.mxu0 %v2035
  %v2096 = vpop.f32.mrf.mxu0
  %v2097 = vadd.f32 %v2084, %v2096
  %v2098 = vpop.f32.mrf.mxu0
  %2099 = vdwg.mxu0
  %2100 = vmatpush.bf16.msra.mxu0 %v929
  %2101 = vmatpush.bf16.msra.mxu0 %v927
  %2102 = vmatpush.bf16.msra.mxu0 %v925
  %2103 = vmatpush.bf16.msra.mxu0 %v923
  %2104 = vmatpush.bf16.msra.mxu0 %v921
  %2105 = vmatpush.bf16.msra.mxu0 %v919
  %2106 = vmatpush.bf16.msra.mxu0 %v917
  %2107 = vmatpush.bf16.msra.mxu0 %v915
  %2108 = vmatmul.bf16.gmra.mxu0 %v2036
  %v2109 = vpop.f32.mrf.mxu0
  %v2110 = vadd.f32 %v2097, %v2109
  %v2111 = vpop.f32.mrf.mxu0
  %2112 = vdwg.mxu0
  %2113 = vmatpush.bf16.msra.mxu0 %v945
  %2114 = vmatpush.bf16.msra.mxu0 %v943
  %2115 = vmatpush.bf16.msra.mxu0 %v941
  %2116 = vmatpush.bf16.msra.mxu0 %v939
  %2117 = vmatpush.bf16.msra.mxu0 %v937
  %2118 = vmatpush.bf16.msra.mxu0 %v935
  %2119 = vmatpush.bf16.msra.mxu0 %v933
  %2120 = vmatpush.bf16.msra.mxu0 %v931
  %2121 = vmatmul.bf16.gmra.mxu0 %v2037
  %v2122 = vpop.f32.mrf.mxu0
  %v2123 = vadd.f32 %v2110, %v2122
  %v2124 = vpop.f32.mrf.mxu0
  %2125 = vdwg.mxu0
  %2126 = vmatpush.bf16.msra.mxu0 %v961
  %2127 = vmatpush.bf16.msra.mxu0 %v959
  %2128 = vmatpush.bf16.msra.mxu0 %v957
  %2129 = vmatpush.bf16.msra.mxu0 %v955
  %2130 = vmatpush.bf16.msra.mxu0 %v953
  %2131 = vmatpush.bf16.msra.mxu0 %v951
  %2132 = vmatpush.bf16.msra.mxu0 %v949
  %2133 = vmatpush.bf16.msra.mxu0 %v947
  %2134 = vmatmul.bf16.gmra.mxu0 %v2038
  %v2135 = vpop.f32.mrf.mxu0
  %v2136 = vadd.f32 %v2123, %v2135
  %v2137 = vpop.f32.mrf.mxu0
  %2138 = vdwg.mxu0
  %2139 = vmatpush.bf16.msra.mxu0 %v977
  %2140 = vmatpush.bf16.msra.mxu0 %v975
  %2141 = vmatpush.bf16.msra.mxu0 %v973
  %2142 = vmatpush.bf16.msra.mxu0 %v971
  %2143 = vmatpush.bf16.msra.mxu0 %v969
  %2144 = vmatpush.bf16.msra.mxu0 %v967
  %2145 = vmatpush.bf16.msra.mxu0 %v965
  %2146 = vmatpush.bf16.msra.mxu0 %v963
  %2147 = vmatmul.bf16.gmra.mxu0 %v2039
  %v2148 = vpop.f32.mrf.mxu0
  %v2149 = vadd.f32 %v2136, %v2148
  %v2150 = vpop.f32.mrf.mxu0
  %2151 = vdwg.mxu0
  %2152 = vmatpush.bf16.msra.mxu0 %v993
  %2153 = vmatpush.bf16.msra.mxu0 %v991
  %2154 = vmatpush.bf16.msra.mxu0 %v989
  %2155 = vmatpush.bf16.msra.mxu0 %v987
  %2156 = vmatpush.bf16.msra.mxu0 %v985
  %2157 = vmatpush.bf16.msra.mxu0 %v983
  %2158 = vmatpush.bf16.msra.mxu0 %v981
  %2159 = vmatpush.bf16.msra.mxu0 %v979
  %2160 = vmatmul.bf16.gmra.mxu0 %v2040
  %v2161 = vpop.f32.mrf.mxu0
  %v2162 = vadd.f32 %v2149, %v2161
  %v2163 = vpop.f32.mrf.mxu0
  %2164 = vdwg.mxu0
  %2165 = vmatpush.bf16.msra.mxu0 %v1009
  %2166 = vmatpush.bf16.msra.mxu0 %v1007
  %2167 = vmatpush.bf16.msra.mxu0 %v1005
  %2168 = vmatpush.bf16.msra.mxu0 %v1003
  %2169 = vmatpush.bf16.msra.mxu0 %v1001
  %2170 = vmatpush.bf16.msra.mxu0 %v999
  %2171 = vmatpush.bf16.msra.mxu0 %v997
  %2172 = vmatpush.bf16.msra.mxu0 %v995
  %2173 = vmatmul.bf16.gmra.mxu0 %v2041
  %v2174 = vpop.f32.mrf.mxu0
  %v2175 = vadd.f32 %v2162, %v2174
  %v2176 = vpop.f32.mrf.mxu0
  %2177 = vdwg.mxu0
  %2178 = vmatpush.bf16.msra.mxu0 %v1025
  %2179 = vmatpush.bf16.msra.mxu0 %v1023
  %2180 = vmatpush.bf16.msra.mxu0 %v1021
  %2181 = vmatpush.bf16.msra.mxu0 %v1019
  %2182 = vmatpush.bf16.msra.mxu0 %v1017
  %2183 = vmatpush.bf16.msra.mxu0 %v1015
  %2184 = vmatpush.bf16.msra.mxu0 %v1013
  %2185 = vmatpush.bf16.msra.mxu0 %v1011
  %2186 = vmatmul.bf16.gmra.mxu0 %v2042
  %v2187 = vpop.f32.mrf.mxu0
  %v2188 = vadd.f32 %v2175, %v2187
  %v2189 = vpop.f32.mrf.mxu0
  %2190 = vdwg.mxu0
  %2191 = vmatpush.bf16.msra.mxu0 %v1041
  %2192 = vmatpush.bf16.msra.mxu0 %v1039
  %2193 = vmatpush.bf16.msra.mxu0 %v1037
  %2194 = vmatpush.bf16.msra.mxu0 %v1035
  %2195 = vmatpush.bf16.msra.mxu0 %v1033
  %2196 = vmatpush.bf16.msra.mxu0 %v1031
  %2197 = vmatpush.bf16.msra.mxu0 %v1029
  %2198 = vmatpush.bf16.msra.mxu0 %v1027
  %2199 = vmatmul.bf16.gmra.mxu0 %v2043
  %v2200 = vpop.f32.mrf.mxu0
  %v2201 = vadd.f32 %v2188, %v2200
  %v2202 = vpop.f32.mrf.mxu0
  %2203 = vdwg.mxu0
  %2204 = vmatpush.bf16.msra.mxu0 %v1057
  %2205 = vmatpush.bf16.msra.mxu0 %v1055
  %2206 = vmatpush.bf16.msra.mxu0 %v1053
  %2207 = vmatpush.bf16.msra.mxu0 %v1051
  %2208 = vmatpush.bf16.msra.mxu0 %v1049
  %2209 = vmatpush.bf16.msra.mxu0 %v1047
  %2210 = vmatpush.bf16.msra.mxu0 %v1045
  %2211 = vmatpush.bf16.msra.mxu0 %v1043
  %2212 = vmatmul.bf16.gmra.mxu0 %v2044
  %v2213 = vpop.f32.mrf.mxu0
  %v2214 = vadd.f32 %v2201, %v2213
  %v2215 = vpop.f32.mrf.mxu0
  %2216 = vdwg.mxu0
  %2217 = vmatpush.bf16.msra.mxu0 0
  %2218 = vmatpush.bf16.msra.mxu0 0
  %2219 = vmatpush.bf16.msra.mxu0 0
  %2220 = vmatpush.bf16.msra.mxu0 0
  %2221 = vmatpush.bf16.msra.mxu0 %v1065
  %2222 = vmatpush.bf16.msra.mxu0 %v1063
  %2223 = vmatpush.bf16.msra.mxu0 %v1061
  %2224 = vmatpush.bf16.msra.mxu0 %v1059
  %2225 = vmatmul.bf16.gmra.mxu0 %v2059
  %v2226 = vpop.f32.mrf.mxu0
  %v2227 = vadd.f32 %v2214, %v2226
  %v2228 = vpop.f32.mrf.mxu0
  %2229 = vdwg.mxu0
  %2230 = vmatpush.bf16.msra.mxu0 %v882
  %2231 = vmatpush.bf16.msra.mxu0 %v880
  %2232 = vmatpush.bf16.msra.mxu0 %v878
  %2233 = vmatpush.bf16.msra.mxu0 %v876
  %2234 = vmatpush.bf16.msra.mxu0 %v874
  %2235 = vmatpush.bf16.msra.mxu0 %v872
  %2236 = vmatpush.bf16.msra.mxu0 %v870
  %2237 = vmatpush.bf16.msra.mxu0 %v868
  %2238 = vmatmul.bf16.gmra.mxu0 %v2033
  %v2239 = vpop.f32.mrf.mxu0
  %v2240 = vadd.f32 0.0, %v2239
  %v2241 = vpop.f32.mrf.mxu0
  %2242 = vdwg.mxu0
  %2243 = vmatpush.bf16.msra.mxu0 %v898
  %2244 = vmatpush.bf16.msra.mxu0 %v896
  %2245 = vmatpush.bf16.msra.mxu0 %v894
  %2246 = vmatpush.bf16.msra.mxu0 %v892
  %2247 = vmatpush.bf16.msra.mxu0 %v890
  %2248 = vmatpush.bf16.msra.mxu0 %v888
  %2249 = vmatpush.bf16.msra.mxu0 %v886
  %2250 = vmatpush.bf16.msra.mxu0 %v884
  %2251 = vmatmul.bf16.gmra.mxu0 %v2034
  %v2252 = vpop.f32.mrf.mxu0
  %v2253 = vadd.f32 %v2240, %v2252
  %v2254 = vpop.f32.mrf.mxu0
  %2255 = vdwg.mxu0
  %2256 = vmatpush.bf16.msra.mxu0 %v914
  %2257 = vmatpush.bf16.msra.mxu0 %v912
  %2258 = vmatpush.bf16.msra.mxu0 %v910
  %2259 = vmatpush.bf16.msra.mxu0 %v908
  %2260 = vmatpush.bf16.msra.mxu0 %v906
  %2261 = vmatpush.bf16.msra.mxu0 %v904
  %2262 = vmatpush.bf16.msra.mxu0 %v902
  %2263 = vmatpush.bf16.msra.mxu0 %v900
  %2264 = vmatmul.bf16.gmra.mxu0 %v2035
  %v2265 = vpop.f32.mrf.mxu0
  %v2266 = vadd.f32 %v2253, %v2265
  %v2267 = vpop.f32.mrf.mxu0
  %2268 = vdwg.mxu0
  %2269 = vmatpush.bf16.msra.mxu0 %v930
  %2270 = vmatpush.bf16.msra.mxu0 %v928
  %2271 = vmatpush.bf16.msra.mxu0 %v926
  %2272 = vmatpush.bf16.msra.mxu0 %v924
  %2273 = vmatpush.bf16.msra.mxu0 %v922
  %2274 = vmatpush.bf16.msra.mxu0 %v920
  %2275 = vmatpush.bf16.msra.mxu0 %v918
  %2276 = vmatpush.bf16.msra.mxu0 %v916
  %2277 = vmatmul.bf16.gmra.mxu0 %v2036
  %v2278 = vpop.f32.mrf.mxu0
  %v2279 = vadd.f32 %v2266, %v2278
  %v2280 = vpop.f32.mrf.mxu0
  %2281 = vdwg.mxu0
  %2282 = vmatpush.bf16.msra.mxu0 %v946
  %2283 = vmatpush.bf16.msra.mxu0 %v944
  %2284 = vmatpush.bf16.msra.mxu0 %v942
  %2285 = vmatpush.bf16.msra.mxu0 %v940
  %2286 = vmatpush.bf16.msra.mxu0 %v938
  %2287 = vmatpush.bf16.msra.mxu0 %v936
  %2288 = vmatpush.bf16.msra.mxu0 %v934
  %2289 = vmatpush.bf16.msra.mxu0 %v932
  %2290 = vmatmul.bf16.gmra.mxu0 %v2037
  %v2291 = vpop.f32.mrf.mxu0
  %v2292 = vadd.f32 %v2279, %v2291
  %v2293 = vpop.f32.mrf.mxu0
  %2294 = vdwg.mxu0
  %2295 = vmatpush.bf16.msra.mxu0 %v962
  %2296 = vmatpush.bf16.msra.mxu0 %v960
  %2297 = vmatpush.bf16.msra.mxu0 %v958
  %2298 = vmatpush.bf16.msra.mxu0 %v956
  %2299 = vmatpush.bf16.msra.mxu0 %v954
  %2300 = vmatpush.bf16.msra.mxu0 %v952
  %2301 = vmatpush.bf16.msra.mxu0 %v950
  %2302 = vmatpush.bf16.msra.mxu0 %v948
  %2303 = vmatmul.bf16.gmra.mxu0 %v2038
  %v2304 = vpop.f32.mrf.mxu0
  %v2305 = vadd.f32 %v2292, %v2304
  %v2306 = vpop.f32.mrf.mxu0
  %2307 = vdwg.mxu0
  %2308 = vmatpush.bf16.msra.mxu0 %v978
  %2309 = vmatpush.bf16.msra.mxu0 %v976
  %2310 = vmatpush.bf16.msra.mxu0 %v974
  %2311 = vmatpush.bf16.msra.mxu0 %v972
  %2312 = vmatpush.bf16.msra.mxu0 %v970
  %2313 = vmatpush.bf16.msra.mxu0 %v968
  %2314 = vmatpush.bf16.msra.mxu0 %v966
  %2315 = vmatpush.bf16.msra.mxu0 %v964
  %2316 = vmatmul.bf16.gmra.mxu0 %v2039
  %v2317 = vpop.f32.mrf.mxu0
  %v2318 = vadd.f32 %v2305, %v2317
  %v2319 = vpop.f32.mrf.mxu0
  %2320 = vdwg.mxu0
  %2321 = vmatpush.bf16.msra.mxu0 %v994
  %2322 = vmatpush.bf16.msra.mxu0 %v992
  %2323 = vmatpush.bf16.msra.mxu0 %v990
  %2324 = vmatpush.bf16.msra.mxu0 %v988
  %2325 = vmatpush.bf16.msra.mxu0 %v986
  %2326 = vmatpush.bf16.msra.mxu0 %v984
  %2327 = vmatpush.bf16.msra.mxu0 %v982
  %2328 = vmatpush.bf16.msra.mxu0 %v980
  %2329 = vmatmul.bf16.gmra.mxu0 %v2040
  %v2330 = vpop.f32.mrf.mxu0
  %v2331 = vadd.f32 %v2318, %v2330
  %v2332 = vpop.f32.mrf.mxu0
  %2333 = vdwg.mxu0
  %2334 = vmatpush.bf16.msra.mxu0 %v1010
  %2335 = vmatpush.bf16.msra.mxu0 %v1008
  %2336 = vmatpush.bf16.msra.mxu0 %v1006
  %2337 = vmatpush.bf16.msra.mxu0 %v1004
  %2338 = vmatpush.bf16.msra.mxu0 %v1002
  %2339 = vmatpush.bf16.msra.mxu0 %v1000
  %2340 = vmatpush.bf16.msra.mxu0 %v998
  %2341 = vmatpush.bf16.msra.mxu0 %v996
  %2342 = vmatmul.bf16.gmra.mxu0 %v2041
  %v2343 = vpop.f32.mrf.mxu0
  %v2344 = vadd.f32 %v2331, %v2343
  %v2345 = vpop.f32.mrf.mxu0
  %2346 = vdwg.mxu0
  %2347 = vmatpush.bf16.msra.mxu0 %v1026
  %2348 = vmatpush.bf16.msra.mxu0 %v1024
  %2349 = vmatpush.bf16.msra.mxu0 %v1022
  %2350 = vmatpush.bf16.msra.mxu0 %v1020
  %2351 = vmatpush.bf16.msra.mxu0 %v1018
  %2352 = vmatpush.bf16.msra.mxu0 %v1016
  %2353 = vmatpush.bf16.msra.mxu0 %v1014
  %2354 = vmatpush.bf16.msra.mxu0 %v1012
  %2355 = vmatmul.bf16.gmra.mxu0 %v2042
  %v2356 = vpop.f32.mrf.mxu0
  %v2357 = vadd.f32 %v2344, %v2356
  %v2358 = vpop.f32.mrf.mxu0
  %2359 = vdwg.mxu0
  %2360 = vmatpush.bf16.msra.mxu0 %v1042
  %2361 = vmatpush.bf16.msra.mxu0 %v1040
  %2362 = vmatpush.bf16.msra.mxu0 %v1038
  %2363 = vmatpush.bf16.msra.mxu0 %v1036
  %2364 = vmatpush.bf16.msra.mxu0 %v1034
  %2365 = vmatpush.bf16.msra.mxu0 %v1032
  %2366 = vmatpush.bf16.msra.mxu0 %v1030
  %2367 = vmatpush.bf16.msra.mxu0 %v1028
  %2368 = vmatmul.bf16.gmra.mxu0 %v2043
  %v2369 = vpop.f32.mrf.mxu0
  %v2370 = vadd.f32 %v2357, %v2369
  %v2371 = vpop.f32.mrf.mxu0
  %2372 = vdwg.mxu0
  %2373 = vmatpush.bf16.msra.mxu0 %v1058
  %2374 = vmatpush.bf16.msra.mxu0 %v1056
  %2375 = vmatpush.bf16.msra.mxu0 %v1054
  %2376 = vmatpush.bf16.msra.mxu0 %v1052
  %2377 = vmatpush.bf16.msra.mxu0 %v1050
  %2378 = vmatpush.bf16.msra.mxu0 %v1048
  %2379 = vmatpush.bf16.msra.mxu0 %v1046
  %2380 = vmatpush.bf16.msra.mxu0 %v1044
  %2381 = vmatmul.bf16.gmra.mxu0 %v2044
  %v2382 = vpop.f32.mrf.mxu0
  %v2383 = vadd.f32 %v2370, %v2382
  %v2384 = vpop.f32.mrf.mxu0
  %2385 = vdwg.mxu0
  %2386 = vmatpush.bf16.msra.mxu0 0
  %2387 = vmatpush.bf16.msra.mxu0 0
  %2388 = vmatpush.bf16.msra.mxu0 0
  %2389 = vmatpush.bf16.msra.mxu0 0
  %2390 = vmatpush.bf16.msra.mxu0 %v1066
  %2391 = vmatpush.bf16.msra.mxu0 %v1064
  %2392 = vmatpush.bf16.msra.mxu0 %v1062
  %2393 = vmatpush.bf16.msra.mxu0 %v1060
  %2394 = vmatmul.bf16.gmra.mxu0 %v2059
  %v2395 = vpop.f32.mrf.mxu0
  %v2396 = vadd.f32 %v2383, %v2395
  %v2397 = vpop.f32.mrf.mxu0
  %2398 = vdwg.mxu0
  %v2399 = vmax.f32 %v2003, %v2227
  %v2400 = vmax.f32 %v2004, %v2396
  %s2401 = scalar_lea.vmem %s0, 156
  %v2402 = vld [vmem:[%s2401] sm:$0xff]
  %v2403 = vld [vmem:[%s2401 + $0x8] sm:$0xff]
  %v2404 = vld [vmem:[%s2401 + $0x10] sm:$0xff]
  %v2405 = vld [vmem:[%s2401 + $0x18] sm:$0xff]
  %v2406 = vld [vmem:[%s2401 + $0x20] sm:$0xff]
  %v2407 = vld [vmem:[%s2401 + $0x28] sm:$0xff]
  %v2408 = vld [vmem:[%s2401 + $0x30] sm:$0xf]
  %v2416 = vunpack.c.l.b16 %v2402
  %v2417 = vunpack.c.h.b16 %v2402
  %v2418 = vunpack.c.l.b16 %v2403
  %v2419 = vunpack.c.h.b16 %v2403
  %v2420 = vunpack.c.l.b16 %v2404
  %v2421 = vunpack.c.h.b16 %v2404
  %v2422 = vunpack.c.l.b16 %v2405
  %v2423 = vunpack.c.h.b16 %v2405
  %v2424 = vunpack.c.l.b16 %v2406
  %v2425 = vunpack.c.h.b16 %v2406
  %v2426 = vunpack.c.l.b16 %v2407
  %v2427 = vunpack.c.h.b16 %v2407
  %v2428 = vunpack.c.l.b16 %v2408
  %v2429 = vpack.c.b16 %v2416, %v2416
  %v2430 = vpack.c.b16 %v2417, %v2417
  %v2431 = vpack.c.b16 %v2418, %v2418
  %v2432 = vpack.c.b16 %v2419, %v2419
  %v2433 = vpack.c.b16 %v2420, %v2420
  %v2434 = vpack.c.b16 %v2421, %v2421
  %v2435 = vpack.c.b16 %v2422, %v2422
  %v2436 = vpack.c.b16 %v2423, %v2423
  %v2437 = vpack.c.b16 %v2424, %v2424
  %v2438 = vpack.c.b16 %v2425, %v2425
  %v2439 = vpack.c.b16 %v2426, %v2426
  %v2440 = vpack.c.b16 %v2427, %v2427
  %v2441 = vpack.c.b16 %v2428, %v2428
  %v2455 = vsel %vm1267, %v2441, 0
  %2457 = vmatpush.bf16.msra.mxu0 %v881
  %2458 = vmatpush.bf16.msra.mxu0 %v879
  %2459 = vmatpush.bf16.msra.mxu0 %v877
  %2460 = vmatpush.bf16.msra.mxu0 %v875
  %2461 = vmatpush.bf16.msra.mxu0 %v873
  %2462 = vmatpush.bf16.msra.mxu0 %v871
  %2463 = vmatpush.bf16.msra.mxu0 %v869
  %2464 = vmatpush.bf16.msra.mxu0 %v867
  %2465 = vmatmul.bf16.gmra.mxu0 %v2429
  %v2466 = vpop.f32.mrf.mxu0
  %v2467 = vadd.f32 0.0, %v2466
  %v2468 = vpop.f32.mrf.mxu0
  %2469 = vdwg.mxu0
  %2470 = vmatpush.bf16.msra.mxu0 %v897
  %2471 = vmatpush.bf16.msra.mxu0 %v895
  %2472 = vmatpush.bf16.msra.mxu0 %v893
  %2473 = vmatpush.bf16.msra.mxu0 %v891
  %2474 = vmatpush.bf16.msra.mxu0 %v889
  %2475 = vmatpush.bf16.msra.mxu0 %v887
  %2476 = vmatpush.bf16.msra.mxu0 %v885
  %2477 = vmatpush.bf16.msra.mxu0 %v883
  %2478 = vmatmul.bf16.gmra.mxu0 %v2430
  %v2479 = vpop.f32.mrf.mxu0
  %v2480 = vadd.f32 %v2467, %v2479
  %v2481 = vpop.f32.mrf.mxu0
  %2482 = vdwg.mxu0
  %2483 = vmatpush.bf16.msra.mxu0 %v913
  %2484 = vmatpush.bf16.msra.mxu0 %v911
  %2485 = vmatpush.bf16.msra.mxu0 %v909
  %2486 = vmatpush.bf16.msra.mxu0 %v907
  %2487 = vmatpush.bf16.msra.mxu0 %v905
  %2488 = vmatpush.bf16.msra.mxu0 %v903
  %2489 = vmatpush.bf16.msra.mxu0 %v901
  %2490 = vmatpush.bf16.msra.mxu0 %v899
  %2491 = vmatmul.bf16.gmra.mxu0 %v2431
  %v2492 = vpop.f32.mrf.mxu0
  %v2493 = vadd.f32 %v2480, %v2492
  %v2494 = vpop.f32.mrf.mxu0
  %2495 = vdwg.mxu0
  %2496 = vmatpush.bf16.msra.mxu0 %v929
  %2497 = vmatpush.bf16.msra.mxu0 %v927
  %2498 = vmatpush.bf16.msra.mxu0 %v925
  %2499 = vmatpush.bf16.msra.mxu0 %v923
  %2500 = vmatpush.bf16.msra.mxu0 %v921
  %2501 = vmatpush.bf16.msra.mxu0 %v919
  %2502 = vmatpush.bf16.msra.mxu0 %v917
  %2503 = vmatpush.bf16.msra.mxu0 %v915
  %2504 = vmatmul.bf16.gmra.mxu0 %v2432
  %v2505 = vpop.f32.mrf.mxu0
  %v2506 = vadd.f32 %v2493, %v2505
  %v2507 = vpop.f32.mrf.mxu0
  %2508 = vdwg.mxu0
  %2509 = vmatpush.bf16.msra.mxu0 %v945
  %2510 = vmatpush.bf16.msra.mxu0 %v943
  %2511 = vmatpush.bf16.msra.mxu0 %v941
  %2512 = vmatpush.bf16.msra.mxu0 %v939
  %2513 = vmatpush.bf16.msra.mxu0 %v937
  %2514 = vmatpush.bf16.msra.mxu0 %v935
  %2515 = vmatpush.bf16.msra.mxu0 %v933
  %2516 = vmatpush.bf16.msra.mxu0 %v931
  %2517 = vmatmul.bf16.gmra.mxu0 %v2433
  %v2518 = vpop.f32.mrf.mxu0
  %v2519 = vadd.f32 %v2506, %v2518
  %v2520 = vpop.f32.mrf.mxu0
  %2521 = vdwg.mxu0
  %2522 = vmatpush.bf16.msra.mxu0 %v961
  %2523 = vmatpush.bf16.msra.mxu0 %v959
  %2524 = vmatpush.bf16.msra.mxu0 %v957
  %2525 = vmatpush.bf16.msra.mxu0 %v955
  %2526 = vmatpush.bf16.msra.mxu0 %v953
  %2527 = vmatpush.bf16.msra.mxu0 %v951
  %2528 = vmatpush.bf16.msra.mxu0 %v949
  %2529 = vmatpush.bf16.msra.mxu0 %v947
  %2530 = vmatmul.bf16.gmra.mxu0 %v2434
  %v2531 = vpop.f32.mrf.mxu0
  %v2532 = vadd.f32 %v2519, %v2531
  %v2533 = vpop.f32.mrf.mxu0
  %2534 = vdwg.mxu0
  %2535 = vmatpush.bf16.msra.mxu0 %v977
  %2536 = vmatpush.bf16.msra.mxu0 %v975
  %2537 = vmatpush.bf16.msra.mxu0 %v973
  %2538 = vmatpush.bf16.msra.mxu0 %v971
  %2539 = vmatpush.bf16.msra.mxu0 %v969
  %2540 = vmatpush.bf16.msra.mxu0 %v967
  %2541 = vmatpush.bf16.msra.mxu0 %v965
  %2542 = vmatpush.bf16.msra.mxu0 %v963
  %2543 = vmatmul.bf16.gmra.mxu0 %v2435
  %v2544 = vpop.f32.mrf.mxu0
  %v2545 = vadd.f32 %v2532, %v2544
  %v2546 = vpop.f32.mrf.mxu0
  %2547 = vdwg.mxu0
  %2548 = vmatpush.bf16.msra.mxu0 %v993
  %2549 = vmatpush.bf16.msra.mxu0 %v991
  %2550 = vmatpush.bf16.msra.mxu0 %v989
  %2551 = vmatpush.bf16.msra.mxu0 %v987
  %2552 = vmatpush.bf16.msra.mxu0 %v985
  %2553 = vmatpush.bf16.msra.mxu0 %v983
  %2554 = vmatpush.bf16.msra.mxu0 %v981
  %2555 = vmatpush.bf16.msra.mxu0 %v979
  %2556 = vmatmul.bf16.gmra.mxu0 %v2436
  %v2557 = vpop.f32.mrf.mxu0
  %v2558 = vadd.f32 %v2545, %v2557
  %v2559 = vpop.f32.mrf.mxu0
  %2560 = vdwg.mxu0
  %2561 = vmatpush.bf16.msra.mxu0 %v1009
  %2562 = vmatpush.bf16.msra.mxu0 %v1007
  %2563 = vmatpush.bf16.msra.mxu0 %v1005
  %2564 = vmatpush.bf16.msra.mxu0 %v1003
  %2565 = vmatpush.bf16.msra.mxu0 %v1001
  %2566 = vmatpush.bf16.msra.mxu0 %v999
  %2567 = vmatpush.bf16.msra.mxu0 %v997
  %2568 = vmatpush.bf16.msra.mxu0 %v995
  %2569 = vmatmul.bf16.gmra.mxu0 %v2437
  %v2570 = vpop.f32.mrf.mxu0
  %v2571 = vadd.f32 %v2558, %v2570
  %v2572 = vpop.f32.mrf.mxu0
  %2573 = vdwg.mxu0
  %2574 = vmatpush.bf16.msra.mxu0 %v1025
  %2575 = vmatpush.bf16.msra.mxu0 %v1023
  %2576 = vmatpush.bf16.msra.mxu0 %v1021
  %2577 = vmatpush.bf16.msra.mxu0 %v1019
  %2578 = vmatpush.bf16.msra.mxu0 %v1017
  %2579 = vmatpush.bf16.msra.mxu0 %v1015
  %2580 = vmatpush.bf16.msra.mxu0 %v1013
  %2581 = vmatpush.bf16.msra.mxu0 %v1011
  %2582 = vmatmul.bf16.gmra.mxu0 %v2438
  %v2583 = vpop.f32.mrf.mxu0
  %v2584 = vadd.f32 %v2571, %v2583
  %v2585 = vpop.f32.mrf.mxu0
  %2586 = vdwg.mxu0
  %2587 = vmatpush.bf16.msra.mxu0 %v1041
  %2588 = vmatpush.bf16.msra.mxu0 %v1039
  %2589 = vmatpush.bf16.msra.mxu0 %v1037
  %2590 = vmatpush.bf16.msra.mxu0 %v1035
  %2591 = vmatpush.bf16.msra.mxu0 %v1033
  %2592 = vmatpush.bf16.msra.mxu0 %v1031
  %2593 = vmatpush.bf16.msra.mxu0 %v1029
  %2594 = vmatpush.bf16.msra.mxu0 %v1027
  %2595 = vmatmul.bf16.gmra.mxu0 %v2439
  %v2596 = vpop.f32.mrf.mxu0
  %v2597 = vadd.f32 %v2584, %v2596
  %v2598 = vpop.f32.mrf.mxu0
  %2599 = vdwg.mxu0
  %2600 = vmatpush.bf16.msra.mxu0 %v1057
  %2601 = vmatpush.bf16.msra.mxu0 %v1055
  %2602 = vmatpush.bf16.msra.mxu0 %v1053
  %2603 = vmatpush.bf16.msra.mxu0 %v1051
  %2604 = vmatpush.bf16.msra.mxu0 %v1049
  %2605 = vmatpush.bf16.msra.mxu0 %v1047
  %2606 = vmatpush.bf16.msra.mxu0 %v1045
  %2607 = vmatpush.bf16.msra.mxu0 %v1043
  %2608 = vmatmul.bf16.gmra.mxu0 %v2440
  %v2609 = vpop.f32.mrf.mxu0
  %v2610 = vadd.f32 %v2597, %v2609
  %v2611 = vpop.f32.mrf.mxu0
  %2612 = vdwg.mxu0
  %2613 = vmatpush.bf16.msra.mxu0 0
  %2614 = vmatpush.bf16.msra.mxu0 0
  %2615 = vmatpush.bf16.msra.mxu0 0
  %2616 = vmatpush.bf16.msra.mxu0 0
  %2617 = vmatpush.bf16.msra.mxu0 %v1065
  %2618 = vmatpush.bf16.msra.mxu0 %v1063
  %2619 = vmatpush.bf16.msra.mxu0 %v1061
  %2620 = vmatpush.bf16.msra.mxu0 %v1059
  %2621 = vmatmul.bf16.gmra.mxu0 %v2455
  %v2622 = vpop.f32.mrf.mxu0
  %v2623 = vadd.f32 %v2610, %v2622
  %v2624 = vpop.f32.mrf.mxu0
  %2625 = vdwg.mxu0
  %2626 = vmatpush.bf16.msra.mxu0 %v882
  %2627 = vmatpush.bf16.msra.mxu0 %v880
  %2628 = vmatpush.bf16.msra.mxu0 %v878
  %2629 = vmatpush.bf16.msra.mxu0 %v876
  %2630 = vmatpush.bf16.msra.mxu0 %v874
  %2631 = vmatpush.bf16.msra.mxu0 %v872
  %2632 = vmatpush.bf16.msra.mxu0 %v870
  %2633 = vmatpush.bf16.msra.mxu0 %v868
  %2634 = vmatmul.bf16.gmra.mxu0 %v2429
  %v2635 = vpop.f32.mrf.mxu0
  %v2636 = vadd.f32 0.0, %v2635
  %v2637 = vpop.f32.mrf.mxu0
  %2638 = vdwg.mxu0
  %2639 = vmatpush.bf16.msra.mxu0 %v898
  %2640 = vmatpush.bf16.msra.mxu0 %v896
  %2641 = vmatpush.bf16.msra.mxu0 %v894
  %2642 = vmatpush.bf16.msra.mxu0 %v892
  %2643 = vmatpush.bf16.msra.mxu0 %v890
  %2644 = vmatpush.bf16.msra.mxu0 %v888
  %2645 = vmatpush.bf16.msra.mxu0 %v886
  %2646 = vmatpush.bf16.msra.mxu0 %v884
  %2647 = vmatmul.bf16.gmra.mxu0 %v2430
  %v2648 = vpop.f32.mrf.mxu0
  %v2649 = vadd.f32 %v2636, %v2648
  %v2650 = vpop.f32.mrf.mxu0
  %2651 = vdwg.mxu0
  %2652 = vmatpush.bf16.msra.mxu0 %v914
  %2653 = vmatpush.bf16.msra.mxu0 %v912
  %2654 = vmatpush.bf16.msra.mxu0 %v910
  %2655 = vmatpush.bf16.msra.mxu0 %v908
  %2656 = vmatpush.bf16.msra.mxu0 %v906
  %2657 = vmatpush.bf16.msra.mxu0 %v904
  %2658 = vmatpush.bf16.msra.mxu0 %v902
  %2659 = vmatpush.bf16.msra.mxu0 %v900
  %2660 = vmatmul.bf16.gmra.mxu0 %v2431
  %v2661 = vpop.f32.mrf.mxu0
  %v2662 = vadd.f32 %v2649, %v2661
  %v2663 = vpop.f32.mrf.mxu0
  %2664 = vdwg.mxu0
  %2665 = vmatpush.bf16.msra.mxu0 %v930
  %2666 = vmatpush.bf16.msra.mxu0 %v928
  %2667 = vmatpush.bf16.msra.mxu0 %v926
  %2668 = vmatpush.bf16.msra.mxu0 %v924
  %2669 = vmatpush.bf16.msra.mxu0 %v922
  %2670 = vmatpush.bf16.msra.mxu0 %v920
  %2671 = vmatpush.bf16.msra.mxu0 %v918
  %2672 = vmatpush.bf16.msra.mxu0 %v916
  %2673 = vmatmul.bf16.gmra.mxu0 %v2432
  %v2674 = vpop.f32.mrf.mxu0
  %v2675 = vadd.f32 %v2662, %v2674
  %v2676 = vpop.f32.mrf.mxu0
  %2677 = vdwg.mxu0
  %2678 = vmatpush.bf16.msra.mxu0 %v946
  %2679 = vmatpush.bf16.msra.mxu0 %v944
  %2680 = vmatpush.bf16.msra.mxu0 %v942
  %2681 = vmatpush.bf16.msra.mxu0 %v940
  %2682 = vmatpush.bf16.msra.mxu0 %v938
  %2683 = vmatpush.bf16.msra.mxu0 %v936
  %2684 = vmatpush.bf16.msra.mxu0 %v934
  %2685 = vmatpush.bf16.msra.mxu0 %v932
  %2686 = vmatmul.bf16.gmra.mxu0 %v2433
  %v2687 = vpop.f32.mrf.mxu0
  %v2688 = vadd.f32 %v2675, %v2687
  %v2689 = vpop.f32.mrf.mxu0
  %2690 = vdwg.mxu0
  %2691 = vmatpush.bf16.msra.mxu0 %v962
  %2692 = vmatpush.bf16.msra.mxu0 %v960
  %2693 = vmatpush.bf16.msra.mxu0 %v958
  %2694 = vmatpush.bf16.msra.mxu0 %v956
  %2695 = vmatpush.bf16.msra.mxu0 %v954
  %2696 = vmatpush.bf16.msra.mxu0 %v952
  %2697 = vmatpush.bf16.msra.mxu0 %v950
  %2698 = vmatpush.bf16.msra.mxu0 %v948
  %2699 = vmatmul.bf16.gmra.mxu0 %v2434
  %v2700 = vpop.f32.mrf.mxu0
  %v2701 = vadd.f32 %v2688, %v2700
  %v2702 = vpop.f32.mrf.mxu0
  %2703 = vdwg.mxu0
  %2704 = vmatpush.bf16.msra.mxu0 %v978
  %2705 = vmatpush.bf16.msra.mxu0 %v976
  %2706 = vmatpush.bf16.msra.mxu0 %v974
  %2707 = vmatpush.bf16.msra.mxu0 %v972
  %2708 = vmatpush.bf16.msra.mxu0 %v970
  %2709 = vmatpush.bf16.msra.mxu0 %v968
  %2710 = vmatpush.bf16.msra.mxu0 %v966
  %2711 = vmatpush.bf16.msra.mxu0 %v964
  %2712 = vmatmul.bf16.gmra.mxu0 %v2435
  %v2713 = vpop.f32.mrf.mxu0
  %v2714 = vadd.f32 %v2701, %v2713
  %v2715 = vpop.f32.mrf.mxu0
  %2716 = vdwg.mxu0
  %2717 = vmatpush.bf16.msra.mxu0 %v994
  %2718 = vmatpush.bf16.msra.mxu0 %v992
  %2719 = vmatpush.bf16.msra.mxu0 %v990
  %2720 = vmatpush.bf16.msra.mxu0 %v988
  %2721 = vmatpush.bf16.msra.mxu0 %v986
  %2722 = vmatpush.bf16.msra.mxu0 %v984
  %2723 = vmatpush.bf16.msra.mxu0 %v982
  %2724 = vmatpush.bf16.msra.mxu0 %v980
  %2725 = vmatmul.bf16.gmra.mxu0 %v2436
  %v2726 = vpop.f32.mrf.mxu0
  %v2727 = vadd.f32 %v2714, %v2726
  %v2728 = vpop.f32.mrf.mxu0
  %2729 = vdwg.mxu0
  %2730 = vmatpush.bf16.msra.mxu0 %v1010
  %2731 = vmatpush.bf16.msra.mxu0 %v1008
  %2732 = vmatpush.bf16.msra.mxu0 %v1006
  %2733 = vmatpush.bf16.msra.mxu0 %v1004
  %2734 = vmatpush.bf16.msra.mxu0 %v1002
  %2735 = vmatpush.bf16.msra.mxu0 %v1000
  %2736 = vmatpush.bf16.msra.mxu0 %v998
  %2737 = vmatpush.bf16.msra.mxu0 %v996
  %2738 = vmatmul.bf16.gmra.mxu0 %v2437
  %v2739 = vpop.f32.mrf.mxu0
  %v2740 = vadd.f32 %v2727, %v2739
  %v2741 = vpop.f32.mrf.mxu0
  %2742 = vdwg.mxu0
  %2743 = vmatpush.bf16.msra.mxu0 %v1026
  %2744 = vmatpush.bf16.msra.mxu0 %v1024
  %2745 = vmatpush.bf16.msra.mxu0 %v1022
  %2746 = vmatpush.bf16.msra.mxu0 %v1020
  %2747 = vmatpush.bf16.msra.mxu0 %v1018
  %2748 = vmatpush.bf16.msra.mxu0 %v1016
  %2749 = vmatpush.bf16.msra.mxu0 %v1014
  %2750 = vmatpush.bf16.msra.mxu0 %v1012
  %2751 = vmatmul.bf16.gmra.mxu0 %v2438
  %v2752 = vpop.f32.mrf.mxu0
  %v2753 = vadd.f32 %v2740, %v2752
  %v2754 = vpop.f32.mrf.mxu0
  %2755 = vdwg.mxu0
  %2756 = vmatpush.bf16.msra.mxu0 %v1042
  %2757 = vmatpush.bf16.msra.mxu0 %v1040
  %2758 = vmatpush.bf16.msra.mxu0 %v1038
  %2759 = vmatpush.bf16.msra.mxu0 %v1036
  %2760 = vmatpush.bf16.msra.mxu0 %v1034
  %2761 = vmatpush.bf16.msra.mxu0 %v1032
  %2762 = vmatpush.bf16.msra.mxu0 %v1030
  %2763 = vmatpush.bf16.msra.mxu0 %v1028
  %2764 = vmatmul.bf16.gmra.mxu0 %v2439
  %v2765 = vpop.f32.mrf.mxu0
  %v2766 = vadd.f32 %v2753, %v2765
  %v2767 = vpop.f32.mrf.mxu0
  %2768 = vdwg.mxu0
  %2769 = vmatpush.bf16.msra.mxu0 %v1058
  %2770 = vmatpush.bf16.msra.mxu0 %v1056
  %2771 = vmatpush.bf16.msra.mxu0 %v1054
  %2772 = vmatpush.bf16.msra.mxu0 %v1052
  %2773 = vmatpush.bf16.msra.mxu0 %v1050
  %2774 = vmatpush.bf16.msra.mxu0 %v1048
  %2775 = vmatpush.bf16.msra.mxu0 %v1046
  %2776 = vmatpush.bf16.msra.mxu0 %v1044
  %2777 = vmatmul.bf16.gmra.mxu0 %v2440
  %v2778 = vpop.f32.mrf.mxu0
  %v2779 = vadd.f32 %v2766, %v2778
  %v2780 = vpop.f32.mrf.mxu0
  %2781 = vdwg.mxu0
  %2782 = vmatpush.bf16.msra.mxu0 0
  %2783 = vmatpush.bf16.msra.mxu0 0
  %2784 = vmatpush.bf16.msra.mxu0 0
  %2785 = vmatpush.bf16.msra.mxu0 0
  %2786 = vmatpush.bf16.msra.mxu0 %v1066
  %2787 = vmatpush.bf16.msra.mxu0 %v1064
  %2788 = vmatpush.bf16.msra.mxu0 %v1062
  %2789 = vmatpush.bf16.msra.mxu0 %v1060
  %2790 = vmatmul.bf16.gmra.mxu0 %v2455
  %v2791 = vpop.f32.mrf.mxu0
  %v2792 = vadd.f32 %v2779, %v2791
  %v2793 = vpop.f32.mrf.mxu0
  %2794 = vdwg.mxu0
  %v2795 = vmax.f32 %v2399, %v2623
  %v2796 = vmax.f32 %v2400, %v2792
  %v2797 = vld [vmem:[%s2] sm:$0x3]
  %v2799 = vperm.slane %v2797, 0
  %v2800 = vperm.slane %v2797, 1
  %v2803 = vadd.f32 %v2795, %v2799
  %v2804 = vadd.f32 %v2796, %v2800
  %v2805 = vmax.f32 %v2803, 0.0
  %v2806 = vmax.f32 %v2804, 0.0
  %2807 = vst [vmem:[%s3] sm:$0xff] %v2805
  %2808 = vst.msk [vmem:[%s3 + $0x8] sm:$0xff] %vm1267, %v2806
  // Predicated region
  $region14: #{alexnet_forward.5} parent=0 // pred_check
    _
  $region15: #{alexnet_forward.5} parent=0 // pred_check_branch
    %2810 = sbr.rel (0) target = $region17
  $region16: #{alexnet_forward.5} parent=0 // pred_region
    _
  $region17: #{alexnet_forward.5} parent=0 // pred_fallthru
    _
  // Predicated region
  $region18: #{alexnet_forward.5} parent=0 // pred_check
    _
  $region19: #{alexnet_forward.5} parent=0 // pred_check_branch
    %2812 = sbr.rel (0) target = $region21
  $region20: #{alexnet_forward.5} parent=0 // pred_region
    _
  $region21: #{alexnet_forward.5} parent=0 // pred_fallthru
    _

// kernel: alexnet_forward.6
$region0: #{alexnet_forward.6}
  #allocation0 [shape = 'u32[]', space=smem, size = 0x4, offset = 0x4, fixed_abs, tag = 'smem constant byte address 0x4 - core index']
  #allocation1 [shape = 'u32[72,128]{1,0:T(1,128)}', space=vmem, size = 0x9000, scoped, tag = 'internal scratch']
  %s0 = inlined_call_operand.vmem [shape: bf16[8,1728], index: 0, kind: input, shape index: {}]
  %s1 = inlined_call_operand.vmem [shape: bf16[1728,384], index: 1, kind: input, shape index: {}]
  %s2 = inlined_call_operand.vmem [shape: f32[1,384], index: 2, kind: input, shape index: {}]
  %s3 = inlined_call_operand.vmem [shape: f32[8,384], index: 3, kind: output, shape index: {}]
  %s4 = sld [smem:[#allocation0]]
  $region22: #{alexnet_forward.6} parent=0
    _
  %s6 = ssub.s32 1, %s4
  %s7 = scalar_select 0, %s6, %s4
  // Predicated region
  $region2: #{alexnet_forward.6} parent=0 // pred_check
    _
  $region3: #{alexnet_forward.6} parent=0 // pred_check_branch
    %9 = sbr.rel (0) target = $region5
  $region4: #{alexnet_forward.6} parent=0 // pred_region
    _
  $region5: #{alexnet_forward.6} parent=0 // pred_fallthru
    _
  // Predicated region
  $region6: #{alexnet_forward.6} parent=0 // pred_check
    _
  $region7: #{alexnet_forward.6} parent=0 // pred_check_branch
    %11 = sbr.rel (0) target = $region9
  $region8: #{alexnet_forward.6} parent=0 // pred_region
    _
  $region9: #{alexnet_forward.6} parent=0 // pred_fallthru
    _
  // Predicated region
  $region10: #{alexnet_forward.6} parent=0 // pred_check
    _
  $region11: #{alexnet_forward.6} parent=0 // pred_check_branch
    %13 = sbr.rel (0) target = $region13
  $region12: #{alexnet_forward.6} parent=0 // pred_region
    _
  $region13: #{alexnet_forward.6} parent=0 // pred_fallthru
    _
  %v15 = vld [vmem:[%s0] sm:$0xff]
  %v16 = vld [vmem:[%s0 + $0x8] sm:$0xff]
  %v17 = vld [vmem:[%s0 + $0x10] sm:$0xff]
  %v18 = vld [vmem:[%s0 + $0x18] sm:$0xff]
  %v19 = vld [vmem:[%s0 + $0x20] sm:$0xff]
  %v20 = vld [vmem:[%s0 + $0x28] sm:$0xff]
  %v21 = vld [vmem:[%s0 + $0x30] sm:$0xff]
  %v22 = vld [vmem:[%s1] sm:$0xff]
  %v23 = vld [vmem:[%s1 + $0x8] sm:$0xf]
  %v24 = vld [vmem:[%s1 + $0xc] sm:$0xff]
  %v25 = vld [vmem:[%s1 + $0x14] sm:$0xf]
  %v26 = vld [vmem:[%s1 + $0x18] sm:$0xff]
  %v27 = vld [vmem:[%s1 + $0x20] sm:$0xf]
  %v28 = vld [vmem:[%s1 + $0x24] sm:$0xff]
  %v29 = vld [vmem:[%s1 + $0x2c] sm:$0xf]
  %v30 = vld [vmem:[%s1 + $0x30] sm:$0xff]
  %v31 = vld [vmem:[%s1 + $0x38] sm:$0xf]
  %v32 = vld [vmem:[%s1 + $0x3c] sm:$0xff]
  %v33 = vld [vmem:[%s1 + $0x44] sm:$0xf]
  %v34 = vld [vmem:[%s1 + $0x48] sm:$0xff]
  %v35 = vld [vmem:[%s1 + $0x50] sm:$0xf]
  %v36 = vld [vmem:[%s1 + $0x54] sm:$0xff]
  %v37 = vld [vmem:[%s1 + $0x5c] sm:$0xf]
  %v38 = vld [vmem:[%s1 + $0x60] sm:$0xff]
  %v39 = vld [vmem:[%s1 + $0x68] sm:$0xf]
  %v40 = vld [vmem:[%s1 + $0x6c] sm:$0xff]
  %v41 = vld [vmem:[%s1 + $0x74] sm:$0xf]
  %v42 = vld [vmem:[%s1 + $0x78] sm:$0xff]
  %v43 = vld [vmem:[%s1 + $0x80] sm:$0xf]
  %v44 = vld [vmem:[%s1 + $0x84] sm:$0xff]
  %v45 = vld [vmem:[%s1 + $0x8c] sm:$0xf]
  %v46 = vld [vmem:[%s1 + $0x90] sm:$0xff]
  %v47 = vld [vmem:[%s1 + $0x98] sm:$0xf]
  %v48 = vld [vmem:[%s1 + $0x9c] sm:$0xff]
  %v49 = vld [vmem:[%s1 + $0xa4] sm:$0xf]
  %v50 = vld [vmem:[%s1 + $0xa8] sm:$0xff]
  %v51 = vld [vmem:[%s1 + $0xb0] sm:$0xf]
  %v52 = vld [vmem:[%s1 + $0xb4] sm:$0xff]
  %v53 = vld [vmem:[%s1 + $0xbc] sm:$0xf]
  %v54 = vld [vmem:[%s1 + $0xc0] sm:$0xff]
  %v55 = vld [vmem:[%s1 + $0xc8] sm:$0xf]
  %v56 = vld [vmem:[%s1 + $0xcc] sm:$0xff]
  %v57 = vld [vmem:[%s1 + $0xd4] sm:$0xf]
  %v58 = vld [vmem:[%s1 + $0xd8] sm:$0xff]
  %v59 = vld [vmem:[%s1 + $0xe0] sm:$0xf]
  %v60 = vld [vmem:[%s1 + $0xe4] sm:$0xff]
  %v61 = vld [vmem:[%s1 + $0xec] sm:$0xf]
  %v62 = vld [vmem:[%s1 + $0xf0] sm:$0xff]
  %v63 = vld [vmem:[%s1 + $0xf8] sm:$0xf]
  %v64 = vld [vmem:[%s1 + $0xfc] sm:$0xff]
  %v65 = vld [vmem:[%s1 + $0x104] sm:$0xf]
  %v66 = vld [vmem:[%s1 + $0x108] sm:$0xff]
  %v67 = vld [vmem:[%s1 + $0x110] sm:$0xf]
  %v68 = vld [vmem:[%s1 + $0x114] sm:$0xff]
  %v69 = vld [vmem:[%s1 + $0x11c] sm:$0xf]
  %v70 = vld [vmem:[%s1 + $0x120] sm:$0xff]
  %v71 = vld [vmem:[%s1 + $0x128] sm:$0xf]
  %v72 = vld [vmem:[%s1 + $0x12c] sm:$0xff]
  %v73 = vld [vmem:[%s1 + $0x134] sm:$0xf]
  %v74 = vld [vmem:[%s1 + $0x138] sm:$0xff]
  %v75 = vld [vmem:[%s1 + $0x140] sm:$0xf]
  %v76 = vld [vmem:[%s1 + $0x144] sm:$0xff]
  %v77 = vld [vmem:[%s1 + $0x14c] sm:$0xf]
  %v78 = vld [vmem:[%s1 + $0x150] sm:$0xff]
  %v79 = vld [vmem:[%s1 + $0x158] sm:$0xf]
  %v80 = vld [vmem:[%s1 + $0x15c] sm:$0xff]
  %v81 = vld [vmem:[%s1 + $0x164] sm:$0xf]
  %v82 = vld [vmem:[%s1 + $0x168] sm:$0xff]
  %v83 = vld [vmem:[%s1 + $0x170] sm:$0xf]
  %v84 = vld [vmem:[%s1 + $0x174] sm:$0xff]
  %v85 = vld [vmem:[%s1 + $0x17c] sm:$0xf]
  %v86 = vld [vmem:[%s1 + $0x180] sm:$0xff]
  %v87 = vld [vmem:[%s1 + $0x188] sm:$0xf]
  %v88 = vld [vmem:[%s1 + $0x18c] sm:$0xff]
  %v89 = vld [vmem:[%s1 + $0x194] sm:$0xf]
  %v90 = vld [vmem:[%s1 + $0x198] sm:$0xff]
  %v91 = vld [vmem:[%s1 + $0x1a0] sm:$0xf]
  %v92 = vld [vmem:[%s1 + $0x1a4] sm:$0xff]
  %v93 = vld [vmem:[%s1 + $0x1ac] sm:$0xf]
  %v94 = vld [vmem:[%s1 + $0x1b0] sm:$0xff]
  %v95 = vld [vmem:[%s1 + $0x1b8] sm:$0xf]
  %v96 = vld [vmem:[%s1 + $0x1bc] sm:$0xff]
  %v97 = vld [vmem:[%s1 + $0x1c4] sm:$0xf]
  %v98 = vld [vmem:[%s1 + $0x1c8] sm:$0xff]
  %v99 = vld [vmem:[%s1 + $0x1d0] sm:$0xf]
  %v100 = vld [vmem:[%s1 + $0x1d4] sm:$0xff]
  %v101 = vld [vmem:[%s1 + $0x1dc] sm:$0xf]
  %v102 = vld [vmem:[%s1 + $0x1e0] sm:$0xff]
  %v103 = vld [vmem:[%s1 + $0x1e8] sm:$0xf]
  %v104 = vld [vmem:[%s1 + $0x1ec] sm:$0xff]
  %v105 = vld [vmem:[%s1 + $0x1f4] sm:$0xf]
  %v106 = vld [vmem:[%s1 + $0x1f8] sm:$0xff]
  %v107 = vld [vmem:[%s1 + $0x200] sm:$0xf]
  %v108 = vld [vmem:[%s1 + $0x204] sm:$0xff]
  %v109 = vld [vmem:[%s1 + $0x20c] sm:$0xf]
  %v110 = vld [vmem:[%s1 + $0x210] sm:$0xff]
  %v111 = vld [vmem:[%s1 + $0x218] sm:$0xf]
  %v112 = vld [vmem:[%s1 + $0x21c] sm:$0xff]
  %v113 = vld [vmem:[%s1 + $0x224] sm:$0xf]
  %v114 = vld [vmem:[%s1 + $0x228] sm:$0xff]
  %v115 = vld [vmem:[%s1 + $0x230] sm:$0xf]
  %v116 = vld [vmem:[%s1 + $0x234] sm:$0xff]
  %v117 = vld [vmem:[%s1 + $0x23c] sm:$0xf]
  %v118 = vld [vmem:[%s1 + $0x240] sm:$0xff]
  %v119 = vld [vmem:[%s1 + $0x248] sm:$0xf]
  %v120 = vld [vmem:[%s1 + $0x24c] sm:$0xff]
  %v121 = vld [vmem:[%s1 + $0x254] sm:$0xf]
  %v122 = vld [vmem:[%s1 + $0x258] sm:$0xff]
  %v123 = vld [vmem:[%s1 + $0x260] sm:$0xf]
  %v124 = vld [vmem:[%s1 + $0x264] sm:$0xff]
  %v125 = vld [vmem:[%s1 + $0x26c] sm:$0xf]
  %v126 = vld [vmem:[%s1 + $0x270] sm:$0xff]
  %v127 = vld [vmem:[%s1 + $0x278] sm:$0xf]
  %v128 = vld [vmem:[%s1 + $0x27c] sm:$0xff]
  %v129 = vld [vmem:[%s1 + $0x284] sm:$0xf]
  %v130 = vld [vmem:[%s1 + $0x288] sm:$0xff]
  %v131 = vld [vmem:[%s1 + $0x290] sm:$0xf]
  %v132 = vld [vmem:[%s1 + $0x294] sm:$0xff]
  %v133 = vld [vmem:[%s1 + $0x29c] sm:$0xf]
  %v134 = vld [vmem:[%s1 + $0x2a0] sm:$0xff]
  %v135 = vld [vmem:[%s1 + $0x2a8] sm:$0xf]
  %v136 = vld [vmem:[%s1 + $0x2ac] sm:$0xff]
  %v137 = vld [vmem:[%s1 + $0x2b4] sm:$0xf]
  %v138 = vld [vmem:[%s1 + $0x2b8] sm:$0xff]
  %v139 = vld [vmem:[%s1 + $0x2c0] sm:$0xf]
  %v140 = vld [vmem:[%s1 + $0x2c4] sm:$0xff]
  %v141 = vld [vmem:[%s1 + $0x2cc] sm:$0xf]
  %v142 = vld [vmem:[%s1 + $0x2d0] sm:$0xff]
  %v143 = vld [vmem:[%s1 + $0x2d8] sm:$0xf]
  %v144 = vld [vmem:[%s1 + $0x2dc] sm:$0xff]
  %v145 = vld [vmem:[%s1 + $0x2e4] sm:$0xf]
  %v146 = vld [vmem:[%s1 + $0x2e8] sm:$0xff]
  %v147 = vld [vmem:[%s1 + $0x2f0] sm:$0xf]
  %v148 = vld [vmem:[%s1 + $0x2f4] sm:$0xff]
  %v149 = vld [vmem:[%s1 + $0x2fc] sm:$0xf]
  %v150 = vld [vmem:[%s1 + $0x300] sm:$0xff]
  %v151 = vld [vmem:[%s1 + $0x308] sm:$0xf]
  %v152 = vld [vmem:[%s1 + $0x30c] sm:$0xff]
  %v153 = vld [vmem:[%s1 + $0x314] sm:$0xf]
  %v154 = vld [vmem:[%s1 + $0x318] sm:$0xff]
  %v155 = vld [vmem:[%s1 + $0x320] sm:$0xf]
  %v156 = vld [vmem:[%s1 + $0x324] sm:$0xff]
  %v157 = vld [vmem:[%s1 + $0x32c] sm:$0xf]
  %v158 = vld [vmem:[%s1 + $0x330] sm:$0xff]
  %v159 = vld [vmem:[%s1 + $0x338] sm:$0xf]
  %v160 = vld [vmem:[%s1 + $0x33c] sm:$0xff]
  %v161 = vld [vmem:[%s1 + $0x344] sm:$0xf]
  %v162 = vld [vmem:[%s1 + $0x348] sm:$0xff]
  %v163 = vld [vmem:[%s1 + $0x350] sm:$0xf]
  %v164 = vld [vmem:[%s1 + $0x354] sm:$0xff]
  %v165 = vld [vmem:[%s1 + $0x35c] sm:$0xf]
  %v166 = vld [vmem:[%s1 + $0x360] sm:$0xff]
  %v167 = vld [vmem:[%s1 + $0x368] sm:$0xf]
  %v168 = vld [vmem:[%s1 + $0x36c] sm:$0xff]
  %v169 = vld [vmem:[%s1 + $0x374] sm:$0xf]
  %v170 = vld [vmem:[%s1 + $0x378] sm:$0xff]
  %v171 = vld [vmem:[%s1 + $0x380] sm:$0xf]
  %v172 = vld [vmem:[%s1 + $0x384] sm:$0xff]
  %v173 = vld [vmem:[%s1 + $0x38c] sm:$0xf]
  %v174 = vld [vmem:[%s1 + $0x390] sm:$0xff]
  %v175 = vld [vmem:[%s1 + $0x398] sm:$0xf]
  %v176 = vld [vmem:[%s1 + $0x39c] sm:$0xff]
  %v177 = vld [vmem:[%s1 + $0x3a4] sm:$0xf]
  %v178 = vld [vmem:[%s1 + $0x3a8] sm:$0xff]
  %v179 = vld [vmem:[%s1 + $0x3b0] sm:$0xf]
  %v180 = vld [vmem:[%s1 + $0x3b4] sm:$0xff]
  %v181 = vld [vmem:[%s1 + $0x3bc] sm:$0xf]
  %v182 = vld [vmem:[%s1 + $0x3c0] sm:$0xff]
  %v183 = vld [vmem:[%s1 + $0x3c8] sm:$0xf]
  %v184 = vld [vmem:[%s1 + $0x3cc] sm:$0xff]
  %v185 = vld [vmem:[%s1 + $0x3d4] sm:$0xf]
  %v186 = vld [vmem:[%s1 + $0x3d8] sm:$0xff]
  %v187 = vld [vmem:[%s1 + $0x3e0] sm:$0xf]
  %v188 = vld [vmem:[%s1 + $0x3e4] sm:$0xff]
  %v189 = vld [vmem:[%s1 + $0x3ec] sm:$0xf]
  %v190 = vld [vmem:[%s1 + $0x3f0] sm:$0xff]
  %v191 = vld [vmem:[%s1 + $0x3f8] sm:$0xf]
  %v192 = vld [vmem:[%s1 + $0x3fc] sm:$0xff]
  %v193 = vld [vmem:[%s1 + $0x404] sm:$0xf]
  %v194 = vld [vmem:[%s1 + $0x408] sm:$0xff]
  %v195 = vld [vmem:[%s1 + $0x410] sm:$0xf]
  %v196 = vld [vmem:[%s1 + $0x414] sm:$0xff]
  %v197 = vld [vmem:[%s1 + $0x41c] sm:$0xf]
  %v198 = vld [vmem:[%s1 + $0x420] sm:$0xff]
  %v199 = vld [vmem:[%s1 + $0x428] sm:$0xf]
  %v200 = vld [vmem:[%s1 + $0x42c] sm:$0xff]
  %v201 = vld [vmem:[%s1 + $0x434] sm:$0xf]
  %v202 = vld [vmem:[%s1 + $0x438] sm:$0xff]
  %v203 = vld [vmem:[%s1 + $0x440] sm:$0xf]
  %v204 = vld [vmem:[%s1 + $0x444] sm:$0xff]
  %v205 = vld [vmem:[%s1 + $0x44c] sm:$0xf]
  %v206 = vld [vmem:[%s1 + $0x450] sm:$0xff]
  %v207 = vld [vmem:[%s1 + $0x458] sm:$0xf]
  %v208 = vld [vmem:[%s1 + $0x45c] sm:$0xff]
  %v209 = vld [vmem:[%s1 + $0x464] sm:$0xf]
  %v210 = vld [vmem:[%s1 + $0x468] sm:$0xff]
  %v211 = vld [vmem:[%s1 + $0x470] sm:$0xf]
  %v212 = vld [vmem:[%s1 + $0x474] sm:$0xff]
  %v213 = vld [vmem:[%s1 + $0x47c] sm:$0xf]
  %v214 = vld [vmem:[%s1 + $0x480] sm:$0xff]
  %v215 = vld [vmem:[%s1 + $0x488] sm:$0xf]
  %v216 = vld [vmem:[%s1 + $0x48c] sm:$0xff]
  %v217 = vld [vmem:[%s1 + $0x494] sm:$0xf]
  %v218 = vld [vmem:[%s1 + $0x498] sm:$0xff]
  %v219 = vld [vmem:[%s1 + $0x4a0] sm:$0xf]
  %v220 = vld [vmem:[%s1 + $0x4a4] sm:$0xff]
  %v221 = vld [vmem:[%s1 + $0x4ac] sm:$0xf]
  %v222 = vld [vmem:[%s1 + $0x4b0] sm:$0xff]
  %v223 = vld [vmem:[%s1 + $0x4b8] sm:$0xf]
  %v224 = vld [vmem:[%s1 + $0x4bc] sm:$0xff]
  %v225 = vld [vmem:[%s1 + $0x4c4] sm:$0xf]
  %v226 = vld [vmem:[%s1 + $0x4c8] sm:$0xff]
  %v227 = vld [vmem:[%s1 + $0x4d0] sm:$0xf]
  %v228 = vld [vmem:[%s1 + $0x4d4] sm:$0xff]
  %v229 = vld [vmem:[%s1 + $0x4dc] sm:$0xf]
  %v230 = vld [vmem:[%s1 + $0x4e0] sm:$0xff]
  %v231 = vld [vmem:[%s1 + $0x4e8] sm:$0xf]
  %v232 = vld [vmem:[%s1 + $0x4ec] sm:$0xff]
  %v233 = vld [vmem:[%s1 + $0x4f4] sm:$0xf]
  %v234 = vld [vmem:[%s1 + $0x4f8] sm:$0xff]
  %v235 = vld [vmem:[%s1 + $0x500] sm:$0xf]
  %v236 = vld [vmem:[%s1 + $0x504] sm:$0xff]
  %v237 = vld [vmem:[%s1 + $0x50c] sm:$0xf]
  %v238 = vld [vmem:[%s1 + $0x510] sm:$0xff]
  %v239 = vld [vmem:[%s1 + $0x518] sm:$0xf]
  %v240 = vld [vmem:[%s1 + $0x51c] sm:$0xff]
  %v241 = vld [vmem:[%s1 + $0x524] sm:$0xf]
  %v242 = vld [vmem:[%s1 + $0x528] sm:$0xff]
  %v243 = vld [vmem:[%s1 + $0x530] sm:$0xf]
  %v244 = vld [vmem:[%s1 + $0x534] sm:$0xff]
  %v245 = vld [vmem:[%s1 + $0x53c] sm:$0xf]
  %v246 = vld [vmem:[%s1 + $0x540] sm:$0xff]
  %v247 = vld [vmem:[%s1 + $0x548] sm:$0xf]
  %v248 = vld [vmem:[%s1 + $0x54c] sm:$0xff]
  %v249 = vld [vmem:[%s1 + $0x554] sm:$0xf]
  %v250 = vld [vmem:[%s1 + $0x558] sm:$0xff]
  %v251 = vld [vmem:[%s1 + $0x560] sm:$0xf]
  %v252 = vld [vmem:[%s1 + $0x564] sm:$0xff]
  %v253 = vld [vmem:[%s1 + $0x56c] sm:$0xf]
  %v254 = vld [vmem:[%s1 + $0x570] sm:$0xff]
  %v255 = vld [vmem:[%s1 + $0x578] sm:$0xf]
  %v256 = vld [vmem:[%s1 + $0x57c] sm:$0xff]
  %v257 = vld [vmem:[%s1 + $0x584] sm:$0xf]
  %v258 = vld [vmem:[%s1 + $0x588] sm:$0xff]
  %v259 = vld [vmem:[%s1 + $0x590] sm:$0xf]
  %v260 = vld [vmem:[%s1 + $0x594] sm:$0xff]
  %v261 = vld [vmem:[%s1 + $0x59c] sm:$0xf]
  %v262 = vld [vmem:[%s1 + $0x5a0] sm:$0xff]
  %v263 = vld [vmem:[%s1 + $0x5a8] sm:$0xf]
  %v264 = vld [vmem:[%s1 + $0x5ac] sm:$0xff]
  %v265 = vld [vmem:[%s1 + $0x5b4] sm:$0xf]
  %v266 = vld [vmem:[%s1 + $0x5b8] sm:$0xff]
  %v267 = vld [vmem:[%s1 + $0x5c0] sm:$0xf]
  %v268 = vld [vmem:[%s1 + $0x5c4] sm:$0xff]
  %v269 = vld [vmem:[%s1 + $0x5cc] sm:$0xf]
  %v270 = vld [vmem:[%s1 + $0x5d0] sm:$0xff]
  %v271 = vld [vmem:[%s1 + $0x5d8] sm:$0xf]
  %v272 = vld [vmem:[%s1 + $0x5dc] sm:$0xff]
  %v273 = vld [vmem:[%s1 + $0x5e4] sm:$0xf]
  %v274 = vld [vmem:[%s1 + $0x5e8] sm:$0xff]
  %v275 = vld [vmem:[%s1 + $0x5f0] sm:$0xf]
  %v276 = vld [vmem:[%s1 + $0x5f4] sm:$0xff]
  %v277 = vld [vmem:[%s1 + $0x5fc] sm:$0xf]
  %v278 = vld [vmem:[%s1 + $0x600] sm:$0xff]
  %v279 = vld [vmem:[%s1 + $0x608] sm:$0xf]
  %v280 = vld [vmem:[%s1 + $0x60c] sm:$0xff]
  %v281 = vld [vmem:[%s1 + $0x614] sm:$0xf]
  %v282 = vld [vmem:[%s1 + $0x618] sm:$0xff]
  %v283 = vld [vmem:[%s1 + $0x620] sm:$0xf]
  %v284 = vld [vmem:[%s1 + $0x624] sm:$0xff]
  %v285 = vld [vmem:[%s1 + $0x62c] sm:$0xf]
  %v286 = vld [vmem:[%s1 + $0x630] sm:$0xff]
  %v287 = vld [vmem:[%s1 + $0x638] sm:$0xf]
  %v288 = vld [vmem:[%s1 + $0x63c] sm:$0xff]
  %v289 = vld [vmem:[%s1 + $0x644] sm:$0xf]
  %v290 = vld [vmem:[%s1 + $0x648] sm:$0xff]
  %v291 = vld [vmem:[%s1 + $0x650] sm:$0xf]
  %v292 = vld [vmem:[%s1 + $0x654] sm:$0xff]
  %v293 = vld [vmem:[%s1 + $0x65c] sm:$0xf]
  %v294 = vld [vmem:[%s1 + $0x660] sm:$0xff]
  %v295 = vld [vmem:[%s1 + $0x668] sm:$0xf]
  %v296 = vld [vmem:[%s1 + $0x66c] sm:$0xff]
  %v297 = vld [vmem:[%s1 + $0x674] sm:$0xf]
  %v298 = vld [vmem:[%s1 + $0x678] sm:$0xff]
  %v299 = vld [vmem:[%s1 + $0x680] sm:$0xf]
  %v300 = vld [vmem:[%s1 + $0x684] sm:$0xff]
  %v301 = vld [vmem:[%s1 + $0x68c] sm:$0xf]
  %v302 = vld [vmem:[%s1 + $0x690] sm:$0xff]
  %v303 = vld [vmem:[%s1 + $0x698] sm:$0xf]
  %v304 = vld [vmem:[%s1 + $0x69c] sm:$0xff]
  %v305 = vld [vmem:[%s1 + $0x6a4] sm:$0xf]
  %v306 = vld [vmem:[%s1 + $0x6a8] sm:$0xff]
  %v307 = vld [vmem:[%s1 + $0x6b0] sm:$0xf]
  %v308 = vld [vmem:[%s1 + $0x6b4] sm:$0xff]
  %v309 = vld [vmem:[%s1 + $0x6bc] sm:$0xf]
  %v310 = vld [vmem:[%s1 + $0x6c0] sm:$0xff]
  %v311 = vld [vmem:[%s1 + $0x6c8] sm:$0xf]
  %v312 = vld [vmem:[%s1 + $0x6cc] sm:$0xff]
  %v313 = vld [vmem:[%s1 + $0x6d4] sm:$0xf]
  %v314 = vld [vmem:[%s1 + $0x6d8] sm:$0xff]
  %v315 = vld [vmem:[%s1 + $0x6e0] sm:$0xf]
  %v316 = vld [vmem:[%s1 + $0x6e4] sm:$0xff]
  %v317 = vld [vmem:[%s1 + $0x6ec] sm:$0xf]
  %v318 = vld [vmem:[%s1 + $0x6f0] sm:$0xff]
  %v319 = vld [vmem:[%s1 + $0x6f8] sm:$0xf]
  %v320 = vld [vmem:[%s1 + $0x6fc] sm:$0xff]
  %v321 = vld [vmem:[%s1 + $0x704] sm:$0xf]
  %v322 = vld [vmem:[%s1 + $0x708] sm:$0xff]
  %v323 = vld [vmem:[%s1 + $0x710] sm:$0xf]
  %v324 = vld [vmem:[%s1 + $0x714] sm:$0xff]
  %v325 = vld [vmem:[%s1 + $0x71c] sm:$0xf]
  %v326 = vld [vmem:[%s1 + $0x720] sm:$0xff]
  %v327 = vld [vmem:[%s1 + $0x728] sm:$0xf]
  %v328 = vld [vmem:[%s1 + $0x72c] sm:$0xff]
  %v329 = vld [vmem:[%s1 + $0x734] sm:$0xf]
  %v330 = vld [vmem:[%s1 + $0x738] sm:$0xff]
  %v331 = vld [vmem:[%s1 + $0x740] sm:$0xf]
  %v332 = vld [vmem:[%s1 + $0x744] sm:$0xff]
  %v333 = vld [vmem:[%s1 + $0x74c] sm:$0xf]
  %v334 = vld [vmem:[%s1 + $0x750] sm:$0xff]
  %v335 = vld [vmem:[%s1 + $0x758] sm:$0xf]
  %v336 = vld [vmem:[%s1 + $0x75c] sm:$0xff]
  %v337 = vld [vmem:[%s1 + $0x764] sm:$0xf]
  %v338 = vld [vmem:[%s1 + $0x768] sm:$0xff]
  %v339 = vld [vmem:[%s1 + $0x770] sm:$0xf]
  %v340 = vld [vmem:[%s1 + $0x774] sm:$0xff]
  %v341 = vld [vmem:[%s1 + $0x77c] sm:$0xf]
  %v342 = vld [vmem:[%s1 + $0x780] sm:$0xff]
  %v343 = vld [vmem:[%s1 + $0x788] sm:$0xf]
  %v344 = vld [vmem:[%s1 + $0x78c] sm:$0xff]
  %v345 = vld [vmem:[%s1 + $0x794] sm:$0xf]
  %v346 = vld [vmem:[%s1 + $0x798] sm:$0xff]
  %v347 = vld [vmem:[%s1 + $0x7a0] sm:$0xf]
  %v348 = vld [vmem:[%s1 + $0x7a4] sm:$0xff]
  %v349 = vld [vmem:[%s1 + $0x7ac] sm:$0xf]
  %v350 = vld [vmem:[%s1 + $0x7b0] sm:$0xff]
  %v351 = vld [vmem:[%s1 + $0x7b8] sm:$0xf]
  %v352 = vld [vmem:[%s1 + $0x7bc] sm:$0xff]
  %v353 = vld [vmem:[%s1 + $0x7c4] sm:$0xf]
  %v354 = vld [vmem:[%s1 + $0x7c8] sm:$0xff]
  %v355 = vld [vmem:[%s1 + $0x7d0] sm:$0xf]
  %v356 = vld [vmem:[%s1 + $0x7d4] sm:$0xff]
  %v357 = vld [vmem:[%s1 + $0x7dc] sm:$0xf]
  %v358 = vld [vmem:[%s1 + $0x7e0] sm:$0xff]
  %v359 = vld [vmem:[%s1 + $0x7e8] sm:$0xf]
  %v360 = vld [vmem:[%s1 + $0x7ec] sm:$0xff]
  %v361 = vld [vmem:[%s1 + $0x7f4] sm:$0xf]
  %v362 = vld [vmem:[%s1 + $0x7f8] sm:$0xff]
  %v363 = vld [vmem:[%s1 + $0x800] sm:$0xf]
  %v364 = vld [vmem:[%s1 + $0x804] sm:$0xff]
  %v365 = vld [vmem:[%s1 + $0x80c] sm:$0xf]
  %v366 = vld [vmem:[%s1 + $0x810] sm:$0xff]
  %v367 = vld [vmem:[%s1 + $0x818] sm:$0xf]
  %v368 = vld [vmem:[%s1 + $0x81c] sm:$0xff]
  %v369 = vld [vmem:[%s1 + $0x824] sm:$0xf]
  %v370 = vld [vmem:[%s1 + $0x828] sm:$0xff]
  %v371 = vld [vmem:[%s1 + $0x830] sm:$0xf]
  %v372 = vld [vmem:[%s1 + $0x834] sm:$0xff]
  %v373 = vld [vmem:[%s1 + $0x83c] sm:$0xf]
  %v374 = vld [vmem:[%s1 + $0x840] sm:$0xff]
  %v375 = vld [vmem:[%s1 + $0x848] sm:$0xf]
  %v376 = vld [vmem:[%s1 + $0x84c] sm:$0xff]
  %v377 = vld [vmem:[%s1 + $0x854] sm:$0xf]
  %v378 = vld [vmem:[%s1 + $0x858] sm:$0xff]
  %v379 = vld [vmem:[%s1 + $0x860] sm:$0xf]
  %v380 = vld [vmem:[%s1 + $0x864] sm:$0xff]
  %v381 = vld [vmem:[%s1 + $0x86c] sm:$0xf]
  %v382 = vld [vmem:[%s1 + $0x870] sm:$0xff]
  %v383 = vld [vmem:[%s1 + $0x878] sm:$0xf]
  %v384 = vld [vmem:[%s1 + $0x87c] sm:$0xff]
  %v385 = vld [vmem:[%s1 + $0x884] sm:$0xf]
  %v386 = vld [vmem:[%s1 + $0x888] sm:$0xff]
  %v387 = vld [vmem:[%s1 + $0x890] sm:$0xf]
  %v388 = vld [vmem:[%s1 + $0x894] sm:$0xff]
  %v389 = vld [vmem:[%s1 + $0x89c] sm:$0xf]
  %v390 = vld [vmem:[%s1 + $0x8a0] sm:$0xff]
  %v391 = vld [vmem:[%s1 + $0x8a8] sm:$0xf]
  %v392 = vld [vmem:[%s1 + $0x8ac] sm:$0xff]
  %v393 = vld [vmem:[%s1 + $0x8b4] sm:$0xf]
  %v394 = vld [vmem:[%s1 + $0x8b8] sm:$0xff]
  %v395 = vld [vmem:[%s1 + $0x8c0] sm:$0xf]
  %v396 = vld [vmem:[%s1 + $0x8c4] sm:$0xff]
  %v397 = vld [vmem:[%s1 + $0x8cc] sm:$0xf]
  %v398 = vld [vmem:[%s1 + $0x8d0] sm:$0xff]
  %v399 = vld [vmem:[%s1 + $0x8d8] sm:$0xf]
  %v400 = vld [vmem:[%s1 + $0x8dc] sm:$0xff]
  %v401 = vld [vmem:[%s1 + $0x8e4] sm:$0xf]
  %v402 = vld [vmem:[%s1 + $0x8e8] sm:$0xff]
  %v403 = vld [vmem:[%s1 + $0x8f0] sm:$0xf]
  %v404 = vld [vmem:[%s1 + $0x8f4] sm:$0xff]
  %v405 = vld [vmem:[%s1 + $0x8fc] sm:$0xf]
  %v406 = vld [vmem:[%s1 + $0x900] sm:$0xff]
  %v407 = vld [vmem:[%s1 + $0x908] sm:$0xf]
  %v408 = vld [vmem:[%s1 + $0x90c] sm:$0xff]
  %v409 = vld [vmem:[%s1 + $0x914] sm:$0xf]
  %v410 = vld [vmem:[%s1 + $0x918] sm:$0xff]
  %v411 = vld [vmem:[%s1 + $0x920] sm:$0xf]
  %v412 = vld [vmem:[%s1 + $0x924] sm:$0xff]
  %v413 = vld [vmem:[%s1 + $0x92c] sm:$0xf]
  %v414 = vld [vmem:[%s1 + $0x930] sm:$0xff]
  %v415 = vld [vmem:[%s1 + $0x938] sm:$0xf]
  %v416 = vld [vmem:[%s1 + $0x93c] sm:$0xff]
  %v417 = vld [vmem:[%s1 + $0x944] sm:$0xf]
  %v418 = vld [vmem:[%s1 + $0x948] sm:$0xff]
  %v419 = vld [vmem:[%s1 + $0x950] sm:$0xf]
  %v420 = vld [vmem:[%s1 + $0x954] sm:$0xff]
  %v421 = vld [vmem:[%s1 + $0x95c] sm:$0xf]
  %v422 = vld [vmem:[%s1 + $0x960] sm:$0xff]
  %v423 = vld [vmem:[%s1 + $0x968] sm:$0xf]
  %v424 = vld [vmem:[%s1 + $0x96c] sm:$0xff]
  %v425 = vld [vmem:[%s1 + $0x974] sm:$0xf]
  %v426 = vld [vmem:[%s1 + $0x978] sm:$0xff]
  %v427 = vld [vmem:[%s1 + $0x980] sm:$0xf]
  %v428 = vld [vmem:[%s1 + $0x984] sm:$0xff]
  %v429 = vld [vmem:[%s1 + $0x98c] sm:$0xf]
  %v430 = vld [vmem:[%s1 + $0x990] sm:$0xff]
  %v431 = vld [vmem:[%s1 + $0x998] sm:$0xf]
  %v432 = vld [vmem:[%s1 + $0x99c] sm:$0xff]
  %v433 = vld [vmem:[%s1 + $0x9a4] sm:$0xf]
  %v434 = vld [vmem:[%s1 + $0x9a8] sm:$0xff]
  %v435 = vld [vmem:[%s1 + $0x9b0] sm:$0xf]
  %v436 = vld [vmem:[%s1 + $0x9b4] sm:$0xff]
  %v437 = vld [vmem:[%s1 + $0x9bc] sm:$0xf]
  %v438 = vld [vmem:[%s1 + $0x9c0] sm:$0xff]
  %v439 = vld [vmem:[%s1 + $0x9c8] sm:$0xf]
  %v440 = vld [vmem:[%s1 + $0x9cc] sm:$0xff]
  %v441 = vld [vmem:[%s1 + $0x9d4] sm:$0xf]
  %v442 = vld [vmem:[%s1 + $0x9d8] sm:$0xff]
  %v443 = vld [vmem:[%s1 + $0x9e0] sm:$0xf]
  %v444 = vld [vmem:[%s1 + $0x9e4] sm:$0xff]
  %v445 = vld [vmem:[%s1 + $0x9ec] sm:$0xf]
  %v446 = vld [vmem:[%s1 + $0x9f0] sm:$0xff]
  %v447 = vld [vmem:[%s1 + $0x9f8] sm:$0xf]
  %v448 = vld [vmem:[%s1 + $0x9fc] sm:$0xff]
  %v449 = vld [vmem:[%s1 + $0xa04] sm:$0xf]
  %v450 = vld [vmem:[%s1 + $0xa08] sm:$0xff]
  %v451 = vld [vmem:[%s1 + $0xa10] sm:$0xf]
  %v452 = vld [vmem:[%s1 + $0xa14] sm:$0xff]
  %v453 = vld [vmem:[%s1 + $0xa1c] sm:$0xf]
  %v454 = vld [vmem:[%s2] sm:$0x7]
  %v456 = vperm.slane %v454, 0
  %v457 = vperm.slane %v454, 1
  %v458 = vperm.slane %v454, 2
  %v469 = vunpack.c.l.b16 %v15
  %v470 = vunpack.c.h.b16 %v15
  %v471 = vunpack.c.l.b16 %v16
  %v472 = vunpack.c.h.b16 %v16
  %v473 = vunpack.c.l.b16 %v17
  %v474 = vunpack.c.h.b16 %v17
  %v475 = vunpack.c.l.b16 %v18
  %v476 = vunpack.c.h.b16 %v18
  %v477 = vunpack.c.l.b16 %v19
  %v478 = vunpack.c.h.b16 %v19
  %v479 = vunpack.c.l.b16 %v20
  %v480 = vunpack.c.h.b16 %v20
  %v481 = vunpack.c.l.b16 %v21
  %v482 = vunpack.c.h.b16 %v21
  %v483 = vpack.c.b16 %v469, %v469
  %v484 = vpack.c.b16 %v470, %v470
  %v485 = vpack.c.b16 %v471, %v471
  %v486 = vpack.c.b16 %v472, %v472
  %v487 = vpack.c.b16 %v473, %v473
  %v488 = vpack.c.b16 %v474, %v474
  %v489 = vpack.c.b16 %v475, %v475
  %v490 = vpack.c.b16 %v476, %v476
  %v491 = vpack.c.b16 %v477, %v477
  %v492 = vpack.c.b16 %v478, %v478
  %v493 = vpack.c.b16 %v479, %v479
  %v494 = vpack.c.b16 %v480, %v480
  %v495 = vpack.c.b16 %v481, %v481
  %v496 = vpack.c.b16 %v482, %v482
  %v942 = vunpack.c.l.b16 %v22
  %v943 = vunpack.c.h.b16 %v22
  %v944 = vunpack.c.l.b16 %v23
  %v945 = vunpack.c.l.b16 %v24
  %v946 = vunpack.c.h.b16 %v24
  %v947 = vunpack.c.l.b16 %v25
  %v948 = vunpack.c.l.b16 %v26
  %v949 = vunpack.c.h.b16 %v26
  %v950 = vunpack.c.l.b16 %v27
  %v951 = vunpack.c.l.b16 %v28
  %v952 = vunpack.c.h.b16 %v28
  %v953 = vunpack.c.l.b16 %v29
  %v954 = vunpack.c.l.b16 %v30
  %v955 = vunpack.c.h.b16 %v30
  %v956 = vunpack.c.l.b16 %v31
  %v957 = vunpack.c.l.b16 %v32
  %v958 = vunpack.c.h.b16 %v32
  %v959 = vunpack.c.l.b16 %v33
  %v960 = vunpack.c.l.b16 %v34
  %v961 = vunpack.c.h.b16 %v34
  %v962 = vunpack.c.l.b16 %v35
  %v963 = vunpack.c.l.b16 %v36
  %v964 = vunpack.c.h.b16 %v36
  %v965 = vunpack.c.l.b16 %v37
  %v966 = vunpack.c.l.b16 %v38
  %v967 = vunpack.c.h.b16 %v38
  %v968 = vunpack.c.l.b16 %v39
  %v969 = vunpack.c.l.b16 %v40
  %v970 = vunpack.c.h.b16 %v40
  %v971 = vunpack.c.l.b16 %v41
  %v972 = vunpack.c.l.b16 %v42
  %v973 = vunpack.c.h.b16 %v42
  %v974 = vunpack.c.l.b16 %v43
  %v975 = vunpack.c.l.b16 %v44
  %v976 = vunpack.c.h.b16 %v44
  %v977 = vunpack.c.l.b16 %v45
  %v978 = vunpack.c.l.b16 %v46
  %v979 = vunpack.c.h.b16 %v46
  %v980 = vunpack.c.l.b16 %v47
  %v981 = vunpack.c.l.b16 %v48
  %v982 = vunpack.c.h.b16 %v48
  %v983 = vunpack.c.l.b16 %v49
  %v984 = vunpack.c.l.b16 %v50
  %v985 = vunpack.c.h.b16 %v50
  %v986 = vunpack.c.l.b16 %v51
  %v987 = vunpack.c.l.b16 %v52
  %v988 = vunpack.c.h.b16 %v52
  %v989 = vunpack.c.l.b16 %v53
  %v990 = vunpack.c.l.b16 %v54
  %v991 = vunpack.c.h.b16 %v54
  %v992 = vunpack.c.l.b16 %v55
  %v993 = vunpack.c.l.b16 %v56
  %v994 = vunpack.c.h.b16 %v56
  %v995 = vunpack.c.l.b16 %v57
  %v996 = vunpack.c.l.b16 %v58
  %v997 = vunpack.c.h.b16 %v58
  %v998 = vunpack.c.l.b16 %v59
  %v999 = vunpack.c.l.b16 %v60
  %v1000 = vunpack.c.h.b16 %v60
  %v1001 = vunpack.c.l.b16 %v61
  %v1002 = vunpack.c.l.b16 %v62
  %v1003 = vunpack.c.h.b16 %v62
  %v1004 = vunpack.c.l.b16 %v63
  %v1005 = vunpack.c.l.b16 %v64
  %v1006 = vunpack.c.h.b16 %v64
  %v1007 = vunpack.c.l.b16 %v65
  %v1008 = vunpack.c.l.b16 %v66
  %v1009 = vunpack.c.h.b16 %v66
  %v1010 = vunpack.c.l.b16 %v67
  %v1011 = vunpack.c.l.b16 %v68
  %v1012 = vunpack.c.h.b16 %v68
  %v1013 = vunpack.c.l.b16 %v69
  %v1014 = vunpack.c.l.b16 %v70
  %v1015 = vunpack.c.h.b16 %v70
  %v1016 = vunpack.c.l.b16 %v71
  %v1017 = vunpack.c.l.b16 %v72
  %v1018 = vunpack.c.h.b16 %v72
  %v1019 = vunpack.c.l.b16 %v73
  %v1020 = vunpack.c.l.b16 %v74
  %v1021 = vunpack.c.h.b16 %v74
  %v1022 = vunpack.c.l.b16 %v75
  %v1023 = vunpack.c.l.b16 %v76
  %v1024 = vunpack.c.h.b16 %v76
  %v1025 = vunpack.c.l.b16 %v77
  %v1026 = vunpack.c.l.b16 %v78
  %v1027 = vunpack.c.h.b16 %v78
  %v1028 = vunpack.c.l.b16 %v79
  %v1029 = vunpack.c.l.b16 %v80
  %v1030 = vunpack.c.h.b16 %v80
  %v1031 = vunpack.c.l.b16 %v81
  %v1032 = vunpack.c.l.b16 %v82
  %v1033 = vunpack.c.h.b16 %v82
  %v1034 = vunpack.c.l.b16 %v83
  %v1035 = vunpack.c.l.b16 %v84
  %v1036 = vunpack.c.h.b16 %v84
  %v1037 = vunpack.c.l.b16 %v85
  %v1038 = vunpack.c.l.b16 %v86
  %v1039 = vunpack.c.h.b16 %v86
  %v1040 = vunpack.c.l.b16 %v87
  %v1041 = vunpack.c.l.b16 %v88
  %v1042 = vunpack.c.h.b16 %v88
  %v1043 = vunpack.c.l.b16 %v89
  %v1044 = vunpack.c.l.b16 %v90
  %v1045 = vunpack.c.h.b16 %v90
  %v1046 = vunpack.c.l.b16 %v91
  %v1047 = vunpack.c.l.b16 %v92
  %v1048 = vunpack.c.h.b16 %v92
  %v1049 = vunpack.c.l.b16 %v93
  %v1050 = vunpack.c.l.b16 %v94
  %v1051 = vunpack.c.h.b16 %v94
  %v1052 = vunpack.c.l.b16 %v95
  %v1053 = vunpack.c.l.b16 %v96
  %v1054 = vunpack.c.h.b16 %v96
  %v1055 = vunpack.c.l.b16 %v97
  %v1056 = vunpack.c.l.b16 %v98
  %v1057 = vunpack.c.h.b16 %v98
  %v1058 = vunpack.c.l.b16 %v99
  %v1059 = vunpack.c.l.b16 %v100
  %v1060 = vunpack.c.h.b16 %v100
  %v1061 = vunpack.c.l.b16 %v101
  %v1062 = vunpack.c.l.b16 %v102
  %v1063 = vunpack.c.h.b16 %v102
  %v1064 = vunpack.c.l.b16 %v103
  %v1065 = vunpack.c.l.b16 %v104
  %v1066 = vunpack.c.h.b16 %v104
  %v1067 = vunpack.c.l.b16 %v105
  %v1068 = vunpack.c.l.b16 %v106
  %v1069 = vunpack.c.h.b16 %v106
  %v1070 = vunpack.c.l.b16 %v107
  %v1071 = vunpack.c.l.b16 %v108
  %v1072 = vunpack.c.h.b16 %v108
  %v1073 = vunpack.c.l.b16 %v109
  %v1074 = vunpack.c.l.b16 %v110
  %v1075 = vunpack.c.h.b16 %v110
  %v1076 = vunpack.c.l.b16 %v111
  %v1077 = vunpack.c.l.b16 %v112
  %v1078 = vunpack.c.h.b16 %v112
  %v1079 = vunpack.c.l.b16 %v113
  %v1080 = vunpack.c.l.b16 %v114
  %v1081 = vunpack.c.h.b16 %v114
  %v1082 = vunpack.c.l.b16 %v115
  %v1083 = vunpack.c.l.b16 %v116
  %v1084 = vunpack.c.h.b16 %v116
  %v1085 = vunpack.c.l.b16 %v117
  %v1086 = vunpack.c.l.b16 %v118
  %v1087 = vunpack.c.h.b16 %v118
  %v1088 = vunpack.c.l.b16 %v119
  %v1089 = vunpack.c.l.b16 %v120
  %v1090 = vunpack.c.h.b16 %v120
  %v1091 = vunpack.c.l.b16 %v121
  %v1092 = vunpack.c.l.b16 %v122
  %v1093 = vunpack.c.h.b16 %v122
  %v1094 = vunpack.c.l.b16 %v123
  %v1095 = vunpack.c.l.b16 %v124
  %v1096 = vunpack.c.h.b16 %v124
  %v1097 = vunpack.c.l.b16 %v125
  %v1098 = vunpack.c.l.b16 %v126
  %v1099 = vunpack.c.h.b16 %v126
  %v1100 = vunpack.c.l.b16 %v127
  %v1101 = vunpack.c.l.b16 %v128
  %v1102 = vunpack.c.h.b16 %v128
  %v1103 = vunpack.c.l.b16 %v129
  %v1104 = vunpack.c.l.b16 %v130
  %v1105 = vunpack.c.h.b16 %v130
  %v1106 = vunpack.c.l.b16 %v131
  %v1107 = vunpack.c.l.b16 %v132
  %v1108 = vunpack.c.h.b16 %v132
  %v1109 = vunpack.c.l.b16 %v133
  %v1110 = vunpack.c.l.b16 %v134
  %v1111 = vunpack.c.h.b16 %v134
  %v1112 = vunpack.c.l.b16 %v135
  %v1113 = vunpack.c.l.b16 %v136
  %v1114 = vunpack.c.h.b16 %v136
  %v1115 = vunpack.c.l.b16 %v137
  %v1116 = vunpack.c.l.b16 %v138
  %v1117 = vunpack.c.h.b16 %v138
  %v1118 = vunpack.c.l.b16 %v139
  %v1119 = vunpack.c.l.b16 %v140
  %v1120 = vunpack.c.h.b16 %v140
  %v1121 = vunpack.c.l.b16 %v141
  %v1122 = vunpack.c.l.b16 %v142
  %v1123 = vunpack.c.h.b16 %v142
  %v1124 = vunpack.c.l.b16 %v143
  %v1125 = vunpack.c.l.b16 %v144
  %v1126 = vunpack.c.h.b16 %v144
  %v1127 = vunpack.c.l.b16 %v145
  %v1128 = vunpack.c.l.b16 %v146
  %v1129 = vunpack.c.h.b16 %v146
  %v1130 = vunpack.c.l.b16 %v147
  %v1131 = vunpack.c.l.b16 %v148
  %v1132 = vunpack.c.h.b16 %v148
  %v1133 = vunpack.c.l.b16 %v149
  %v1134 = vunpack.c.l.b16 %v150
  %v1135 = vunpack.c.h.b16 %v150
  %v1136 = vunpack.c.l.b16 %v151
  %v1137 = vunpack.c.l.b16 %v152
  %v1138 = vunpack.c.h.b16 %v152
  %v1139 = vunpack.c.l.b16 %v153
  %v1140 = vunpack.c.l.b16 %v154
  %v1141 = vunpack.c.h.b16 %v154
  %v1142 = vunpack.c.l.b16 %v155
  %v1143 = vunpack.c.l.b16 %v156
  %v1144 = vunpack.c.h.b16 %v156
  %v1145 = vunpack.c.l.b16 %v157
  %v1146 = vunpack.c.l.b16 %v158
  %v1147 = vunpack.c.h.b16 %v158
  %v1148 = vunpack.c.l.b16 %v159
  %v1149 = vunpack.c.l.b16 %v160
  %v1150 = vunpack.c.h.b16 %v160
  %v1151 = vunpack.c.l.b16 %v161
  %v1152 = vunpack.c.l.b16 %v162
  %v1153 = vunpack.c.h.b16 %v162
  %v1154 = vunpack.c.l.b16 %v163
  %v1155 = vunpack.c.l.b16 %v164
  %v1156 = vunpack.c.h.b16 %v164
  %v1157 = vunpack.c.l.b16 %v165
  %v1158 = vunpack.c.l.b16 %v166
  %v1159 = vunpack.c.h.b16 %v166
  %v1160 = vunpack.c.l.b16 %v167
  %v1161 = vunpack.c.l.b16 %v168
  %v1162 = vunpack.c.h.b16 %v168
  %v1163 = vunpack.c.l.b16 %v169
  %v1164 = vunpack.c.l.b16 %v170
  %v1165 = vunpack.c.h.b16 %v170
  %v1166 = vunpack.c.l.b16 %v171
  %v1167 = vunpack.c.l.b16 %v172
  %v1168 = vunpack.c.h.b16 %v172
  %v1169 = vunpack.c.l.b16 %v173
  %v1170 = vunpack.c.l.b16 %v174
  %v1171 = vunpack.c.h.b16 %v174
  %v1172 = vunpack.c.l.b16 %v175
  %v1173 = vunpack.c.l.b16 %v176
  %v1174 = vunpack.c.h.b16 %v176
  %v1175 = vunpack.c.l.b16 %v177
  %v1176 = vunpack.c.l.b16 %v178
  %v1177 = vunpack.c.h.b16 %v178
  %v1178 = vunpack.c.l.b16 %v179
  %v1179 = vunpack.c.l.b16 %v180
  %v1180 = vunpack.c.h.b16 %v180
  %v1181 = vunpack.c.l.b16 %v181
  %v1182 = vunpack.c.l.b16 %v182
  %v1183 = vunpack.c.h.b16 %v182
  %v1184 = vunpack.c.l.b16 %v183
  %v1185 = vunpack.c.l.b16 %v184
  %v1186 = vunpack.c.h.b16 %v184
  %v1187 = vunpack.c.l.b16 %v185
  %v1188 = vunpack.c.l.b16 %v186
  %v1189 = vunpack.c.h.b16 %v186
  %v1190 = vunpack.c.l.b16 %v187
  %v1191 = vunpack.c.l.b16 %v188
  %v1192 = vunpack.c.h.b16 %v188
  %v1193 = vunpack.c.l.b16 %v189
  %v1194 = vunpack.c.l.b16 %v190
  %v1195 = vunpack.c.h.b16 %v190
  %v1196 = vunpack.c.l.b16 %v191
  %v1197 = vunpack.c.l.b16 %v192
  %v1198 = vunpack.c.h.b16 %v192
  %v1199 = vunpack.c.l.b16 %v193
  %v1200 = vunpack.c.l.b16 %v194
  %v1201 = vunpack.c.h.b16 %v194
  %v1202 = vunpack.c.l.b16 %v195
  %v1203 = vunpack.c.l.b16 %v196
  %v1204 = vunpack.c.h.b16 %v196
  %v1205 = vunpack.c.l.b16 %v197
  %v1206 = vunpack.c.l.b16 %v198
  %v1207 = vunpack.c.h.b16 %v198
  %v1208 = vunpack.c.l.b16 %v199
  %v1209 = vunpack.c.l.b16 %v200
  %v1210 = vunpack.c.h.b16 %v200
  %v1211 = vunpack.c.l.b16 %v201
  %v1212 = vunpack.c.l.b16 %v202
  %v1213 = vunpack.c.h.b16 %v202
  %v1214 = vunpack.c.l.b16 %v203
  %v1215 = vunpack.c.l.b16 %v204
  %v1216 = vunpack.c.h.b16 %v204
  %v1217 = vunpack.c.l.b16 %v205
  %v1218 = vunpack.c.l.b16 %v206
  %v1219 = vunpack.c.h.b16 %v206
  %v1220 = vunpack.c.l.b16 %v207
  %v1221 = vunpack.c.l.b16 %v208
  %v1222 = vunpack.c.h.b16 %v208
  %v1223 = vunpack.c.l.b16 %v209
  %v1224 = vunpack.c.l.b16 %v210
  %v1225 = vunpack.c.h.b16 %v210
  %v1226 = vunpack.c.l.b16 %v211
  %v1227 = vunpack.c.l.b16 %v212
  %v1228 = vunpack.c.h.b16 %v212
  %v1229 = vunpack.c.l.b16 %v213
  %v1230 = vunpack.c.l.b16 %v214
  %v1231 = vunpack.c.h.b16 %v214
  %v1232 = vunpack.c.l.b16 %v215
  %v1233 = vunpack.c.l.b16 %v216
  %v1234 = vunpack.c.h.b16 %v216
  %v1235 = vunpack.c.l.b16 %v217
  %v1236 = vunpack.c.l.b16 %v218
  %v1237 = vunpack.c.h.b16 %v218
  %v1238 = vunpack.c.l.b16 %v219
  %v1239 = vunpack.c.l.b16 %v220
  %v1240 = vunpack.c.h.b16 %v220
  %v1241 = vunpack.c.l.b16 %v221
  %v1242 = vunpack.c.l.b16 %v222
  %v1243 = vunpack.c.h.b16 %v222
  %v1244 = vunpack.c.l.b16 %v223
  %v1245 = vunpack.c.l.b16 %v224
  %v1246 = vunpack.c.h.b16 %v224
  %v1247 = vunpack.c.l.b16 %v225
  %v1248 = vunpack.c.l.b16 %v226
  %v1249 = vunpack.c.h.b16 %v226
  %v1250 = vunpack.c.l.b16 %v227
  %v1251 = vunpack.c.l.b16 %v228
  %v1252 = vunpack.c.h.b16 %v228
  %v1253 = vunpack.c.l.b16 %v229
  %v1254 = vunpack.c.l.b16 %v230
  %v1255 = vunpack.c.h.b16 %v230
  %v1256 = vunpack.c.l.b16 %v231
  %v1257 = vunpack.c.l.b16 %v232
  %v1258 = vunpack.c.h.b16 %v232
  %v1259 = vunpack.c.l.b16 %v233
  %v1260 = vunpack.c.l.b16 %v234
  %v1261 = vunpack.c.h.b16 %v234
  %v1262 = vunpack.c.l.b16 %v235
  %v1263 = vunpack.c.l.b16 %v236
  %v1264 = vunpack.c.h.b16 %v236
  %v1265 = vunpack.c.l.b16 %v237
  %v1266 = vunpack.c.l.b16 %v238
  %v1267 = vunpack.c.h.b16 %v238
  %v1268 = vunpack.c.l.b16 %v239
  %v1269 = vunpack.c.l.b16 %v240
  %v1270 = vunpack.c.h.b16 %v240
  %v1271 = vunpack.c.l.b16 %v241
  %v1272 = vunpack.c.l.b16 %v242
  %v1273 = vunpack.c.h.b16 %v242
  %v1274 = vunpack.c.l.b16 %v243
  %v1275 = vunpack.c.l.b16 %v244
  %v1276 = vunpack.c.h.b16 %v244
  %v1277 = vunpack.c.l.b16 %v245
  %v1278 = vunpack.c.l.b16 %v246
  %v1279 = vunpack.c.h.b16 %v246
  %v1280 = vunpack.c.l.b16 %v247
  %v1281 = vunpack.c.l.b16 %v248
  %v1282 = vunpack.c.h.b16 %v248
  %v1283 = vunpack.c.l.b16 %v249
  %v1284 = vunpack.c.l.b16 %v250
  %v1285 = vunpack.c.h.b16 %v250
  %v1286 = vunpack.c.l.b16 %v251
  %v1287 = vunpack.c.l.b16 %v252
  %v1288 = vunpack.c.h.b16 %v252
  %v1289 = vunpack.c.l.b16 %v253
  %v1290 = vunpack.c.l.b16 %v254
  %v1291 = vunpack.c.h.b16 %v254
  %v1292 = vunpack.c.l.b16 %v255
  %v1293 = vunpack.c.l.b16 %v256
  %v1294 = vunpack.c.h.b16 %v256
  %v1295 = vunpack.c.l.b16 %v257
  %v1296 = vunpack.c.l.b16 %v258
  %v1297 = vunpack.c.h.b16 %v258
  %v1298 = vunpack.c.l.b16 %v259
  %v1299 = vunpack.c.l.b16 %v260
  %v1300 = vunpack.c.h.b16 %v260
  %v1301 = vunpack.c.l.b16 %v261
  %v1302 = vunpack.c.l.b16 %v262
  %v1303 = vunpack.c.h.b16 %v262
  %v1304 = vunpack.c.l.b16 %v263
  %v1305 = vunpack.c.l.b16 %v264
  %v1306 = vunpack.c.h.b16 %v264
  %v1307 = vunpack.c.l.b16 %v265
  %v1308 = vunpack.c.l.b16 %v266
  %v1309 = vunpack.c.h.b16 %v266
  %v1310 = vunpack.c.l.b16 %v267
  %v1311 = vunpack.c.l.b16 %v268
  %v1312 = vunpack.c.h.b16 %v268
  %v1313 = vunpack.c.l.b16 %v269
  %v1314 = vunpack.c.l.b16 %v270
  %v1315 = vunpack.c.h.b16 %v270
  %v1316 = vunpack.c.l.b16 %v271
  %v1317 = vunpack.c.l.b16 %v272
  %v1318 = vunpack.c.h.b16 %v272
  %v1319 = vunpack.c.l.b16 %v273
  %v1320 = vunpack.c.l.b16 %v274
  %v1321 = vunpack.c.h.b16 %v274
  %v1322 = vunpack.c.l.b16 %v275
  %v1323 = vunpack.c.l.b16 %v276
  %v1324 = vunpack.c.h.b16 %v276
  %v1325 = vunpack.c.l.b16 %v277
  %v1326 = vunpack.c.l.b16 %v278
  %v1327 = vunpack.c.h.b16 %v278
  %v1328 = vunpack.c.l.b16 %v279
  %v1329 = vunpack.c.l.b16 %v280
  %v1330 = vunpack.c.h.b16 %v280
  %v1331 = vunpack.c.l.b16 %v281
  %v1332 = vunpack.c.l.b16 %v282
  %v1333 = vunpack.c.h.b16 %v282
  %v1334 = vunpack.c.l.b16 %v283
  %v1335 = vunpack.c.l.b16 %v284
  %v1336 = vunpack.c.h.b16 %v284
  %v1337 = vunpack.c.l.b16 %v285
  %v1338 = vunpack.c.l.b16 %v286
  %v1339 = vunpack.c.h.b16 %v286
  %v1340 = vunpack.c.l.b16 %v287
  %v1341 = vunpack.c.l.b16 %v288
  %v1342 = vunpack.c.h.b16 %v288
  %v1343 = vunpack.c.l.b16 %v289
  %v1344 = vunpack.c.l.b16 %v290
  %v1345 = vunpack.c.h.b16 %v290
  %v1346 = vunpack.c.l.b16 %v291
  %v1347 = vunpack.c.l.b16 %v292
  %v1348 = vunpack.c.h.b16 %v292
  %v1349 = vunpack.c.l.b16 %v293
  %v1350 = vunpack.c.l.b16 %v294
  %v1351 = vunpack.c.h.b16 %v294
  %v1352 = vunpack.c.l.b16 %v295
  %v1353 = vunpack.c.l.b16 %v296
  %v1354 = vunpack.c.h.b16 %v296
  %v1355 = vunpack.c.l.b16 %v297
  %v1356 = vunpack.c.l.b16 %v298
  %v1357 = vunpack.c.h.b16 %v298
  %v1358 = vunpack.c.l.b16 %v299
  %v1359 = vunpack.c.l.b16 %v300
  %v1360 = vunpack.c.h.b16 %v300
  %v1361 = vunpack.c.l.b16 %v301
  %v1362 = vunpack.c.l.b16 %v302
  %v1363 = vunpack.c.h.b16 %v302
  %v1364 = vunpack.c.l.b16 %v303
  %v1365 = vunpack.c.l.b16 %v304
  %v1366 = vunpack.c.h.b16 %v304
  %v1367 = vunpack.c.l.b16 %v305
  %v1368 = vunpack.c.l.b16 %v306
  %v1369 = vunpack.c.h.b16 %v306
  %v1370 = vunpack.c.l.b16 %v307
  %v1371 = vunpack.c.l.b16 %v308
  %v1372 = vunpack.c.h.b16 %v308
  %v1373 = vunpack.c.l.b16 %v309
  %v1374 = vunpack.c.l.b16 %v310
  %v1375 = vunpack.c.h.b16 %v310
  %v1376 = vunpack.c.l.b16 %v311
  %v1377 = vunpack.c.l.b16 %v312
  %v1378 = vunpack.c.h.b16 %v312
  %v1379 = vunpack.c.l.b16 %v313
  %v1380 = vunpack.c.l.b16 %v314
  %v1381 = vunpack.c.h.b16 %v314
  %v1382 = vunpack.c.l.b16 %v315
  %v1383 = vunpack.c.l.b16 %v316
  %v1384 = vunpack.c.h.b16 %v316
  %v1385 = vunpack.c.l.b16 %v317
  %v1386 = vunpack.c.l.b16 %v318
  %v1387 = vunpack.c.h.b16 %v318
  %v1388 = vunpack.c.l.b16 %v319
  %v1389 = vunpack.c.l.b16 %v320
  %v1390 = vunpack.c.h.b16 %v320
  %v1391 = vunpack.c.l.b16 %v321
  %v1392 = vunpack.c.l.b16 %v322
  %v1393 = vunpack.c.h.b16 %v322
  %v1394 = vunpack.c.l.b16 %v323
  %v1395 = vunpack.c.l.b16 %v324
  %v1396 = vunpack.c.h.b16 %v324
  %v1397 = vunpack.c.l.b16 %v325
  %v1398 = vunpack.c.l.b16 %v326
  %v1399 = vunpack.c.h.b16 %v326
  %v1400 = vunpack.c.l.b16 %v327
  %v1401 = vunpack.c.l.b16 %v328
  %v1402 = vunpack.c.h.b16 %v328
  %v1403 = vunpack.c.l.b16 %v329
  %v1404 = vunpack.c.l.b16 %v330
  %v1405 = vunpack.c.h.b16 %v330
  %v1406 = vunpack.c.l.b16 %v331
  %v1407 = vunpack.c.l.b16 %v332
  %v1408 = vunpack.c.h.b16 %v332
  %v1409 = vunpack.c.l.b16 %v333
  %v1410 = vunpack.c.l.b16 %v334
  %v1411 = vunpack.c.h.b16 %v334
  %v1412 = vunpack.c.l.b16 %v335
  %v1413 = vunpack.c.l.b16 %v336
  %v1414 = vunpack.c.h.b16 %v336
  %v1415 = vunpack.c.l.b16 %v337
  %v1416 = vunpack.c.l.b16 %v338
  %v1417 = vunpack.c.h.b16 %v338
  %v1418 = vunpack.c.l.b16 %v339
  %v1419 = vunpack.c.l.b16 %v340
  %v1420 = vunpack.c.h.b16 %v340
  %v1421 = vunpack.c.l.b16 %v341
  %v1422 = vunpack.c.l.b16 %v342
  %v1423 = vunpack.c.h.b16 %v342
  %v1424 = vunpack.c.l.b16 %v343
  %v1425 = vunpack.c.l.b16 %v344
  %v1426 = vunpack.c.h.b16 %v344
  %v1427 = vunpack.c.l.b16 %v345
  %v1428 = vunpack.c.l.b16 %v346
  %v1429 = vunpack.c.h.b16 %v346
  %v1430 = vunpack.c.l.b16 %v347
  %v1431 = vunpack.c.l.b16 %v348
  %v1432 = vunpack.c.h.b16 %v348
  %v1433 = vunpack.c.l.b16 %v349
  %v1434 = vunpack.c.l.b16 %v350
  %v1435 = vunpack.c.h.b16 %v350
  %v1436 = vunpack.c.l.b16 %v351
  %v1437 = vunpack.c.l.b16 %v352
  %v1438 = vunpack.c.h.b16 %v352
  %v1439 = vunpack.c.l.b16 %v353
  %v1440 = vunpack.c.l.b16 %v354
  %v1441 = vunpack.c.h.b16 %v354
  %v1442 = vunpack.c.l.b16 %v355
  %v1443 = vunpack.c.l.b16 %v356
  %v1444 = vunpack.c.h.b16 %v356
  %v1445 = vunpack.c.l.b16 %v357
  %v1446 = vunpack.c.l.b16 %v358
  %v1447 = vunpack.c.h.b16 %v358
  %v1448 = vunpack.c.l.b16 %v359
  %v1449 = vunpack.c.l.b16 %v360
  %v1450 = vunpack.c.h.b16 %v360
  %v1451 = vunpack.c.l.b16 %v361
  %v1452 = vunpack.c.l.b16 %v362
  %v1453 = vunpack.c.h.b16 %v362
  %v1454 = vunpack.c.l.b16 %v363
  %v1455 = vunpack.c.l.b16 %v364
  %v1456 = vunpack.c.h.b16 %v364
  %v1457 = vunpack.c.l.b16 %v365
  %v1458 = vunpack.c.l.b16 %v366
  %v1459 = vunpack.c.h.b16 %v366
  %v1460 = vunpack.c.l.b16 %v367
  %v1461 = vunpack.c.l.b16 %v368
  %v1462 = vunpack.c.h.b16 %v368
  %v1463 = vunpack.c.l.b16 %v369
  %v1464 = vunpack.c.l.b16 %v370
  %v1465 = vunpack.c.h.b16 %v370
  %v1466 = vunpack.c.l.b16 %v371
  %v1467 = vunpack.c.l.b16 %v372
  %v1468 = vunpack.c.h.b16 %v372
  %v1469 = vunpack.c.l.b16 %v373
  %v1470 = vunpack.c.l.b16 %v374
  %v1471 = vunpack.c.h.b16 %v374
  %v1472 = vunpack.c.l.b16 %v375
  %v1473 = vunpack.c.l.b16 %v376
  %v1474 = vunpack.c.h.b16 %v376
  %v1475 = vunpack.c.l.b16 %v377
  %v1476 = vunpack.c.l.b16 %v378
  %v1477 = vunpack.c.h.b16 %v378
  %v1478 = vunpack.c.l.b16 %v379
  %v1479 = vunpack.c.l.b16 %v380
  %v1480 = vunpack.c.h.b16 %v380
  %v1481 = vunpack.c.l.b16 %v381
  %v1482 = vunpack.c.l.b16 %v382
  %v1483 = vunpack.c.h.b16 %v382
  %v1484 = vunpack.c.l.b16 %v383
  %v1485 = vunpack.c.l.b16 %v384
  %v1486 = vunpack.c.h.b16 %v384
  %v1487 = vunpack.c.l.b16 %v385
  %v1488 = vunpack.c.l.b16 %v386
  %v1489 = vunpack.c.h.b16 %v386
  %v1490 = vunpack.c.l.b16 %v387
  %v1491 = vunpack.c.l.b16 %v388
  %v1492 = vunpack.c.h.b16 %v388
  %v1493 = vunpack.c.l.b16 %v389
  %v1494 = vunpack.c.l.b16 %v390
  %v1495 = vunpack.c.h.b16 %v390
  %v1496 = vunpack.c.l.b16 %v391
  %v1497 = vunpack.c.l.b16 %v392
  %v1498 = vunpack.c.h.b16 %v392
  %v1499 = vunpack.c.l.b16 %v393
  %v1500 = vunpack.c.l.b16 %v394
  %v1501 = vunpack.c.h.b16 %v394
  %v1502 = vunpack.c.l.b16 %v395
  %v1503 = vunpack.c.l.b16 %v396
  %v1504 = vunpack.c.h.b16 %v396
  %v1505 = vunpack.c.l.b16 %v397
  %v1506 = vunpack.c.l.b16 %v398
  %v1507 = vunpack.c.h.b16 %v398
  %v1508 = vunpack.c.l.b16 %v399
  %v1509 = vunpack.c.l.b16 %v400
  %v1510 = vunpack.c.h.b16 %v400
  %v1511 = vunpack.c.l.b16 %v401
  %v1512 = vunpack.c.l.b16 %v402
  %v1513 = vunpack.c.h.b16 %v402
  %v1514 = vunpack.c.l.b16 %v403
  %v1515 = vunpack.c.l.b16 %v404
  %v1516 = vunpack.c.h.b16 %v404
  %v1517 = vunpack.c.l.b16 %v405
  %v1518 = vunpack.c.l.b16 %v406
  %v1519 = vunpack.c.h.b16 %v406
  %v1520 = vunpack.c.l.b16 %v407
  %v1521 = vunpack.c.l.b16 %v408
  %v1522 = vunpack.c.h.b16 %v408
  %v1523 = vunpack.c.l.b16 %v409
  %v1524 = vunpack.c.l.b16 %v410
  %v1525 = vunpack.c.h.b16 %v410
  %v1526 = vunpack.c.l.b16 %v411
  %v1527 = vunpack.c.l.b16 %v412
  %v1528 = vunpack.c.h.b16 %v412
  %v1529 = vunpack.c.l.b16 %v413
  %v1530 = vunpack.c.l.b16 %v414
  %v1531 = vunpack.c.h.b16 %v414
  %v1532 = vunpack.c.l.b16 %v415
  %v1533 = vunpack.c.l.b16 %v416
  %v1534 = vunpack.c.h.b16 %v416
  %v1535 = vunpack.c.l.b16 %v417
  %v1536 = vunpack.c.l.b16 %v418
  %v1537 = vunpack.c.h.b16 %v418
  %v1538 = vunpack.c.l.b16 %v419
  %v1539 = vunpack.c.l.b16 %v420
  %v1540 = vunpack.c.h.b16 %v420
  %v1541 = vunpack.c.l.b16 %v421
  %v1542 = vunpack.c.l.b16 %v422
  %v1543 = vunpack.c.h.b16 %v422
  %v1544 = vunpack.c.l.b16 %v423
  %v1545 = vunpack.c.l.b16 %v424
  %v1546 = vunpack.c.h.b16 %v424
  %v1547 = vunpack.c.l.b16 %v425
  %v1548 = vunpack.c.l.b16 %v426
  %v1549 = vunpack.c.h.b16 %v426
  %v1550 = vunpack.c.l.b16 %v427
  %v1551 = vunpack.c.l.b16 %v428
  %v1552 = vunpack.c.h.b16 %v428
  %v1553 = vunpack.c.l.b16 %v429
  %v1554 = vunpack.c.l.b16 %v430
  %v1555 = vunpack.c.h.b16 %v430
  %v1556 = vunpack.c.l.b16 %v431
  %v1557 = vunpack.c.l.b16 %v432
  %v1558 = vunpack.c.h.b16 %v432
  %v1559 = vunpack.c.l.b16 %v433
  %v1560 = vunpack.c.l.b16 %v434
  %v1561 = vunpack.c.h.b16 %v434
  %v1562 = vunpack.c.l.b16 %v435
  %v1563 = vunpack.c.l.b16 %v436
  %v1564 = vunpack.c.h.b16 %v436
  %v1565 = vunpack.c.l.b16 %v437
  %v1566 = vunpack.c.l.b16 %v438
  %v1567 = vunpack.c.h.b16 %v438
  %v1568 = vunpack.c.l.b16 %v439
  %v1569 = vunpack.c.l.b16 %v440
  %v1570 = vunpack.c.h.b16 %v440
  %v1571 = vunpack.c.l.b16 %v441
  %v1572 = vunpack.c.l.b16 %v442
  %v1573 = vunpack.c.h.b16 %v442
  %v1574 = vunpack.c.l.b16 %v443
  %v1575 = vunpack.c.l.b16 %v444
  %v1576 = vunpack.c.h.b16 %v444
  %v1577 = vunpack.c.l.b16 %v445
  %v1578 = vunpack.c.l.b16 %v446
  %v1579 = vunpack.c.h.b16 %v446
  %v1580 = vunpack.c.l.b16 %v447
  %v1581 = vunpack.c.l.b16 %v448
  %v1582 = vunpack.c.h.b16 %v448
  %v1583 = vunpack.c.l.b16 %v449
  %v1584 = vunpack.c.l.b16 %v450
  %v1585 = vunpack.c.h.b16 %v450
  %v1586 = vunpack.c.l.b16 %v451
  %v1587 = vunpack.c.l.b16 %v452
  %v1588 = vunpack.c.h.b16 %v452
  %v1589 = vunpack.c.l.b16 %v453
  %v1590 = vpack.c.b16 %v945, %v942
  %v1591 = vpack.c.b16 %v946, %v943
  %v1592 = vpack.c.b16 %v947, %v944
  %v1593 = vpack.c.b16 %v951, %v948
  %v1594 = vpack.c.b16 %v952, %v949
  %v1595 = vpack.c.b16 %v953, %v950
  %v1596 = vpack.c.b16 %v957, %v954
  %v1597 = vpack.c.b16 %v958, %v955
  %v1598 = vpack.c.b16 %v959, %v956
  %v1599 = vpack.c.b16 %v963, %v960
  %v1600 = vpack.c.b16 %v964, %v961
  %v1601 = vpack.c.b16 %v965, %v962
  %v1602 = vpack.c.b16 %v969, %v966
  %v1603 = vpack.c.b16 %v970, %v967
  %v1604 = vpack.c.b16 %v971, %v968
  %v1605 = vpack.c.b16 %v975, %v972
  %v1606 = vpack.c.b16 %v976, %v973
  %v1607 = vpack.c.b16 %v977, %v974
  %v1608 = vpack.c.b16 %v981, %v978
  %v1609 = vpack.c.b16 %v982, %v979
  %v1610 = vpack.c.b16 %v983, %v980
  %v1611 = vpack.c.b16 %v987, %v984
  %v1612 = vpack.c.b16 %v988, %v985
  %v1613 = vpack.c.b16 %v989, %v986
  %v1614 = vpack.c.b16 %v993, %v990
  %v1615 = vpack.c.b16 %v994, %v991
  %v1616 = vpack.c.b16 %v995, %v992
  %v1617 = vpack.c.b16 %v999, %v996
  %v1618 = vpack.c.b16 %v1000, %v997
  %v1619 = vpack.c.b16 %v1001, %v998
  %v1620 = vpack.c.b16 %v1005, %v1002
  %v1621 = vpack.c.b16 %v1006, %v1003
  %v1622 = vpack.c.b16 %v1007, %v1004
  %v1623 = vpack.c.b16 %v1011, %v1008
  %v1624 = vpack.c.b16 %v1012, %v1009
  %v1625 = vpack.c.b16 %v1013, %v1010
  %v1626 = vpack.c.b16 %v1017, %v1014
  %v1627 = vpack.c.b16 %v1018, %v1015
  %v1628 = vpack.c.b16 %v1019, %v1016
  %v1629 = vpack.c.b16 %v1023, %v1020
  %v1630 = vpack.c.b16 %v1024, %v1021
  %v1631 = vpack.c.b16 %v1025, %v1022
  %v1632 = vpack.c.b16 %v1029, %v1026
  %v1633 = vpack.c.b16 %v1030, %v1027
  %v1634 = vpack.c.b16 %v1031, %v1028
  %v1635 = vpack.c.b16 %v1035, %v1032
  %v1636 = vpack.c.b16 %v1036, %v1033
  %v1637 = vpack.c.b16 %v1037, %v1034
  %v1638 = vpack.c.b16 %v1041, %v1038
  %v1639 = vpack.c.b16 %v1042, %v1039
  %v1640 = vpack.c.b16 %v1043, %v1040
  %v1641 = vpack.c.b16 %v1047, %v1044
  %v1642 = vpack.c.b16 %v1048, %v1045
  %v1643 = vpack.c.b16 %v1049, %v1046
  %v1644 = vpack.c.b16 %v1053, %v1050
  %v1645 = vpack.c.b16 %v1054, %v1051
  %v1646 = vpack.c.b16 %v1055, %v1052
  %v1647 = vpack.c.b16 %v1059, %v1056
  %v1648 = vpack.c.b16 %v1060, %v1057
  %v1649 = vpack.c.b16 %v1061, %v1058
  %v1650 = vpack.c.b16 %v1065, %v1062
  %v1651 = vpack.c.b16 %v1066, %v1063
  %v1652 = vpack.c.b16 %v1067, %v1064
  %v1653 = vpack.c.b16 %v1071, %v1068
  %v1654 = vpack.c.b16 %v1072, %v1069
  %v1655 = vpack.c.b16 %v1073, %v1070
  %v1656 = vpack.c.b16 %v1077, %v1074
  %v1657 = vpack.c.b16 %v1078, %v1075
  %v1658 = vpack.c.b16 %v1079, %v1076
  %v1659 = vpack.c.b16 %v1083, %v1080
  %v1660 = vpack.c.b16 %v1084, %v1081
  %v1661 = vpack.c.b16 %v1085, %v1082
  %v1662 = vpack.c.b16 %v1089, %v1086
  %v1663 = vpack.c.b16 %v1090, %v1087
  %v1664 = vpack.c.b16 %v1091, %v1088
  %v1665 = vpack.c.b16 %v1095, %v1092
  %v1666 = vpack.c.b16 %v1096, %v1093
  %v1667 = vpack.c.b16 %v1097, %v1094
  %v1668 = vpack.c.b16 %v1101, %v1098
  %v1669 = vpack.c.b16 %v1102, %v1099
  %v1670 = vpack.c.b16 %v1103, %v1100
  %v1671 = vpack.c.b16 %v1107, %v1104
  %v1672 = vpack.c.b16 %v1108, %v1105
  %v1673 = vpack.c.b16 %v1109, %v1106
  %v1674 = vpack.c.b16 %v1113, %v1110
  %v1675 = vpack.c.b16 %v1114, %v1111
  %v1676 = vpack.c.b16 %v1115, %v1112
  %v1677 = vpack.c.b16 %v1119, %v1116
  %v1678 = vpack.c.b16 %v1120, %v1117
  %v1679 = vpack.c.b16 %v1121, %v1118
  %v1680 = vpack.c.b16 %v1125, %v1122
  %v1681 = vpack.c.b16 %v1126, %v1123
  %v1682 = vpack.c.b16 %v1127, %v1124
  %v1683 = vpack.c.b16 %v1131, %v1128
  %v1684 = vpack.c.b16 %v1132, %v1129
  %v1685 = vpack.c.b16 %v1133, %v1130
  %v1686 = vpack.c.b16 %v1137, %v1134
  %v1687 = vpack.c.b16 %v1138, %v1135
  %v1688 = vpack.c.b16 %v1139, %v1136
  %v1689 = vpack.c.b16 %v1143, %v1140
  %v1690 = vpack.c.b16 %v1144, %v1141
  %v1691 = vpack.c.b16 %v1145, %v1142
  %v1692 = vpack.c.b16 %v1149, %v1146
  %v1693 = vpack.c.b16 %v1150, %v1147
  %v1694 = vpack.c.b16 %v1151, %v1148
  %v1695 = vpack.c.b16 %v1155, %v1152
  %v1696 = vpack.c.b16 %v1156, %v1153
  %v1697 = vpack.c.b16 %v1157, %v1154
  %v1698 = vpack.c.b16 %v1161, %v1158
  %v1699 = vpack.c.b16 %v1162, %v1159
  %v1700 = vpack.c.b16 %v1163, %v1160
  %v1701 = vpack.c.b16 %v1167, %v1164
  %v1702 = vpack.c.b16 %v1168, %v1165
  %v1703 = vpack.c.b16 %v1169, %v1166
  %v1704 = vpack.c.b16 %v1173, %v1170
  %v1705 = vpack.c.b16 %v1174, %v1171
  %v1706 = vpack.c.b16 %v1175, %v1172
  %v1707 = vpack.c.b16 %v1179, %v1176
  %v1708 = vpack.c.b16 %v1180, %v1177
  %v1709 = vpack.c.b16 %v1181, %v1178
  %v1710 = vpack.c.b16 %v1185, %v1182
  %v1711 = vpack.c.b16 %v1186, %v1183
  %v1712 = vpack.c.b16 %v1187, %v1184
  %v1713 = vpack.c.b16 %v1191, %v1188
  %v1714 = vpack.c.b16 %v1192, %v1189
  %v1715 = vpack.c.b16 %v1193, %v1190
  %v1716 = vpack.c.b16 %v1197, %v1194
  %v1717 = vpack.c.b16 %v1198, %v1195
  %v1718 = vpack.c.b16 %v1199, %v1196
  %v1719 = vpack.c.b16 %v1203, %v1200
  %v1720 = vpack.c.b16 %v1204, %v1201
  %v1721 = vpack.c.b16 %v1205, %v1202
  %v1722 = vpack.c.b16 %v1209, %v1206
  %v1723 = vpack.c.b16 %v1210, %v1207
  %v1724 = vpack.c.b16 %v1211, %v1208
  %v1725 = vpack.c.b16 %v1215, %v1212
  %v1726 = vpack.c.b16 %v1216, %v1213
  %v1727 = vpack.c.b16 %v1217, %v1214
  %v1728 = vpack.c.b16 %v1221, %v1218
  %v1729 = vpack.c.b16 %v1222, %v1219
  %v1730 = vpack.c.b16 %v1223, %v1220
  %v1731 = vpack.c.b16 %v1227, %v1224
  %v1732 = vpack.c.b16 %v1228, %v1225
  %v1733 = vpack.c.b16 %v1229, %v1226
  %v1734 = vpack.c.b16 %v1233, %v1230
  %v1735 = vpack.c.b16 %v1234, %v1231
  %v1736 = vpack.c.b16 %v1235, %v1232
  %v1737 = vpack.c.b16 %v1239, %v1236
  %v1738 = vpack.c.b16 %v1240, %v1237
  %v1739 = vpack.c.b16 %v1241, %v1238
  %v1740 = vpack.c.b16 %v1245, %v1242
  %v1741 = vpack.c.b16 %v1246, %v1243
  %v1742 = vpack.c.b16 %v1247, %v1244
  %v1743 = vpack.c.b16 %v1251, %v1248
  %v1744 = vpack.c.b16 %v1252, %v1249
  %v1745 = vpack.c.b16 %v1253, %v1250
  %v1746 = vpack.c.b16 %v1257, %v1254
  %v1747 = vpack.c.b16 %v1258, %v1255
  %v1748 = vpack.c.b16 %v1259, %v1256
  %v1749 = vpack.c.b16 %v1263, %v1260
  %v1750 = vpack.c.b16 %v1264, %v1261
  %v1751 = vpack.c.b16 %v1265, %v1262
  %v1752 = vpack.c.b16 %v1269, %v1266
  %v1753 = vpack.c.b16 %v1270, %v1267
  %v1754 = vpack.c.b16 %v1271, %v1268
  %v1755 = vpack.c.b16 %v1275, %v1272
  %v1756 = vpack.c.b16 %v1276, %v1273
  %v1757 = vpack.c.b16 %v1277, %v1274
  %v1758 = vpack.c.b16 %v1281, %v1278
  %v1759 = vpack.c.b16 %v1282, %v1279
  %v1760 = vpack.c.b16 %v1283, %v1280
  %v1761 = vpack.c.b16 %v1287, %v1284
  %v1762 = vpack.c.b16 %v1288, %v1285
  %v1763 = vpack.c.b16 %v1289, %v1286
  %v1764 = vpack.c.b16 %v1293, %v1290
  %v1765 = vpack.c.b16 %v1294, %v1291
  %v1766 = vpack.c.b16 %v1295, %v1292
  %v1767 = vpack.c.b16 %v1299, %v1296
  %v1768 = vpack.c.b16 %v1300, %v1297
  %v1769 = vpack.c.b16 %v1301, %v1298
  %v1770 = vpack.c.b16 %v1305, %v1302
  %v1771 = vpack.c.b16 %v1306, %v1303
  %v1772 = vpack.c.b16 %v1307, %v1304
  %v1773 = vpack.c.b16 %v1311, %v1308
  %v1774 = vpack.c.b16 %v1312, %v1309
  %v1775 = vpack.c.b16 %v1313, %v1310
  %v1776 = vpack.c.b16 %v1317, %v1314
  %v1777 = vpack.c.b16 %v1318, %v1315
  %v1778 = vpack.c.b16 %v1319, %v1316
  %v1779 = vpack.c.b16 %v1323, %v1320
  %v1780 = vpack.c.b16 %v1324, %v1321
  %v1781 = vpack.c.b16 %v1325, %v1322
  %v1782 = vpack.c.b16 %v1329, %v1326
  %v1783 = vpack.c.b16 %v1330, %v1327
  %v1784 = vpack.c.b16 %v1331, %v1328
  %v1785 = vpack.c.b16 %v1335, %v1332
  %v1786 = vpack.c.b16 %v1336, %v1333
  %v1787 = vpack.c.b16 %v1337, %v1334
  %v1788 = vpack.c.b16 %v1341, %v1338
  %v1789 = vpack.c.b16 %v1342, %v1339
  %v1790 = vpack.c.b16 %v1343, %v1340
  %v1791 = vpack.c.b16 %v1347, %v1344
  %v1792 = vpack.c.b16 %v1348, %v1345
  %v1793 = vpack.c.b16 %v1349, %v1346
  %v1794 = vpack.c.b16 %v1353, %v1350
  %v1795 = vpack.c.b16 %v1354, %v1351
  %v1796 = vpack.c.b16 %v1355, %v1352
  %v1797 = vpack.c.b16 %v1359, %v1356
  %v1798 = vpack.c.b16 %v1360, %v1357
  %v1799 = vpack.c.b16 %v1361, %v1358
  %v1800 = vpack.c.b16 %v1365, %v1362
  %v1801 = vpack.c.b16 %v1366, %v1363
  %v1802 = vpack.c.b16 %v1367, %v1364
  %v1803 = vpack.c.b16 %v1371, %v1368
  %v1804 = vpack.c.b16 %v1372, %v1369
  %v1805 = vpack.c.b16 %v1373, %v1370
  %v1806 = vpack.c.b16 %v1377, %v1374
  %v1807 = vpack.c.b16 %v1378, %v1375
  %v1808 = vpack.c.b16 %v1379, %v1376
  %v1809 = vpack.c.b16 %v1383, %v1380
  %v1810 = vpack.c.b16 %v1384, %v1381
  %v1811 = vpack.c.b16 %v1385, %v1382
  %v1812 = vpack.c.b16 %v1389, %v1386
  %v1813 = vpack.c.b16 %v1390, %v1387
  %v1814 = vpack.c.b16 %v1391, %v1388
  %v1815 = vpack.c.b16 %v1395, %v1392
  %v1816 = vpack.c.b16 %v1396, %v1393
  %v1817 = vpack.c.b16 %v1397, %v1394
  %v1818 = vpack.c.b16 %v1401, %v1398
  %v1819 = vpack.c.b16 %v1402, %v1399
  %v1820 = vpack.c.b16 %v1403, %v1400
  %v1821 = vpack.c.b16 %v1407, %v1404
  %v1822 = vpack.c.b16 %v1408, %v1405
  %v1823 = vpack.c.b16 %v1409, %v1406
  %v1824 = vpack.c.b16 %v1413, %v1410
  %v1825 = vpack.c.b16 %v1414, %v1411
  %v1826 = vpack.c.b16 %v1415, %v1412
  %v1827 = vpack.c.b16 %v1419, %v1416
  %v1828 = vpack.c.b16 %v1420, %v1417
  %v1829 = vpack.c.b16 %v1421, %v1418
  %v1830 = vpack.c.b16 %v1425, %v1422
  %v1831 = vpack.c.b16 %v1426, %v1423
  %v1832 = vpack.c.b16 %v1427, %v1424
  %v1833 = vpack.c.b16 %v1431, %v1428
  %v1834 = vpack.c.b16 %v1432, %v1429
  %v1835 = vpack.c.b16 %v1433, %v1430
  %v1836 = vpack.c.b16 %v1437, %v1434
  %v1837 = vpack.c.b16 %v1438, %v1435
  %v1838 = vpack.c.b16 %v1439, %v1436
  %v1839 = vpack.c.b16 %v1443, %v1440
  %v1840 = vpack.c.b16 %v1444, %v1441
  %v1841 = vpack.c.b16 %v1445, %v1442
  %v1842 = vpack.c.b16 %v1449, %v1446
  %v1843 = vpack.c.b16 %v1450, %v1447
  %v1844 = vpack.c.b16 %v1451, %v1448
  %v1845 = vpack.c.b16 %v1455, %v1452
  %v1846 = vpack.c.b16 %v1456, %v1453
  %v1847 = vpack.c.b16 %v1457, %v1454
  %v1848 = vpack.c.b16 %v1461, %v1458
  %v1849 = vpack.c.b16 %v1462, %v1459
  %v1850 = vpack.c.b16 %v1463, %v1460
  %v1851 = vpack.c.b16 %v1467, %v1464
  %v1852 = vpack.c.b16 %v1468, %v1465
  %v1853 = vpack.c.b16 %v1469, %v1466
  %v1854 = vpack.c.b16 %v1473, %v1470
  %v1855 = vpack.c.b16 %v1474, %v1471
  %v1856 = vpack.c.b16 %v1475, %v1472
  %v1857 = vpack.c.b16 %v1479, %v1476
  %v1858 = vpack.c.b16 %v1480, %v1477
  %v1859 = vpack.c.b16 %v1481, %v1478
  %v1860 = vpack.c.b16 %v1485, %v1482
  %v1861 = vpack.c.b16 %v1486, %v1483
  %v1862 = vpack.c.b16 %v1487, %v1484
  %v1863 = vpack.c.b16 %v1491, %v1488
  %v1864 = vpack.c.b16 %v1492, %v1489
  %v1865 = vpack.c.b16 %v1493, %v1490
  %v1866 = vpack.c.b16 %v1497, %v1494
  %v1867 = vpack.c.b16 %v1498, %v1495
  %v1868 = vpack.c.b16 %v1499, %v1496
  %v1869 = vpack.c.b16 %v1503, %v1500
  %v1870 = vpack.c.b16 %v1504, %v1501
  %v1871 = vpack.c.b16 %v1505, %v1502
  %v1872 = vpack.c.b16 %v1509, %v1506
  %v1873 = vpack.c.b16 %v1510, %v1507
  %v1874 = vpack.c.b16 %v1511, %v1508
  %v1875 = vpack.c.b16 %v1515, %v1512
  %v1876 = vpack.c.b16 %v1516, %v1513
  %v1877 = vpack.c.b16 %v1517, %v1514
  %v1878 = vpack.c.b16 %v1521, %v1518
  %v1879 = vpack.c.b16 %v1522, %v1519
  %v1880 = vpack.c.b16 %v1523, %v1520
  %v1881 = vpack.c.b16 %v1527, %v1524
  %v1882 = vpack.c.b16 %v1528, %v1525
  %v1883 = vpack.c.b16 %v1529, %v1526
  %v1884 = vpack.c.b16 %v1533, %v1530
  %v1885 = vpack.c.b16 %v1534, %v1531
  %v1886 = vpack.c.b16 %v1535, %v1532
  %v1887 = vpack.c.b16 %v1539, %v1536
  %v1888 = vpack.c.b16 %v1540, %v1537
  %v1889 = vpack.c.b16 %v1541, %v1538
  %v1890 = vpack.c.b16 %v1545, %v1542
  %v1891 = vpack.c.b16 %v1546, %v1543
  %v1892 = vpack.c.b16 %v1547, %v1544
  %v1893 = vpack.c.b16 %v1551, %v1548
  %v1894 = vpack.c.b16 %v1552, %v1549
  %v1895 = vpack.c.b16 %v1553, %v1550
  %v1896 = vpack.c.b16 %v1557, %v1554
  %v1897 = vpack.c.b16 %v1558, %v1555
  %v1898 = vpack.c.b16 %v1559, %v1556
  %v1899 = vpack.c.b16 %v1563, %v1560
  %v1900 = vpack.c.b16 %v1564, %v1561
  %v1901 = vpack.c.b16 %v1565, %v1562
  %v1902 = vpack.c.b16 %v1569, %v1566
  %v1903 = vpack.c.b16 %v1570, %v1567
  %v1904 = vpack.c.b16 %v1571, %v1568
  %v1905 = vpack.c.b16 %v1575, %v1572
  %v1906 = vpack.c.b16 %v1576, %v1573
  %v1907 = vpack.c.b16 %v1577, %v1574
  %v1908 = vpack.c.b16 %v1581, %v1578
  %v1909 = vpack.c.b16 %v1582, %v1579
  %v1910 = vpack.c.b16 %v1583, %v1580
  %v1911 = vpack.c.b16 %v1587, %v1584
  %v1912 = vpack.c.b16 %v1588, %v1585
  %v1913 = vpack.c.b16 %v1589, %v1586
  %vm2238 = vcmask 523264
  %v2240 = vsel %vm2238, %v496, 0
  %2242 = vmatpush.bf16.msra.mxu0 %v1611
  %2243 = vmatpush.bf16.msra.mxu0 %v1608
  %2244 = vmatpush.bf16.msra.mxu0 %v1605
  %2245 = vmatpush.bf16.msra.mxu0 %v1602
  %2246 = vmatpush.bf16.msra.mxu0 %v1599
  %2247 = vmatpush.bf16.msra.mxu0 %v1596
  %2248 = vmatpush.bf16.msra.mxu0 %v1593
  %2249 = vmatpush.bf16.msra.mxu0 %v1590
  %2250 = vmatmul.bf16.gmra.mxu0 %v483
  %v2251 = vpop.f32.mrf.mxu0
  %v2252 = vadd.f32 %v456, %v2251
  %v2253 = vpop.f32.mrf.mxu0
  %2254 = vdwg.mxu0
  %2255 = vmatpush.bf16.msra.mxu0 %v1635
  %2256 = vmatpush.bf16.msra.mxu0 %v1632
  %2257 = vmatpush.bf16.msra.mxu0 %v1629
  %2258 = vmatpush.bf16.msra.mxu0 %v1626
  %2259 = vmatpush.bf16.msra.mxu0 %v1623
  %2260 = vmatpush.bf16.msra.mxu0 %v1620
  %2261 = vmatpush.bf16.msra.mxu0 %v1617
  %2262 = vmatpush.bf16.msra.mxu0 %v1614
  %2263 = vmatmul.bf16.gmra.mxu0 %v484
  %v2264 = vpop.f32.mrf.mxu0
  %v2265 = vadd.f32 %v2252, %v2264
  %v2266 = vpop.f32.mrf.mxu0
  %2267 = vdwg.mxu0
  %2268 = vmatpush.bf16.msra.mxu0 %v1659
  %2269 = vmatpush.bf16.msra.mxu0 %v1656
  %2270 = vmatpush.bf16.msra.mxu0 %v1653
  %2271 = vmatpush.bf16.msra.mxu0 %v1650
  %2272 = vmatpush.bf16.msra.mxu0 %v1647
  %2273 = vmatpush.bf16.msra.mxu0 %v1644
  %2274 = vmatpush.bf16.msra.mxu0 %v1641
  %2275 = vmatpush.bf16.msra.mxu0 %v1638
  %2276 = vmatmul.bf16.gmra.mxu0 %v485
  %v2277 = vpop.f32.mrf.mxu0
  %v2278 = vadd.f32 %v2265, %v2277
  %v2279 = vpop.f32.mrf.mxu0
  %2280 = vdwg.mxu0
  %2281 = vmatpush.bf16.msra.mxu0 %v1683
  %2282 = vmatpush.bf16.msra.mxu0 %v1680
  %2283 = vmatpush.bf16.msra.mxu0 %v1677
  %2284 = vmatpush.bf16.msra.mxu0 %v1674
  %2285 = vmatpush.bf16.msra.mxu0 %v1671
  %2286 = vmatpush.bf16.msra.mxu0 %v1668
  %2287 = vmatpush.bf16.msra.mxu0 %v1665
  %2288 = vmatpush.bf16.msra.mxu0 %v1662
  %2289 = vmatmul.bf16.gmra.mxu0 %v486
  %v2290 = vpop.f32.mrf.mxu0
  %v2291 = vadd.f32 %v2278, %v2290
  %v2292 = vpop.f32.mrf.mxu0
  %2293 = vdwg.mxu0
  %2294 = vmatpush.bf16.msra.mxu0 %v1707
  %2295 = vmatpush.bf16.msra.mxu0 %v1704
  %2296 = vmatpush.bf16.msra.mxu0 %v1701
  %2297 = vmatpush.bf16.msra.mxu0 %v1698
  %2298 = vmatpush.bf16.msra.mxu0 %v1695
  %2299 = vmatpush.bf16.msra.mxu0 %v1692
  %2300 = vmatpush.bf16.msra.mxu0 %v1689
  %2301 = vmatpush.bf16.msra.mxu0 %v1686
  %2302 = vmatmul.bf16.gmra.mxu0 %v487
  %v2303 = vpop.f32.mrf.mxu0
  %v2304 = vadd.f32 %v2291, %v2303
  %v2305 = vpop.f32.mrf.mxu0
  %2306 = vdwg.mxu0
  %2307 = vmatpush.bf16.msra.mxu0 %v1731
  %2308 = vmatpush.bf16.msra.mxu0 %v1728
  %2309 = vmatpush.bf16.msra.mxu0 %v1725
  %2310 = vmatpush.bf16.msra.mxu0 %v1722
  %2311 = vmatpush.bf16.msra.mxu0 %v1719
  %2312 = vmatpush.bf16.msra.mxu0 %v1716
  %2313 = vmatpush.bf16.msra.mxu0 %v1713
  %2314 = vmatpush.bf16.msra.mxu0 %v1710
  %2315 = vmatmul.bf16.gmra.mxu0 %v488
  %v2316 = vpop.f32.mrf.mxu0
  %v2317 = vadd.f32 %v2304, %v2316
  %v2318 = vpop.f32.mrf.mxu0
  %2319 = vdwg.mxu0
  %2320 = vmatpush.bf16.msra.mxu0 %v1755
  %2321 = vmatpush.bf16.msra.mxu0 %v1752
  %2322 = vmatpush.bf16.msra.mxu0 %v1749
  %2323 = vmatpush.bf16.msra.mxu0 %v1746
  %2324 = vmatpush.bf16.msra.mxu0 %v1743
  %2325 = vmatpush.bf16.msra.mxu0 %v1740
  %2326 = vmatpush.bf16.msra.mxu0 %v1737
  %2327 = vmatpush.bf16.msra.mxu0 %v1734
  %2328 = vmatmul.bf16.gmra.mxu0 %v489
  %v2329 = vpop.f32.mrf.mxu0
  %v2330 = vadd.f32 %v2317, %v2329
  %v2331 = vpop.f32.mrf.mxu0
  %2332 = vdwg.mxu0
  %2333 = vmatpush.bf16.msra.mxu0 %v1779
  %2334 = vmatpush.bf16.msra.mxu0 %v1776
  %2335 = vmatpush.bf16.msra.mxu0 %v1773
  %2336 = vmatpush.bf16.msra.mxu0 %v1770
  %2337 = vmatpush.bf16.msra.mxu0 %v1767
  %2338 = vmatpush.bf16.msra.mxu0 %v1764
  %2339 = vmatpush.bf16.msra.mxu0 %v1761
  %2340 = vmatpush.bf16.msra.mxu0 %v1758
  %2341 = vmatmul.bf16.gmra.mxu0 %v490
  %v2342 = vpop.f32.mrf.mxu0
  %v2343 = vadd.f32 %v2330, %v2342
  %v2344 = vpop.f32.mrf.mxu0
  %2345 = vdwg.mxu0
  %2346 = vmatpush.bf16.msra.mxu0 %v1803
  %2347 = vmatpush.bf16.msra.mxu0 %v1800
  %2348 = vmatpush.bf16.msra.mxu0 %v1797
  %2349 = vmatpush.bf16.msra.mxu0 %v1794
  %2350 = vmatpush.bf16.msra.mxu0 %v1791
  %2351 = vmatpush.bf16.msra.mxu0 %v1788
  %2352 = vmatpush.bf16.msra.mxu0 %v1785
  %2353 = vmatpush.bf16.msra.mxu0 %v1782
  %2354 = vmatmul.bf16.gmra.mxu0 %v491
  %v2355 = vpop.f32.mrf.mxu0
  %v2356 = vadd.f32 %v2343, %v2355
  %v2357 = vpop.f32.mrf.mxu0
  %2358 = vdwg.mxu0
  %2359 = vmatpush.bf16.msra.mxu0 %v1827
  %2360 = vmatpush.bf16.msra.mxu0 %v1824
  %2361 = vmatpush.bf16.msra.mxu0 %v1821
  %2362 = vmatpush.bf16.msra.mxu0 %v1818
  %2363 = vmatpush.bf16.msra.mxu0 %v1815
  %2364 = vmatpush.bf16.msra.mxu0 %v1812
  %2365 = vmatpush.bf16.msra.mxu0 %v1809
  %2366 = vmatpush.bf16.msra.mxu0 %v1806
  %2367 = vmatmul.bf16.gmra.mxu0 %v492
  %v2368 = vpop.f32.mrf.mxu0
  %v2369 = vadd.f32 %v2356, %v2368
  %v2370 = vpop.f32.mrf.mxu0
  %2371 = vdwg.mxu0
  %2372 = vmatpush.bf16.msra.mxu0 %v1851
  %2373 = vmatpush.bf16.msra.mxu0 %v1848
  %2374 = vmatpush.bf16.msra.mxu0 %v1845
  %2375 = vmatpush.bf16.msra.mxu0 %v1842
  %2376 = vmatpush.bf16.msra.mxu0 %v1839
  %2377 = vmatpush.bf16.msra.mxu0 %v1836
  %2378 = vmatpush.bf16.msra.mxu0 %v1833
  %2379 = vmatpush.bf16.msra.mxu0 %v1830
  %2380 = vmatmul.bf16.gmra.mxu0 %v493
  %v2381 = vpop.f32.mrf.mxu0
  %v2382 = vadd.f32 %v2369, %v2381
  %v2383 = vpop.f32.mrf.mxu0
  %2384 = vdwg.mxu0
  %2385 = vmatpush.bf16.msra.mxu0 %v1875
  %2386 = vmatpush.bf16.msra.mxu0 %v1872
  %2387 = vmatpush.bf16.msra.mxu0 %v1869
  %2388 = vmatpush.bf16.msra.mxu0 %v1866
  %2389 = vmatpush.bf16.msra.mxu0 %v1863
  %2390 = vmatpush.bf16.msra.mxu0 %v1860
  %2391 = vmatpush.bf16.msra.mxu0 %v1857
  %2392 = vmatpush.bf16.msra.mxu0 %v1854
  %2393 = vmatmul.bf16.gmra.mxu0 %v494
  %v2394 = vpop.f32.mrf.mxu0
  %v2395 = vadd.f32 %v2382, %v2394
  %v2396 = vpop.f32.mrf.mxu0
  %2397 = vdwg.mxu0
  %2398 = vmatpush.bf16.msra.mxu0 %v1899
  %2399 = vmatpush.bf16.msra.mxu0 %v1896
  %2400 = vmatpush.bf16.msra.mxu0 %v1893
  %2401 = vmatpush.bf16.msra.mxu0 %v1890
  %2402 = vmatpush.bf16.msra.mxu0 %v1887
  %2403 = vmatpush.bf16.msra.mxu0 %v1884
  %2404 = vmatpush.bf16.msra.mxu0 %v1881
  %2405 = vmatpush.bf16.msra.mxu0 %v1878
  %2406 = vmatmul.bf16.gmra.mxu0 %v495
  %v2407 = vpop.f32.mrf.mxu0
  %v2408 = vadd.f32 %v2395, %v2407
  %v2409 = vpop.f32.mrf.mxu0
  %2410 = vdwg.mxu0
  %2411 = vmatpush.bf16.msra.mxu0 0
  %2412 = vmatpush.bf16.msra.mxu0 0
  %2413 = vmatpush.bf16.msra.mxu0 0
  %2414 = vmatpush.bf16.msra.mxu0 0
  %2415 = vmatpush.bf16.msra.mxu0 %v1911
  %2416 = vmatpush.bf16.msra.mxu0 %v1908
  %2417 = vmatpush.bf16.msra.mxu0 %v1905
  %2418 = vmatpush.bf16.msra.mxu0 %v1902
  %2419 = vmatmul.bf16.gmra.mxu0 %v2240
  %v2420 = vpop.f32.mrf.mxu0
  %v2421 = vadd.f32 %v2408, %v2420
  %v2422 = vpop.f32.mrf.mxu0
  %2423 = vdwg.mxu0
  %2424 = vmatpush.bf16.msra.mxu0 %v1612
  %2425 = vmatpush.bf16.msra.mxu0 %v1609
  %2426 = vmatpush.bf16.msra.mxu0 %v1606
  %2427 = vmatpush.bf16.msra.mxu0 %v1603
  %2428 = vmatpush.bf16.msra.mxu0 %v1600
  %2429 = vmatpush.bf16.msra.mxu0 %v1597
  %2430 = vmatpush.bf16.msra.mxu0 %v1594
  %2431 = vmatpush.bf16.msra.mxu0 %v1591
  %2432 = vmatmul.bf16.gmra.mxu0 %v483
  %v2433 = vpop.f32.mrf.mxu0
  %v2434 = vadd.f32 %v457, %v2433
  %v2435 = vpop.f32.mrf.mxu0
  %2436 = vdwg.mxu0
  %2437 = vmatpush.bf16.msra.mxu0 %v1636
  %2438 = vmatpush.bf16.msra.mxu0 %v1633
  %2439 = vmatpush.bf16.msra.mxu0 %v1630
  %2440 = vmatpush.bf16.msra.mxu0 %v1627
  %2441 = vmatpush.bf16.msra.mxu0 %v1624
  %2442 = vmatpush.bf16.msra.mxu0 %v1621
  %2443 = vmatpush.bf16.msra.mxu0 %v1618
  %2444 = vmatpush.bf16.msra.mxu0 %v1615
  %2445 = vmatmul.bf16.gmra.mxu0 %v484
  %v2446 = vpop.f32.mrf.mxu0
  %v2447 = vadd.f32 %v2434, %v2446
  %v2448 = vpop.f32.mrf.mxu0
  %2449 = vdwg.mxu0
  %2450 = vmatpush.bf16.msra.mxu0 %v1660
  %2451 = vmatpush.bf16.msra.mxu0 %v1657
  %2452 = vmatpush.bf16.msra.mxu0 %v1654
  %2453 = vmatpush.bf16.msra.mxu0 %v1651
  %2454 = vmatpush.bf16.msra.mxu0 %v1648
  %2455 = vmatpush.bf16.msra.mxu0 %v1645
  %2456 = vmatpush.bf16.msra.mxu0 %v1642
  %2457 = vmatpush.bf16.msra.mxu0 %v1639
  %2458 = vmatmul.bf16.gmra.mxu0 %v485
  %v2459 = vpop.f32.mrf.mxu0
  %v2460 = vadd.f32 %v2447, %v2459
  %v2461 = vpop.f32.mrf.mxu0
  %2462 = vdwg.mxu0
  %2463 = vmatpush.bf16.msra.mxu0 %v1684
  %2464 = vmatpush.bf16.msra.mxu0 %v1681
  %2465 = vmatpush.bf16.msra.mxu0 %v1678
  %2466 = vmatpush.bf16.msra.mxu0 %v1675
  %2467 = vmatpush.bf16.msra.mxu0 %v1672
  %2468 = vmatpush.bf16.msra.mxu0 %v1669
  %2469 = vmatpush.bf16.msra.mxu0 %v1666
  %2470 = vmatpush.bf16.msra.mxu0 %v1663
  %2471 = vmatmul.bf16.gmra.mxu0 %v486
  %v2472 = vpop.f32.mrf.mxu0
  %v2473 = vadd.f32 %v2460, %v2472
  %v2474 = vpop.f32.mrf.mxu0
  %2475 = vdwg.mxu0
  %2476 = vmatpush.bf16.msra.mxu0 %v1708
  %2477 = vmatpush.bf16.msra.mxu0 %v1705
  %2478 = vmatpush.bf16.msra.mxu0 %v1702
  %2479 = vmatpush.bf16.msra.mxu0 %v1699
  %2480 = vmatpush.bf16.msra.mxu0 %v1696
  %2481 = vmatpush.bf16.msra.mxu0 %v1693
  %2482 = vmatpush.bf16.msra.mxu0 %v1690
  %2483 = vmatpush.bf16.msra.mxu0 %v1687
  %2484 = vmatmul.bf16.gmra.mxu0 %v487
  %v2485 = vpop.f32.mrf.mxu0
  %v2486 = vadd.f32 %v2473, %v2485
  %v2487 = vpop.f32.mrf.mxu0
  %2488 = vdwg.mxu0
  %2489 = vmatpush.bf16.msra.mxu0 %v1732
  %2490 = vmatpush.bf16.msra.mxu0 %v1729
  %2491 = vmatpush.bf16.msra.mxu0 %v1726
  %2492 = vmatpush.bf16.msra.mxu0 %v1723
  %2493 = vmatpush.bf16.msra.mxu0 %v1720
  %2494 = vmatpush.bf16.msra.mxu0 %v1717
  %2495 = vmatpush.bf16.msra.mxu0 %v1714
  %2496 = vmatpush.bf16.msra.mxu0 %v1711
  %2497 = vmatmul.bf16.gmra.mxu0 %v488
  %v2498 = vpop.f32.mrf.mxu0
  %v2499 = vadd.f32 %v2486, %v2498
  %v2500 = vpop.f32.mrf.mxu0
  %2501 = vdwg.mxu0
  %2502 = vmatpush.bf16.msra.mxu0 %v1756
  %2503 = vmatpush.bf16.msra.mxu0 %v1753
  %2504 = vmatpush.bf16.msra.mxu0 %v1750
  %2505 = vmatpush.bf16.msra.mxu0 %v1747
  %2506 = vmatpush.bf16.msra.mxu0 %v1744
  %2507 = vmatpush.bf16.msra.mxu0 %v1741
  %2508 = vmatpush.bf16.msra.mxu0 %v1738
  %2509 = vmatpush.bf16.msra.mxu0 %v1735
  %2510 = vmatmul.bf16.gmra.mxu0 %v489
  %v2511 = vpop.f32.mrf.mxu0
  %v2512 = vadd.f32 %v2499, %v2511
  %v2513 = vpop.f32.mrf.mxu0
  %2514 = vdwg.mxu0
  %2515 = vmatpush.bf16.msra.mxu0 %v1780
  %2516 = vmatpush.bf16.msra.mxu0 %v1777
  %2517 = vmatpush.bf16.msra.mxu0 %v1774
  %2518 = vmatpush.bf16.msra.mxu0 %v1771
  %2519 = vmatpush.bf16.msra.mxu0 %v1768
  %2520 = vmatpush.bf16.msra.mxu0 %v1765
  %2521 = vmatpush.bf16.msra.mxu0 %v1762
  %2522 = vmatpush.bf16.msra.mxu0 %v1759
  %2523 = vmatmul.bf16.gmra.mxu0 %v490
  %v2524 = vpop.f32.mrf.mxu0
  %v2525 = vadd.f32 %v2512, %v2524
  %v2526 = vpop.f32.mrf.mxu0
  %2527 = vdwg.mxu0
  %2528 = vmatpush.bf16.msra.mxu0 %v1804
  %2529 = vmatpush.bf16.msra.mxu0 %v1801
  %2530 = vmatpush.bf16.msra.mxu0 %v1798
  %2531 = vmatpush.bf16.msra.mxu0 %v1795
  %2532 = vmatpush.bf16.msra.mxu0 %v1792
  %2533 = vmatpush.bf16.msra.mxu0 %v1789
  %2534 = vmatpush.bf16.msra.mxu0 %v1786
  %2535 = vmatpush.bf16.msra.mxu0 %v1783
  %2536 = vmatmul.bf16.gmra.mxu0 %v491
  %v2537 = vpop.f32.mrf.mxu0
  %v2538 = vadd.f32 %v2525, %v2537
  %v2539 = vpop.f32.mrf.mxu0
  %2540 = vdwg.mxu0
  %2541 = vmatpush.bf16.msra.mxu0 %v1828
  %2542 = vmatpush.bf16.msra.mxu0 %v1825
  %2543 = vmatpush.bf16.msra.mxu0 %v1822
  %2544 = vmatpush.bf16.msra.mxu0 %v1819
  %2545 = vmatpush.bf16.msra.mxu0 %v1816
  %2546 = vmatpush.bf16.msra.mxu0 %v1813
  %2547 = vmatpush.bf16.msra.mxu0 %v1810
  %2548 = vmatpush.bf16.msra.mxu0 %v1807
  %2549 = vmatmul.bf16.gmra.mxu0 %v492
  %v2550 = vpop.f32.mrf.mxu0
  %v2551 = vadd.f32 %v2538, %v2550
  %v2552 = vpop.f32.mrf.mxu0
  %2553 = vdwg.mxu0
  %2554 = vmatpush.bf16.msra.mxu0 %v1852
  %2555 = vmatpush.bf16.msra.mxu0 %v1849
  %2556 = vmatpush.bf16.msra.mxu0 %v1846
  %2557 = vmatpush.bf16.msra.mxu0 %v1843
  %2558 = vmatpush.bf16.msra.mxu0 %v1840
  %2559 = vmatpush.bf16.msra.mxu0 %v1837
  %2560 = vmatpush.bf16.msra.mxu0 %v1834
  %2561 = vmatpush.bf16.msra.mxu0 %v1831
  %2562 = vmatmul.bf16.gmra.mxu0 %v493
  %v2563 = vpop.f32.mrf.mxu0
  %v2564 = vadd.f32 %v2551, %v2563
  %v2565 = vpop.f32.mrf.mxu0
  %2566 = vdwg.mxu0
  %2567 = vmatpush.bf16.msra.mxu0 %v1876
  %2568 = vmatpush.bf16.msra.mxu0 %v1873
  %2569 = vmatpush.bf16.msra.mxu0 %v1870
  %2570 = vmatpush.bf16.msra.mxu0 %v1867
  %2571 = vmatpush.bf16.msra.mxu0 %v1864
  %2572 = vmatpush.bf16.msra.mxu0 %v1861
  %2573 = vmatpush.bf16.msra.mxu0 %v1858
  %2574 = vmatpush.bf16.msra.mxu0 %v1855
  %2575 = vmatmul.bf16.gmra.mxu0 %v494
  %v2576 = vpop.f32.mrf.mxu0
  %v2577 = vadd.f32 %v2564, %v2576
  %v2578 = vpop.f32.mrf.mxu0
  %2579 = vdwg.mxu0
  %2580 = vmatpush.bf16.msra.mxu0 %v1900
  %2581 = vmatpush.bf16.msra.mxu0 %v1897
  %2582 = vmatpush.bf16.msra.mxu0 %v1894
  %2583 = vmatpush.bf16.msra.mxu0 %v1891
  %2584 = vmatpush.bf16.msra.mxu0 %v1888
  %2585 = vmatpush.bf16.msra.mxu0 %v1885
  %2586 = vmatpush.bf16.msra.mxu0 %v1882
  %2587 = vmatpush.bf16.msra.mxu0 %v1879
  %2588 = vmatmul.bf16.gmra.mxu0 %v495
  %v2589 = vpop.f32.mrf.mxu0
  %v2590 = vadd.f32 %v2577, %v2589
  %v2591 = vpop.f32.mrf.mxu0
  %2592 = vdwg.mxu0
  %2593 = vmatpush.bf16.msra.mxu0 0
  %2594 = vmatpush.bf16.msra.mxu0 0
  %2595 = vmatpush.bf16.msra.mxu0 0
  %2596 = vmatpush.bf16.msra.mxu0 0
  %2597 = vmatpush.bf16.msra.mxu0 %v1912
  %2598 = vmatpush.bf16.msra.mxu0 %v1909
  %2599 = vmatpush.bf16.msra.mxu0 %v1906
  %2600 = vmatpush.bf16.msra.mxu0 %v1903
  %2601 = vmatmul.bf16.gmra.mxu0 %v2240
  %v2602 = vpop.f32.mrf.mxu0
  %v2603 = vadd.f32 %v2590, %v2602
  %v2604 = vpop.f32.mrf.mxu0
  %2605 = vdwg.mxu0
  %2606 = vmatpush.bf16.msra.mxu0 %v1613
  %2607 = vmatpush.bf16.msra.mxu0 %v1610
  %2608 = vmatpush.bf16.msra.mxu0 %v1607
  %2609 = vmatpush.bf16.msra.mxu0 %v1604
  %2610 = vmatpush.bf16.msra.mxu0 %v1601
  %2611 = vmatpush.bf16.msra.mxu0 %v1598
  %2612 = vmatpush.bf16.msra.mxu0 %v1595
  %2613 = vmatpush.bf16.msra.mxu0 %v1592
  %2614 = vmatmul.bf16.gmra.mxu0 %v483
  %v2615 = vpop.f32.mrf.mxu0
  %v2616 = vadd.f32 %v458, %v2615
  %v2617 = vpop.f32.mrf.mxu0
  %2618 = vdwg.mxu0
  %2619 = vmatpush.bf16.msra.mxu0 %v1637
  %2620 = vmatpush.bf16.msra.mxu0 %v1634
  %2621 = vmatpush.bf16.msra.mxu0 %v1631
  %2622 = vmatpush.bf16.msra.mxu0 %v1628
  %2623 = vmatpush.bf16.msra.mxu0 %v1625
  %2624 = vmatpush.bf16.msra.mxu0 %v1622
  %2625 = vmatpush.bf16.msra.mxu0 %v1619
  %2626 = vmatpush.bf16.msra.mxu0 %v1616
  %2627 = vmatmul.bf16.gmra.mxu0 %v484
  %v2628 = vpop.f32.mrf.mxu0
  %v2629 = vadd.f32 %v2616, %v2628
  %v2630 = vpop.f32.mrf.mxu0
  %2631 = vdwg.mxu0
  %2632 = vmatpush.bf16.msra.mxu0 %v1661
  %2633 = vmatpush.bf16.msra.mxu0 %v1658
  %2634 = vmatpush.bf16.msra.mxu0 %v1655
  %2635 = vmatpush.bf16.msra.mxu0 %v1652
  %2636 = vmatpush.bf16.msra.mxu0 %v1649
  %2637 = vmatpush.bf16.msra.mxu0 %v1646
  %2638 = vmatpush.bf16.msra.mxu0 %v1643
  %2639 = vmatpush.bf16.msra.mxu0 %v1640
  %2640 = vmatmul.bf16.gmra.mxu0 %v485
  %v2641 = vpop.f32.mrf.mxu0
  %v2642 = vadd.f32 %v2629, %v2641
  %v2643 = vpop.f32.mrf.mxu0
  %2644 = vdwg.mxu0
  %2645 = vmatpush.bf16.msra.mxu0 %v1685
  %2646 = vmatpush.bf16.msra.mxu0 %v1682
  %2647 = vmatpush.bf16.msra.mxu0 %v1679
  %2648 = vmatpush.bf16.msra.mxu0 %v1676
  %2649 = vmatpush.bf16.msra.mxu0 %v1673
  %2650 = vmatpush.bf16.msra.mxu0 %v1670
  %2651 = vmatpush.bf16.msra.mxu0 %v1667
  %2652 = vmatpush.bf16.msra.mxu0 %v1664
  %2653 = vmatmul.bf16.gmra.mxu0 %v486
  %v2654 = vpop.f32.mrf.mxu0
  %v2655 = vadd.f32 %v2642, %v2654
  %v2656 = vpop.f32.mrf.mxu0
  %2657 = vdwg.mxu0
  %2658 = vmatpush.bf16.msra.mxu0 %v1709
  %2659 = vmatpush.bf16.msra.mxu0 %v1706
  %2660 = vmatpush.bf16.msra.mxu0 %v1703
  %2661 = vmatpush.bf16.msra.mxu0 %v1700
  %2662 = vmatpush.bf16.msra.mxu0 %v1697
  %2663 = vmatpush.bf16.msra.mxu0 %v1694
  %2664 = vmatpush.bf16.msra.mxu0 %v1691
  %2665 = vmatpush.bf16.msra.mxu0 %v1688
  %2666 = vmatmul.bf16.gmra.mxu0 %v487
  %v2667 = vpop.f32.mrf.mxu0
  %v2668 = vadd.f32 %v2655, %v2667
  %v2669 = vpop.f32.mrf.mxu0
  %2670 = vdwg.mxu0
  %2671 = vmatpush.bf16.msra.mxu0 %v1733
  %2672 = vmatpush.bf16.msra.mxu0 %v1730
  %2673 = vmatpush.bf16.msra.mxu0 %v1727
  %2674 = vmatpush.bf16.msra.mxu0 %v1724
  %2675 = vmatpush.bf16.msra.mxu0 %v1721
  %2676 = vmatpush.bf16.msra.mxu0 %v1718
  %2677 = vmatpush.bf16.msra.mxu0 %v1715
  %2678 = vmatpush.bf16.msra.mxu0 %v1712
  %2679 = vmatmul.bf16.gmra.mxu0 %v488
  %v2680 = vpop.f32.mrf.mxu0
  %v2681 = vadd.f32 %v2668, %v2680
  %v2682 = vpop.f32.mrf.mxu0
  %2683 = vdwg.mxu0
  %2684 = vmatpush.bf16.msra.mxu0 %v1757
  %2685 = vmatpush.bf16.msra.mxu0 %v1754
  %2686 = vmatpush.bf16.msra.mxu0 %v1751
  %2687 = vmatpush.bf16.msra.mxu0 %v1748
  %2688 = vmatpush.bf16.msra.mxu0 %v1745
  %2689 = vmatpush.bf16.msra.mxu0 %v1742
  %2690 = vmatpush.bf16.msra.mxu0 %v1739
  %2691 = vmatpush.bf16.msra.mxu0 %v1736
  %2692 = vmatmul.bf16.gmra.mxu0 %v489
  %v2693 = vpop.f32.mrf.mxu0
  %v2694 = vadd.f32 %v2681, %v2693
  %v2695 = vpop.f32.mrf.mxu0
  %2696 = vdwg.mxu0
  %2697 = vmatpush.bf16.msra.mxu0 %v1781
  %2698 = vmatpush.bf16.msra.mxu0 %v1778
  %2699 = vmatpush.bf16.msra.mxu0 %v1775
  %2700 = vmatpush.bf16.msra.mxu0 %v1772
  %2701 = vmatpush.bf16.msra.mxu0 %v1769
  %2702 = vmatpush.bf16.msra.mxu0 %v1766
  %2703 = vmatpush.bf16.msra.mxu0 %v1763
  %2704 = vmatpush.bf16.msra.mxu0 %v1760
  %2705 = vmatmul.bf16.gmra.mxu0 %v490
  %v2706 = vpop.f32.mrf.mxu0
  %v2707 = vadd.f32 %v2694, %v2706
  %v2708 = vpop.f32.mrf.mxu0
  %2709 = vdwg.mxu0
  %2710 = vmatpush.bf16.msra.mxu0 %v1805
  %2711 = vmatpush.bf16.msra.mxu0 %v1802
  %2712 = vmatpush.bf16.msra.mxu0 %v1799
  %2713 = vmatpush.bf16.msra.mxu0 %v1796
  %2714 = vmatpush.bf16.msra.mxu0 %v1793
  %2715 = vmatpush.bf16.msra.mxu0 %v1790
  %2716 = vmatpush.bf16.msra.mxu0 %v1787
  %2717 = vmatpush.bf16.msra.mxu0 %v1784
  %2718 = vmatmul.bf16.gmra.mxu0 %v491
  %v2719 = vpop.f32.mrf.mxu0
  %v2720 = vadd.f32 %v2707, %v2719
  %v2721 = vpop.f32.mrf.mxu0
  %2722 = vdwg.mxu0
  %2723 = vmatpush.bf16.msra.mxu0 %v1829
  %2724 = vmatpush.bf16.msra.mxu0 %v1826
  %2725 = vmatpush.bf16.msra.mxu0 %v1823
  %2726 = vmatpush.bf16.msra.mxu0 %v1820
  %2727 = vmatpush.bf16.msra.mxu0 %v1817
  %2728 = vmatpush.bf16.msra.mxu0 %v1814
  %2729 = vmatpush.bf16.msra.mxu0 %v1811
  %2730 = vmatpush.bf16.msra.mxu0 %v1808
  %2731 = vmatmul.bf16.gmra.mxu0 %v492
  %v2732 = vpop.f32.mrf.mxu0
  %v2733 = vadd.f32 %v2720, %v2732
  %v2734 = vpop.f32.mrf.mxu0
  %2735 = vdwg.mxu0
  %2736 = vmatpush.bf16.msra.mxu0 %v1853
  %2737 = vmatpush.bf16.msra.mxu0 %v1850
  %2738 = vmatpush.bf16.msra.mxu0 %v1847
  %2739 = vmatpush.bf16.msra.mxu0 %v1844
  %2740 = vmatpush.bf16.msra.mxu0 %v1841
  %2741 = vmatpush.bf16.msra.mxu0 %v1838
  %2742 = vmatpush.bf16.msra.mxu0 %v1835
  %2743 = vmatpush.bf16.msra.mxu0 %v1832
  %2744 = vmatmul.bf16.gmra.mxu0 %v493
  %v2745 = vpop.f32.mrf.mxu0
  %v2746 = vadd.f32 %v2733, %v2745
  %v2747 = vpop.f32.mrf.mxu0
  %2748 = vdwg.mxu0
  %2749 = vmatpush.bf16.msra.mxu0 %v1877
  %2750 = vmatpush.bf16.msra.mxu0 %v1874
  %2751 = vmatpush.bf16.msra.mxu0 %v1871
  %2752 = vmatpush.bf16.msra.mxu0 %v1868
  %2753 = vmatpush.bf16.msra.mxu0 %v1865
  %2754 = vmatpush.bf16.msra.mxu0 %v1862
  %2755 = vmatpush.bf16.msra.mxu0 %v1859
  %2756 = vmatpush.bf16.msra.mxu0 %v1856
  %2757 = vmatmul.bf16.gmra.mxu0 %v494
  %v2758 = vpop.f32.mrf.mxu0
  %v2759 = vadd.f32 %v2746, %v2758
  %v2760 = vpop.f32.mrf.mxu0
  %2761 = vdwg.mxu0
  %2762 = vmatpush.bf16.msra.mxu0 %v1901
  %2763 = vmatpush.bf16.msra.mxu0 %v1898
  %2764 = vmatpush.bf16.msra.mxu0 %v1895
  %2765 = vmatpush.bf16.msra.mxu0 %v1892
  %2766 = vmatpush.bf16.msra.mxu0 %v1889
  %2767 = vmatpush.bf16.msra.mxu0 %v1886
  %2768 = vmatpush.bf16.msra.mxu0 %v1883
  %2769 = vmatpush.bf16.msra.mxu0 %v1880
  %2770 = vmatmul.bf16.gmra.mxu0 %v495
  %v2771 = vpop.f32.mrf.mxu0
  %v2772 = vadd.f32 %v2759, %v2771
  %v2773 = vpop.f32.mrf.mxu0
  %2774 = vdwg.mxu0
  %2775 = vmatpush.bf16.msra.mxu0 0
  %2776 = vmatpush.bf16.msra.mxu0 0
  %2777 = vmatpush.bf16.msra.mxu0 0
  %2778 = vmatpush.bf16.msra.mxu0 0
  %2779 = vmatpush.bf16.msra.mxu0 %v1913
  %2780 = vmatpush.bf16.msra.mxu0 %v1910
  %2781 = vmatpush.bf16.msra.mxu0 %v1907
  %2782 = vmatpush.bf16.msra.mxu0 %v1904
  %2783 = vmatmul.bf16.gmra.mxu0 %v2240
  %v2784 = vpop.f32.mrf.mxu0
  %v2785 = vadd.f32 %v2772, %v2784
  %v2786 = vpop.f32.mrf.mxu0
  %2787 = vdwg.mxu0
  %v2788 = vmax.f32 %v2421, 0.0
  %v2789 = vmax.f32 %v2603, 0.0
  %v2790 = vmax.f32 %v2785, 0.0
  %2791 = vst [vmem:[%s3] sm:$0xff] %v2788
  %2792 = vst [vmem:[%s3 + $0x8] sm:$0xff] %v2789
  %2793 = vst [vmem:[%s3 + $0x10] sm:$0xff] %v2790
  // Predicated region
  $region14: #{alexnet_forward.6} parent=0 // pred_check
    _
  $region15: #{alexnet_forward.6} parent=0 // pred_check_branch
    %2795 = sbr.rel (0) target = $region17
  $region16: #{alexnet_forward.6} parent=0 // pred_region
    _
  $region17: #{alexnet_forward.6} parent=0 // pred_fallthru
    _
  // Predicated region
  $region18: #{alexnet_forward.6} parent=0 // pred_check
    _
  $region19: #{alexnet_forward.6} parent=0 // pred_check_branch
    %2797 = sbr.rel (0) target = $region21
  $region20: #{alexnet_forward.6} parent=0 // pred_region
    _
  $region21: #{alexnet_forward.6} parent=0 // pred_fallthru
    _

// kernel: alexnet_forward.7
$region0: #{alexnet_forward.7}
  #allocation0 [shape = 'u32[]', space=smem, size = 0x4, offset = 0x4, fixed_abs, tag = 'smem constant byte address 0x4 - core index']
  #allocation1 [shape = 'u32[72,128]{1,0:T(1,128)}', space=vmem, size = 0x9000, scoped, tag = 'internal scratch']
  %s0 = inlined_call_operand.vmem [shape: bf16[4,2,3456], index: 0, kind: input, shape index: {}]
  %s1 = inlined_call_operand.vmem [shape: bf16[3456,256], index: 1, kind: input, shape index: {}]
  %s2 = inlined_call_operand.vmem [shape: f32[1,256], index: 2, kind: input, shape index: {}]
  %s3 = inlined_call_operand.vmem [shape: f32[256,10], index: 3, kind: input, shape index: {}]
  %s4 = inlined_call_operand.vmem [shape: f32[1,10], index: 4, kind: input, shape index: {}]
  %s5 = inlined_call_operand.hbm [shape: f32[2,10], index: 5, kind: output, shape index: {}]
  %s6 = sld [smem:[#allocation0]]
  $region30: #{alexnet_forward.7} parent=0
    _
  %s8 = ssub.s32 1, %s6
  %s9 = scalar_select 0, %s8, %s6
  $region1: #{alexnet_forward.7} parent=0
    #allocation2 [shape = 'u8[1024]{0}', space=vmem, size = 0x400, scoped, tag = 'output window, operand 0, single buffered']
    #allocation3 [shape = 's32[1]{0}', space=sflag, size = 0x4, scoped, tag = 'scoped memory for alexnet_forward.7']
    %10 = vsyncpa [#allocation3], 0
    // Predicated region
    $region2: #{alexnet_forward.7} parent=1 // pred_check
      _
    $region3: #{alexnet_forward.7} parent=1 // pred_check_branch
      %12 = sbr.rel (0) target = $region5
    $region4: #{alexnet_forward.7} parent=1 // pred_region
      _
    $region5: #{alexnet_forward.7} parent=1 // pred_fallthru
      _
    // Predicated region
    $region6: #{alexnet_forward.7} parent=1 // pred_check
      _
    $region7: #{alexnet_forward.7} parent=1 // pred_check_branch
      %14 = sbr.rel (0) target = $region9
    $region8: #{alexnet_forward.7} parent=1 // pred_region
      _
    $region9: #{alexnet_forward.7} parent=1 // pred_fallthru
      _
    // Predicated region
    $region10: #{alexnet_forward.7} parent=1 // pred_check
      _
    $region11: #{alexnet_forward.7} parent=1 // pred_check_branch
      %16 = sbr.rel (0) target = $region13
    $region12: #{alexnet_forward.7} parent=1 // pred_region
      _
    $region13: #{alexnet_forward.7} parent=1 // pred_fallthru
      _
    // Predicated region
    $region14: #{alexnet_forward.7} parent=1 // pred_check
      _
    $region15: #{alexnet_forward.7} parent=1 // pred_check_branch
      %18 = sbr.rel (0) target = $region17
    $region16: #{alexnet_forward.7} parent=1 // pred_region
      _
    $region17: #{alexnet_forward.7} parent=1 // pred_fallthru
      _
    // Predicated region
    $region18: #{alexnet_forward.7} parent=1 // pred_check
      _
    $region19: #{alexnet_forward.7} parent=1 // pred_check_branch
      %20 = sbr.rel (0) target = $region21
    $region20: #{alexnet_forward.7} parent=1 // pred_region
      _
    $region21: #{alexnet_forward.7} parent=1 // pred_fallthru
      _
    %v21 = vld [vmem:[%s1] sm:$0xff]
    %v22 = vld [vmem:[%s1 + $0x8] sm:$0xff]
    %v23 = vld [vmem:[%s1 + $0x10] sm:$0xff]
    %v24 = vld [vmem:[%s1 + $0x18] sm:$0xff]
    %v25 = vld [vmem:[%s1 + $0x20] sm:$0xff]
    %v26 = vld [vmem:[%s1 + $0x28] sm:$0xff]
    %v27 = vld [vmem:[%s1 + $0x30] sm:$0xff]
    %v28 = vld [vmem:[%s1 + $0x38] sm:$0xff]
    %v29 = vld [vmem:[%s1 + $0x40] sm:$0xff]
    %v30 = vld [vmem:[%s1 + $0x48] sm:$0xff]
    %v31 = vld [vmem:[%s1 + $0x50] sm:$0xff]
    %v32 = vld [vmem:[%s1 + $0x58] sm:$0xff]
    %v33 = vld [vmem:[%s1 + $0x60] sm:$0xff]
    %v34 = vld [vmem:[%s1 + $0x68] sm:$0xff]
    %v35 = vld [vmem:[%s1 + $0x70] sm:$0xff]
    %v36 = vld [vmem:[%s1 + $0x78] sm:$0xff]
    %v37 = vld [vmem:[%s1 + $0x80] sm:$0xff]
    %v38 = vld [vmem:[%s1 + $0x88] sm:$0xff]
    %v39 = vld [vmem:[%s1 + $0x90] sm:$0xff]
    %v40 = vld [vmem:[%s1 + $0x98] sm:$0xff]
    %v41 = vld [vmem:[%s1 + $0xa0] sm:$0xff]
    %v42 = vld [vmem:[%s1 + $0xa8] sm:$0xff]
    %v43 = vld [vmem:[%s1 + $0xb0] sm:$0xff]
    %v44 = vld [vmem:[%s1 + $0xb8] sm:$0xff]
    %v45 = vld [vmem:[%s1 + $0xc0] sm:$0xff]
    %v46 = vld [vmem:[%s1 + $0xc8] sm:$0xff]
    %v47 = vld [vmem:[%s1 + $0xd0] sm:$0xff]
    %v48 = vld [vmem:[%s1 + $0xd8] sm:$0xff]
    %v49 = vld [vmem:[%s1 + $0xe0] sm:$0xff]
    %v50 = vld [vmem:[%s1 + $0xe8] sm:$0xff]
    %v51 = vld [vmem:[%s1 + $0xf0] sm:$0xff]
    %v52 = vld [vmem:[%s1 + $0xf8] sm:$0xff]
    %v53 = vld [vmem:[%s1 + $0x100] sm:$0xff]
    %v54 = vld [vmem:[%s1 + $0x108] sm:$0xff]
    %v55 = vld [vmem:[%s1 + $0x110] sm:$0xff]
    %v56 = vld [vmem:[%s1 + $0x118] sm:$0xff]
    %v57 = vld [vmem:[%s1 + $0x120] sm:$0xff]
    %v58 = vld [vmem:[%s1 + $0x128] sm:$0xff]
    %v59 = vld [vmem:[%s1 + $0x130] sm:$0xff]
    %v60 = vld [vmem:[%s1 + $0x138] sm:$0xff]
    %v61 = vld [vmem:[%s1 + $0x140] sm:$0xff]
    %v62 = vld [vmem:[%s1 + $0x148] sm:$0xff]
    %v63 = vld [vmem:[%s1 + $0x150] sm:$0xff]
    %v64 = vld [vmem:[%s1 + $0x158] sm:$0xff]
    %v65 = vld [vmem:[%s1 + $0x160] sm:$0xff]
    %v66 = vld [vmem:[%s1 + $0x168] sm:$0xff]
    %v67 = vld [vmem:[%s1 + $0x170] sm:$0xff]
    %v68 = vld [vmem:[%s1 + $0x178] sm:$0xff]
    %v69 = vld [vmem:[%s1 + $0x180] sm:$0xff]
    %v70 = vld [vmem:[%s1 + $0x188] sm:$0xff]
    %v71 = vld [vmem:[%s1 + $0x190] sm:$0xff]
    %v72 = vld [vmem:[%s1 + $0x198] sm:$0xff]
    %v73 = vld [vmem:[%s1 + $0x1a0] sm:$0xff]
    %v74 = vld [vmem:[%s1 + $0x1a8] sm:$0xff]
    %v75 = vld [vmem:[%s1 + $0x1b0] sm:$0xff]
    %v76 = vld [vmem:[%s1 + $0x1b8] sm:$0xff]
    %v77 = vld [vmem:[%s1 + $0x1c0] sm:$0xff]
    %v78 = vld [vmem:[%s1 + $0x1c8] sm:$0xff]
    %v79 = vld [vmem:[%s1 + $0x1d0] sm:$0xff]
    %v80 = vld [vmem:[%s1 + $0x1d8] sm:$0xff]
    %v81 = vld [vmem:[%s1 + $0x1e0] sm:$0xff]
    %v82 = vld [vmem:[%s1 + $0x1e8] sm:$0xff]
    %v83 = vld [vmem:[%s1 + $0x1f0] sm:$0xff]
    %v84 = vld [vmem:[%s1 + $0x1f8] sm:$0xff]
    %v85 = vld [vmem:[%s1 + $0x200] sm:$0xff]
    %v86 = vld [vmem:[%s1 + $0x208] sm:$0xff]
    %v87 = vld [vmem:[%s1 + $0x210] sm:$0xff]
    %v88 = vld [vmem:[%s1 + $0x218] sm:$0xff]
    %v89 = vld [vmem:[%s1 + $0x220] sm:$0xff]
    %v90 = vld [vmem:[%s1 + $0x228] sm:$0xff]
    %v91 = vld [vmem:[%s1 + $0x230] sm:$0xff]
    %v92 = vld [vmem:[%s1 + $0x238] sm:$0xff]
    %v93 = vld [vmem:[%s1 + $0x240] sm:$0xff]
    %v94 = vld [vmem:[%s1 + $0x248] sm:$0xff]
    %v95 = vld [vmem:[%s1 + $0x250] sm:$0xff]
    %v96 = vld [vmem:[%s1 + $0x258] sm:$0xff]
    %v97 = vld [vmem:[%s1 + $0x260] sm:$0xff]
    %v98 = vld [vmem:[%s1 + $0x268] sm:$0xff]
    %v99 = vld [vmem:[%s1 + $0x270] sm:$0xff]
    %v100 = vld [vmem:[%s1 + $0x278] sm:$0xff]
    %v101 = vld [vmem:[%s1 + $0x280] sm:$0xff]
    %v102 = vld [vmem:[%s1 + $0x288] sm:$0xff]
    %v103 = vld [vmem:[%s1 + $0x290] sm:$0xff]
    %v104 = vld [vmem:[%s1 + $0x298] sm:$0xff]
    %v105 = vld [vmem:[%s1 + $0x2a0] sm:$0xff]
    %v106 = vld [vmem:[%s1 + $0x2a8] sm:$0xff]
    %v107 = vld [vmem:[%s1 + $0x2b0] sm:$0xff]
    %v108 = vld [vmem:[%s1 + $0x2b8] sm:$0xff]
    %v109 = vld [vmem:[%s1 + $0x2c0] sm:$0xff]
    %v110 = vld [vmem:[%s1 + $0x2c8] sm:$0xff]
    %v111 = vld [vmem:[%s1 + $0x2d0] sm:$0xff]
    %v112 = vld [vmem:[%s1 + $0x2d8] sm:$0xff]
    %v113 = vld [vmem:[%s1 + $0x2e0] sm:$0xff]
    %v114 = vld [vmem:[%s1 + $0x2e8] sm:$0xff]
    %v115 = vld [vmem:[%s1 + $0x2f0] sm:$0xff]
    %v116 = vld [vmem:[%s1 + $0x2f8] sm:$0xff]
    %v117 = vld [vmem:[%s1 + $0x300] sm:$0xff]
    %v118 = vld [vmem:[%s1 + $0x308] sm:$0xff]
    %v119 = vld [vmem:[%s1 + $0x310] sm:$0xff]
    %v120 = vld [vmem:[%s1 + $0x318] sm:$0xff]
    %v121 = vld [vmem:[%s1 + $0x320] sm:$0xff]
    %v122 = vld [vmem:[%s1 + $0x328] sm:$0xff]
    %v123 = vld [vmem:[%s1 + $0x330] sm:$0xff]
    %v124 = vld [vmem:[%s1 + $0x338] sm:$0xff]
    %v125 = vld [vmem:[%s1 + $0x340] sm:$0xff]
    %v126 = vld [vmem:[%s1 + $0x348] sm:$0xff]
    %v127 = vld [vmem:[%s1 + $0x350] sm:$0xff]
    %v128 = vld [vmem:[%s1 + $0x358] sm:$0xff]
    %v129 = vld [vmem:[%s1 + $0x360] sm:$0xff]
    %v130 = vld [vmem:[%s1 + $0x368] sm:$0xff]
    %v131 = vld [vmem:[%s1 + $0x370] sm:$0xff]
    %v132 = vld [vmem:[%s1 + $0x378] sm:$0xff]
    %v133 = vld [vmem:[%s1 + $0x380] sm:$0xff]
    %v134 = vld [vmem:[%s1 + $0x388] sm:$0xff]
    %v135 = vld [vmem:[%s1 + $0x390] sm:$0xff]
    %v136 = vld [vmem:[%s1 + $0x398] sm:$0xff]
    %v137 = vld [vmem:[%s1 + $0x3a0] sm:$0xff]
    %v138 = vld [vmem:[%s1 + $0x3a8] sm:$0xff]
    %v139 = vld [vmem:[%s1 + $0x3b0] sm:$0xff]
    %v140 = vld [vmem:[%s1 + $0x3b8] sm:$0xff]
    %v141 = vld [vmem:[%s1 + $0x3c0] sm:$0xff]
    %v142 = vld [vmem:[%s1 + $0x3c8] sm:$0xff]
    %v143 = vld [vmem:[%s1 + $0x3d0] sm:$0xff]
    %v144 = vld [vmem:[%s1 + $0x3d8] sm:$0xff]
    %v145 = vld [vmem:[%s1 + $0x3e0] sm:$0xff]
    %v146 = vld [vmem:[%s1 + $0x3e8] sm:$0xff]
    %v147 = vld [vmem:[%s1 + $0x3f0] sm:$0xff]
    %v148 = vld [vmem:[%s1 + $0x3f8] sm:$0xff]
    %v149 = vld [vmem:[%s1 + $0x400] sm:$0xff]
    %v150 = vld [vmem:[%s1 + $0x408] sm:$0xff]
    %v151 = vld [vmem:[%s1 + $0x410] sm:$0xff]
    %v152 = vld [vmem:[%s1 + $0x418] sm:$0xff]
    %v153 = vld [vmem:[%s1 + $0x420] sm:$0xff]
    %v154 = vld [vmem:[%s1 + $0x428] sm:$0xff]
    %v155 = vld [vmem:[%s1 + $0x430] sm:$0xff]
    %v156 = vld [vmem:[%s1 + $0x438] sm:$0xff]
    %v157 = vld [vmem:[%s1 + $0x440] sm:$0xff]
    %v158 = vld [vmem:[%s1 + $0x448] sm:$0xff]
    %v159 = vld [vmem:[%s1 + $0x450] sm:$0xff]
    %v160 = vld [vmem:[%s1 + $0x458] sm:$0xff]
    %v161 = vld [vmem:[%s1 + $0x460] sm:$0xff]
    %v162 = vld [vmem:[%s1 + $0x468] sm:$0xff]
    %v163 = vld [vmem:[%s1 + $0x470] sm:$0xff]
    %v164 = vld [vmem:[%s1 + $0x478] sm:$0xff]
    %v165 = vld [vmem:[%s1 + $0x480] sm:$0xff]
    %v166 = vld [vmem:[%s1 + $0x488] sm:$0xff]
    %v167 = vld [vmem:[%s1 + $0x490] sm:$0xff]
    %v168 = vld [vmem:[%s1 + $0x498] sm:$0xff]
    %v169 = vld [vmem:[%s1 + $0x4a0] sm:$0xff]
    %v170 = vld [vmem:[%s1 + $0x4a8] sm:$0xff]
    %v171 = vld [vmem:[%s1 + $0x4b0] sm:$0xff]
    %v172 = vld [vmem:[%s1 + $0x4b8] sm:$0xff]
    %v173 = vld [vmem:[%s1 + $0x4c0] sm:$0xff]
    %v174 = vld [vmem:[%s1 + $0x4c8] sm:$0xff]
    %v175 = vld [vmem:[%s1 + $0x4d0] sm:$0xff]
    %v176 = vld [vmem:[%s1 + $0x4d8] sm:$0xff]
    %v177 = vld [vmem:[%s1 + $0x4e0] sm:$0xff]
    %v178 = vld [vmem:[%s1 + $0x4e8] sm:$0xff]
    %v179 = vld [vmem:[%s1 + $0x4f0] sm:$0xff]
    %v180 = vld [vmem:[%s1 + $0x4f8] sm:$0xff]
    %v181 = vld [vmem:[%s1 + $0x500] sm:$0xff]
    %v182 = vld [vmem:[%s1 + $0x508] sm:$0xff]
    %v183 = vld [vmem:[%s1 + $0x510] sm:$0xff]
    %v184 = vld [vmem:[%s1 + $0x518] sm:$0xff]
    %v185 = vld [vmem:[%s1 + $0x520] sm:$0xff]
    %v186 = vld [vmem:[%s1 + $0x528] sm:$0xff]
    %v187 = vld [vmem:[%s1 + $0x530] sm:$0xff]
    %v188 = vld [vmem:[%s1 + $0x538] sm:$0xff]
    %v189 = vld [vmem:[%s1 + $0x540] sm:$0xff]
    %v190 = vld [vmem:[%s1 + $0x548] sm:$0xff]
    %v191 = vld [vmem:[%s1 + $0x550] sm:$0xff]
    %v192 = vld [vmem:[%s1 + $0x558] sm:$0xff]
    %v193 = vld [vmem:[%s1 + $0x560] sm:$0xff]
    %v194 = vld [vmem:[%s1 + $0x568] sm:$0xff]
    %v195 = vld [vmem:[%s1 + $0x570] sm:$0xff]
    %v196 = vld [vmem:[%s1 + $0x578] sm:$0xff]
    %v197 = vld [vmem:[%s1 + $0x580] sm:$0xff]
    %v198 = vld [vmem:[%s1 + $0x588] sm:$0xff]
    %v199 = vld [vmem:[%s1 + $0x590] sm:$0xff]
    %v200 = vld [vmem:[%s1 + $0x598] sm:$0xff]
    %v201 = vld [vmem:[%s1 + $0x5a0] sm:$0xff]
    %v202 = vld [vmem:[%s1 + $0x5a8] sm:$0xff]
    %v203 = vld [vmem:[%s1 + $0x5b0] sm:$0xff]
    %v204 = vld [vmem:[%s1 + $0x5b8] sm:$0xff]
    %v205 = vld [vmem:[%s1 + $0x5c0] sm:$0xff]
    %v206 = vld [vmem:[%s1 + $0x5c8] sm:$0xff]
    %v207 = vld [vmem:[%s1 + $0x5d0] sm:$0xff]
    %v208 = vld [vmem:[%s1 + $0x5d8] sm:$0xff]
    %v209 = vld [vmem:[%s1 + $0x5e0] sm:$0xff]
    %v210 = vld [vmem:[%s1 + $0x5e8] sm:$0xff]
    %v211 = vld [vmem:[%s1 + $0x5f0] sm:$0xff]
    %v212 = vld [vmem:[%s1 + $0x5f8] sm:$0xff]
    %v213 = vld [vmem:[%s1 + $0x600] sm:$0xff]
    %v214 = vld [vmem:[%s1 + $0x608] sm:$0xff]
    %v215 = vld [vmem:[%s1 + $0x610] sm:$0xff]
    %v216 = vld [vmem:[%s1 + $0x618] sm:$0xff]
    %v217 = vld [vmem:[%s1 + $0x620] sm:$0xff]
    %v218 = vld [vmem:[%s1 + $0x628] sm:$0xff]
    %v219 = vld [vmem:[%s1 + $0x630] sm:$0xff]
    %v220 = vld [vmem:[%s1 + $0x638] sm:$0xff]
    %v221 = vld [vmem:[%s1 + $0x640] sm:$0xff]
    %v222 = vld [vmem:[%s1 + $0x648] sm:$0xff]
    %v223 = vld [vmem:[%s1 + $0x650] sm:$0xff]
    %v224 = vld [vmem:[%s1 + $0x658] sm:$0xff]
    %v225 = vld [vmem:[%s1 + $0x660] sm:$0xff]
    %v226 = vld [vmem:[%s1 + $0x668] sm:$0xff]
    %v227 = vld [vmem:[%s1 + $0x670] sm:$0xff]
    %v228 = vld [vmem:[%s1 + $0x678] sm:$0xff]
    %v229 = vld [vmem:[%s1 + $0x680] sm:$0xff]
    %v230 = vld [vmem:[%s1 + $0x688] sm:$0xff]
    %v231 = vld [vmem:[%s1 + $0x690] sm:$0xff]
    %v232 = vld [vmem:[%s1 + $0x698] sm:$0xff]
    %v233 = vld [vmem:[%s1 + $0x6a0] sm:$0xff]
    %v234 = vld [vmem:[%s1 + $0x6a8] sm:$0xff]
    %v235 = vld [vmem:[%s1 + $0x6b0] sm:$0xff]
    %v236 = vld [vmem:[%s1 + $0x6b8] sm:$0xff]
    %v237 = vld [vmem:[%s1 + $0x6c0] sm:$0xff]
    %v238 = vld [vmem:[%s1 + $0x6c8] sm:$0xff]
    %v239 = vld [vmem:[%s1 + $0x6d0] sm:$0xff]
    %v240 = vld [vmem:[%s1 + $0x6d8] sm:$0xff]
    %v241 = vld [vmem:[%s1 + $0x6e0] sm:$0xff]
    %v242 = vld [vmem:[%s1 + $0x6e8] sm:$0xff]
    %v243 = vld [vmem:[%s1 + $0x6f0] sm:$0xff]
    %v244 = vld [vmem:[%s1 + $0x6f8] sm:$0xff]
    %v245 = vld [vmem:[%s1 + $0x700] sm:$0xff]
    %v246 = vld [vmem:[%s1 + $0x708] sm:$0xff]
    %v247 = vld [vmem:[%s1 + $0x710] sm:$0xff]
    %v248 = vld [vmem:[%s1 + $0x718] sm:$0xff]
    %v249 = vld [vmem:[%s1 + $0x720] sm:$0xff]
    %v250 = vld [vmem:[%s1 + $0x728] sm:$0xff]
    %v251 = vld [vmem:[%s1 + $0x730] sm:$0xff]
    %v252 = vld [vmem:[%s1 + $0x738] sm:$0xff]
    %v253 = vld [vmem:[%s1 + $0x740] sm:$0xff]
    %v254 = vld [vmem:[%s1 + $0x748] sm:$0xff]
    %v255 = vld [vmem:[%s1 + $0x750] sm:$0xff]
    %v256 = vld [vmem:[%s1 + $0x758] sm:$0xff]
    %v257 = vld [vmem:[%s1 + $0x760] sm:$0xff]
    %v258 = vld [vmem:[%s1 + $0x768] sm:$0xff]
    %v259 = vld [vmem:[%s1 + $0x770] sm:$0xff]
    %v260 = vld [vmem:[%s1 + $0x778] sm:$0xff]
    %v261 = vld [vmem:[%s1 + $0x780] sm:$0xff]
    %v262 = vld [vmem:[%s1 + $0x788] sm:$0xff]
    %v263 = vld [vmem:[%s1 + $0x790] sm:$0xff]
    %v264 = vld [vmem:[%s1 + $0x798] sm:$0xff]
    %v265 = vld [vmem:[%s1 + $0x7a0] sm:$0xff]
    %v266 = vld [vmem:[%s1 + $0x7a8] sm:$0xff]
    %v267 = vld [vmem:[%s1 + $0x7b0] sm:$0xff]
    %v268 = vld [vmem:[%s1 + $0x7b8] sm:$0xff]
    %v269 = vld [vmem:[%s1 + $0x7c0] sm:$0xff]
    %v270 = vld [vmem:[%s1 + $0x7c8] sm:$0xff]
    %v271 = vld [vmem:[%s1 + $0x7d0] sm:$0xff]
    %v272 = vld [vmem:[%s1 + $0x7d8] sm:$0xff]
    %v273 = vld [vmem:[%s1 + $0x7e0] sm:$0xff]
    %v274 = vld [vmem:[%s1 + $0x7e8] sm:$0xff]
    %v275 = vld [vmem:[%s1 + $0x7f0] sm:$0xff]
    %v276 = vld [vmem:[%s1 + $0x7f8] sm:$0xff]
    %v277 = vld [vmem:[%s1 + $0x800] sm:$0xff]
    %v278 = vld [vmem:[%s1 + $0x808] sm:$0xff]
    %v279 = vld [vmem:[%s1 + $0x810] sm:$0xff]
    %v280 = vld [vmem:[%s1 + $0x818] sm:$0xff]
    %v281 = vld [vmem:[%s1 + $0x820] sm:$0xff]
    %v282 = vld [vmem:[%s1 + $0x828] sm:$0xff]
    %v283 = vld [vmem:[%s1 + $0x830] sm:$0xff]
    %v284 = vld [vmem:[%s1 + $0x838] sm:$0xff]
    %v285 = vld [vmem:[%s1 + $0x840] sm:$0xff]
    %v286 = vld [vmem:[%s1 + $0x848] sm:$0xff]
    %v287 = vld [vmem:[%s1 + $0x850] sm:$0xff]
    %v288 = vld [vmem:[%s1 + $0x858] sm:$0xff]
    %v289 = vld [vmem:[%s1 + $0x860] sm:$0xff]
    %v290 = vld [vmem:[%s1 + $0x868] sm:$0xff]
    %v291 = vld [vmem:[%s1 + $0x870] sm:$0xff]
    %v292 = vld [vmem:[%s1 + $0x878] sm:$0xff]
    %v293 = vld [vmem:[%s1 + $0x880] sm:$0xff]
    %v294 = vld [vmem:[%s1 + $0x888] sm:$0xff]
    %v295 = vld [vmem:[%s1 + $0x890] sm:$0xff]
    %v296 = vld [vmem:[%s1 + $0x898] sm:$0xff]
    %v297 = vld [vmem:[%s1 + $0x8a0] sm:$0xff]
    %v298 = vld [vmem:[%s1 + $0x8a8] sm:$0xff]
    %v299 = vld [vmem:[%s1 + $0x8b0] sm:$0xff]
    %v300 = vld [vmem:[%s1 + $0x8b8] sm:$0xff]
    %v301 = vld [vmem:[%s1 + $0x8c0] sm:$0xff]
    %v302 = vld [vmem:[%s1 + $0x8c8] sm:$0xff]
    %v303 = vld [vmem:[%s1 + $0x8d0] sm:$0xff]
    %v304 = vld [vmem:[%s1 + $0x8d8] sm:$0xff]
    %v305 = vld [vmem:[%s1 + $0x8e0] sm:$0xff]
    %v306 = vld [vmem:[%s1 + $0x8e8] sm:$0xff]
    %v307 = vld [vmem:[%s1 + $0x8f0] sm:$0xff]
    %v308 = vld [vmem:[%s1 + $0x8f8] sm:$0xff]
    %v309 = vld [vmem:[%s1 + $0x900] sm:$0xff]
    %v310 = vld [vmem:[%s1 + $0x908] sm:$0xff]
    %v311 = vld [vmem:[%s1 + $0x910] sm:$0xff]
    %v312 = vld [vmem:[%s1 + $0x918] sm:$0xff]
    %v313 = vld [vmem:[%s1 + $0x920] sm:$0xff]
    %v314 = vld [vmem:[%s1 + $0x928] sm:$0xff]
    %v315 = vld [vmem:[%s1 + $0x930] sm:$0xff]
    %v316 = vld [vmem:[%s1 + $0x938] sm:$0xff]
    %v317 = vld [vmem:[%s1 + $0x940] sm:$0xff]
    %v318 = vld [vmem:[%s1 + $0x948] sm:$0xff]
    %v319 = vld [vmem:[%s1 + $0x950] sm:$0xff]
    %v320 = vld [vmem:[%s1 + $0x958] sm:$0xff]
    %v321 = vld [vmem:[%s1 + $0x960] sm:$0xff]
    %v322 = vld [vmem:[%s1 + $0x968] sm:$0xff]
    %v323 = vld [vmem:[%s1 + $0x970] sm:$0xff]
    %v324 = vld [vmem:[%s1 + $0x978] sm:$0xff]
    %v325 = vld [vmem:[%s1 + $0x980] sm:$0xff]
    %v326 = vld [vmem:[%s1 + $0x988] sm:$0xff]
    %v327 = vld [vmem:[%s1 + $0x990] sm:$0xff]
    %v328 = vld [vmem:[%s1 + $0x998] sm:$0xff]
    %v329 = vld [vmem:[%s1 + $0x9a0] sm:$0xff]
    %v330 = vld [vmem:[%s1 + $0x9a8] sm:$0xff]
    %v331 = vld [vmem:[%s1 + $0x9b0] sm:$0xff]
    %v332 = vld [vmem:[%s1 + $0x9b8] sm:$0xff]
    %v333 = vld [vmem:[%s1 + $0x9c0] sm:$0xff]
    %v334 = vld [vmem:[%s1 + $0x9c8] sm:$0xff]
    %v335 = vld [vmem:[%s1 + $0x9d0] sm:$0xff]
    %v336 = vld [vmem:[%s1 + $0x9d8] sm:$0xff]
    %v337 = vld [vmem:[%s1 + $0x9e0] sm:$0xff]
    %v338 = vld [vmem:[%s1 + $0x9e8] sm:$0xff]
    %v339 = vld [vmem:[%s1 + $0x9f0] sm:$0xff]
    %v340 = vld [vmem:[%s1 + $0x9f8] sm:$0xff]
    %v341 = vld [vmem:[%s1 + $0xa00] sm:$0xff]
    %v342 = vld [vmem:[%s1 + $0xa08] sm:$0xff]
    %v343 = vld [vmem:[%s1 + $0xa10] sm:$0xff]
    %v344 = vld [vmem:[%s1 + $0xa18] sm:$0xff]
    %v345 = vld [vmem:[%s1 + $0xa20] sm:$0xff]
    %v346 = vld [vmem:[%s1 + $0xa28] sm:$0xff]
    %v347 = vld [vmem:[%s1 + $0xa30] sm:$0xff]
    %v348 = vld [vmem:[%s1 + $0xa38] sm:$0xff]
    %v349 = vld [vmem:[%s1 + $0xa40] sm:$0xff]
    %v350 = vld [vmem:[%s1 + $0xa48] sm:$0xff]
    %v351 = vld [vmem:[%s1 + $0xa50] sm:$0xff]
    %v352 = vld [vmem:[%s1 + $0xa58] sm:$0xff]
    %v353 = vld [vmem:[%s1 + $0xa60] sm:$0xff]
    %v354 = vld [vmem:[%s1 + $0xa68] sm:$0xff]
    %v355 = vld [vmem:[%s1 + $0xa70] sm:$0xff]
    %v356 = vld [vmem:[%s1 + $0xa78] sm:$0xff]
    %v357 = vld [vmem:[%s1 + $0xa80] sm:$0xff]
    %v358 = vld [vmem:[%s1 + $0xa88] sm:$0xff]
    %v359 = vld [vmem:[%s1 + $0xa90] sm:$0xff]
    %v360 = vld [vmem:[%s1 + $0xa98] sm:$0xff]
    %v361 = vld [vmem:[%s1 + $0xaa0] sm:$0xff]
    %v362 = vld [vmem:[%s1 + $0xaa8] sm:$0xff]
    %v363 = vld [vmem:[%s1 + $0xab0] sm:$0xff]
    %v364 = vld [vmem:[%s1 + $0xab8] sm:$0xff]
    %v365 = vld [vmem:[%s1 + $0xac0] sm:$0xff]
    %v366 = vld [vmem:[%s1 + $0xac8] sm:$0xff]
    %v367 = vld [vmem:[%s1 + $0xad0] sm:$0xff]
    %v368 = vld [vmem:[%s1 + $0xad8] sm:$0xff]
    %v369 = vld [vmem:[%s1 + $0xae0] sm:$0xff]
    %v370 = vld [vmem:[%s1 + $0xae8] sm:$0xff]
    %v371 = vld [vmem:[%s1 + $0xaf0] sm:$0xff]
    %v372 = vld [vmem:[%s1 + $0xaf8] sm:$0xff]
    %v373 = vld [vmem:[%s1 + $0xb00] sm:$0xff]
    %v374 = vld [vmem:[%s1 + $0xb08] sm:$0xff]
    %v375 = vld [vmem:[%s1 + $0xb10] sm:$0xff]
    %v376 = vld [vmem:[%s1 + $0xb18] sm:$0xff]
    %v377 = vld [vmem:[%s1 + $0xb20] sm:$0xff]
    %v378 = vld [vmem:[%s1 + $0xb28] sm:$0xff]
    %v379 = vld [vmem:[%s1 + $0xb30] sm:$0xff]
    %v380 = vld [vmem:[%s1 + $0xb38] sm:$0xff]
    %v381 = vld [vmem:[%s1 + $0xb40] sm:$0xff]
    %v382 = vld [vmem:[%s1 + $0xb48] sm:$0xff]
    %v383 = vld [vmem:[%s1 + $0xb50] sm:$0xff]
    %v384 = vld [vmem:[%s1 + $0xb58] sm:$0xff]
    %v385 = vld [vmem:[%s1 + $0xb60] sm:$0xff]
    %v386 = vld [vmem:[%s1 + $0xb68] sm:$0xff]
    %v387 = vld [vmem:[%s1 + $0xb70] sm:$0xff]
    %v388 = vld [vmem:[%s1 + $0xb78] sm:$0xff]
    %v389 = vld [vmem:[%s1 + $0xb80] sm:$0xff]
    %v390 = vld [vmem:[%s1 + $0xb88] sm:$0xff]
    %v391 = vld [vmem:[%s1 + $0xb90] sm:$0xff]
    %v392 = vld [vmem:[%s1 + $0xb98] sm:$0xff]
    %v393 = vld [vmem:[%s1 + $0xba0] sm:$0xff]
    %v394 = vld [vmem:[%s1 + $0xba8] sm:$0xff]
    %v395 = vld [vmem:[%s1 + $0xbb0] sm:$0xff]
    %v396 = vld [vmem:[%s1 + $0xbb8] sm:$0xff]
    %v397 = vld [vmem:[%s1 + $0xbc0] sm:$0xff]
    %v398 = vld [vmem:[%s1 + $0xbc8] sm:$0xff]
    %v399 = vld [vmem:[%s1 + $0xbd0] sm:$0xff]
    %v400 = vld [vmem:[%s1 + $0xbd8] sm:$0xff]
    %v401 = vld [vmem:[%s1 + $0xbe0] sm:$0xff]
    %v402 = vld [vmem:[%s1 + $0xbe8] sm:$0xff]
    %v403 = vld [vmem:[%s1 + $0xbf0] sm:$0xff]
    %v404 = vld [vmem:[%s1 + $0xbf8] sm:$0xff]
    %v405 = vld [vmem:[%s1 + $0xc00] sm:$0xff]
    %v406 = vld [vmem:[%s1 + $0xc08] sm:$0xff]
    %v407 = vld [vmem:[%s1 + $0xc10] sm:$0xff]
    %v408 = vld [vmem:[%s1 + $0xc18] sm:$0xff]
    %v409 = vld [vmem:[%s1 + $0xc20] sm:$0xff]
    %v410 = vld [vmem:[%s1 + $0xc28] sm:$0xff]
    %v411 = vld [vmem:[%s1 + $0xc30] sm:$0xff]
    %v412 = vld [vmem:[%s1 + $0xc38] sm:$0xff]
    %v413 = vld [vmem:[%s1 + $0xc40] sm:$0xff]
    %v414 = vld [vmem:[%s1 + $0xc48] sm:$0xff]
    %v415 = vld [vmem:[%s1 + $0xc50] sm:$0xff]
    %v416 = vld [vmem:[%s1 + $0xc58] sm:$0xff]
    %v417 = vld [vmem:[%s1 + $0xc60] sm:$0xff]
    %v418 = vld [vmem:[%s1 + $0xc68] sm:$0xff]
    %v419 = vld [vmem:[%s1 + $0xc70] sm:$0xff]
    %v420 = vld [vmem:[%s1 + $0xc78] sm:$0xff]
    %v421 = vld [vmem:[%s1 + $0xc80] sm:$0xff]
    %v422 = vld [vmem:[%s1 + $0xc88] sm:$0xff]
    %v423 = vld [vmem:[%s1 + $0xc90] sm:$0xff]
    %v424 = vld [vmem:[%s1 + $0xc98] sm:$0xff]
    %v425 = vld [vmem:[%s1 + $0xca0] sm:$0xff]
    %v426 = vld [vmem:[%s1 + $0xca8] sm:$0xff]
    %v427 = vld [vmem:[%s1 + $0xcb0] sm:$0xff]
    %v428 = vld [vmem:[%s1 + $0xcb8] sm:$0xff]
    %v429 = vld [vmem:[%s1 + $0xcc0] sm:$0xff]
    %v430 = vld [vmem:[%s1 + $0xcc8] sm:$0xff]
    %v431 = vld [vmem:[%s1 + $0xcd0] sm:$0xff]
    %v432 = vld [vmem:[%s1 + $0xcd8] sm:$0xff]
    %v433 = vld [vmem:[%s1 + $0xce0] sm:$0xff]
    %v434 = vld [vmem:[%s1 + $0xce8] sm:$0xff]
    %v435 = vld [vmem:[%s1 + $0xcf0] sm:$0xff]
    %v436 = vld [vmem:[%s1 + $0xcf8] sm:$0xff]
    %v437 = vld [vmem:[%s1 + $0xd00] sm:$0xff]
    %v438 = vld [vmem:[%s1 + $0xd08] sm:$0xff]
    %v439 = vld [vmem:[%s1 + $0xd10] sm:$0xff]
    %v440 = vld [vmem:[%s1 + $0xd18] sm:$0xff]
    %v441 = vld [vmem:[%s1 + $0xd20] sm:$0xff]
    %v442 = vld [vmem:[%s1 + $0xd28] sm:$0xff]
    %v443 = vld [vmem:[%s1 + $0xd30] sm:$0xff]
    %v444 = vld [vmem:[%s1 + $0xd38] sm:$0xff]
    %v445 = vld [vmem:[%s1 + $0xd40] sm:$0xff]
    %v446 = vld [vmem:[%s1 + $0xd48] sm:$0xff]
    %v447 = vld [vmem:[%s1 + $0xd50] sm:$0xff]
    %v448 = vld [vmem:[%s1 + $0xd58] sm:$0xff]
    %v449 = vld [vmem:[%s1 + $0xd60] sm:$0xff]
    %v450 = vld [vmem:[%s1 + $0xd68] sm:$0xff]
    %v451 = vld [vmem:[%s1 + $0xd70] sm:$0xff]
    %v452 = vld [vmem:[%s1 + $0xd78] sm:$0xff]
    %v453 = vld [vmem:[%s0] sm:$0xff]
    %v454 = vld [vmem:[%s0 + $0x8] sm:$0xff]
    %v455 = vld [vmem:[%s0 + $0x10] sm:$0xff]
    %v456 = vld [vmem:[%s0 + $0x18] sm:$0x7]
    %458 = vst [vmem:[#allocation1] ss:$9 sm:$0xff] %v453
    %v459 = vld [vmem:[#allocation1] sm:$0xff]
    %v460 = vld [vmem:[#allocation1 + $0x9] sm:$0xff]
    %v461 = vld [vmem:[#allocation1 + $0x12] sm:$0xff]
    %v462 = vld [vmem:[#allocation1 + $0x1b] sm:$0xff]
    %v463 = vld [vmem:[#allocation1 + $0x24] sm:$0xff]
    %v464 = vld [vmem:[#allocation1 + $0x2d] sm:$0xff]
    %v465 = vld [vmem:[#allocation1 + $0x36] sm:$0xff]
    %v466 = vld [vmem:[#allocation1 + $0x3f] sm:$0xff]
    %468 = vst [vmem:[#allocation1] ss:$9 sm:$0xff] %v454
    %v469 = vld [vmem:[#allocation1] sm:$0xff]
    %v470 = vld [vmem:[#allocation1 + $0x9] sm:$0xff]
    %v471 = vld [vmem:[#allocation1 + $0x12] sm:$0xff]
    %v472 = vld [vmem:[#allocation1 + $0x1b] sm:$0xff]
    %v473 = vld [vmem:[#allocation1 + $0x24] sm:$0xff]
    %v474 = vld [vmem:[#allocation1 + $0x2d] sm:$0xff]
    %v475 = vld [vmem:[#allocation1 + $0x36] sm:$0xff]
    %v476 = vld [vmem:[#allocation1 + $0x3f] sm:$0xff]
    %478 = vst [vmem:[#allocation1] ss:$9 sm:$0xff] %v455
    %v479 = vld [vmem:[#allocation1] sm:$0xff]
    %v480 = vld [vmem:[#allocation1 + $0x9] sm:$0xff]
    %v481 = vld [vmem:[#allocation1 + $0x12] sm:$0xff]
    %v482 = vld [vmem:[#allocation1 + $0x1b] sm:$0xff]
    %v483 = vld [vmem:[#allocation1 + $0x24] sm:$0xff]
    %v484 = vld [vmem:[#allocation1 + $0x2d] sm:$0xff]
    %v485 = vld [vmem:[#allocation1 + $0x36] sm:$0xff]
    %v486 = vld [vmem:[#allocation1 + $0x3f] sm:$0xff]
    %488 = vst [vmem:[#allocation1] ss:$9 sm:$0xff] %v456
    %v489 = vld [vmem:[#allocation1] sm:$0xff]
    %v490 = vld [vmem:[#allocation1 + $0x9] sm:$0xff]
    %v491 = vld [vmem:[#allocation1 + $0x12] sm:$0xff]
    %v951 = vunpack.c.l.b16 %v21
    %v952 = vunpack.c.h.b16 %v21
    %v953 = vunpack.c.l.b16 %v22
    %v954 = vunpack.c.h.b16 %v22
    %v955 = vunpack.c.l.b16 %v23
    %v956 = vunpack.c.h.b16 %v23
    %v957 = vunpack.c.l.b16 %v24
    %v958 = vunpack.c.h.b16 %v24
    %v959 = vunpack.c.l.b16 %v25
    %v960 = vunpack.c.h.b16 %v25
    %v961 = vunpack.c.l.b16 %v26
    %v962 = vunpack.c.h.b16 %v26
    %v963 = vunpack.c.l.b16 %v27
    %v964 = vunpack.c.h.b16 %v27
    %v965 = vunpack.c.l.b16 %v28
    %v966 = vunpack.c.h.b16 %v28
    %v967 = vunpack.c.l.b16 %v29
    %v968 = vunpack.c.h.b16 %v29
    %v969 = vunpack.c.l.b16 %v30
    %v970 = vunpack.c.h.b16 %v30
    %v971 = vunpack.c.l.b16 %v31
    %v972 = vunpack.c.h.b16 %v31
    %v973 = vunpack.c.l.b16 %v32
    %v974 = vunpack.c.h.b16 %v32
    %v975 = vunpack.c.l.b16 %v33
    %v976 = vunpack.c.h.b16 %v33
    %v977 = vunpack.c.l.b16 %v34
    %v978 = vunpack.c.h.b16 %v34
    %v979 = vunpack.c.l.b16 %v35
    %v980 = vunpack.c.h.b16 %v35
    %v981 = vunpack.c.l.b16 %v36
    %v982 = vunpack.c.h.b16 %v36
    %v983 = vunpack.c.l.b16 %v37
    %v984 = vunpack.c.h.b16 %v37
    %v985 = vunpack.c.l.b16 %v38
    %v986 = vunpack.c.h.b16 %v38
    %v987 = vunpack.c.l.b16 %v39
    %v988 = vunpack.c.h.b16 %v39
    %v989 = vunpack.c.l.b16 %v40
    %v990 = vunpack.c.h.b16 %v40
    %v991 = vunpack.c.l.b16 %v41
    %v992 = vunpack.c.h.b16 %v41
    %v993 = vunpack.c.l.b16 %v42
    %v994 = vunpack.c.h.b16 %v42
    %v995 = vunpack.c.l.b16 %v43
    %v996 = vunpack.c.h.b16 %v43
    %v997 = vunpack.c.l.b16 %v44
    %v998 = vunpack.c.h.b16 %v44
    %v999 = vunpack.c.l.b16 %v45
    %v1000 = vunpack.c.h.b16 %v45
    %v1001 = vunpack.c.l.b16 %v46
    %v1002 = vunpack.c.h.b16 %v46
    %v1003 = vunpack.c.l.b16 %v47
    %v1004 = vunpack.c.h.b16 %v47
    %v1005 = vunpack.c.l.b16 %v48
    %v1006 = vunpack.c.h.b16 %v48
    %v1007 = vunpack.c.l.b16 %v49
    %v1008 = vunpack.c.h.b16 %v49
    %v1009 = vunpack.c.l.b16 %v50
    %v1010 = vunpack.c.h.b16 %v50
    %v1011 = vunpack.c.l.b16 %v51
    %v1012 = vunpack.c.h.b16 %v51
    %v1013 = vunpack.c.l.b16 %v52
    %v1014 = vunpack.c.h.b16 %v52
    %v1015 = vunpack.c.l.b16 %v53
    %v1016 = vunpack.c.h.b16 %v53
    %v1017 = vunpack.c.l.b16 %v54
    %v1018 = vunpack.c.h.b16 %v54
    %v1019 = vunpack.c.l.b16 %v55
    %v1020 = vunpack.c.h.b16 %v55
    %v1021 = vunpack.c.l.b16 %v56
    %v1022 = vunpack.c.h.b16 %v56
    %v1023 = vunpack.c.l.b16 %v57
    %v1024 = vunpack.c.h.b16 %v57
    %v1025 = vunpack.c.l.b16 %v58
    %v1026 = vunpack.c.h.b16 %v58
    %v1027 = vunpack.c.l.b16 %v59
    %v1028 = vunpack.c.h.b16 %v59
    %v1029 = vunpack.c.l.b16 %v60
    %v1030 = vunpack.c.h.b16 %v60
    %v1031 = vunpack.c.l.b16 %v61
    %v1032 = vunpack.c.h.b16 %v61
    %v1033 = vunpack.c.l.b16 %v62
    %v1034 = vunpack.c.h.b16 %v62
    %v1035 = vunpack.c.l.b16 %v63
    %v1036 = vunpack.c.h.b16 %v63
    %v1037 = vunpack.c.l.b16 %v64
    %v1038 = vunpack.c.h.b16 %v64
    %v1039 = vunpack.c.l.b16 %v65
    %v1040 = vunpack.c.h.b16 %v65
    %v1041 = vunpack.c.l.b16 %v66
    %v1042 = vunpack.c.h.b16 %v66
    %v1043 = vunpack.c.l.b16 %v67
    %v1044 = vunpack.c.h.b16 %v67
    %v1045 = vunpack.c.l.b16 %v68
    %v1046 = vunpack.c.h.b16 %v68
    %v1047 = vunpack.c.l.b16 %v69
    %v1048 = vunpack.c.h.b16 %v69
    %v1049 = vunpack.c.l.b16 %v70
    %v1050 = vunpack.c.h.b16 %v70
    %v1051 = vunpack.c.l.b16 %v71
    %v1052 = vunpack.c.h.b16 %v71
    %v1053 = vunpack.c.l.b16 %v72
    %v1054 = vunpack.c.h.b16 %v72
    %v1055 = vunpack.c.l.b16 %v73
    %v1056 = vunpack.c.h.b16 %v73
    %v1057 = vunpack.c.l.b16 %v74
    %v1058 = vunpack.c.h.b16 %v74
    %v1059 = vunpack.c.l.b16 %v75
    %v1060 = vunpack.c.h.b16 %v75
    %v1061 = vunpack.c.l.b16 %v76
    %v1062 = vunpack.c.h.b16 %v76
    %v1063 = vunpack.c.l.b16 %v77
    %v1064 = vunpack.c.h.b16 %v77
    %v1065 = vunpack.c.l.b16 %v78
    %v1066 = vunpack.c.h.b16 %v78
    %v1067 = vunpack.c.l.b16 %v79
    %v1068 = vunpack.c.h.b16 %v79
    %v1069 = vunpack.c.l.b16 %v80
    %v1070 = vunpack.c.h.b16 %v80
    %v1071 = vunpack.c.l.b16 %v81
    %v1072 = vunpack.c.h.b16 %v81
    %v1073 = vunpack.c.l.b16 %v82
    %v1074 = vunpack.c.h.b16 %v82
    %v1075 = vunpack.c.l.b16 %v83
    %v1076 = vunpack.c.h.b16 %v83
    %v1077 = vunpack.c.l.b16 %v84
    %v1078 = vunpack.c.h.b16 %v84
    %v1079 = vunpack.c.l.b16 %v85
    %v1080 = vunpack.c.h.b16 %v85
    %v1081 = vunpack.c.l.b16 %v86
    %v1082 = vunpack.c.h.b16 %v86
    %v1083 = vunpack.c.l.b16 %v87
    %v1084 = vunpack.c.h.b16 %v87
    %v1085 = vunpack.c.l.b16 %v88
    %v1086 = vunpack.c.h.b16 %v88
    %v1087 = vunpack.c.l.b16 %v89
    %v1088 = vunpack.c.h.b16 %v89
    %v1089 = vunpack.c.l.b16 %v90
    %v1090 = vunpack.c.h.b16 %v90
    %v1091 = vunpack.c.l.b16 %v91
    %v1092 = vunpack.c.h.b16 %v91
    %v1093 = vunpack.c.l.b16 %v92
    %v1094 = vunpack.c.h.b16 %v92
    %v1095 = vunpack.c.l.b16 %v93
    %v1096 = vunpack.c.h.b16 %v93
    %v1097 = vunpack.c.l.b16 %v94
    %v1098 = vunpack.c.h.b16 %v94
    %v1099 = vunpack.c.l.b16 %v95
    %v1100 = vunpack.c.h.b16 %v95
    %v1101 = vunpack.c.l.b16 %v96
    %v1102 = vunpack.c.h.b16 %v96
    %v1103 = vunpack.c.l.b16 %v97
    %v1104 = vunpack.c.h.b16 %v97
    %v1105 = vunpack.c.l.b16 %v98
    %v1106 = vunpack.c.h.b16 %v98
    %v1107 = vunpack.c.l.b16 %v99
    %v1108 = vunpack.c.h.b16 %v99
    %v1109 = vunpack.c.l.b16 %v100
    %v1110 = vunpack.c.h.b16 %v100
    %v1111 = vunpack.c.l.b16 %v101
    %v1112 = vunpack.c.h.b16 %v101
    %v1113 = vunpack.c.l.b16 %v102
    %v1114 = vunpack.c.h.b16 %v102
    %v1115 = vunpack.c.l.b16 %v103
    %v1116 = vunpack.c.h.b16 %v103
    %v1117 = vunpack.c.l.b16 %v104
    %v1118 = vunpack.c.h.b16 %v104
    %v1119 = vunpack.c.l.b16 %v105
    %v1120 = vunpack.c.h.b16 %v105
    %v1121 = vunpack.c.l.b16 %v106
    %v1122 = vunpack.c.h.b16 %v106
    %v1123 = vunpack.c.l.b16 %v107
    %v1124 = vunpack.c.h.b16 %v107
    %v1125 = vunpack.c.l.b16 %v108
    %v1126 = vunpack.c.h.b16 %v108
    %v1127 = vunpack.c.l.b16 %v109
    %v1128 = vunpack.c.h.b16 %v109
    %v1129 = vunpack.c.l.b16 %v110
    %v1130 = vunpack.c.h.b16 %v110
    %v1131 = vunpack.c.l.b16 %v111
    %v1132 = vunpack.c.h.b16 %v111
    %v1133 = vunpack.c.l.b16 %v112
    %v1134 = vunpack.c.h.b16 %v112
    %v1135 = vunpack.c.l.b16 %v113
    %v1136 = vunpack.c.h.b16 %v113
    %v1137 = vunpack.c.l.b16 %v114
    %v1138 = vunpack.c.h.b16 %v114
    %v1139 = vunpack.c.l.b16 %v115
    %v1140 = vunpack.c.h.b16 %v115
    %v1141 = vunpack.c.l.b16 %v116
    %v1142 = vunpack.c.h.b16 %v116
    %v1143 = vunpack.c.l.b16 %v117
    %v1144 = vunpack.c.h.b16 %v117
    %v1145 = vunpack.c.l.b16 %v118
    %v1146 = vunpack.c.h.b16 %v118
    %v1147 = vunpack.c.l.b16 %v119
    %v1148 = vunpack.c.h.b16 %v119
    %v1149 = vunpack.c.l.b16 %v120
    %v1150 = vunpack.c.h.b16 %v120
    %v1151 = vunpack.c.l.b16 %v121
    %v1152 = vunpack.c.h.b16 %v121
    %v1153 = vunpack.c.l.b16 %v122
    %v1154 = vunpack.c.h.b16 %v122
    %v1155 = vunpack.c.l.b16 %v123
    %v1156 = vunpack.c.h.b16 %v123
    %v1157 = vunpack.c.l.b16 %v124
    %v1158 = vunpack.c.h.b16 %v124
    %v1159 = vunpack.c.l.b16 %v125
    %v1160 = vunpack.c.h.b16 %v125
    %v1161 = vunpack.c.l.b16 %v126
    %v1162 = vunpack.c.h.b16 %v126
    %v1163 = vunpack.c.l.b16 %v127
    %v1164 = vunpack.c.h.b16 %v127
    %v1165 = vunpack.c.l.b16 %v128
    %v1166 = vunpack.c.h.b16 %v128
    %v1167 = vunpack.c.l.b16 %v129
    %v1168 = vunpack.c.h.b16 %v129
    %v1169 = vunpack.c.l.b16 %v130
    %v1170 = vunpack.c.h.b16 %v130
    %v1171 = vunpack.c.l.b16 %v131
    %v1172 = vunpack.c.h.b16 %v131
    %v1173 = vunpack.c.l.b16 %v132
    %v1174 = vunpack.c.h.b16 %v132
    %v1175 = vunpack.c.l.b16 %v133
    %v1176 = vunpack.c.h.b16 %v133
    %v1177 = vunpack.c.l.b16 %v134
    %v1178 = vunpack.c.h.b16 %v134
    %v1179 = vunpack.c.l.b16 %v135
    %v1180 = vunpack.c.h.b16 %v135
    %v1181 = vunpack.c.l.b16 %v136
    %v1182 = vunpack.c.h.b16 %v136
    %v1183 = vunpack.c.l.b16 %v137
    %v1184 = vunpack.c.h.b16 %v137
    %v1185 = vunpack.c.l.b16 %v138
    %v1186 = vunpack.c.h.b16 %v138
    %v1187 = vunpack.c.l.b16 %v139
    %v1188 = vunpack.c.h.b16 %v139
    %v1189 = vunpack.c.l.b16 %v140
    %v1190 = vunpack.c.h.b16 %v140
    %v1191 = vunpack.c.l.b16 %v141
    %v1192 = vunpack.c.h.b16 %v141
    %v1193 = vunpack.c.l.b16 %v142
    %v1194 = vunpack.c.h.b16 %v142
    %v1195 = vunpack.c.l.b16 %v143
    %v1196 = vunpack.c.h.b16 %v143
    %v1197 = vunpack.c.l.b16 %v144
    %v1198 = vunpack.c.h.b16 %v144
    %v1199 = vunpack.c.l.b16 %v145
    %v1200 = vunpack.c.h.b16 %v145
    %v1201 = vunpack.c.l.b16 %v146
    %v1202 = vunpack.c.h.b16 %v146
    %v1203 = vunpack.c.l.b16 %v147
    %v1204 = vunpack.c.h.b16 %v147
    %v1205 = vunpack.c.l.b16 %v148
    %v1206 = vunpack.c.h.b16 %v148
    %v1207 = vunpack.c.l.b16 %v149
    %v1208 = vunpack.c.h.b16 %v149
    %v1209 = vunpack.c.l.b16 %v150
    %v1210 = vunpack.c.h.b16 %v150
    %v1211 = vunpack.c.l.b16 %v151
    %v1212 = vunpack.c.h.b16 %v151
    %v1213 = vunpack.c.l.b16 %v152
    %v1214 = vunpack.c.h.b16 %v152
    %v1215 = vunpack.c.l.b16 %v153
    %v1216 = vunpack.c.h.b16 %v153
    %v1217 = vunpack.c.l.b16 %v154
    %v1218 = vunpack.c.h.b16 %v154
    %v1219 = vunpack.c.l.b16 %v155
    %v1220 = vunpack.c.h.b16 %v155
    %v1221 = vunpack.c.l.b16 %v156
    %v1222 = vunpack.c.h.b16 %v156
    %v1223 = vunpack.c.l.b16 %v157
    %v1224 = vunpack.c.h.b16 %v157
    %v1225 = vunpack.c.l.b16 %v158
    %v1226 = vunpack.c.h.b16 %v158
    %v1227 = vunpack.c.l.b16 %v159
    %v1228 = vunpack.c.h.b16 %v159
    %v1229 = vunpack.c.l.b16 %v160
    %v1230 = vunpack.c.h.b16 %v160
    %v1231 = vunpack.c.l.b16 %v161
    %v1232 = vunpack.c.h.b16 %v161
    %v1233 = vunpack.c.l.b16 %v162
    %v1234 = vunpack.c.h.b16 %v162
    %v1235 = vunpack.c.l.b16 %v163
    %v1236 = vunpack.c.h.b16 %v163
    %v1237 = vunpack.c.l.b16 %v164
    %v1238 = vunpack.c.h.b16 %v164
    %v1239 = vunpack.c.l.b16 %v165
    %v1240 = vunpack.c.h.b16 %v165
    %v1241 = vunpack.c.l.b16 %v166
    %v1242 = vunpack.c.h.b16 %v166
    %v1243 = vunpack.c.l.b16 %v167
    %v1244 = vunpack.c.h.b16 %v167
    %v1245 = vunpack.c.l.b16 %v168
    %v1246 = vunpack.c.h.b16 %v168
    %v1247 = vunpack.c.l.b16 %v169
    %v1248 = vunpack.c.h.b16 %v169
    %v1249 = vunpack.c.l.b16 %v170
    %v1250 = vunpack.c.h.b16 %v170
    %v1251 = vunpack.c.l.b16 %v171
    %v1252 = vunpack.c.h.b16 %v171
    %v1253 = vunpack.c.l.b16 %v172
    %v1254 = vunpack.c.h.b16 %v172
    %v1255 = vunpack.c.l.b16 %v173
    %v1256 = vunpack.c.h.b16 %v173
    %v1257 = vunpack.c.l.b16 %v174
    %v1258 = vunpack.c.h.b16 %v174
    %v1259 = vunpack.c.l.b16 %v175
    %v1260 = vunpack.c.h.b16 %v175
    %v1261 = vunpack.c.l.b16 %v176
    %v1262 = vunpack.c.h.b16 %v176
    %v1263 = vunpack.c.l.b16 %v177
    %v1264 = vunpack.c.h.b16 %v177
    %v1265 = vunpack.c.l.b16 %v178
    %v1266 = vunpack.c.h.b16 %v178
    %v1267 = vunpack.c.l.b16 %v179
    %v1268 = vunpack.c.h.b16 %v179
    %v1269 = vunpack.c.l.b16 %v180
    %v1270 = vunpack.c.h.b16 %v180
    %v1271 = vunpack.c.l.b16 %v181
    %v1272 = vunpack.c.h.b16 %v181
    %v1273 = vunpack.c.l.b16 %v182
    %v1274 = vunpack.c.h.b16 %v182
    %v1275 = vunpack.c.l.b16 %v183
    %v1276 = vunpack.c.h.b16 %v183
    %v1277 = vunpack.c.l.b16 %v184
    %v1278 = vunpack.c.h.b16 %v184
    %v1279 = vunpack.c.l.b16 %v185
    %v1280 = vunpack.c.h.b16 %v185
    %v1281 = vunpack.c.l.b16 %v186
    %v1282 = vunpack.c.h.b16 %v186
    %v1283 = vunpack.c.l.b16 %v187
    %v1284 = vunpack.c.h.b16 %v187
    %v1285 = vunpack.c.l.b16 %v188
    %v1286 = vunpack.c.h.b16 %v188
    %v1287 = vunpack.c.l.b16 %v189
    %v1288 = vunpack.c.h.b16 %v189
    %v1289 = vunpack.c.l.b16 %v190
    %v1290 = vunpack.c.h.b16 %v190
    %v1291 = vunpack.c.l.b16 %v191
    %v1292 = vunpack.c.h.b16 %v191
    %v1293 = vunpack.c.l.b16 %v192
    %v1294 = vunpack.c.h.b16 %v192
    %v1295 = vunpack.c.l.b16 %v193
    %v1296 = vunpack.c.h.b16 %v193
    %v1297 = vunpack.c.l.b16 %v194
    %v1298 = vunpack.c.h.b16 %v194
    %v1299 = vunpack.c.l.b16 %v195
    %v1300 = vunpack.c.h.b16 %v195
    %v1301 = vunpack.c.l.b16 %v196
    %v1302 = vunpack.c.h.b16 %v196
    %v1303 = vunpack.c.l.b16 %v197
    %v1304 = vunpack.c.h.b16 %v197
    %v1305 = vunpack.c.l.b16 %v198
    %v1306 = vunpack.c.h.b16 %v198
    %v1307 = vunpack.c.l.b16 %v199
    %v1308 = vunpack.c.h.b16 %v199
    %v1309 = vunpack.c.l.b16 %v200
    %v1310 = vunpack.c.h.b16 %v200
    %v1311 = vunpack.c.l.b16 %v201
    %v1312 = vunpack.c.h.b16 %v201
    %v1313 = vunpack.c.l.b16 %v202
    %v1314 = vunpack.c.h.b16 %v202
    %v1315 = vunpack.c.l.b16 %v203
    %v1316 = vunpack.c.h.b16 %v203
    %v1317 = vunpack.c.l.b16 %v204
    %v1318 = vunpack.c.h.b16 %v204
    %v1319 = vunpack.c.l.b16 %v205
    %v1320 = vunpack.c.h.b16 %v205
    %v1321 = vunpack.c.l.b16 %v206
    %v1322 = vunpack.c.h.b16 %v206
    %v1323 = vunpack.c.l.b16 %v207
    %v1324 = vunpack.c.h.b16 %v207
    %v1325 = vunpack.c.l.b16 %v208
    %v1326 = vunpack.c.h.b16 %v208
    %v1327 = vunpack.c.l.b16 %v209
    %v1328 = vunpack.c.h.b16 %v209
    %v1329 = vunpack.c.l.b16 %v210
    %v1330 = vunpack.c.h.b16 %v210
    %v1331 = vunpack.c.l.b16 %v211
    %v1332 = vunpack.c.h.b16 %v211
    %v1333 = vunpack.c.l.b16 %v212
    %v1334 = vunpack.c.h.b16 %v212
    %v1335 = vunpack.c.l.b16 %v213
    %v1336 = vunpack.c.h.b16 %v213
    %v1337 = vunpack.c.l.b16 %v214
    %v1338 = vunpack.c.h.b16 %v214
    %v1339 = vunpack.c.l.b16 %v215
    %v1340 = vunpack.c.h.b16 %v215
    %v1341 = vunpack.c.l.b16 %v216
    %v1342 = vunpack.c.h.b16 %v216
    %v1343 = vunpack.c.l.b16 %v217
    %v1344 = vunpack.c.h.b16 %v217
    %v1345 = vunpack.c.l.b16 %v218
    %v1346 = vunpack.c.h.b16 %v218
    %v1347 = vunpack.c.l.b16 %v219
    %v1348 = vunpack.c.h.b16 %v219
    %v1349 = vunpack.c.l.b16 %v220
    %v1350 = vunpack.c.h.b16 %v220
    %v1351 = vunpack.c.l.b16 %v221
    %v1352 = vunpack.c.h.b16 %v221
    %v1353 = vunpack.c.l.b16 %v222
    %v1354 = vunpack.c.h.b16 %v222
    %v1355 = vunpack.c.l.b16 %v223
    %v1356 = vunpack.c.h.b16 %v223
    %v1357 = vunpack.c.l.b16 %v224
    %v1358 = vunpack.c.h.b16 %v224
    %v1359 = vunpack.c.l.b16 %v225
    %v1360 = vunpack.c.h.b16 %v225
    %v1361 = vunpack.c.l.b16 %v226
    %v1362 = vunpack.c.h.b16 %v226
    %v1363 = vunpack.c.l.b16 %v227
    %v1364 = vunpack.c.h.b16 %v227
    %v1365 = vunpack.c.l.b16 %v228
    %v1366 = vunpack.c.h.b16 %v228
    %v1367 = vunpack.c.l.b16 %v229
    %v1368 = vunpack.c.h.b16 %v229
    %v1369 = vunpack.c.l.b16 %v230
    %v1370 = vunpack.c.h.b16 %v230
    %v1371 = vunpack.c.l.b16 %v231
    %v1372 = vunpack.c.h.b16 %v231
    %v1373 = vunpack.c.l.b16 %v232
    %v1374 = vunpack.c.h.b16 %v232
    %v1375 = vunpack.c.l.b16 %v233
    %v1376 = vunpack.c.h.b16 %v233
    %v1377 = vunpack.c.l.b16 %v234
    %v1378 = vunpack.c.h.b16 %v234
    %v1379 = vunpack.c.l.b16 %v235
    %v1380 = vunpack.c.h.b16 %v235
    %v1381 = vunpack.c.l.b16 %v236
    %v1382 = vunpack.c.h.b16 %v236
    %v1383 = vunpack.c.l.b16 %v237
    %v1384 = vunpack.c.h.b16 %v237
    %v1385 = vunpack.c.l.b16 %v238
    %v1386 = vunpack.c.h.b16 %v238
    %v1387 = vunpack.c.l.b16 %v239
    %v1388 = vunpack.c.h.b16 %v239
    %v1389 = vunpack.c.l.b16 %v240
    %v1390 = vunpack.c.h.b16 %v240
    %v1391 = vunpack.c.l.b16 %v241
    %v1392 = vunpack.c.h.b16 %v241
    %v1393 = vunpack.c.l.b16 %v242
    %v1394 = vunpack.c.h.b16 %v242
    %v1395 = vunpack.c.l.b16 %v243
    %v1396 = vunpack.c.h.b16 %v243
    %v1397 = vunpack.c.l.b16 %v244
    %v1398 = vunpack.c.h.b16 %v244
    %v1399 = vunpack.c.l.b16 %v245
    %v1400 = vunpack.c.h.b16 %v245
    %v1401 = vunpack.c.l.b16 %v246
    %v1402 = vunpack.c.h.b16 %v246
    %v1403 = vunpack.c.l.b16 %v247
    %v1404 = vunpack.c.h.b16 %v247
    %v1405 = vunpack.c.l.b16 %v248
    %v1406 = vunpack.c.h.b16 %v248
    %v1407 = vunpack.c.l.b16 %v249
    %v1408 = vunpack.c.h.b16 %v249
    %v1409 = vunpack.c.l.b16 %v250
    %v1410 = vunpack.c.h.b16 %v250
    %v1411 = vunpack.c.l.b16 %v251
    %v1412 = vunpack.c.h.b16 %v251
    %v1413 = vunpack.c.l.b16 %v252
    %v1414 = vunpack.c.h.b16 %v252
    %v1415 = vunpack.c.l.b16 %v253
    %v1416 = vunpack.c.h.b16 %v253
    %v1417 = vunpack.c.l.b16 %v254
    %v1418 = vunpack.c.h.b16 %v254
    %v1419 = vunpack.c.l.b16 %v255
    %v1420 = vunpack.c.h.b16 %v255
    %v1421 = vunpack.c.l.b16 %v256
    %v1422 = vunpack.c.h.b16 %v256
    %v1423 = vunpack.c.l.b16 %v257
    %v1424 = vunpack.c.h.b16 %v257
    %v1425 = vunpack.c.l.b16 %v258
    %v1426 = vunpack.c.h.b16 %v258
    %v1427 = vunpack.c.l.b16 %v259
    %v1428 = vunpack.c.h.b16 %v259
    %v1429 = vunpack.c.l.b16 %v260
    %v1430 = vunpack.c.h.b16 %v260
    %v1431 = vunpack.c.l.b16 %v261
    %v1432 = vunpack.c.h.b16 %v261
    %v1433 = vunpack.c.l.b16 %v262
    %v1434 = vunpack.c.h.b16 %v262
    %v1435 = vunpack.c.l.b16 %v263
    %v1436 = vunpack.c.h.b16 %v263
    %v1437 = vunpack.c.l.b16 %v264
    %v1438 = vunpack.c.h.b16 %v264
    %v1439 = vunpack.c.l.b16 %v265
    %v1440 = vunpack.c.h.b16 %v265
    %v1441 = vunpack.c.l.b16 %v266
    %v1442 = vunpack.c.h.b16 %v266
    %v1443 = vunpack.c.l.b16 %v267
    %v1444 = vunpack.c.h.b16 %v267
    %v1445 = vunpack.c.l.b16 %v268
    %v1446 = vunpack.c.h.b16 %v268
    %v1447 = vunpack.c.l.b16 %v269
    %v1448 = vunpack.c.h.b16 %v269
    %v1449 = vunpack.c.l.b16 %v270
    %v1450 = vunpack.c.h.b16 %v270
    %v1451 = vunpack.c.l.b16 %v271
    %v1452 = vunpack.c.h.b16 %v271
    %v1453 = vunpack.c.l.b16 %v272
    %v1454 = vunpack.c.h.b16 %v272
    %v1455 = vunpack.c.l.b16 %v273
    %v1456 = vunpack.c.h.b16 %v273
    %v1457 = vunpack.c.l.b16 %v274
    %v1458 = vunpack.c.h.b16 %v274
    %v1459 = vunpack.c.l.b16 %v275
    %v1460 = vunpack.c.h.b16 %v275
    %v1461 = vunpack.c.l.b16 %v276
    %v1462 = vunpack.c.h.b16 %v276
    %v1463 = vunpack.c.l.b16 %v277
    %v1464 = vunpack.c.h.b16 %v277
    %v1465 = vunpack.c.l.b16 %v278
    %v1466 = vunpack.c.h.b16 %v278
    %v1467 = vunpack.c.l.b16 %v279
    %v1468 = vunpack.c.h.b16 %v279
    %v1469 = vunpack.c.l.b16 %v280
    %v1470 = vunpack.c.h.b16 %v280
    %v1471 = vunpack.c.l.b16 %v281
    %v1472 = vunpack.c.h.b16 %v281
    %v1473 = vunpack.c.l.b16 %v282
    %v1474 = vunpack.c.h.b16 %v282
    %v1475 = vunpack.c.l.b16 %v283
    %v1476 = vunpack.c.h.b16 %v283
    %v1477 = vunpack.c.l.b16 %v284
    %v1478 = vunpack.c.h.b16 %v284
    %v1479 = vunpack.c.l.b16 %v285
    %v1480 = vunpack.c.h.b16 %v285
    %v1481 = vunpack.c.l.b16 %v286
    %v1482 = vunpack.c.h.b16 %v286
    %v1483 = vunpack.c.l.b16 %v287
    %v1484 = vunpack.c.h.b16 %v287
    %v1485 = vunpack.c.l.b16 %v288
    %v1486 = vunpack.c.h.b16 %v288
    %v1487 = vunpack.c.l.b16 %v289
    %v1488 = vunpack.c.h.b16 %v289
    %v1489 = vunpack.c.l.b16 %v290
    %v1490 = vunpack.c.h.b16 %v290
    %v1491 = vunpack.c.l.b16 %v291
    %v1492 = vunpack.c.h.b16 %v291
    %v1493 = vunpack.c.l.b16 %v292
    %v1494 = vunpack.c.h.b16 %v292
    %v1495 = vunpack.c.l.b16 %v293
    %v1496 = vunpack.c.h.b16 %v293
    %v1497 = vunpack.c.l.b16 %v294
    %v1498 = vunpack.c.h.b16 %v294
    %v1499 = vunpack.c.l.b16 %v295
    %v1500 = vunpack.c.h.b16 %v295
    %v1501 = vunpack.c.l.b16 %v296
    %v1502 = vunpack.c.h.b16 %v296
    %v1503 = vunpack.c.l.b16 %v297
    %v1504 = vunpack.c.h.b16 %v297
    %v1505 = vunpack.c.l.b16 %v298
    %v1506 = vunpack.c.h.b16 %v298
    %v1507 = vunpack.c.l.b16 %v299
    %v1508 = vunpack.c.h.b16 %v299
    %v1509 = vunpack.c.l.b16 %v300
    %v1510 = vunpack.c.h.b16 %v300
    %v1511 = vunpack.c.l.b16 %v301
    %v1512 = vunpack.c.h.b16 %v301
    %v1513 = vunpack.c.l.b16 %v302
    %v1514 = vunpack.c.h.b16 %v302
    %v1515 = vunpack.c.l.b16 %v303
    %v1516 = vunpack.c.h.b16 %v303
    %v1517 = vunpack.c.l.b16 %v304
    %v1518 = vunpack.c.h.b16 %v304
    %v1519 = vunpack.c.l.b16 %v305
    %v1520 = vunpack.c.h.b16 %v305
    %v1521 = vunpack.c.l.b16 %v306
    %v1522 = vunpack.c.h.b16 %v306
    %v1523 = vunpack.c.l.b16 %v307
    %v1524 = vunpack.c.h.b16 %v307
    %v1525 = vunpack.c.l.b16 %v308
    %v1526 = vunpack.c.h.b16 %v308
    %v1527 = vunpack.c.l.b16 %v309
    %v1528 = vunpack.c.h.b16 %v309
    %v1529 = vunpack.c.l.b16 %v310
    %v1530 = vunpack.c.h.b16 %v310
    %v1531 = vunpack.c.l.b16 %v311
    %v1532 = vunpack.c.h.b16 %v311
    %v1533 = vunpack.c.l.b16 %v312
    %v1534 = vunpack.c.h.b16 %v312
    %v1535 = vunpack.c.l.b16 %v313
    %v1536 = vunpack.c.h.b16 %v313
    %v1537 = vunpack.c.l.b16 %v314
    %v1538 = vunpack.c.h.b16 %v314
    %v1539 = vunpack.c.l.b16 %v315
    %v1540 = vunpack.c.h.b16 %v315
    %v1541 = vunpack.c.l.b16 %v316
    %v1542 = vunpack.c.h.b16 %v316
    %v1543 = vunpack.c.l.b16 %v317
    %v1544 = vunpack.c.h.b16 %v317
    %v1545 = vunpack.c.l.b16 %v318
    %v1546 = vunpack.c.h.b16 %v318
    %v1547 = vunpack.c.l.b16 %v319
    %v1548 = vunpack.c.h.b16 %v319
    %v1549 = vunpack.c.l.b16 %v320
    %v1550 = vunpack.c.h.b16 %v320
    %v1551 = vunpack.c.l.b16 %v321
    %v1552 = vunpack.c.h.b16 %v321
    %v1553 = vunpack.c.l.b16 %v322
    %v1554 = vunpack.c.h.b16 %v322
    %v1555 = vunpack.c.l.b16 %v323
    %v1556 = vunpack.c.h.b16 %v323
    %v1557 = vunpack.c.l.b16 %v324
    %v1558 = vunpack.c.h.b16 %v324
    %v1559 = vunpack.c.l.b16 %v325
    %v1560 = vunpack.c.h.b16 %v325
    %v1561 = vunpack.c.l.b16 %v326
    %v1562 = vunpack.c.h.b16 %v326
    %v1563 = vunpack.c.l.b16 %v327
    %v1564 = vunpack.c.h.b16 %v327
    %v1565 = vunpack.c.l.b16 %v328
    %v1566 = vunpack.c.h.b16 %v328
    %v1567 = vunpack.c.l.b16 %v329
    %v1568 = vunpack.c.h.b16 %v329
    %v1569 = vunpack.c.l.b16 %v330
    %v1570 = vunpack.c.h.b16 %v330
    %v1571 = vunpack.c.l.b16 %v331
    %v1572 = vunpack.c.h.b16 %v331
    %v1573 = vunpack.c.l.b16 %v332
    %v1574 = vunpack.c.h.b16 %v332
    %v1575 = vunpack.c.l.b16 %v333
    %v1576 = vunpack.c.h.b16 %v333
    %v1577 = vunpack.c.l.b16 %v334
    %v1578 = vunpack.c.h.b16 %v334
    %v1579 = vunpack.c.l.b16 %v335
    %v1580 = vunpack.c.h.b16 %v335
    %v1581 = vunpack.c.l.b16 %v336
    %v1582 = vunpack.c.h.b16 %v336
    %v1583 = vunpack.c.l.b16 %v337
    %v1584 = vunpack.c.h.b16 %v337
    %v1585 = vunpack.c.l.b16 %v338
    %v1586 = vunpack.c.h.b16 %v338
    %v1587 = vunpack.c.l.b16 %v339
    %v1588 = vunpack.c.h.b16 %v339
    %v1589 = vunpack.c.l.b16 %v340
    %v1590 = vunpack.c.h.b16 %v340
    %v1591 = vunpack.c.l.b16 %v341
    %v1592 = vunpack.c.h.b16 %v341
    %v1593 = vunpack.c.l.b16 %v342
    %v1594 = vunpack.c.h.b16 %v342
    %v1595 = vunpack.c.l.b16 %v343
    %v1596 = vunpack.c.h.b16 %v343
    %v1597 = vunpack.c.l.b16 %v344
    %v1598 = vunpack.c.h.b16 %v344
    %v1599 = vunpack.c.l.b16 %v345
    %v1600 = vunpack.c.h.b16 %v345
    %v1601 = vunpack.c.l.b16 %v346
    %v1602 = vunpack.c.h.b16 %v346
    %v1603 = vunpack.c.l.b16 %v347
    %v1604 = vunpack.c.h.b16 %v347
    %v1605 = vunpack.c.l.b16 %v348
    %v1606 = vunpack.c.h.b16 %v348
    %v1607 = vunpack.c.l.b16 %v349
    %v1608 = vunpack.c.h.b16 %v349
    %v1609 = vunpack.c.l.b16 %v350
    %v1610 = vunpack.c.h.b16 %v350
    %v1611 = vunpack.c.l.b16 %v351
    %v1612 = vunpack.c.h.b16 %v351
    %v1613 = vunpack.c.l.b16 %v352
    %v1614 = vunpack.c.h.b16 %v352
    %v1615 = vunpack.c.l.b16 %v353
    %v1616 = vunpack.c.h.b16 %v353
    %v1617 = vunpack.c.l.b16 %v354
    %v1618 = vunpack.c.h.b16 %v354
    %v1619 = vunpack.c.l.b16 %v355
    %v1620 = vunpack.c.h.b16 %v355
    %v1621 = vunpack.c.l.b16 %v356
    %v1622 = vunpack.c.h.b16 %v356
    %v1623 = vunpack.c.l.b16 %v357
    %v1624 = vunpack.c.h.b16 %v357
    %v1625 = vunpack.c.l.b16 %v358
    %v1626 = vunpack.c.h.b16 %v358
    %v1627 = vunpack.c.l.b16 %v359
    %v1628 = vunpack.c.h.b16 %v359
    %v1629 = vunpack.c.l.b16 %v360
    %v1630 = vunpack.c.h.b16 %v360
    %v1631 = vunpack.c.l.b16 %v361
    %v1632 = vunpack.c.h.b16 %v361
    %v1633 = vunpack.c.l.b16 %v362
    %v1634 = vunpack.c.h.b16 %v362
    %v1635 = vunpack.c.l.b16 %v363
    %v1636 = vunpack.c.h.b16 %v363
    %v1637 = vunpack.c.l.b16 %v364
    %v1638 = vunpack.c.h.b16 %v364
    %v1639 = vunpack.c.l.b16 %v365
    %v1640 = vunpack.c.h.b16 %v365
    %v1641 = vunpack.c.l.b16 %v366
    %v1642 = vunpack.c.h.b16 %v366
    %v1643 = vunpack.c.l.b16 %v367
    %v1644 = vunpack.c.h.b16 %v367
    %v1645 = vunpack.c.l.b16 %v368
    %v1646 = vunpack.c.h.b16 %v368
    %v1647 = vunpack.c.l.b16 %v369
    %v1648 = vunpack.c.h.b16 %v369
    %v1649 = vunpack.c.l.b16 %v370
    %v1650 = vunpack.c.h.b16 %v370
    %v1651 = vunpack.c.l.b16 %v371
    %v1652 = vunpack.c.h.b16 %v371
    %v1653 = vunpack.c.l.b16 %v372
    %v1654 = vunpack.c.h.b16 %v372
    %v1655 = vunpack.c.l.b16 %v373
    %v1656 = vunpack.c.h.b16 %v373
    %v1657 = vunpack.c.l.b16 %v374
    %v1658 = vunpack.c.h.b16 %v374
    %v1659 = vunpack.c.l.b16 %v375
    %v1660 = vunpack.c.h.b16 %v375
    %v1661 = vunpack.c.l.b16 %v376
    %v1662 = vunpack.c.h.b16 %v376
    %v1663 = vunpack.c.l.b16 %v377
    %v1664 = vunpack.c.h.b16 %v377
    %v1665 = vunpack.c.l.b16 %v378
    %v1666 = vunpack.c.h.b16 %v378
    %v1667 = vunpack.c.l.b16 %v379
    %v1668 = vunpack.c.h.b16 %v379
    %v1669 = vunpack.c.l.b16 %v380
    %v1670 = vunpack.c.h.b16 %v380
    %v1671 = vunpack.c.l.b16 %v381
    %v1672 = vunpack.c.h.b16 %v381
    %v1673 = vunpack.c.l.b16 %v382
    %v1674 = vunpack.c.h.b16 %v382
    %v1675 = vunpack.c.l.b16 %v383
    %v1676 = vunpack.c.h.b16 %v383
    %v1677 = vunpack.c.l.b16 %v384
    %v1678 = vunpack.c.h.b16 %v384
    %v1679 = vunpack.c.l.b16 %v385
    %v1680 = vunpack.c.h.b16 %v385
    %v1681 = vunpack.c.l.b16 %v386
    %v1682 = vunpack.c.h.b16 %v386
    %v1683 = vunpack.c.l.b16 %v387
    %v1684 = vunpack.c.h.b16 %v387
    %v1685 = vunpack.c.l.b16 %v388
    %v1686 = vunpack.c.h.b16 %v388
    %v1687 = vunpack.c.l.b16 %v389
    %v1688 = vunpack.c.h.b16 %v389
    %v1689 = vunpack.c.l.b16 %v390
    %v1690 = vunpack.c.h.b16 %v390
    %v1691 = vunpack.c.l.b16 %v391
    %v1692 = vunpack.c.h.b16 %v391
    %v1693 = vunpack.c.l.b16 %v392
    %v1694 = vunpack.c.h.b16 %v392
    %v1695 = vunpack.c.l.b16 %v393
    %v1696 = vunpack.c.h.b16 %v393
    %v1697 = vunpack.c.l.b16 %v394
    %v1698 = vunpack.c.h.b16 %v394
    %v1699 = vunpack.c.l.b16 %v395
    %v1700 = vunpack.c.h.b16 %v395
    %v1701 = vunpack.c.l.b16 %v396
    %v1702 = vunpack.c.h.b16 %v396
    %v1703 = vunpack.c.l.b16 %v397
    %v1704 = vunpack.c.h.b16 %v397
    %v1705 = vunpack.c.l.b16 %v398
    %v1706 = vunpack.c.h.b16 %v398
    %v1707 = vunpack.c.l.b16 %v399
    %v1708 = vunpack.c.h.b16 %v399
    %v1709 = vunpack.c.l.b16 %v400
    %v1710 = vunpack.c.h.b16 %v400
    %v1711 = vunpack.c.l.b16 %v401
    %v1712 = vunpack.c.h.b16 %v401
    %v1713 = vunpack.c.l.b16 %v402
    %v1714 = vunpack.c.h.b16 %v402
    %v1715 = vunpack.c.l.b16 %v403
    %v1716 = vunpack.c.h.b16 %v403
    %v1717 = vunpack.c.l.b16 %v404
    %v1718 = vunpack.c.h.b16 %v404
    %v1719 = vunpack.c.l.b16 %v405
    %v1720 = vunpack.c.h.b16 %v405
    %v1721 = vunpack.c.l.b16 %v406
    %v1722 = vunpack.c.h.b16 %v406
    %v1723 = vunpack.c.l.b16 %v407
    %v1724 = vunpack.c.h.b16 %v407
    %v1725 = vunpack.c.l.b16 %v408
    %v1726 = vunpack.c.h.b16 %v408
    %v1727 = vunpack.c.l.b16 %v409
    %v1728 = vunpack.c.h.b16 %v409
    %v1729 = vunpack.c.l.b16 %v410
    %v1730 = vunpack.c.h.b16 %v410
    %v1731 = vunpack.c.l.b16 %v411
    %v1732 = vunpack.c.h.b16 %v411
    %v1733 = vunpack.c.l.b16 %v412
    %v1734 = vunpack.c.h.b16 %v412
    %v1735 = vunpack.c.l.b16 %v413
    %v1736 = vunpack.c.h.b16 %v413
    %v1737 = vunpack.c.l.b16 %v414
    %v1738 = vunpack.c.h.b16 %v414
    %v1739 = vunpack.c.l.b16 %v415
    %v1740 = vunpack.c.h.b16 %v415
    %v1741 = vunpack.c.l.b16 %v416
    %v1742 = vunpack.c.h.b16 %v416
    %v1743 = vunpack.c.l.b16 %v417
    %v1744 = vunpack.c.h.b16 %v417
    %v1745 = vunpack.c.l.b16 %v418
    %v1746 = vunpack.c.h.b16 %v418
    %v1747 = vunpack.c.l.b16 %v419
    %v1748 = vunpack.c.h.b16 %v419
    %v1749 = vunpack.c.l.b16 %v420
    %v1750 = vunpack.c.h.b16 %v420
    %v1751 = vunpack.c.l.b16 %v421
    %v1752 = vunpack.c.h.b16 %v421
    %v1753 = vunpack.c.l.b16 %v422
    %v1754 = vunpack.c.h.b16 %v422
    %v1755 = vunpack.c.l.b16 %v423
    %v1756 = vunpack.c.h.b16 %v423
    %v1757 = vunpack.c.l.b16 %v424
    %v1758 = vunpack.c.h.b16 %v424
    %v1759 = vunpack.c.l.b16 %v425
    %v1760 = vunpack.c.h.b16 %v425
    %v1761 = vunpack.c.l.b16 %v426
    %v1762 = vunpack.c.h.b16 %v426
    %v1763 = vunpack.c.l.b16 %v427
    %v1764 = vunpack.c.h.b16 %v427
    %v1765 = vunpack.c.l.b16 %v428
    %v1766 = vunpack.c.h.b16 %v428
    %v1767 = vunpack.c.l.b16 %v429
    %v1768 = vunpack.c.h.b16 %v429
    %v1769 = vunpack.c.l.b16 %v430
    %v1770 = vunpack.c.h.b16 %v430
    %v1771 = vunpack.c.l.b16 %v431
    %v1772 = vunpack.c.h.b16 %v431
    %v1773 = vunpack.c.l.b16 %v432
    %v1774 = vunpack.c.h.b16 %v432
    %v1775 = vunpack.c.l.b16 %v433
    %v1776 = vunpack.c.h.b16 %v433
    %v1777 = vunpack.c.l.b16 %v434
    %v1778 = vunpack.c.h.b16 %v434
    %v1779 = vunpack.c.l.b16 %v435
    %v1780 = vunpack.c.h.b16 %v435
    %v1781 = vunpack.c.l.b16 %v436
    %v1782 = vunpack.c.h.b16 %v436
    %v1783 = vunpack.c.l.b16 %v437
    %v1784 = vunpack.c.h.b16 %v437
    %v1785 = vunpack.c.l.b16 %v438
    %v1786 = vunpack.c.h.b16 %v438
    %v1787 = vunpack.c.l.b16 %v439
    %v1788 = vunpack.c.h.b16 %v439
    %v1789 = vunpack.c.l.b16 %v440
    %v1790 = vunpack.c.h.b16 %v440
    %v1791 = vunpack.c.l.b16 %v441
    %v1792 = vunpack.c.h.b16 %v441
    %v1793 = vunpack.c.l.b16 %v442
    %v1794 = vunpack.c.h.b16 %v442
    %v1795 = vunpack.c.l.b16 %v443
    %v1796 = vunpack.c.h.b16 %v443
    %v1797 = vunpack.c.l.b16 %v444
    %v1798 = vunpack.c.h.b16 %v444
    %v1799 = vunpack.c.l.b16 %v445
    %v1800 = vunpack.c.h.b16 %v445
    %v1801 = vunpack.c.l.b16 %v446
    %v1802 = vunpack.c.h.b16 %v446
    %v1803 = vunpack.c.l.b16 %v447
    %v1804 = vunpack.c.h.b16 %v447
    %v1805 = vunpack.c.l.b16 %v448
    %v1806 = vunpack.c.h.b16 %v448
    %v1807 = vunpack.c.l.b16 %v449
    %v1808 = vunpack.c.h.b16 %v449
    %v1809 = vunpack.c.l.b16 %v450
    %v1810 = vunpack.c.h.b16 %v450
    %v1811 = vunpack.c.l.b16 %v451
    %v1812 = vunpack.c.h.b16 %v451
    %v1813 = vunpack.c.l.b16 %v452
    %v1814 = vunpack.c.h.b16 %v452
    %v1815 = vpack.c.b16 %v953, %v951
    %v1816 = vpack.c.b16 %v954, %v952
    %v1817 = vpack.c.b16 %v957, %v955
    %v1818 = vpack.c.b16 %v958, %v956
    %v1819 = vpack.c.b16 %v961, %v959
    %v1820 = vpack.c.b16 %v962, %v960
    %v1821 = vpack.c.b16 %v965, %v963
    %v1822 = vpack.c.b16 %v966, %v964
    %v1823 = vpack.c.b16 %v969, %v967
    %v1824 = vpack.c.b16 %v970, %v968
    %v1825 = vpack.c.b16 %v973, %v971
    %v1826 = vpack.c.b16 %v974, %v972
    %v1827 = vpack.c.b16 %v977, %v975
    %v1828 = vpack.c.b16 %v978, %v976
    %v1829 = vpack.c.b16 %v981, %v979
    %v1830 = vpack.c.b16 %v982, %v980
    %v1831 = vpack.c.b16 %v985, %v983
    %v1832 = vpack.c.b16 %v986, %v984
    %v1833 = vpack.c.b16 %v989, %v987
    %v1834 = vpack.c.b16 %v990, %v988
    %v1835 = vpack.c.b16 %v993, %v991
    %v1836 = vpack.c.b16 %v994, %v992
    %v1837 = vpack.c.b16 %v997, %v995
    %v1838 = vpack.c.b16 %v998, %v996
    %v1839 = vpack.c.b16 %v1001, %v999
    %v1840 = vpack.c.b16 %v1002, %v1000
    %v1841 = vpack.c.b16 %v1005, %v1003
    %v1842 = vpack.c.b16 %v1006, %v1004
    %v1843 = vpack.c.b16 %v1009, %v1007
    %v1844 = vpack.c.b16 %v1010, %v1008
    %v1845 = vpack.c.b16 %v1013, %v1011
    %v1846 = vpack.c.b16 %v1014, %v1012
    %v1847 = vpack.c.b16 %v1017, %v1015
    %v1848 = vpack.c.b16 %v1018, %v1016
    %v1849 = vpack.c.b16 %v1021, %v1019
    %v1850 = vpack.c.b16 %v1022, %v1020
    %v1851 = vpack.c.b16 %v1025, %v1023
    %v1852 = vpack.c.b16 %v1026, %v1024
    %v1853 = vpack.c.b16 %v1029, %v1027
    %v1854 = vpack.c.b16 %v1030, %v1028
    %v1855 = vpack.c.b16 %v1033, %v1031
    %v1856 = vpack.c.b16 %v1034, %v1032
    %v1857 = vpack.c.b16 %v1037, %v1035
    %v1858 = vpack.c.b16 %v1038, %v1036
    %v1859 = vpack.c.b16 %v1041, %v1039
    %v1860 = vpack.c.b16 %v1042, %v1040
    %v1861 = vpack.c.b16 %v1045, %v1043
    %v1862 = vpack.c.b16 %v1046, %v1044
    %v1863 = vpack.c.b16 %v1049, %v1047
    %v1864 = vpack.c.b16 %v1050, %v1048
    %v1865 = vpack.c.b16 %v1053, %v1051
    %v1866 = vpack.c.b16 %v1054, %v1052
    %v1867 = vpack.c.b16 %v1057, %v1055
    %v1868 = vpack.c.b16 %v1058, %v1056
    %v1869 = vpack.c.b16 %v1061, %v1059
    %v1870 = vpack.c.b16 %v1062, %v1060
    %v1871 = vpack.c.b16 %v1065, %v1063
    %v1872 = vpack.c.b16 %v1066, %v1064
    %v1873 = vpack.c.b16 %v1069, %v1067
    %v1874 = vpack.c.b16 %v1070, %v1068
    %v1875 = vpack.c.b16 %v1073, %v1071
    %v1876 = vpack.c.b16 %v1074, %v1072
    %v1877 = vpack.c.b16 %v1077, %v1075
    %v1878 = vpack.c.b16 %v1078, %v1076
    %v1879 = vpack.c.b16 %v1081, %v1079
    %v1880 = vpack.c.b16 %v1082, %v1080
    %v1881 = vpack.c.b16 %v1085, %v1083
    %v1882 = vpack.c.b16 %v1086, %v1084
    %v1883 = vpack.c.b16 %v1089, %v1087
    %v1884 = vpack.c.b16 %v1090, %v1088
    %v1885 = vpack.c.b16 %v1093, %v1091
    %v1886 = vpack.c.b16 %v1094, %v1092
    %v1887 = vpack.c.b16 %v1097, %v1095
    %v1888 = vpack.c.b16 %v1098, %v1096
    %v1889 = vpack.c.b16 %v1101, %v1099
    %v1890 = vpack.c.b16 %v1102, %v1100
    %v1891 = vpack.c.b16 %v1105, %v1103
    %v1892 = vpack.c.b16 %v1106, %v1104
    %v1893 = vpack.c.b16 %v1109, %v1107
    %v1894 = vpack.c.b16 %v1110, %v1108
    %v1895 = vpack.c.b16 %v1113, %v1111
    %v1896 = vpack.c.b16 %v1114, %v1112
    %v1897 = vpack.c.b16 %v1117, %v1115
    %v1898 = vpack.c.b16 %v1118, %v1116
    %v1899 = vpack.c.b16 %v1121, %v1119
    %v1900 = vpack.c.b16 %v1122, %v1120
    %v1901 = vpack.c.b16 %v1125, %v1123
    %v1902 = vpack.c.b16 %v1126, %v1124
    %v1903 = vpack.c.b16 %v1129, %v1127
    %v1904 = vpack.c.b16 %v1130, %v1128
    %v1905 = vpack.c.b16 %v1133, %v1131
    %v1906 = vpack.c.b16 %v1134, %v1132
    %v1907 = vpack.c.b16 %v1137, %v1135
    %v1908 = vpack.c.b16 %v1138, %v1136
    %v1909 = vpack.c.b16 %v1141, %v1139
    %v1910 = vpack.c.b16 %v1142, %v1140
    %v1911 = vpack.c.b16 %v1145, %v1143
    %v1912 = vpack.c.b16 %v1146, %v1144
    %v1913 = vpack.c.b16 %v1149, %v1147
    %v1914 = vpack.c.b16 %v1150, %v1148
    %v1915 = vpack.c.b16 %v1153, %v1151
    %v1916 = vpack.c.b16 %v1154, %v1152
    %v1917 = vpack.c.b16 %v1157, %v1155
    %v1918 = vpack.c.b16 %v1158, %v1156
    %v1919 = vpack.c.b16 %v1161, %v1159
    %v1920 = vpack.c.b16 %v1162, %v1160
    %v1921 = vpack.c.b16 %v1165, %v1163
    %v1922 = vpack.c.b16 %v1166, %v1164
    %v1923 = vpack.c.b16 %v1169, %v1167
    %v1924 = vpack.c.b16 %v1170, %v1168
    %v1925 = vpack.c.b16 %v1173, %v1171
    %v1926 = vpack.c.b16 %v1174, %v1172
    %v1927 = vpack.c.b16 %v1177, %v1175
    %v1928 = vpack.c.b16 %v1178, %v1176
    %v1929 = vpack.c.b16 %v1181, %v1179
    %v1930 = vpack.c.b16 %v1182, %v1180
    %v1931 = vpack.c.b16 %v1185, %v1183
    %v1932 = vpack.c.b16 %v1186, %v1184
    %v1933 = vpack.c.b16 %v1189, %v1187
    %v1934 = vpack.c.b16 %v1190, %v1188
    %v1935 = vpack.c.b16 %v1193, %v1191
    %v1936 = vpack.c.b16 %v1194, %v1192
    %v1937 = vpack.c.b16 %v1197, %v1195
    %v1938 = vpack.c.b16 %v1198, %v1196
    %v1939 = vpack.c.b16 %v1201, %v1199
    %v1940 = vpack.c.b16 %v1202, %v1200
    %v1941 = vpack.c.b16 %v1205, %v1203
    %v1942 = vpack.c.b16 %v1206, %v1204
    %v1943 = vpack.c.b16 %v1209, %v1207
    %v1944 = vpack.c.b16 %v1210, %v1208
    %v1945 = vpack.c.b16 %v1213, %v1211
    %v1946 = vpack.c.b16 %v1214, %v1212
    %v1947 = vpack.c.b16 %v1217, %v1215
    %v1948 = vpack.c.b16 %v1218, %v1216
    %v1949 = vpack.c.b16 %v1221, %v1219
    %v1950 = vpack.c.b16 %v1222, %v1220
    %v1951 = vpack.c.b16 %v1225, %v1223
    %v1952 = vpack.c.b16 %v1226, %v1224
    %v1953 = vpack.c.b16 %v1229, %v1227
    %v1954 = vpack.c.b16 %v1230, %v1228
    %v1955 = vpack.c.b16 %v1233, %v1231
    %v1956 = vpack.c.b16 %v1234, %v1232
    %v1957 = vpack.c.b16 %v1237, %v1235
    %v1958 = vpack.c.b16 %v1238, %v1236
    %v1959 = vpack.c.b16 %v1241, %v1239
    %v1960 = vpack.c.b16 %v1242, %v1240
    %v1961 = vpack.c.b16 %v1245, %v1243
    %v1962 = vpack.c.b16 %v1246, %v1244
    %v1963 = vpack.c.b16 %v1249, %v1247
    %v1964 = vpack.c.b16 %v1250, %v1248
    %v1965 = vpack.c.b16 %v1253, %v1251
    %v1966 = vpack.c.b16 %v1254, %v1252
    %v1967 = vpack.c.b16 %v1257, %v1255
    %v1968 = vpack.c.b16 %v1258, %v1256
    %v1969 = vpack.c.b16 %v1261, %v1259
    %v1970 = vpack.c.b16 %v1262, %v1260
    %v1971 = vpack.c.b16 %v1265, %v1263
    %v1972 = vpack.c.b16 %v1266, %v1264
    %v1973 = vpack.c.b16 %v1269, %v1267
    %v1974 = vpack.c.b16 %v1270, %v1268
    %v1975 = vpack.c.b16 %v1273, %v1271
    %v1976 = vpack.c.b16 %v1274, %v1272
    %v1977 = vpack.c.b16 %v1277, %v1275
    %v1978 = vpack.c.b16 %v1278, %v1276
    %v1979 = vpack.c.b16 %v1281, %v1279
    %v1980 = vpack.c.b16 %v1282, %v1280
    %v1981 = vpack.c.b16 %v1285, %v1283
    %v1982 = vpack.c.b16 %v1286, %v1284
    %v1983 = vpack.c.b16 %v1289, %v1287
    %v1984 = vpack.c.b16 %v1290, %v1288
    %v1985 = vpack.c.b16 %v1293, %v1291
    %v1986 = vpack.c.b16 %v1294, %v1292
    %v1987 = vpack.c.b16 %v1297, %v1295
    %v1988 = vpack.c.b16 %v1298, %v1296
    %v1989 = vpack.c.b16 %v1301, %v1299
    %v1990 = vpack.c.b16 %v1302, %v1300
    %v1991 = vpack.c.b16 %v1305, %v1303
    %v1992 = vpack.c.b16 %v1306, %v1304
    %v1993 = vpack.c.b16 %v1309, %v1307
    %v1994 = vpack.c.b16 %v1310, %v1308
    %v1995 = vpack.c.b16 %v1313, %v1311
    %v1996 = vpack.c.b16 %v1314, %v1312
    %v1997 = vpack.c.b16 %v1317, %v1315
    %v1998 = vpack.c.b16 %v1318, %v1316
    %v1999 = vpack.c.b16 %v1321, %v1319
    %v2000 = vpack.c.b16 %v1322, %v1320
    %v2001 = vpack.c.b16 %v1325, %v1323
    %v2002 = vpack.c.b16 %v1326, %v1324
    %v2003 = vpack.c.b16 %v1329, %v1327
    %v2004 = vpack.c.b16 %v1330, %v1328
    %v2005 = vpack.c.b16 %v1333, %v1331
    %v2006 = vpack.c.b16 %v1334, %v1332
    %v2007 = vpack.c.b16 %v1337, %v1335
    %v2008 = vpack.c.b16 %v1338, %v1336
    %v2009 = vpack.c.b16 %v1341, %v1339
    %v2010 = vpack.c.b16 %v1342, %v1340
    %v2011 = vpack.c.b16 %v1345, %v1343
    %v2012 = vpack.c.b16 %v1346, %v1344
    %v2013 = vpack.c.b16 %v1349, %v1347
    %v2014 = vpack.c.b16 %v1350, %v1348
    %v2015 = vpack.c.b16 %v1353, %v1351
    %v2016 = vpack.c.b16 %v1354, %v1352
    %v2017 = vpack.c.b16 %v1357, %v1355
    %v2018 = vpack.c.b16 %v1358, %v1356
    %v2019 = vpack.c.b16 %v1361, %v1359
    %v2020 = vpack.c.b16 %v1362, %v1360
    %v2021 = vpack.c.b16 %v1365, %v1363
    %v2022 = vpack.c.b16 %v1366, %v1364
    %v2023 = vpack.c.b16 %v1369, %v1367
    %v2024 = vpack.c.b16 %v1370, %v1368
    %v2025 = vpack.c.b16 %v1373, %v1371
    %v2026 = vpack.c.b16 %v1374, %v1372
    %v2027 = vpack.c.b16 %v1377, %v1375
    %v2028 = vpack.c.b16 %v1378, %v1376
    %v2029 = vpack.c.b16 %v1381, %v1379
    %v2030 = vpack.c.b16 %v1382, %v1380
    %v2031 = vpack.c.b16 %v1385, %v1383
    %v2032 = vpack.c.b16 %v1386, %v1384
    %v2033 = vpack.c.b16 %v1389, %v1387
    %v2034 = vpack.c.b16 %v1390, %v1388
    %v2035 = vpack.c.b16 %v1393, %v1391
    %v2036 = vpack.c.b16 %v1394, %v1392
    %v2037 = vpack.c.b16 %v1397, %v1395
    %v2038 = vpack.c.b16 %v1398, %v1396
    %v2039 = vpack.c.b16 %v1401, %v1399
    %v2040 = vpack.c.b16 %v1402, %v1400
    %v2041 = vpack.c.b16 %v1405, %v1403
    %v2042 = vpack.c.b16 %v1406, %v1404
    %v2043 = vpack.c.b16 %v1409, %v1407
    %v2044 = vpack.c.b16 %v1410, %v1408
    %v2045 = vpack.c.b16 %v1413, %v1411
    %v2046 = vpack.c.b16 %v1414, %v1412
    %v2047 = vpack.c.b16 %v1417, %v1415
    %v2048 = vpack.c.b16 %v1418, %v1416
    %v2049 = vpack.c.b16 %v1421, %v1419
    %v2050 = vpack.c.b16 %v1422, %v1420
    %v2051 = vpack.c.b16 %v1425, %v1423
    %v2052 = vpack.c.b16 %v1426, %v1424
    %v2053 = vpack.c.b16 %v1429, %v1427
    %v2054 = vpack.c.b16 %v1430, %v1428
    %v2055 = vpack.c.b16 %v1433, %v1431
    %v2056 = vpack.c.b16 %v1434, %v1432
    %v2057 = vpack.c.b16 %v1437, %v1435
    %v2058 = vpack.c.b16 %v1438, %v1436
    %v2059 = vpack.c.b16 %v1441, %v1439
    %v2060 = vpack.c.b16 %v1442, %v1440
    %v2061 = vpack.c.b16 %v1445, %v1443
    %v2062 = vpack.c.b16 %v1446, %v1444
    %v2063 = vpack.c.b16 %v1449, %v1447
    %v2064 = vpack.c.b16 %v1450, %v1448
    %v2065 = vpack.c.b16 %v1453, %v1451
    %v2066 = vpack.c.b16 %v1454, %v1452
    %v2067 = vpack.c.b16 %v1457, %v1455
    %v2068 = vpack.c.b16 %v1458, %v1456
    %v2069 = vpack.c.b16 %v1461, %v1459
    %v2070 = vpack.c.b16 %v1462, %v1460
    %v2071 = vpack.c.b16 %v1465, %v1463
    %v2072 = vpack.c.b16 %v1466, %v1464
    %v2073 = vpack.c.b16 %v1469, %v1467
    %v2074 = vpack.c.b16 %v1470, %v1468
    %v2075 = vpack.c.b16 %v1473, %v1471
    %v2076 = vpack.c.b16 %v1474, %v1472
    %v2077 = vpack.c.b16 %v1477, %v1475
    %v2078 = vpack.c.b16 %v1478, %v1476
    %v2079 = vpack.c.b16 %v1481, %v1479
    %v2080 = vpack.c.b16 %v1482, %v1480
    %v2081 = vpack.c.b16 %v1485, %v1483
    %v2082 = vpack.c.b16 %v1486, %v1484
    %v2083 = vpack.c.b16 %v1489, %v1487
    %v2084 = vpack.c.b16 %v1490, %v1488
    %v2085 = vpack.c.b16 %v1493, %v1491
    %v2086 = vpack.c.b16 %v1494, %v1492
    %v2087 = vpack.c.b16 %v1497, %v1495
    %v2088 = vpack.c.b16 %v1498, %v1496
    %v2089 = vpack.c.b16 %v1501, %v1499
    %v2090 = vpack.c.b16 %v1502, %v1500
    %v2091 = vpack.c.b16 %v1505, %v1503
    %v2092 = vpack.c.b16 %v1506, %v1504
    %v2093 = vpack.c.b16 %v1509, %v1507
    %v2094 = vpack.c.b16 %v1510, %v1508
    %v2095 = vpack.c.b16 %v1513, %v1511
    %v2096 = vpack.c.b16 %v1514, %v1512
    %v2097 = vpack.c.b16 %v1517, %v1515
    %v2098 = vpack.c.b16 %v1518, %v1516
    %v2099 = vpack.c.b16 %v1521, %v1519
    %v2100 = vpack.c.b16 %v1522, %v1520
    %v2101 = vpack.c.b16 %v1525, %v1523
    %v2102 = vpack.c.b16 %v1526, %v1524
    %v2103 = vpack.c.b16 %v1529, %v1527
    %v2104 = vpack.c.b16 %v1530, %v1528
    %v2105 = vpack.c.b16 %v1533, %v1531
    %v2106 = vpack.c.b16 %v1534, %v1532
    %v2107 = vpack.c.b16 %v1537, %v1535
    %v2108 = vpack.c.b16 %v1538, %v1536
    %v2109 = vpack.c.b16 %v1541, %v1539
    %v2110 = vpack.c.b16 %v1542, %v1540
    %v2111 = vpack.c.b16 %v1545, %v1543
    %v2112 = vpack.c.b16 %v1546, %v1544
    %v2113 = vpack.c.b16 %v1549, %v1547
    %v2114 = vpack.c.b16 %v1550, %v1548
    %v2115 = vpack.c.b16 %v1553, %v1551
    %v2116 = vpack.c.b16 %v1554, %v1552
    %v2117 = vpack.c.b16 %v1557, %v1555
    %v2118 = vpack.c.b16 %v1558, %v1556
    %v2119 = vpack.c.b16 %v1561, %v1559
    %v2120 = vpack.c.b16 %v1562, %v1560
    %v2121 = vpack.c.b16 %v1565, %v1563
    %v2122 = vpack.c.b16 %v1566, %v1564
    %v2123 = vpack.c.b16 %v1569, %v1567
    %v2124 = vpack.c.b16 %v1570, %v1568
    %v2125 = vpack.c.b16 %v1573, %v1571
    %v2126 = vpack.c.b16 %v1574, %v1572
    %v2127 = vpack.c.b16 %v1577, %v1575
    %v2128 = vpack.c.b16 %v1578, %v1576
    %v2129 = vpack.c.b16 %v1581, %v1579
    %v2130 = vpack.c.b16 %v1582, %v1580
    %v2131 = vpack.c.b16 %v1585, %v1583
    %v2132 = vpack.c.b16 %v1586, %v1584
    %v2133 = vpack.c.b16 %v1589, %v1587
    %v2134 = vpack.c.b16 %v1590, %v1588
    %v2135 = vpack.c.b16 %v1593, %v1591
    %v2136 = vpack.c.b16 %v1594, %v1592
    %v2137 = vpack.c.b16 %v1597, %v1595
    %v2138 = vpack.c.b16 %v1598, %v1596
    %v2139 = vpack.c.b16 %v1601, %v1599
    %v2140 = vpack.c.b16 %v1602, %v1600
    %v2141 = vpack.c.b16 %v1605, %v1603
    %v2142 = vpack.c.b16 %v1606, %v1604
    %v2143 = vpack.c.b16 %v1609, %v1607
    %v2144 = vpack.c.b16 %v1610, %v1608
    %v2145 = vpack.c.b16 %v1613, %v1611
    %v2146 = vpack.c.b16 %v1614, %v1612
    %v2147 = vpack.c.b16 %v1617, %v1615
    %v2148 = vpack.c.b16 %v1618, %v1616
    %v2149 = vpack.c.b16 %v1621, %v1619
    %v2150 = vpack.c.b16 %v1622, %v1620
    %v2151 = vpack.c.b16 %v1625, %v1623
    %v2152 = vpack.c.b16 %v1626, %v1624
    %v2153 = vpack.c.b16 %v1629, %v1627
    %v2154 = vpack.c.b16 %v1630, %v1628
    %v2155 = vpack.c.b16 %v1633, %v1631
    %v2156 = vpack.c.b16 %v1634, %v1632
    %v2157 = vpack.c.b16 %v1637, %v1635
    %v2158 = vpack.c.b16 %v1638, %v1636
    %v2159 = vpack.c.b16 %v1641, %v1639
    %v2160 = vpack.c.b16 %v1642, %v1640
    %v2161 = vpack.c.b16 %v1645, %v1643
    %v2162 = vpack.c.b16 %v1646, %v1644
    %v2163 = vpack.c.b16 %v1649, %v1647
    %v2164 = vpack.c.b16 %v1650, %v1648
    %v2165 = vpack.c.b16 %v1653, %v1651
    %v2166 = vpack.c.b16 %v1654, %v1652
    %v2167 = vpack.c.b16 %v1657, %v1655
    %v2168 = vpack.c.b16 %v1658, %v1656
    %v2169 = vpack.c.b16 %v1661, %v1659
    %v2170 = vpack.c.b16 %v1662, %v1660
    %v2171 = vpack.c.b16 %v1665, %v1663
    %v2172 = vpack.c.b16 %v1666, %v1664
    %v2173 = vpack.c.b16 %v1669, %v1667
    %v2174 = vpack.c.b16 %v1670, %v1668
    %v2175 = vpack.c.b16 %v1673, %v1671
    %v2176 = vpack.c.b16 %v1674, %v1672
    %v2177 = vpack.c.b16 %v1677, %v1675
    %v2178 = vpack.c.b16 %v1678, %v1676
    %v2179 = vpack.c.b16 %v1681, %v1679
    %v2180 = vpack.c.b16 %v1682, %v1680
    %v2181 = vpack.c.b16 %v1685, %v1683
    %v2182 = vpack.c.b16 %v1686, %v1684
    %v2183 = vpack.c.b16 %v1689, %v1687
    %v2184 = vpack.c.b16 %v1690, %v1688
    %v2185 = vpack.c.b16 %v1693, %v1691
    %v2186 = vpack.c.b16 %v1694, %v1692
    %v2187 = vpack.c.b16 %v1697, %v1695
    %v2188 = vpack.c.b16 %v1698, %v1696
    %v2189 = vpack.c.b16 %v1701, %v1699
    %v2190 = vpack.c.b16 %v1702, %v1700
    %v2191 = vpack.c.b16 %v1705, %v1703
    %v2192 = vpack.c.b16 %v1706, %v1704
    %v2193 = vpack.c.b16 %v1709, %v1707
    %v2194 = vpack.c.b16 %v1710, %v1708
    %v2195 = vpack.c.b16 %v1713, %v1711
    %v2196 = vpack.c.b16 %v1714, %v1712
    %v2197 = vpack.c.b16 %v1717, %v1715
    %v2198 = vpack.c.b16 %v1718, %v1716
    %v2199 = vpack.c.b16 %v1721, %v1719
    %v2200 = vpack.c.b16 %v1722, %v1720
    %v2201 = vpack.c.b16 %v1725, %v1723
    %v2202 = vpack.c.b16 %v1726, %v1724
    %v2203 = vpack.c.b16 %v1729, %v1727
    %v2204 = vpack.c.b16 %v1730, %v1728
    %v2205 = vpack.c.b16 %v1733, %v1731
    %v2206 = vpack.c.b16 %v1734, %v1732
    %v2207 = vpack.c.b16 %v1737, %v1735
    %v2208 = vpack.c.b16 %v1738, %v1736
    %v2209 = vpack.c.b16 %v1741, %v1739
    %v2210 = vpack.c.b16 %v1742, %v1740
    %v2211 = vpack.c.b16 %v1745, %v1743
    %v2212 = vpack.c.b16 %v1746, %v1744
    %v2213 = vpack.c.b16 %v1749, %v1747
    %v2214 = vpack.c.b16 %v1750, %v1748
    %v2215 = vpack.c.b16 %v1753, %v1751
    %v2216 = vpack.c.b16 %v1754, %v1752
    %v2217 = vpack.c.b16 %v1757, %v1755
    %v2218 = vpack.c.b16 %v1758, %v1756
    %v2219 = vpack.c.b16 %v1761, %v1759
    %v2220 = vpack.c.b16 %v1762, %v1760
    %v2221 = vpack.c.b16 %v1765, %v1763
    %v2222 = vpack.c.b16 %v1766, %v1764
    %v2223 = vpack.c.b16 %v1769, %v1767
    %v2224 = vpack.c.b16 %v1770, %v1768
    %v2225 = vpack.c.b16 %v1773, %v1771
    %v2226 = vpack.c.b16 %v1774, %v1772
    %v2227 = vpack.c.b16 %v1777, %v1775
    %v2228 = vpack.c.b16 %v1778, %v1776
    %v2229 = vpack.c.b16 %v1781, %v1779
    %v2230 = vpack.c.b16 %v1782, %v1780
    %v2231 = vpack.c.b16 %v1785, %v1783
    %v2232 = vpack.c.b16 %v1786, %v1784
    %v2233 = vpack.c.b16 %v1789, %v1787
    %v2234 = vpack.c.b16 %v1790, %v1788
    %v2235 = vpack.c.b16 %v1793, %v1791
    %v2236 = vpack.c.b16 %v1794, %v1792
    %v2237 = vpack.c.b16 %v1797, %v1795
    %v2238 = vpack.c.b16 %v1798, %v1796
    %v2239 = vpack.c.b16 %v1801, %v1799
    %v2240 = vpack.c.b16 %v1802, %v1800
    %v2241 = vpack.c.b16 %v1805, %v1803
    %v2242 = vpack.c.b16 %v1806, %v1804
    %v2243 = vpack.c.b16 %v1809, %v1807
    %v2244 = vpack.c.b16 %v1810, %v1808
    %v2245 = vpack.c.b16 %v1813, %v1811
    %v2246 = vpack.c.b16 %v1814, %v1812
    %2679 = vmatpush.bf16.msra.mxu0 %v1829
    %2680 = vmatpush.bf16.msra.mxu0 %v1827
    %2681 = vmatpush.bf16.msra.mxu0 %v1825
    %2682 = vmatpush.bf16.msra.mxu0 %v1823
    %2683 = vmatpush.bf16.msra.mxu0 %v1821
    %2684 = vmatpush.bf16.msra.mxu0 %v1819
    %2685 = vmatpush.bf16.msra.mxu0 %v1817
    %2686 = vmatpush.bf16.msra.mxu0 %v1815
    %2687 = vmatmul.bf16.gmra.mxu0 %v459
    %v2688 = vpop.f32.mrf.mxu0
    %v2689 = vadd.f32 0.0, %v2688
    %v2690 = vpop.f32.mrf.mxu0
    %2691 = vdwg.mxu0
    %2692 = vmatpush.bf16.msra.mxu0 %v1845
    %2693 = vmatpush.bf16.msra.mxu0 %v1843
    %2694 = vmatpush.bf16.msra.mxu0 %v1841
    %2695 = vmatpush.bf16.msra.mxu0 %v1839
    %2696 = vmatpush.bf16.msra.mxu0 %v1837
    %2697 = vmatpush.bf16.msra.mxu0 %v1835
    %2698 = vmatpush.bf16.msra.mxu0 %v1833
    %2699 = vmatpush.bf16.msra.mxu0 %v1831
    %2700 = vmatmul.bf16.gmra.mxu0 %v460
    %v2701 = vpop.f32.mrf.mxu0
    %v2702 = vadd.f32 %v2689, %v2701
    %v2703 = vpop.f32.mrf.mxu0
    %2704 = vdwg.mxu0
    %2705 = vmatpush.bf16.msra.mxu0 %v1861
    %2706 = vmatpush.bf16.msra.mxu0 %v1859
    %2707 = vmatpush.bf16.msra.mxu0 %v1857
    %2708 = vmatpush.bf16.msra.mxu0 %v1855
    %2709 = vmatpush.bf16.msra.mxu0 %v1853
    %2710 = vmatpush.bf16.msra.mxu0 %v1851
    %2711 = vmatpush.bf16.msra.mxu0 %v1849
    %2712 = vmatpush.bf16.msra.mxu0 %v1847
    %2713 = vmatmul.bf16.gmra.mxu0 %v461
    %v2714 = vpop.f32.mrf.mxu0
    %v2715 = vadd.f32 %v2702, %v2714
    %v2716 = vpop.f32.mrf.mxu0
    %2717 = vdwg.mxu0
    %2718 = vmatpush.bf16.msra.mxu0 %v1877
    %2719 = vmatpush.bf16.msra.mxu0 %v1875
    %2720 = vmatpush.bf16.msra.mxu0 %v1873
    %2721 = vmatpush.bf16.msra.mxu0 %v1871
    %2722 = vmatpush.bf16.msra.mxu0 %v1869
    %2723 = vmatpush.bf16.msra.mxu0 %v1867
    %2724 = vmatpush.bf16.msra.mxu0 %v1865
    %2725 = vmatpush.bf16.msra.mxu0 %v1863
    %2726 = vmatmul.bf16.gmra.mxu0 %v462
    %v2727 = vpop.f32.mrf.mxu0
    %v2728 = vadd.f32 %v2715, %v2727
    %v2729 = vpop.f32.mrf.mxu0
    %2730 = vdwg.mxu0
    %2731 = vmatpush.bf16.msra.mxu0 %v1893
    %2732 = vmatpush.bf16.msra.mxu0 %v1891
    %2733 = vmatpush.bf16.msra.mxu0 %v1889
    %2734 = vmatpush.bf16.msra.mxu0 %v1887
    %2735 = vmatpush.bf16.msra.mxu0 %v1885
    %2736 = vmatpush.bf16.msra.mxu0 %v1883
    %2737 = vmatpush.bf16.msra.mxu0 %v1881
    %2738 = vmatpush.bf16.msra.mxu0 %v1879
    %2739 = vmatmul.bf16.gmra.mxu0 %v463
    %v2740 = vpop.f32.mrf.mxu0
    %v2741 = vadd.f32 %v2728, %v2740
    %v2742 = vpop.f32.mrf.mxu0
    %2743 = vdwg.mxu0
    %2744 = vmatpush.bf16.msra.mxu0 %v1909
    %2745 = vmatpush.bf16.msra.mxu0 %v1907
    %2746 = vmatpush.bf16.msra.mxu0 %v1905
    %2747 = vmatpush.bf16.msra.mxu0 %v1903
    %2748 = vmatpush.bf16.msra.mxu0 %v1901
    %2749 = vmatpush.bf16.msra.mxu0 %v1899
    %2750 = vmatpush.bf16.msra.mxu0 %v1897
    %2751 = vmatpush.bf16.msra.mxu0 %v1895
    %2752 = vmatmul.bf16.gmra.mxu0 %v464
    %v2753 = vpop.f32.mrf.mxu0
    %v2754 = vadd.f32 %v2741, %v2753
    %v2755 = vpop.f32.mrf.mxu0
    %2756 = vdwg.mxu0
    %2757 = vmatpush.bf16.msra.mxu0 %v1925
    %2758 = vmatpush.bf16.msra.mxu0 %v1923
    %2759 = vmatpush.bf16.msra.mxu0 %v1921
    %2760 = vmatpush.bf16.msra.mxu0 %v1919
    %2761 = vmatpush.bf16.msra.mxu0 %v1917
    %2762 = vmatpush.bf16.msra.mxu0 %v1915
    %2763 = vmatpush.bf16.msra.mxu0 %v1913
    %2764 = vmatpush.bf16.msra.mxu0 %v1911
    %2765 = vmatmul.bf16.gmra.mxu0 %v465
    %v2766 = vpop.f32.mrf.mxu0
    %v2767 = vadd.f32 %v2754, %v2766
    %v2768 = vpop.f32.mrf.mxu0
    %2769 = vdwg.mxu0
    %2770 = vmatpush.bf16.msra.mxu0 %v1941
    %2771 = vmatpush.bf16.msra.mxu0 %v1939
    %2772 = vmatpush.bf16.msra.mxu0 %v1937
    %2773 = vmatpush.bf16.msra.mxu0 %v1935
    %2774 = vmatpush.bf16.msra.mxu0 %v1933
    %2775 = vmatpush.bf16.msra.mxu0 %v1931
    %2776 = vmatpush.bf16.msra.mxu0 %v1929
    %2777 = vmatpush.bf16.msra.mxu0 %v1927
    %2778 = vmatmul.bf16.gmra.mxu0 %v466
    %v2779 = vpop.f32.mrf.mxu0
    %v2780 = vadd.f32 %v2767, %v2779
    %v2781 = vpop.f32.mrf.mxu0
    %2782 = vdwg.mxu0
    %2783 = vmatpush.bf16.msra.mxu0 %v1957
    %2784 = vmatpush.bf16.msra.mxu0 %v1955
    %2785 = vmatpush.bf16.msra.mxu0 %v1953
    %2786 = vmatpush.bf16.msra.mxu0 %v1951
    %2787 = vmatpush.bf16.msra.mxu0 %v1949
    %2788 = vmatpush.bf16.msra.mxu0 %v1947
    %2789 = vmatpush.bf16.msra.mxu0 %v1945
    %2790 = vmatpush.bf16.msra.mxu0 %v1943
    %2791 = vmatmul.bf16.gmra.mxu0 %v469
    %v2792 = vpop.f32.mrf.mxu0
    %v2793 = vadd.f32 %v2780, %v2792
    %v2794 = vpop.f32.mrf.mxu0
    %2795 = vdwg.mxu0
    %2796 = vmatpush.bf16.msra.mxu0 %v1973
    %2797 = vmatpush.bf16.msra.mxu0 %v1971
    %2798 = vmatpush.bf16.msra.mxu0 %v1969
    %2799 = vmatpush.bf16.msra.mxu0 %v1967
    %2800 = vmatpush.bf16.msra.mxu0 %v1965
    %2801 = vmatpush.bf16.msra.mxu0 %v1963
    %2802 = vmatpush.bf16.msra.mxu0 %v1961
    %2803 = vmatpush.bf16.msra.mxu0 %v1959
    %2804 = vmatmul.bf16.gmra.mxu0 %v470
    %v2805 = vpop.f32.mrf.mxu0
    %v2806 = vadd.f32 %v2793, %v2805
    %v2807 = vpop.f32.mrf.mxu0
    %2808 = vdwg.mxu0
    %2809 = vmatpush.bf16.msra.mxu0 %v1989
    %2810 = vmatpush.bf16.msra.mxu0 %v1987
    %2811 = vmatpush.bf16.msra.mxu0 %v1985
    %2812 = vmatpush.bf16.msra.mxu0 %v1983
    %2813 = vmatpush.bf16.msra.mxu0 %v1981
    %2814 = vmatpush.bf16.msra.mxu0 %v1979
    %2815 = vmatpush.bf16.msra.mxu0 %v1977
    %2816 = vmatpush.bf16.msra.mxu0 %v1975
    %2817 = vmatmul.bf16.gmra.mxu0 %v471
    %v2818 = vpop.f32.mrf.mxu0
    %v2819 = vadd.f32 %v2806, %v2818
    %v2820 = vpop.f32.mrf.mxu0
    %2821 = vdwg.mxu0
    %2822 = vmatpush.bf16.msra.mxu0 %v2005
    %2823 = vmatpush.bf16.msra.mxu0 %v2003
    %2824 = vmatpush.bf16.msra.mxu0 %v2001
    %2825 = vmatpush.bf16.msra.mxu0 %v1999
    %2826 = vmatpush.bf16.msra.mxu0 %v1997
    %2827 = vmatpush.bf16.msra.mxu0 %v1995
    %2828 = vmatpush.bf16.msra.mxu0 %v1993
    %2829 = vmatpush.bf16.msra.mxu0 %v1991
    %2830 = vmatmul.bf16.gmra.mxu0 %v472
    %v2831 = vpop.f32.mrf.mxu0
    %v2832 = vadd.f32 %v2819, %v2831
    %v2833 = vpop.f32.mrf.mxu0
    %2834 = vdwg.mxu0
    %2835 = vmatpush.bf16.msra.mxu0 %v2021
    %2836 = vmatpush.bf16.msra.mxu0 %v2019
    %2837 = vmatpush.bf16.msra.mxu0 %v2017
    %2838 = vmatpush.bf16.msra.mxu0 %v2015
    %2839 = vmatpush.bf16.msra.mxu0 %v2013
    %2840 = vmatpush.bf16.msra.mxu0 %v2011
    %2841 = vmatpush.bf16.msra.mxu0 %v2009
    %2842 = vmatpush.bf16.msra.mxu0 %v2007
    %2843 = vmatmul.bf16.gmra.mxu0 %v473
    %v2844 = vpop.f32.mrf.mxu0
    %v2845 = vadd.f32 %v2832, %v2844
    %v2846 = vpop.f32.mrf.mxu0
    %2847 = vdwg.mxu0
    %2848 = vmatpush.bf16.msra.mxu0 %v2037
    %2849 = vmatpush.bf16.msra.mxu0 %v2035
    %2850 = vmatpush.bf16.msra.mxu0 %v2033
    %2851 = vmatpush.bf16.msra.mxu0 %v2031
    %2852 = vmatpush.bf16.msra.mxu0 %v2029
    %2853 = vmatpush.bf16.msra.mxu0 %v2027
    %2854 = vmatpush.bf16.msra.mxu0 %v2025
    %2855 = vmatpush.bf16.msra.mxu0 %v2023
    %2856 = vmatmul.bf16.gmra.mxu0 %v474
    %v2857 = vpop.f32.mrf.mxu0
    %v2858 = vadd.f32 %v2845, %v2857
    %v2859 = vpop.f32.mrf.mxu0
    %2860 = vdwg.mxu0
    %2861 = vmatpush.bf16.msra.mxu0 %v2053
    %2862 = vmatpush.bf16.msra.mxu0 %v2051
    %2863 = vmatpush.bf16.msra.mxu0 %v2049
    %2864 = vmatpush.bf16.msra.mxu0 %v2047
    %2865 = vmatpush.bf16.msra.mxu0 %v2045
    %2866 = vmatpush.bf16.msra.mxu0 %v2043
    %2867 = vmatpush.bf16.msra.mxu0 %v2041
    %2868 = vmatpush.bf16.msra.mxu0 %v2039
    %2869 = vmatmul.bf16.gmra.mxu0 %v475
    %v2870 = vpop.f32.mrf.mxu0
    %v2871 = vadd.f32 %v2858, %v2870
    %v2872 = vpop.f32.mrf.mxu0
    %2873 = vdwg.mxu0
    %2874 = vmatpush.bf16.msra.mxu0 %v2069
    %2875 = vmatpush.bf16.msra.mxu0 %v2067
    %2876 = vmatpush.bf16.msra.mxu0 %v2065
    %2877 = vmatpush.bf16.msra.mxu0 %v2063
    %2878 = vmatpush.bf16.msra.mxu0 %v2061
    %2879 = vmatpush.bf16.msra.mxu0 %v2059
    %2880 = vmatpush.bf16.msra.mxu0 %v2057
    %2881 = vmatpush.bf16.msra.mxu0 %v2055
    %2882 = vmatmul.bf16.gmra.mxu0 %v476
    %v2883 = vpop.f32.mrf.mxu0
    %v2884 = vadd.f32 %v2871, %v2883
    %v2885 = vpop.f32.mrf.mxu0
    %2886 = vdwg.mxu0
    %2887 = vmatpush.bf16.msra.mxu0 %v2085
    %2888 = vmatpush.bf16.msra.mxu0 %v2083
    %2889 = vmatpush.bf16.msra.mxu0 %v2081
    %2890 = vmatpush.bf16.msra.mxu0 %v2079
    %2891 = vmatpush.bf16.msra.mxu0 %v2077
    %2892 = vmatpush.bf16.msra.mxu0 %v2075
    %2893 = vmatpush.bf16.msra.mxu0 %v2073
    %2894 = vmatpush.bf16.msra.mxu0 %v2071
    %2895 = vmatmul.bf16.gmra.mxu0 %v479
    %v2896 = vpop.f32.mrf.mxu0
    %v2897 = vadd.f32 %v2884, %v2896
    %v2898 = vpop.f32.mrf.mxu0
    %2899 = vdwg.mxu0
    %2900 = vmatpush.bf16.msra.mxu0 %v2101
    %2901 = vmatpush.bf16.msra.mxu0 %v2099
    %2902 = vmatpush.bf16.msra.mxu0 %v2097
    %2903 = vmatpush.bf16.msra.mxu0 %v2095
    %2904 = vmatpush.bf16.msra.mxu0 %v2093
    %2905 = vmatpush.bf16.msra.mxu0 %v2091
    %2906 = vmatpush.bf16.msra.mxu0 %v2089
    %2907 = vmatpush.bf16.msra.mxu0 %v2087
    %2908 = vmatmul.bf16.gmra.mxu0 %v480
    %v2909 = vpop.f32.mrf.mxu0
    %v2910 = vadd.f32 %v2897, %v2909
    %v2911 = vpop.f32.mrf.mxu0
    %2912 = vdwg.mxu0
    %2913 = vmatpush.bf16.msra.mxu0 %v2117
    %2914 = vmatpush.bf16.msra.mxu0 %v2115
    %2915 = vmatpush.bf16.msra.mxu0 %v2113
    %2916 = vmatpush.bf16.msra.mxu0 %v2111
    %2917 = vmatpush.bf16.msra.mxu0 %v2109
    %2918 = vmatpush.bf16.msra.mxu0 %v2107
    %2919 = vmatpush.bf16.msra.mxu0 %v2105
    %2920 = vmatpush.bf16.msra.mxu0 %v2103
    %2921 = vmatmul.bf16.gmra.mxu0 %v481
    %v2922 = vpop.f32.mrf.mxu0
    %v2923 = vadd.f32 %v2910, %v2922
    %v2924 = vpop.f32.mrf.mxu0
    %2925 = vdwg.mxu0
    %2926 = vmatpush.bf16.msra.mxu0 %v2133
    %2927 = vmatpush.bf16.msra.mxu0 %v2131
    %2928 = vmatpush.bf16.msra.mxu0 %v2129
    %2929 = vmatpush.bf16.msra.mxu0 %v2127
    %2930 = vmatpush.bf16.msra.mxu0 %v2125
    %2931 = vmatpush.bf16.msra.mxu0 %v2123
    %2932 = vmatpush.bf16.msra.mxu0 %v2121
    %2933 = vmatpush.bf16.msra.mxu0 %v2119
    %2934 = vmatmul.bf16.gmra.mxu0 %v482
    %v2935 = vpop.f32.mrf.mxu0
    %v2936 = vadd.f32 %v2923, %v2935
    %v2937 = vpop.f32.mrf.mxu0
    %2938 = vdwg.mxu0
    %2939 = vmatpush.bf16.msra.mxu0 %v2149
    %2940 = vmatpush.bf16.msra.mxu0 %v2147
    %2941 = vmatpush.bf16.msra.mxu0 %v2145
    %2942 = vmatpush.bf16.msra.mxu0 %v2143
    %2943 = vmatpush.bf16.msra.mxu0 %v2141
    %2944 = vmatpush.bf16.msra.mxu0 %v2139
    %2945 = vmatpush.bf16.msra.mxu0 %v2137
    %2946 = vmatpush.bf16.msra.mxu0 %v2135
    %2947 = vmatmul.bf16.gmra.mxu0 %v483
    %v2948 = vpop.f32.mrf.mxu0
    %v2949 = vadd.f32 %v2936, %v2948
    %v2950 = vpop.f32.mrf.mxu0
    %2951 = vdwg.mxu0
    %2952 = vmatpush.bf16.msra.mxu0 %v2165
    %2953 = vmatpush.bf16.msra.mxu0 %v2163
    %2954 = vmatpush.bf16.msra.mxu0 %v2161
    %2955 = vmatpush.bf16.msra.mxu0 %v2159
    %2956 = vmatpush.bf16.msra.mxu0 %v2157
    %2957 = vmatpush.bf16.msra.mxu0 %v2155
    %2958 = vmatpush.bf16.msra.mxu0 %v2153
    %2959 = vmatpush.bf16.msra.mxu0 %v2151
    %2960 = vmatmul.bf16.gmra.mxu0 %v484
    %v2961 = vpop.f32.mrf.mxu0
    %v2962 = vadd.f32 %v2949, %v2961
    %v2963 = vpop.f32.mrf.mxu0
    %2964 = vdwg.mxu0
    %2965 = vmatpush.bf16.msra.mxu0 %v2181
    %2966 = vmatpush.bf16.msra.mxu0 %v2179
    %2967 = vmatpush.bf16.msra.mxu0 %v2177
    %2968 = vmatpush.bf16.msra.mxu0 %v2175
    %2969 = vmatpush.bf16.msra.mxu0 %v2173
    %2970 = vmatpush.bf16.msra.mxu0 %v2171
    %2971 = vmatpush.bf16.msra.mxu0 %v2169
    %2972 = vmatpush.bf16.msra.mxu0 %v2167
    %2973 = vmatmul.bf16.gmra.mxu0 %v485
    %v2974 = vpop.f32.mrf.mxu0
    %v2975 = vadd.f32 %v2962, %v2974
    %v2976 = vpop.f32.mrf.mxu0
    %2977 = vdwg.mxu0
    %2978 = vmatpush.bf16.msra.mxu0 %v2197
    %2979 = vmatpush.bf16.msra.mxu0 %v2195
    %2980 = vmatpush.bf16.msra.mxu0 %v2193
    %2981 = vmatpush.bf16.msra.mxu0 %v2191
    %2982 = vmatpush.bf16.msra.mxu0 %v2189
    %2983 = vmatpush.bf16.msra.mxu0 %v2187
    %2984 = vmatpush.bf16.msra.mxu0 %v2185
    %2985 = vmatpush.bf16.msra.mxu0 %v2183
    %2986 = vmatmul.bf16.gmra.mxu0 %v486
    %v2987 = vpop.f32.mrf.mxu0
    %v2988 = vadd.f32 %v2975, %v2987
    %v2989 = vpop.f32.mrf.mxu0
    %2990 = vdwg.mxu0
    %2991 = vmatpush.bf16.msra.mxu0 %v2213
    %2992 = vmatpush.bf16.msra.mxu0 %v2211
    %2993 = vmatpush.bf16.msra.mxu0 %v2209
    %2994 = vmatpush.bf16.msra.mxu0 %v2207
    %2995 = vmatpush.bf16.msra.mxu0 %v2205
    %2996 = vmatpush.bf16.msra.mxu0 %v2203
    %2997 = vmatpush.bf16.msra.mxu0 %v2201
    %2998 = vmatpush.bf16.msra.mxu0 %v2199
    %2999 = vmatmul.bf16.gmra.mxu0 %v489
    %v3000 = vpop.f32.mrf.mxu0
    %v3001 = vadd.f32 %v2988, %v3000
    %v3002 = vpop.f32.mrf.mxu0
    %3003 = vdwg.mxu0
    %3004 = vmatpush.bf16.msra.mxu0 %v2229
    %3005 = vmatpush.bf16.msra.mxu0 %v2227
    %3006 = vmatpush.bf16.msra.mxu0 %v2225
    %3007 = vmatpush.bf16.msra.mxu0 %v2223
    %3008 = vmatpush.bf16.msra.mxu0 %v2221
    %3009 = vmatpush.bf16.msra.mxu0 %v2219
    %3010 = vmatpush.bf16.msra.mxu0 %v2217
    %3011 = vmatpush.bf16.msra.mxu0 %v2215
    %3012 = vmatmul.bf16.gmra.mxu0 %v490
    %v3013 = vpop.f32.mrf.mxu0
    %v3014 = vadd.f32 %v3001, %v3013
    %v3015 = vpop.f32.mrf.mxu0
    %3016 = vdwg.mxu0
    %3017 = vmatpush.bf16.msra.mxu0 %v2245
    %3018 = vmatpush.bf16.msra.mxu0 %v2243
    %3019 = vmatpush.bf16.msra.mxu0 %v2241
    %3020 = vmatpush.bf16.msra.mxu0 %v2239
    %3021 = vmatpush.bf16.msra.mxu0 %v2237
    %3022 = vmatpush.bf16.msra.mxu0 %v2235
    %3023 = vmatpush.bf16.msra.mxu0 %v2233
    %3024 = vmatpush.bf16.msra.mxu0 %v2231
    %3025 = vmatmul.bf16.gmra.mxu0 %v491
    %v3026 = vpop.f32.mrf.mxu0
    %v3027 = vadd.f32 %v3014, %v3026
    %v3028 = vpop.f32.mrf.mxu0
    %3029 = vdwg.mxu0
    %3030 = vmatpush.bf16.msra.mxu0 %v1830
    %3031 = vmatpush.bf16.msra.mxu0 %v1828
    %3032 = vmatpush.bf16.msra.mxu0 %v1826
    %3033 = vmatpush.bf16.msra.mxu0 %v1824
    %3034 = vmatpush.bf16.msra.mxu0 %v1822
    %3035 = vmatpush.bf16.msra.mxu0 %v1820
    %3036 = vmatpush.bf16.msra.mxu0 %v1818
    %3037 = vmatpush.bf16.msra.mxu0 %v1816
    %3038 = vmatmul.bf16.gmra.mxu0 %v459
    %v3039 = vpop.f32.mrf.mxu0
    %v3040 = vadd.f32 0.0, %v3039
    %v3041 = vpop.f32.mrf.mxu0
    %3042 = vdwg.mxu0
    %3043 = vmatpush.bf16.msra.mxu0 %v1846
    %3044 = vmatpush.bf16.msra.mxu0 %v1844
    %3045 = vmatpush.bf16.msra.mxu0 %v1842
    %3046 = vmatpush.bf16.msra.mxu0 %v1840
    %3047 = vmatpush.bf16.msra.mxu0 %v1838
    %3048 = vmatpush.bf16.msra.mxu0 %v1836
    %3049 = vmatpush.bf16.msra.mxu0 %v1834
    %3050 = vmatpush.bf16.msra.mxu0 %v1832
    %3051 = vmatmul.bf16.gmra.mxu0 %v460
    %v3052 = vpop.f32.mrf.mxu0
    %v3053 = vadd.f32 %v3040, %v3052
    %v3054 = vpop.f32.mrf.mxu0
    %3055 = vdwg.mxu0
    %3056 = vmatpush.bf16.msra.mxu0 %v1862
    %3057 = vmatpush.bf16.msra.mxu0 %v1860
    %3058 = vmatpush.bf16.msra.mxu0 %v1858
    %3059 = vmatpush.bf16.msra.mxu0 %v1856
    %3060 = vmatpush.bf16.msra.mxu0 %v1854
    %3061 = vmatpush.bf16.msra.mxu0 %v1852
    %3062 = vmatpush.bf16.msra.mxu0 %v1850
    %3063 = vmatpush.bf16.msra.mxu0 %v1848
    %3064 = vmatmul.bf16.gmra.mxu0 %v461
    %v3065 = vpop.f32.mrf.mxu0
    %v3066 = vadd.f32 %v3053, %v3065
    %v3067 = vpop.f32.mrf.mxu0
    %3068 = vdwg.mxu0
    %3069 = vmatpush.bf16.msra.mxu0 %v1878
    %3070 = vmatpush.bf16.msra.mxu0 %v1876
    %3071 = vmatpush.bf16.msra.mxu0 %v1874
    %3072 = vmatpush.bf16.msra.mxu0 %v1872
    %3073 = vmatpush.bf16.msra.mxu0 %v1870
    %3074 = vmatpush.bf16.msra.mxu0 %v1868
    %3075 = vmatpush.bf16.msra.mxu0 %v1866
    %3076 = vmatpush.bf16.msra.mxu0 %v1864
    %3077 = vmatmul.bf16.gmra.mxu0 %v462
    %v3078 = vpop.f32.mrf.mxu0
    %v3079 = vadd.f32 %v3066, %v3078
    %v3080 = vpop.f32.mrf.mxu0
    %3081 = vdwg.mxu0
    %3082 = vmatpush.bf16.msra.mxu0 %v1894
    %3083 = vmatpush.bf16.msra.mxu0 %v1892
    %3084 = vmatpush.bf16.msra.mxu0 %v1890
    %3085 = vmatpush.bf16.msra.mxu0 %v1888
    %3086 = vmatpush.bf16.msra.mxu0 %v1886
    %3087 = vmatpush.bf16.msra.mxu0 %v1884
    %3088 = vmatpush.bf16.msra.mxu0 %v1882
    %3089 = vmatpush.bf16.msra.mxu0 %v1880
    %3090 = vmatmul.bf16.gmra.mxu0 %v463
    %v3091 = vpop.f32.mrf.mxu0
    %v3092 = vadd.f32 %v3079, %v3091
    %v3093 = vpop.f32.mrf.mxu0
    %3094 = vdwg.mxu0
    %3095 = vmatpush.bf16.msra.mxu0 %v1910
    %3096 = vmatpush.bf16.msra.mxu0 %v1908
    %3097 = vmatpush.bf16.msra.mxu0 %v1906
    %3098 = vmatpush.bf16.msra.mxu0 %v1904
    %3099 = vmatpush.bf16.msra.mxu0 %v1902
    %3100 = vmatpush.bf16.msra.mxu0 %v1900
    %3101 = vmatpush.bf16.msra.mxu0 %v1898
    %3102 = vmatpush.bf16.msra.mxu0 %v1896
    %3103 = vmatmul.bf16.gmra.mxu0 %v464
    %v3104 = vpop.f32.mrf.mxu0
    %v3105 = vadd.f32 %v3092, %v3104
    %v3106 = vpop.f32.mrf.mxu0
    %3107 = vdwg.mxu0
    %3108 = vmatpush.bf16.msra.mxu0 %v1926
    %3109 = vmatpush.bf16.msra.mxu0 %v1924
    %3110 = vmatpush.bf16.msra.mxu0 %v1922
    %3111 = vmatpush.bf16.msra.mxu0 %v1920
    %3112 = vmatpush.bf16.msra.mxu0 %v1918
    %3113 = vmatpush.bf16.msra.mxu0 %v1916
    %3114 = vmatpush.bf16.msra.mxu0 %v1914
    %3115 = vmatpush.bf16.msra.mxu0 %v1912
    %3116 = vmatmul.bf16.gmra.mxu0 %v465
    %v3117 = vpop.f32.mrf.mxu0
    %v3118 = vadd.f32 %v3105, %v3117
    %v3119 = vpop.f32.mrf.mxu0
    %3120 = vdwg.mxu0
    %3121 = vmatpush.bf16.msra.mxu0 %v1942
    %3122 = vmatpush.bf16.msra.mxu0 %v1940
    %3123 = vmatpush.bf16.msra.mxu0 %v1938
    %3124 = vmatpush.bf16.msra.mxu0 %v1936
    %3125 = vmatpush.bf16.msra.mxu0 %v1934
    %3126 = vmatpush.bf16.msra.mxu0 %v1932
    %3127 = vmatpush.bf16.msra.mxu0 %v1930
    %3128 = vmatpush.bf16.msra.mxu0 %v1928
    %3129 = vmatmul.bf16.gmra.mxu0 %v466
    %v3130 = vpop.f32.mrf.mxu0
    %v3131 = vadd.f32 %v3118, %v3130
    %v3132 = vpop.f32.mrf.mxu0
    %3133 = vdwg.mxu0
    %3134 = vmatpush.bf16.msra.mxu0 %v1958
    %3135 = vmatpush.bf16.msra.mxu0 %v1956
    %3136 = vmatpush.bf16.msra.mxu0 %v1954
    %3137 = vmatpush.bf16.msra.mxu0 %v1952
    %3138 = vmatpush.bf16.msra.mxu0 %v1950
    %3139 = vmatpush.bf16.msra.mxu0 %v1948
    %3140 = vmatpush.bf16.msra.mxu0 %v1946
    %3141 = vmatpush.bf16.msra.mxu0 %v1944
    %3142 = vmatmul.bf16.gmra.mxu0 %v469
    %v3143 = vpop.f32.mrf.mxu0
    %v3144 = vadd.f32 %v3131, %v3143
    %v3145 = vpop.f32.mrf.mxu0
    %3146 = vdwg.mxu0
    %3147 = vmatpush.bf16.msra.mxu0 %v1974
    %3148 = vmatpush.bf16.msra.mxu0 %v1972
    %3149 = vmatpush.bf16.msra.mxu0 %v1970
    %3150 = vmatpush.bf16.msra.mxu0 %v1968
    %3151 = vmatpush.bf16.msra.mxu0 %v1966
    %3152 = vmatpush.bf16.msra.mxu0 %v1964
    %3153 = vmatpush.bf16.msra.mxu0 %v1962
    %3154 = vmatpush.bf16.msra.mxu0 %v1960
    %3155 = vmatmul.bf16.gmra.mxu0 %v470
    %v3156 = vpop.f32.mrf.mxu0
    %v3157 = vadd.f32 %v3144, %v3156
    %v3158 = vpop.f32.mrf.mxu0
    %3159 = vdwg.mxu0
    %3160 = vmatpush.bf16.msra.mxu0 %v1990
    %3161 = vmatpush.bf16.msra.mxu0 %v1988
    %3162 = vmatpush.bf16.msra.mxu0 %v1986
    %3163 = vmatpush.bf16.msra.mxu0 %v1984
    %3164 = vmatpush.bf16.msra.mxu0 %v1982
    %3165 = vmatpush.bf16.msra.mxu0 %v1980
    %3166 = vmatpush.bf16.msra.mxu0 %v1978
    %3167 = vmatpush.bf16.msra.mxu0 %v1976
    %3168 = vmatmul.bf16.gmra.mxu0 %v471
    %v3169 = vpop.f32.mrf.mxu0
    %v3170 = vadd.f32 %v3157, %v3169
    %v3171 = vpop.f32.mrf.mxu0
    %3172 = vdwg.mxu0
    %3173 = vmatpush.bf16.msra.mxu0 %v2006
    %3174 = vmatpush.bf16.msra.mxu0 %v2004
    %3175 = vmatpush.bf16.msra.mxu0 %v2002
    %3176 = vmatpush.bf16.msra.mxu0 %v2000
    %3177 = vmatpush.bf16.msra.mxu0 %v1998
    %3178 = vmatpush.bf16.msra.mxu0 %v1996
    %3179 = vmatpush.bf16.msra.mxu0 %v1994
    %3180 = vmatpush.bf16.msra.mxu0 %v1992
    %3181 = vmatmul.bf16.gmra.mxu0 %v472
    %v3182 = vpop.f32.mrf.mxu0
    %v3183 = vadd.f32 %v3170, %v3182
    %v3184 = vpop.f32.mrf.mxu0
    %3185 = vdwg.mxu0
    %3186 = vmatpush.bf16.msra.mxu0 %v2022
    %3187 = vmatpush.bf16.msra.mxu0 %v2020
    %3188 = vmatpush.bf16.msra.mxu0 %v2018
    %3189 = vmatpush.bf16.msra.mxu0 %v2016
    %3190 = vmatpush.bf16.msra.mxu0 %v2014
    %3191 = vmatpush.bf16.msra.mxu0 %v2012
    %3192 = vmatpush.bf16.msra.mxu0 %v2010
    %3193 = vmatpush.bf16.msra.mxu0 %v2008
    %3194 = vmatmul.bf16.gmra.mxu0 %v473
    %v3195 = vpop.f32.mrf.mxu0
    %v3196 = vadd.f32 %v3183, %v3195
    %v3197 = vpop.f32.mrf.mxu0
    %3198 = vdwg.mxu0
    %3199 = vmatpush.bf16.msra.mxu0 %v2038
    %3200 = vmatpush.bf16.msra.mxu0 %v2036
    %3201 = vmatpush.bf16.msra.mxu0 %v2034
    %3202 = vmatpush.bf16.msra.mxu0 %v2032
    %3203 = vmatpush.bf16.msra.mxu0 %v2030
    %3204 = vmatpush.bf16.msra.mxu0 %v2028
    %3205 = vmatpush.bf16.msra.mxu0 %v2026
    %3206 = vmatpush.bf16.msra.mxu0 %v2024
    %3207 = vmatmul.bf16.gmra.mxu0 %v474
    %v3208 = vpop.f32.mrf.mxu0
    %v3209 = vadd.f32 %v3196, %v3208
    %v3210 = vpop.f32.mrf.mxu0
    %3211 = vdwg.mxu0
    %3212 = vmatpush.bf16.msra.mxu0 %v2054
    %3213 = vmatpush.bf16.msra.mxu0 %v2052
    %3214 = vmatpush.bf16.msra.mxu0 %v2050
    %3215 = vmatpush.bf16.msra.mxu0 %v2048
    %3216 = vmatpush.bf16.msra.mxu0 %v2046
    %3217 = vmatpush.bf16.msra.mxu0 %v2044
    %3218 = vmatpush.bf16.msra.mxu0 %v2042
    %3219 = vmatpush.bf16.msra.mxu0 %v2040
    %3220 = vmatmul.bf16.gmra.mxu0 %v475
    %v3221 = vpop.f32.mrf.mxu0
    %v3222 = vadd.f32 %v3209, %v3221
    %v3223 = vpop.f32.mrf.mxu0
    %3224 = vdwg.mxu0
    %3225 = vmatpush.bf16.msra.mxu0 %v2070
    %3226 = vmatpush.bf16.msra.mxu0 %v2068
    %3227 = vmatpush.bf16.msra.mxu0 %v2066
    %3228 = vmatpush.bf16.msra.mxu0 %v2064
    %3229 = vmatpush.bf16.msra.mxu0 %v2062
    %3230 = vmatpush.bf16.msra.mxu0 %v2060
    %3231 = vmatpush.bf16.msra.mxu0 %v2058
    %3232 = vmatpush.bf16.msra.mxu0 %v2056
    %3233 = vmatmul.bf16.gmra.mxu0 %v476
    %v3234 = vpop.f32.mrf.mxu0
    %v3235 = vadd.f32 %v3222, %v3234
    %v3236 = vpop.f32.mrf.mxu0
    %3237 = vdwg.mxu0
    %3238 = vmatpush.bf16.msra.mxu0 %v2086
    %3239 = vmatpush.bf16.msra.mxu0 %v2084
    %3240 = vmatpush.bf16.msra.mxu0 %v2082
    %3241 = vmatpush.bf16.msra.mxu0 %v2080
    %3242 = vmatpush.bf16.msra.mxu0 %v2078
    %3243 = vmatpush.bf16.msra.mxu0 %v2076
    %3244 = vmatpush.bf16.msra.mxu0 %v2074
    %3245 = vmatpush.bf16.msra.mxu0 %v2072
    %3246 = vmatmul.bf16.gmra.mxu0 %v479
    %v3247 = vpop.f32.mrf.mxu0
    %v3248 = vadd.f32 %v3235, %v3247
    %v3249 = vpop.f32.mrf.mxu0
    %3250 = vdwg.mxu0
    %3251 = vmatpush.bf16.msra.mxu0 %v2102
    %3252 = vmatpush.bf16.msra.mxu0 %v2100
    %3253 = vmatpush.bf16.msra.mxu0 %v2098
    %3254 = vmatpush.bf16.msra.mxu0 %v2096
    %3255 = vmatpush.bf16.msra.mxu0 %v2094
    %3256 = vmatpush.bf16.msra.mxu0 %v2092
    %3257 = vmatpush.bf16.msra.mxu0 %v2090
    %3258 = vmatpush.bf16.msra.mxu0 %v2088
    %3259 = vmatmul.bf16.gmra.mxu0 %v480
    %v3260 = vpop.f32.mrf.mxu0
    %v3261 = vadd.f32 %v3248, %v3260
    %v3262 = vpop.f32.mrf.mxu0
    %3263 = vdwg.mxu0
    %3264 = vmatpush.bf16.msra.mxu0 %v2118
    %3265 = vmatpush.bf16.msra.mxu0 %v2116
    %3266 = vmatpush.bf16.msra.mxu0 %v2114
    %3267 = vmatpush.bf16.msra.mxu0 %v2112
    %3268 = vmatpush.bf16.msra.mxu0 %v2110
    %3269 = vmatpush.bf16.msra.mxu0 %v2108
    %3270 = vmatpush.bf16.msra.mxu0 %v2106
    %3271 = vmatpush.bf16.msra.mxu0 %v2104
    %3272 = vmatmul.bf16.gmra.mxu0 %v481
    %v3273 = vpop.f32.mrf.mxu0
    %v3274 = vadd.f32 %v3261, %v3273
    %v3275 = vpop.f32.mrf.mxu0
    %3276 = vdwg.mxu0
    %3277 = vmatpush.bf16.msra.mxu0 %v2134
    %3278 = vmatpush.bf16.msra.mxu0 %v2132
    %3279 = vmatpush.bf16.msra.mxu0 %v2130
    %3280 = vmatpush.bf16.msra.mxu0 %v2128
    %3281 = vmatpush.bf16.msra.mxu0 %v2126
    %3282 = vmatpush.bf16.msra.mxu0 %v2124
    %3283 = vmatpush.bf16.msra.mxu0 %v2122
    %3284 = vmatpush.bf16.msra.mxu0 %v2120
    %3285 = vmatmul.bf16.gmra.mxu0 %v482
    %v3286 = vpop.f32.mrf.mxu0
    %v3287 = vadd.f32 %v3274, %v3286
    %v3288 = vpop.f32.mrf.mxu0
    %3289 = vdwg.mxu0
    %3290 = vmatpush.bf16.msra.mxu0 %v2150
    %3291 = vmatpush.bf16.msra.mxu0 %v2148
    %3292 = vmatpush.bf16.msra.mxu0 %v2146
    %3293 = vmatpush.bf16.msra.mxu0 %v2144
    %3294 = vmatpush.bf16.msra.mxu0 %v2142
    %3295 = vmatpush.bf16.msra.mxu0 %v2140
    %3296 = vmatpush.bf16.msra.mxu0 %v2138
    %3297 = vmatpush.bf16.msra.mxu0 %v2136
    %3298 = vmatmul.bf16.gmra.mxu0 %v483
    %v3299 = vpop.f32.mrf.mxu0
    %v3300 = vadd.f32 %v3287, %v3299
    %v3301 = vpop.f32.mrf.mxu0
    %3302 = vdwg.mxu0
    %3303 = vmatpush.bf16.msra.mxu0 %v2166
    %3304 = vmatpush.bf16.msra.mxu0 %v2164
    %3305 = vmatpush.bf16.msra.mxu0 %v2162
    %3306 = vmatpush.bf16.msra.mxu0 %v2160
    %3307 = vmatpush.bf16.msra.mxu0 %v2158
    %3308 = vmatpush.bf16.msra.mxu0 %v2156
    %3309 = vmatpush.bf16.msra.mxu0 %v2154
    %3310 = vmatpush.bf16.msra.mxu0 %v2152
    %3311 = vmatmul.bf16.gmra.mxu0 %v484
    %v3312 = vpop.f32.mrf.mxu0
    %v3313 = vadd.f32 %v3300, %v3312
    %v3314 = vpop.f32.mrf.mxu0
    %3315 = vdwg.mxu0
    %3316 = vmatpush.bf16.msra.mxu0 %v2182
    %3317 = vmatpush.bf16.msra.mxu0 %v2180
    %3318 = vmatpush.bf16.msra.mxu0 %v2178
    %3319 = vmatpush.bf16.msra.mxu0 %v2176
    %3320 = vmatpush.bf16.msra.mxu0 %v2174
    %3321 = vmatpush.bf16.msra.mxu0 %v2172
    %3322 = vmatpush.bf16.msra.mxu0 %v2170
    %3323 = vmatpush.bf16.msra.mxu0 %v2168
    %3324 = vmatmul.bf16.gmra.mxu0 %v485
    %v3325 = vpop.f32.mrf.mxu0
    %v3326 = vadd.f32 %v3313, %v3325
    %v3327 = vpop.f32.mrf.mxu0
    %3328 = vdwg.mxu0
    %3329 = vmatpush.bf16.msra.mxu0 %v2198
    %3330 = vmatpush.bf16.msra.mxu0 %v2196
    %3331 = vmatpush.bf16.msra.mxu0 %v2194
    %3332 = vmatpush.bf16.msra.mxu0 %v2192
    %3333 = vmatpush.bf16.msra.mxu0 %v2190
    %3334 = vmatpush.bf16.msra.mxu0 %v2188
    %3335 = vmatpush.bf16.msra.mxu0 %v2186
    %3336 = vmatpush.bf16.msra.mxu0 %v2184
    %3337 = vmatmul.bf16.gmra.mxu0 %v486
    %v3338 = vpop.f32.mrf.mxu0
    %v3339 = vadd.f32 %v3326, %v3338
    %v3340 = vpop.f32.mrf.mxu0
    %3341 = vdwg.mxu0
    %3342 = vmatpush.bf16.msra.mxu0 %v2214
    %3343 = vmatpush.bf16.msra.mxu0 %v2212
    %3344 = vmatpush.bf16.msra.mxu0 %v2210
    %3345 = vmatpush.bf16.msra.mxu0 %v2208
    %3346 = vmatpush.bf16.msra.mxu0 %v2206
    %3347 = vmatpush.bf16.msra.mxu0 %v2204
    %3348 = vmatpush.bf16.msra.mxu0 %v2202
    %3349 = vmatpush.bf16.msra.mxu0 %v2200
    %3350 = vmatmul.bf16.gmra.mxu0 %v489
    %v3351 = vpop.f32.mrf.mxu0
    %v3352 = vadd.f32 %v3339, %v3351
    %v3353 = vpop.f32.mrf.mxu0
    %3354 = vdwg.mxu0
    %3355 = vmatpush.bf16.msra.mxu0 %v2230
    %3356 = vmatpush.bf16.msra.mxu0 %v2228
    %3357 = vmatpush.bf16.msra.mxu0 %v2226
    %3358 = vmatpush.bf16.msra.mxu0 %v2224
    %3359 = vmatpush.bf16.msra.mxu0 %v2222
    %3360 = vmatpush.bf16.msra.mxu0 %v2220
    %3361 = vmatpush.bf16.msra.mxu0 %v2218
    %3362 = vmatpush.bf16.msra.mxu0 %v2216
    %3363 = vmatmul.bf16.gmra.mxu0 %v490
    %v3364 = vpop.f32.mrf.mxu0
    %v3365 = vadd.f32 %v3352, %v3364
    %v3366 = vpop.f32.mrf.mxu0
    %3367 = vdwg.mxu0
    %3368 = vmatpush.bf16.msra.mxu0 %v2246
    %3369 = vmatpush.bf16.msra.mxu0 %v2244
    %3370 = vmatpush.bf16.msra.mxu0 %v2242
    %3371 = vmatpush.bf16.msra.mxu0 %v2240
    %3372 = vmatpush.bf16.msra.mxu0 %v2238
    %3373 = vmatpush.bf16.msra.mxu0 %v2236
    %3374 = vmatpush.bf16.msra.mxu0 %v2234
    %3375 = vmatpush.bf16.msra.mxu0 %v2232
    %3376 = vmatmul.bf16.gmra.mxu0 %v491
    %v3377 = vpop.f32.mrf.mxu0
    %v3378 = vadd.f32 %v3365, %v3377
    %v3379 = vpop.f32.mrf.mxu0
    %3380 = vdwg.mxu0
    %s3381 = scalar_lea.vmem %s0, 27
    %v3382 = vld [vmem:[%s3381] sm:$0xff]
    %v3383 = vld [vmem:[%s3381 + $0x8] sm:$0xff]
    %v3384 = vld [vmem:[%s3381 + $0x10] sm:$0xff]
    %v3385 = vld [vmem:[%s3381 + $0x18] sm:$0x7]
    %3387 = vst [vmem:[#allocation1] ss:$9 sm:$0xff] %v3382
    %v3388 = vld [vmem:[#allocation1] sm:$0xff]
    %v3389 = vld [vmem:[#allocation1 + $0x9] sm:$0xff]
    %v3390 = vld [vmem:[#allocation1 + $0x12] sm:$0xff]
    %v3391 = vld [vmem:[#allocation1 + $0x1b] sm:$0xff]
    %v3392 = vld [vmem:[#allocation1 + $0x24] sm:$0xff]
    %v3393 = vld [vmem:[#allocation1 + $0x2d] sm:$0xff]
    %v3394 = vld [vmem:[#allocation1 + $0x36] sm:$0xff]
    %v3395 = vld [vmem:[#allocation1 + $0x3f] sm:$0xff]
    %3397 = vst [vmem:[#allocation1] ss:$9 sm:$0xff] %v3383
    %v3398 = vld [vmem:[#allocation1] sm:$0xff]
    %v3399 = vld [vmem:[#allocation1 + $0x9] sm:$0xff]
    %v3400 = vld [vmem:[#allocation1 + $0x12] sm:$0xff]
    %v3401 = vld [vmem:[#allocation1 + $0x1b] sm:$0xff]
    %v3402 = vld [vmem:[#allocation1 + $0x24] sm:$0xff]
    %v3403 = vld [vmem:[#allocation1 + $0x2d] sm:$0xff]
    %v3404 = vld [vmem:[#allocation1 + $0x36] sm:$0xff]
    %v3405 = vld [vmem:[#allocation1 + $0x3f] sm:$0xff]
    %3407 = vst [vmem:[#allocation1] ss:$9 sm:$0xff] %v3384
    %v3408 = vld [vmem:[#allocation1] sm:$0xff]
    %v3409 = vld [vmem:[#allocation1 + $0x9] sm:$0xff]
    %v3410 = vld [vmem:[#allocation1 + $0x12] sm:$0xff]
    %v3411 = vld [vmem:[#allocation1 + $0x1b] sm:$0xff]
    %v3412 = vld [vmem:[#allocation1 + $0x24] sm:$0xff]
    %v3413 = vld [vmem:[#allocation1 + $0x2d] sm:$0xff]
    %v3414 = vld [vmem:[#allocation1 + $0x36] sm:$0xff]
    %v3415 = vld [vmem:[#allocation1 + $0x3f] sm:$0xff]
    %3417 = vst [vmem:[#allocation1] ss:$9 sm:$0xff] %v3385
    %v3418 = vld [vmem:[#allocation1] sm:$0xff]
    %v3419 = vld [vmem:[#allocation1 + $0x9] sm:$0xff]
    %v3420 = vld [vmem:[#allocation1 + $0x12] sm:$0xff]
    %3448 = vmatpush.bf16.msra.mxu0 %v1829
    %3449 = vmatpush.bf16.msra.mxu0 %v1827
    %3450 = vmatpush.bf16.msra.mxu0 %v1825
    %3451 = vmatpush.bf16.msra.mxu0 %v1823
    %3452 = vmatpush.bf16.msra.mxu0 %v1821
    %3453 = vmatpush.bf16.msra.mxu0 %v1819
    %3454 = vmatpush.bf16.msra.mxu0 %v1817
    %3455 = vmatpush.bf16.msra.mxu0 %v1815
    %3456 = vmatmul.bf16.gmra.mxu0 %v3388
    %v3457 = vpop.f32.mrf.mxu0
    %v3458 = vadd.f32 0.0, %v3457
    %v3459 = vpop.f32.mrf.mxu0
    %3460 = vdwg.mxu0
    %3461 = vmatpush.bf16.msra.mxu0 %v1845
    %3462 = vmatpush.bf16.msra.mxu0 %v1843
    %3463 = vmatpush.bf16.msra.mxu0 %v1841
    %3464 = vmatpush.bf16.msra.mxu0 %v1839
    %3465 = vmatpush.bf16.msra.mxu0 %v1837
    %3466 = vmatpush.bf16.msra.mxu0 %v1835
    %3467 = vmatpush.bf16.msra.mxu0 %v1833
    %3468 = vmatpush.bf16.msra.mxu0 %v1831
    %3469 = vmatmul.bf16.gmra.mxu0 %v3389
    %v3470 = vpop.f32.mrf.mxu0
    %v3471 = vadd.f32 %v3458, %v3470
    %v3472 = vpop.f32.mrf.mxu0
    %3473 = vdwg.mxu0
    %3474 = vmatpush.bf16.msra.mxu0 %v1861
    %3475 = vmatpush.bf16.msra.mxu0 %v1859
    %3476 = vmatpush.bf16.msra.mxu0 %v1857
    %3477 = vmatpush.bf16.msra.mxu0 %v1855
    %3478 = vmatpush.bf16.msra.mxu0 %v1853
    %3479 = vmatpush.bf16.msra.mxu0 %v1851
    %3480 = vmatpush.bf16.msra.mxu0 %v1849
    %3481 = vmatpush.bf16.msra.mxu0 %v1847
    %3482 = vmatmul.bf16.gmra.mxu0 %v3390
    %v3483 = vpop.f32.mrf.mxu0
    %v3484 = vadd.f32 %v3471, %v3483
    %v3485 = vpop.f32.mrf.mxu0
    %3486 = vdwg.mxu0
    %3487 = vmatpush.bf16.msra.mxu0 %v1877
    %3488 = vmatpush.bf16.msra.mxu0 %v1875
    %3489 = vmatpush.bf16.msra.mxu0 %v1873
    %3490 = vmatpush.bf16.msra.mxu0 %v1871
    %3491 = vmatpush.bf16.msra.mxu0 %v1869
    %3492 = vmatpush.bf16.msra.mxu0 %v1867
    %3493 = vmatpush.bf16.msra.mxu0 %v1865
    %3494 = vmatpush.bf16.msra.mxu0 %v1863
    %3495 = vmatmul.bf16.gmra.mxu0 %v3391
    %v3496 = vpop.f32.mrf.mxu0
    %v3497 = vadd.f32 %v3484, %v3496
    %v3498 = vpop.f32.mrf.mxu0
    %3499 = vdwg.mxu0
    %3500 = vmatpush.bf16.msra.mxu0 %v1893
    %3501 = vmatpush.bf16.msra.mxu0 %v1891
    %3502 = vmatpush.bf16.msra.mxu0 %v1889
    %3503 = vmatpush.bf16.msra.mxu0 %v1887
    %3504 = vmatpush.bf16.msra.mxu0 %v1885
    %3505 = vmatpush.bf16.msra.mxu0 %v1883
    %3506 = vmatpush.bf16.msra.mxu0 %v1881
    %3507 = vmatpush.bf16.msra.mxu0 %v1879
    %3508 = vmatmul.bf16.gmra.mxu0 %v3392
    %v3509 = vpop.f32.mrf.mxu0
    %v3510 = vadd.f32 %v3497, %v3509
    %v3511 = vpop.f32.mrf.mxu0
    %3512 = vdwg.mxu0
    %3513 = vmatpush.bf16.msra.mxu0 %v1909
    %3514 = vmatpush.bf16.msra.mxu0 %v1907
    %3515 = vmatpush.bf16.msra.mxu0 %v1905
    %3516 = vmatpush.bf16.msra.mxu0 %v1903
    %3517 = vmatpush.bf16.msra.mxu0 %v1901
    %3518 = vmatpush.bf16.msra.mxu0 %v1899
    %3519 = vmatpush.bf16.msra.mxu0 %v1897
    %3520 = vmatpush.bf16.msra.mxu0 %v1895
    %3521 = vmatmul.bf16.gmra.mxu0 %v3393
    %v3522 = vpop.f32.mrf.mxu0
    %v3523 = vadd.f32 %v3510, %v3522
    %v3524 = vpop.f32.mrf.mxu0
    %3525 = vdwg.mxu0
    %3526 = vmatpush.bf16.msra.mxu0 %v1925
    %3527 = vmatpush.bf16.msra.mxu0 %v1923
    %3528 = vmatpush.bf16.msra.mxu0 %v1921
    %3529 = vmatpush.bf16.msra.mxu0 %v1919
    %3530 = vmatpush.bf16.msra.mxu0 %v1917
    %3531 = vmatpush.bf16.msra.mxu0 %v1915
    %3532 = vmatpush.bf16.msra.mxu0 %v1913
    %3533 = vmatpush.bf16.msra.mxu0 %v1911
    %3534 = vmatmul.bf16.gmra.mxu0 %v3394
    %v3535 = vpop.f32.mrf.mxu0
    %v3536 = vadd.f32 %v3523, %v3535
    %v3537 = vpop.f32.mrf.mxu0
    %3538 = vdwg.mxu0
    %3539 = vmatpush.bf16.msra.mxu0 %v1941
    %3540 = vmatpush.bf16.msra.mxu0 %v1939
    %3541 = vmatpush.bf16.msra.mxu0 %v1937
    %3542 = vmatpush.bf16.msra.mxu0 %v1935
    %3543 = vmatpush.bf16.msra.mxu0 %v1933
    %3544 = vmatpush.bf16.msra.mxu0 %v1931
    %3545 = vmatpush.bf16.msra.mxu0 %v1929
    %3546 = vmatpush.bf16.msra.mxu0 %v1927
    %3547 = vmatmul.bf16.gmra.mxu0 %v3395
    %v3548 = vpop.f32.mrf.mxu0
    %v3549 = vadd.f32 %v3536, %v3548
    %v3550 = vpop.f32.mrf.mxu0
    %3551 = vdwg.mxu0
    %3552 = vmatpush.bf16.msra.mxu0 %v1957
    %3553 = vmatpush.bf16.msra.mxu0 %v1955
    %3554 = vmatpush.bf16.msra.mxu0 %v1953
    %3555 = vmatpush.bf16.msra.mxu0 %v1951
    %3556 = vmatpush.bf16.msra.mxu0 %v1949
    %3557 = vmatpush.bf16.msra.mxu0 %v1947
    %3558 = vmatpush.bf16.msra.mxu0 %v1945
    %3559 = vmatpush.bf16.msra.mxu0 %v1943
    %3560 = vmatmul.bf16.gmra.mxu0 %v3398
    %v3561 = vpop.f32.mrf.mxu0
    %v3562 = vadd.f32 %v3549, %v3561
    %v3563 = vpop.f32.mrf.mxu0
    %3564 = vdwg.mxu0
    %3565 = vmatpush.bf16.msra.mxu0 %v1973
    %3566 = vmatpush.bf16.msra.mxu0 %v1971
    %3567 = vmatpush.bf16.msra.mxu0 %v1969
    %3568 = vmatpush.bf16.msra.mxu0 %v1967
    %3569 = vmatpush.bf16.msra.mxu0 %v1965
    %3570 = vmatpush.bf16.msra.mxu0 %v1963
    %3571 = vmatpush.bf16.msra.mxu0 %v1961
    %3572 = vmatpush.bf16.msra.mxu0 %v1959
    %3573 = vmatmul.bf16.gmra.mxu0 %v3399
    %v3574 = vpop.f32.mrf.mxu0
    %v3575 = vadd.f32 %v3562, %v3574
    %v3576 = vpop.f32.mrf.mxu0
    %3577 = vdwg.mxu0
    %3578 = vmatpush.bf16.msra.mxu0 %v1989
    %3579 = vmatpush.bf16.msra.mxu0 %v1987
    %3580 = vmatpush.bf16.msra.mxu0 %v1985
    %3581 = vmatpush.bf16.msra.mxu0 %v1983
    %3582 = vmatpush.bf16.msra.mxu0 %v1981
    %3583 = vmatpush.bf16.msra.mxu0 %v1979
    %3584 = vmatpush.bf16.msra.mxu0 %v1977
    %3585 = vmatpush.bf16.msra.mxu0 %v1975
    %3586 = vmatmul.bf16.gmra.mxu0 %v3400
    %v3587 = vpop.f32.mrf.mxu0
    %v3588 = vadd.f32 %v3575, %v3587
    %v3589 = vpop.f32.mrf.mxu0
    %3590 = vdwg.mxu0
    %3591 = vmatpush.bf16.msra.mxu0 %v2005
    %3592 = vmatpush.bf16.msra.mxu0 %v2003
    %3593 = vmatpush.bf16.msra.mxu0 %v2001
    %3594 = vmatpush.bf16.msra.mxu0 %v1999
    %3595 = vmatpush.bf16.msra.mxu0 %v1997
    %3596 = vmatpush.bf16.msra.mxu0 %v1995
    %3597 = vmatpush.bf16.msra.mxu0 %v1993
    %3598 = vmatpush.bf16.msra.mxu0 %v1991
    %3599 = vmatmul.bf16.gmra.mxu0 %v3401
    %v3600 = vpop.f32.mrf.mxu0
    %v3601 = vadd.f32 %v3588, %v3600
    %v3602 = vpop.f32.mrf.mxu0
    %3603 = vdwg.mxu0
    %3604 = vmatpush.bf16.msra.mxu0 %v2021
    %3605 = vmatpush.bf16.msra.mxu0 %v2019
    %3606 = vmatpush.bf16.msra.mxu0 %v2017
    %3607 = vmatpush.bf16.msra.mxu0 %v2015
    %3608 = vmatpush.bf16.msra.mxu0 %v2013
    %3609 = vmatpush.bf16.msra.mxu0 %v2011
    %3610 = vmatpush.bf16.msra.mxu0 %v2009
    %3611 = vmatpush.bf16.msra.mxu0 %v2007
    %3612 = vmatmul.bf16.gmra.mxu0 %v3402
    %v3613 = vpop.f32.mrf.mxu0
    %v3614 = vadd.f32 %v3601, %v3613
    %v3615 = vpop.f32.mrf.mxu0
    %3616 = vdwg.mxu0
    %3617 = vmatpush.bf16.msra.mxu0 %v2037
    %3618 = vmatpush.bf16.msra.mxu0 %v2035
    %3619 = vmatpush.bf16.msra.mxu0 %v2033
    %3620 = vmatpush.bf16.msra.mxu0 %v2031
    %3621 = vmatpush.bf16.msra.mxu0 %v2029
    %3622 = vmatpush.bf16.msra.mxu0 %v2027
    %3623 = vmatpush.bf16.msra.mxu0 %v2025
    %3624 = vmatpush.bf16.msra.mxu0 %v2023
    %3625 = vmatmul.bf16.gmra.mxu0 %v3403
    %v3626 = vpop.f32.mrf.mxu0
    %v3627 = vadd.f32 %v3614, %v3626
    %v3628 = vpop.f32.mrf.mxu0
    %3629 = vdwg.mxu0
    %3630 = vmatpush.bf16.msra.mxu0 %v2053
    %3631 = vmatpush.bf16.msra.mxu0 %v2051
    %3632 = vmatpush.bf16.msra.mxu0 %v2049
    %3633 = vmatpush.bf16.msra.mxu0 %v2047
    %3634 = vmatpush.bf16.msra.mxu0 %v2045
    %3635 = vmatpush.bf16.msra.mxu0 %v2043
    %3636 = vmatpush.bf16.msra.mxu0 %v2041
    %3637 = vmatpush.bf16.msra.mxu0 %v2039
    %3638 = vmatmul.bf16.gmra.mxu0 %v3404
    %v3639 = vpop.f32.mrf.mxu0
    %v3640 = vadd.f32 %v3627, %v3639
    %v3641 = vpop.f32.mrf.mxu0
    %3642 = vdwg.mxu0
    %3643 = vmatpush.bf16.msra.mxu0 %v2069
    %3644 = vmatpush.bf16.msra.mxu0 %v2067
    %3645 = vmatpush.bf16.msra.mxu0 %v2065
    %3646 = vmatpush.bf16.msra.mxu0 %v2063
    %3647 = vmatpush.bf16.msra.mxu0 %v2061
    %3648 = vmatpush.bf16.msra.mxu0 %v2059
    %3649 = vmatpush.bf16.msra.mxu0 %v2057
    %3650 = vmatpush.bf16.msra.mxu0 %v2055
    %3651 = vmatmul.bf16.gmra.mxu0 %v3405
    %v3652 = vpop.f32.mrf.mxu0
    %v3653 = vadd.f32 %v3640, %v3652
    %v3654 = vpop.f32.mrf.mxu0
    %3655 = vdwg.mxu0
    %3656 = vmatpush.bf16.msra.mxu0 %v2085
    %3657 = vmatpush.bf16.msra.mxu0 %v2083
    %3658 = vmatpush.bf16.msra.mxu0 %v2081
    %3659 = vmatpush.bf16.msra.mxu0 %v2079
    %3660 = vmatpush.bf16.msra.mxu0 %v2077
    %3661 = vmatpush.bf16.msra.mxu0 %v2075
    %3662 = vmatpush.bf16.msra.mxu0 %v2073
    %3663 = vmatpush.bf16.msra.mxu0 %v2071
    %3664 = vmatmul.bf16.gmra.mxu0 %v3408
    %v3665 = vpop.f32.mrf.mxu0
    %v3666 = vadd.f32 %v3653, %v3665
    %v3667 = vpop.f32.mrf.mxu0
    %3668 = vdwg.mxu0
    %3669 = vmatpush.bf16.msra.mxu0 %v2101
    %3670 = vmatpush.bf16.msra.mxu0 %v2099
    %3671 = vmatpush.bf16.msra.mxu0 %v2097
    %3672 = vmatpush.bf16.msra.mxu0 %v2095
    %3673 = vmatpush.bf16.msra.mxu0 %v2093
    %3674 = vmatpush.bf16.msra.mxu0 %v2091
    %3675 = vmatpush.bf16.msra.mxu0 %v2089
    %3676 = vmatpush.bf16.msra.mxu0 %v2087
    %3677 = vmatmul.bf16.gmra.mxu0 %v3409
    %v3678 = vpop.f32.mrf.mxu0
    %v3679 = vadd.f32 %v3666, %v3678
    %v3680 = vpop.f32.mrf.mxu0
    %3681 = vdwg.mxu0
    %3682 = vmatpush.bf16.msra.mxu0 %v2117
    %3683 = vmatpush.bf16.msra.mxu0 %v2115
    %3684 = vmatpush.bf16.msra.mxu0 %v2113
    %3685 = vmatpush.bf16.msra.mxu0 %v2111
    %3686 = vmatpush.bf16.msra.mxu0 %v2109
    %3687 = vmatpush.bf16.msra.mxu0 %v2107
    %3688 = vmatpush.bf16.msra.mxu0 %v2105
    %3689 = vmatpush.bf16.msra.mxu0 %v2103
    %3690 = vmatmul.bf16.gmra.mxu0 %v3410
    %v3691 = vpop.f32.mrf.mxu0
    %v3692 = vadd.f32 %v3679, %v3691
    %v3693 = vpop.f32.mrf.mxu0
    %3694 = vdwg.mxu0
    %3695 = vmatpush.bf16.msra.mxu0 %v2133
    %3696 = vmatpush.bf16.msra.mxu0 %v2131
    %3697 = vmatpush.bf16.msra.mxu0 %v2129
    %3698 = vmatpush.bf16.msra.mxu0 %v2127
    %3699 = vmatpush.bf16.msra.mxu0 %v2125
    %3700 = vmatpush.bf16.msra.mxu0 %v2123
    %3701 = vmatpush.bf16.msra.mxu0 %v2121
    %3702 = vmatpush.bf16.msra.mxu0 %v2119
    %3703 = vmatmul.bf16.gmra.mxu0 %v3411
    %v3704 = vpop.f32.mrf.mxu0
    %v3705 = vadd.f32 %v3692, %v3704
    %v3706 = vpop.f32.mrf.mxu0
    %3707 = vdwg.mxu0
    %3708 = vmatpush.bf16.msra.mxu0 %v2149
    %3709 = vmatpush.bf16.msra.mxu0 %v2147
    %3710 = vmatpush.bf16.msra.mxu0 %v2145
    %3711 = vmatpush.bf16.msra.mxu0 %v2143
    %3712 = vmatpush.bf16.msra.mxu0 %v2141
    %3713 = vmatpush.bf16.msra.mxu0 %v2139
    %3714 = vmatpush.bf16.msra.mxu0 %v2137
    %3715 = vmatpush.bf16.msra.mxu0 %v2135
    %3716 = vmatmul.bf16.gmra.mxu0 %v3412
    %v3717 = vpop.f32.mrf.mxu0
    %v3718 = vadd.f32 %v3705, %v3717
    %v3719 = vpop.f32.mrf.mxu0
    %3720 = vdwg.mxu0
    %3721 = vmatpush.bf16.msra.mxu0 %v2165
    %3722 = vmatpush.bf16.msra.mxu0 %v2163
    %3723 = vmatpush.bf16.msra.mxu0 %v2161
    %3724 = vmatpush.bf16.msra.mxu0 %v2159
    %3725 = vmatpush.bf16.msra.mxu0 %v2157
    %3726 = vmatpush.bf16.msra.mxu0 %v2155
    %3727 = vmatpush.bf16.msra.mxu0 %v2153
    %3728 = vmatpush.bf16.msra.mxu0 %v2151
    %3729 = vmatmul.bf16.gmra.mxu0 %v3413
    %v3730 = vpop.f32.mrf.mxu0
    %v3731 = vadd.f32 %v3718, %v3730
    %v3732 = vpop.f32.mrf.mxu0
    %3733 = vdwg.mxu0
    %3734 = vmatpush.bf16.msra.mxu0 %v2181
    %3735 = vmatpush.bf16.msra.mxu0 %v2179
    %3736 = vmatpush.bf16.msra.mxu0 %v2177
    %3737 = vmatpush.bf16.msra.mxu0 %v2175
    %3738 = vmatpush.bf16.msra.mxu0 %v2173
    %3739 = vmatpush.bf16.msra.mxu0 %v2171
    %3740 = vmatpush.bf16.msra.mxu0 %v2169
    %3741 = vmatpush.bf16.msra.mxu0 %v2167
    %3742 = vmatmul.bf16.gmra.mxu0 %v3414
    %v3743 = vpop.f32.mrf.mxu0
    %v3744 = vadd.f32 %v3731, %v3743
    %v3745 = vpop.f32.mrf.mxu0
    %3746 = vdwg.mxu0
    %3747 = vmatpush.bf16.msra.mxu0 %v2197
    %3748 = vmatpush.bf16.msra.mxu0 %v2195
    %3749 = vmatpush.bf16.msra.mxu0 %v2193
    %3750 = vmatpush.bf16.msra.mxu0 %v2191
    %3751 = vmatpush.bf16.msra.mxu0 %v2189
    %3752 = vmatpush.bf16.msra.mxu0 %v2187
    %3753 = vmatpush.bf16.msra.mxu0 %v2185
    %3754 = vmatpush.bf16.msra.mxu0 %v2183
    %3755 = vmatmul.bf16.gmra.mxu0 %v3415
    %v3756 = vpop.f32.mrf.mxu0
    %v3757 = vadd.f32 %v3744, %v3756
    %v3758 = vpop.f32.mrf.mxu0
    %3759 = vdwg.mxu0
    %3760 = vmatpush.bf16.msra.mxu0 %v2213
    %3761 = vmatpush.bf16.msra.mxu0 %v2211
    %3762 = vmatpush.bf16.msra.mxu0 %v2209
    %3763 = vmatpush.bf16.msra.mxu0 %v2207
    %3764 = vmatpush.bf16.msra.mxu0 %v2205
    %3765 = vmatpush.bf16.msra.mxu0 %v2203
    %3766 = vmatpush.bf16.msra.mxu0 %v2201
    %3767 = vmatpush.bf16.msra.mxu0 %v2199
    %3768 = vmatmul.bf16.gmra.mxu0 %v3418
    %v3769 = vpop.f32.mrf.mxu0
    %v3770 = vadd.f32 %v3757, %v3769
    %v3771 = vpop.f32.mrf.mxu0
    %3772 = vdwg.mxu0
    %3773 = vmatpush.bf16.msra.mxu0 %v2229
    %3774 = vmatpush.bf16.msra.mxu0 %v2227
    %3775 = vmatpush.bf16.msra.mxu0 %v2225
    %3776 = vmatpush.bf16.msra.mxu0 %v2223
    %3777 = vmatpush.bf16.msra.mxu0 %v2221
    %3778 = vmatpush.bf16.msra.mxu0 %v2219
    %3779 = vmatpush.bf16.msra.mxu0 %v2217
    %3780 = vmatpush.bf16.msra.mxu0 %v2215
    %3781 = vmatmul.bf16.gmra.mxu0 %v3419
    %v3782 = vpop.f32.mrf.mxu0
    %v3783 = vadd.f32 %v3770, %v3782
    %v3784 = vpop.f32.mrf.mxu0
    %3785 = vdwg.mxu0
    %3786 = vmatpush.bf16.msra.mxu0 %v2245
    %3787 = vmatpush.bf16.msra.mxu0 %v2243
    %3788 = vmatpush.bf16.msra.mxu0 %v2241
    %3789 = vmatpush.bf16.msra.mxu0 %v2239
    %3790 = vmatpush.bf16.msra.mxu0 %v2237
    %3791 = vmatpush.bf16.msra.mxu0 %v2235
    %3792 = vmatpush.bf16.msra.mxu0 %v2233
    %3793 = vmatpush.bf16.msra.mxu0 %v2231
    %3794 = vmatmul.bf16.gmra.mxu0 %v3420
    %v3795 = vpop.f32.mrf.mxu0
    %v3796 = vadd.f32 %v3783, %v3795
    %v3797 = vpop.f32.mrf.mxu0
    %3798 = vdwg.mxu0
    %3799 = vmatpush.bf16.msra.mxu0 %v1830
    %3800 = vmatpush.bf16.msra.mxu0 %v1828
    %3801 = vmatpush.bf16.msra.mxu0 %v1826
    %3802 = vmatpush.bf16.msra.mxu0 %v1824
    %3803 = vmatpush.bf16.msra.mxu0 %v1822
    %3804 = vmatpush.bf16.msra.mxu0 %v1820
    %3805 = vmatpush.bf16.msra.mxu0 %v1818
    %3806 = vmatpush.bf16.msra.mxu0 %v1816
    %3807 = vmatmul.bf16.gmra.mxu0 %v3388
    %v3808 = vpop.f32.mrf.mxu0
    %v3809 = vadd.f32 0.0, %v3808
    %v3810 = vpop.f32.mrf.mxu0
    %3811 = vdwg.mxu0
    %3812 = vmatpush.bf16.msra.mxu0 %v1846
    %3813 = vmatpush.bf16.msra.mxu0 %v1844
    %3814 = vmatpush.bf16.msra.mxu0 %v1842
    %3815 = vmatpush.bf16.msra.mxu0 %v1840
    %3816 = vmatpush.bf16.msra.mxu0 %v1838
    %3817 = vmatpush.bf16.msra.mxu0 %v1836
    %3818 = vmatpush.bf16.msra.mxu0 %v1834
    %3819 = vmatpush.bf16.msra.mxu0 %v1832
    %3820 = vmatmul.bf16.gmra.mxu0 %v3389
    %v3821 = vpop.f32.mrf.mxu0
    %v3822 = vadd.f32 %v3809, %v3821
    %v3823 = vpop.f32.mrf.mxu0
    %3824 = vdwg.mxu0
    %3825 = vmatpush.bf16.msra.mxu0 %v1862
    %3826 = vmatpush.bf16.msra.mxu0 %v1860
    %3827 = vmatpush.bf16.msra.mxu0 %v1858
    %3828 = vmatpush.bf16.msra.mxu0 %v1856
    %3829 = vmatpush.bf16.msra.mxu0 %v1854
    %3830 = vmatpush.bf16.msra.mxu0 %v1852
    %3831 = vmatpush.bf16.msra.mxu0 %v1850
    %3832 = vmatpush.bf16.msra.mxu0 %v1848
    %3833 = vmatmul.bf16.gmra.mxu0 %v3390
    %v3834 = vpop.f32.mrf.mxu0
    %v3835 = vadd.f32 %v3822, %v3834
    %v3836 = vpop.f32.mrf.mxu0
    %3837 = vdwg.mxu0
    %3838 = vmatpush.bf16.msra.mxu0 %v1878
    %3839 = vmatpush.bf16.msra.mxu0 %v1876
    %3840 = vmatpush.bf16.msra.mxu0 %v1874
    %3841 = vmatpush.bf16.msra.mxu0 %v1872
    %3842 = vmatpush.bf16.msra.mxu0 %v1870
    %3843 = vmatpush.bf16.msra.mxu0 %v1868
    %3844 = vmatpush.bf16.msra.mxu0 %v1866
    %3845 = vmatpush.bf16.msra.mxu0 %v1864
    %3846 = vmatmul.bf16.gmra.mxu0 %v3391
    %v3847 = vpop.f32.mrf.mxu0
    %v3848 = vadd.f32 %v3835, %v3847
    %v3849 = vpop.f32.mrf.mxu0
    %3850 = vdwg.mxu0
    %3851 = vmatpush.bf16.msra.mxu0 %v1894
    %3852 = vmatpush.bf16.msra.mxu0 %v1892
    %3853 = vmatpush.bf16.msra.mxu0 %v1890
    %3854 = vmatpush.bf16.msra.mxu0 %v1888
    %3855 = vmatpush.bf16.msra.mxu0 %v1886
    %3856 = vmatpush.bf16.msra.mxu0 %v1884
    %3857 = vmatpush.bf16.msra.mxu0 %v1882
    %3858 = vmatpush.bf16.msra.mxu0 %v1880
    %3859 = vmatmul.bf16.gmra.mxu0 %v3392
    %v3860 = vpop.f32.mrf.mxu0
    %v3861 = vadd.f32 %v3848, %v3860
    %v3862 = vpop.f32.mrf.mxu0
    %3863 = vdwg.mxu0
    %3864 = vmatpush.bf16.msra.mxu0 %v1910
    %3865 = vmatpush.bf16.msra.mxu0 %v1908
    %3866 = vmatpush.bf16.msra.mxu0 %v1906
    %3867 = vmatpush.bf16.msra.mxu0 %v1904
    %3868 = vmatpush.bf16.msra.mxu0 %v1902
    %3869 = vmatpush.bf16.msra.mxu0 %v1900
    %3870 = vmatpush.bf16.msra.mxu0 %v1898
    %3871 = vmatpush.bf16.msra.mxu0 %v1896
    %3872 = vmatmul.bf16.gmra.mxu0 %v3393
    %v3873 = vpop.f32.mrf.mxu0
    %v3874 = vadd.f32 %v3861, %v3873
    %v3875 = vpop.f32.mrf.mxu0
    %3876 = vdwg.mxu0
    %3877 = vmatpush.bf16.msra.mxu0 %v1926
    %3878 = vmatpush.bf16.msra.mxu0 %v1924
    %3879 = vmatpush.bf16.msra.mxu0 %v1922
    %3880 = vmatpush.bf16.msra.mxu0 %v1920
    %3881 = vmatpush.bf16.msra.mxu0 %v1918
    %3882 = vmatpush.bf16.msra.mxu0 %v1916
    %3883 = vmatpush.bf16.msra.mxu0 %v1914
    %3884 = vmatpush.bf16.msra.mxu0 %v1912
    %3885 = vmatmul.bf16.gmra.mxu0 %v3394
    %v3886 = vpop.f32.mrf.mxu0
    %v3887 = vadd.f32 %v3874, %v3886
    %v3888 = vpop.f32.mrf.mxu0
    %3889 = vdwg.mxu0
    %3890 = vmatpush.bf16.msra.mxu0 %v1942
    %3891 = vmatpush.bf16.msra.mxu0 %v1940
    %3892 = vmatpush.bf16.msra.mxu0 %v1938
    %3893 = vmatpush.bf16.msra.mxu0 %v1936
    %3894 = vmatpush.bf16.msra.mxu0 %v1934
    %3895 = vmatpush.bf16.msra.mxu0 %v1932
    %3896 = vmatpush.bf16.msra.mxu0 %v1930
    %3897 = vmatpush.bf16.msra.mxu0 %v1928
    %3898 = vmatmul.bf16.gmra.mxu0 %v3395
    %v3899 = vpop.f32.mrf.mxu0
    %v3900 = vadd.f32 %v3887, %v3899
    %v3901 = vpop.f32.mrf.mxu0
    %3902 = vdwg.mxu0
    %3903 = vmatpush.bf16.msra.mxu0 %v1958
    %3904 = vmatpush.bf16.msra.mxu0 %v1956
    %3905 = vmatpush.bf16.msra.mxu0 %v1954
    %3906 = vmatpush.bf16.msra.mxu0 %v1952
    %3907 = vmatpush.bf16.msra.mxu0 %v1950
    %3908 = vmatpush.bf16.msra.mxu0 %v1948
    %3909 = vmatpush.bf16.msra.mxu0 %v1946
    %3910 = vmatpush.bf16.msra.mxu0 %v1944
    %3911 = vmatmul.bf16.gmra.mxu0 %v3398
    %v3912 = vpop.f32.mrf.mxu0
    %v3913 = vadd.f32 %v3900, %v3912
    %v3914 = vpop.f32.mrf.mxu0
    %3915 = vdwg.mxu0
    %3916 = vmatpush.bf16.msra.mxu0 %v1974
    %3917 = vmatpush.bf16.msra.mxu0 %v1972
    %3918 = vmatpush.bf16.msra.mxu0 %v1970
    %3919 = vmatpush.bf16.msra.mxu0 %v1968
    %3920 = vmatpush.bf16.msra.mxu0 %v1966
    %3921 = vmatpush.bf16.msra.mxu0 %v1964
    %3922 = vmatpush.bf16.msra.mxu0 %v1962
    %3923 = vmatpush.bf16.msra.mxu0 %v1960
    %3924 = vmatmul.bf16.gmra.mxu0 %v3399
    %v3925 = vpop.f32.mrf.mxu0
    %v3926 = vadd.f32 %v3913, %v3925
    %v3927 = vpop.f32.mrf.mxu0
    %3928 = vdwg.mxu0
    %3929 = vmatpush.bf16.msra.mxu0 %v1990
    %3930 = vmatpush.bf16.msra.mxu0 %v1988
    %3931 = vmatpush.bf16.msra.mxu0 %v1986
    %3932 = vmatpush.bf16.msra.mxu0 %v1984
    %3933 = vmatpush.bf16.msra.mxu0 %v1982
    %3934 = vmatpush.bf16.msra.mxu0 %v1980
    %3935 = vmatpush.bf16.msra.mxu0 %v1978
    %3936 = vmatpush.bf16.msra.mxu0 %v1976
    %3937 = vmatmul.bf16.gmra.mxu0 %v3400
    %v3938 = vpop.f32.mrf.mxu0
    %v3939 = vadd.f32 %v3926, %v3938
    %v3940 = vpop.f32.mrf.mxu0
    %3941 = vdwg.mxu0
    %3942 = vmatpush.bf16.msra.mxu0 %v2006
    %3943 = vmatpush.bf16.msra.mxu0 %v2004
    %3944 = vmatpush.bf16.msra.mxu0 %v2002
    %3945 = vmatpush.bf16.msra.mxu0 %v2000
    %3946 = vmatpush.bf16.msra.mxu0 %v1998
    %3947 = vmatpush.bf16.msra.mxu0 %v1996
    %3948 = vmatpush.bf16.msra.mxu0 %v1994
    %3949 = vmatpush.bf16.msra.mxu0 %v1992
    %3950 = vmatmul.bf16.gmra.mxu0 %v3401
    %v3951 = vpop.f32.mrf.mxu0
    %v3952 = vadd.f32 %v3939, %v3951
    %v3953 = vpop.f32.mrf.mxu0
    %3954 = vdwg.mxu0
    %3955 = vmatpush.bf16.msra.mxu0 %v2022
    %3956 = vmatpush.bf16.msra.mxu0 %v2020
    %3957 = vmatpush.bf16.msra.mxu0 %v2018
    %3958 = vmatpush.bf16.msra.mxu0 %v2016
    %3959 = vmatpush.bf16.msra.mxu0 %v2014
    %3960 = vmatpush.bf16.msra.mxu0 %v2012
    %3961 = vmatpush.bf16.msra.mxu0 %v2010
    %3962 = vmatpush.bf16.msra.mxu0 %v2008
    %3963 = vmatmul.bf16.gmra.mxu0 %v3402
    %v3964 = vpop.f32.mrf.mxu0
    %v3965 = vadd.f32 %v3952, %v3964
    %v3966 = vpop.f32.mrf.mxu0
    %3967 = vdwg.mxu0
    %3968 = vmatpush.bf16.msra.mxu0 %v2038
    %3969 = vmatpush.bf16.msra.mxu0 %v2036
    %3970 = vmatpush.bf16.msra.mxu0 %v2034
    %3971 = vmatpush.bf16.msra.mxu0 %v2032
    %3972 = vmatpush.bf16.msra.mxu0 %v2030
    %3973 = vmatpush.bf16.msra.mxu0 %v2028
    %3974 = vmatpush.bf16.msra.mxu0 %v2026
    %3975 = vmatpush.bf16.msra.mxu0 %v2024
    %3976 = vmatmul.bf16.gmra.mxu0 %v3403
    %v3977 = vpop.f32.mrf.mxu0
    %v3978 = vadd.f32 %v3965, %v3977
    %v3979 = vpop.f32.mrf.mxu0
    %3980 = vdwg.mxu0
    %3981 = vmatpush.bf16.msra.mxu0 %v2054
    %3982 = vmatpush.bf16.msra.mxu0 %v2052
    %3983 = vmatpush.bf16.msra.mxu0 %v2050
    %3984 = vmatpush.bf16.msra.mxu0 %v2048
    %3985 = vmatpush.bf16.msra.mxu0 %v2046
    %3986 = vmatpush.bf16.msra.mxu0 %v2044
    %3987 = vmatpush.bf16.msra.mxu0 %v2042
    %3988 = vmatpush.bf16.msra.mxu0 %v2040
    %3989 = vmatmul.bf16.gmra.mxu0 %v3404
    %v3990 = vpop.f32.mrf.mxu0
    %v3991 = vadd.f32 %v3978, %v3990
    %v3992 = vpop.f32.mrf.mxu0
    %3993 = vdwg.mxu0
    %3994 = vmatpush.bf16.msra.mxu0 %v2070
    %3995 = vmatpush.bf16.msra.mxu0 %v2068
    %3996 = vmatpush.bf16.msra.mxu0 %v2066
    %3997 = vmatpush.bf16.msra.mxu0 %v2064
    %3998 = vmatpush.bf16.msra.mxu0 %v2062
    %3999 = vmatpush.bf16.msra.mxu0 %v2060
    %4000 = vmatpush.bf16.msra.mxu0 %v2058
    %4001 = vmatpush.bf16.msra.mxu0 %v2056
    %4002 = vmatmul.bf16.gmra.mxu0 %v3405
    %v4003 = vpop.f32.mrf.mxu0
    %v4004 = vadd.f32 %v3991, %v4003
    %v4005 = vpop.f32.mrf.mxu0
    %4006 = vdwg.mxu0
    %4007 = vmatpush.bf16.msra.mxu0 %v2086
    %4008 = vmatpush.bf16.msra.mxu0 %v2084
    %4009 = vmatpush.bf16.msra.mxu0 %v2082
    %4010 = vmatpush.bf16.msra.mxu0 %v2080
    %4011 = vmatpush.bf16.msra.mxu0 %v2078
    %4012 = vmatpush.bf16.msra.mxu0 %v2076
    %4013 = vmatpush.bf16.msra.mxu0 %v2074
    %4014 = vmatpush.bf16.msra.mxu0 %v2072
    %4015 = vmatmul.bf16.gmra.mxu0 %v3408
    %v4016 = vpop.f32.mrf.mxu0
    %v4017 = vadd.f32 %v4004, %v4016
    %v4018 = vpop.f32.mrf.mxu0
    %4019 = vdwg.mxu0
    %4020 = vmatpush.bf16.msra.mxu0 %v2102
    %4021 = vmatpush.bf16.msra.mxu0 %v2100
    %4022 = vmatpush.bf16.msra.mxu0 %v2098
    %4023 = vmatpush.bf16.msra.mxu0 %v2096
    %4024 = vmatpush.bf16.msra.mxu0 %v2094
    %4025 = vmatpush.bf16.msra.mxu0 %v2092
    %4026 = vmatpush.bf16.msra.mxu0 %v2090
    %4027 = vmatpush.bf16.msra.mxu0 %v2088
    %4028 = vmatmul.bf16.gmra.mxu0 %v3409
    %v4029 = vpop.f32.mrf.mxu0
    %v4030 = vadd.f32 %v4017, %v4029
    %v4031 = vpop.f32.mrf.mxu0
    %4032 = vdwg.mxu0
    %4033 = vmatpush.bf16.msra.mxu0 %v2118
    %4034 = vmatpush.bf16.msra.mxu0 %v2116
    %4035 = vmatpush.bf16.msra.mxu0 %v2114
    %4036 = vmatpush.bf16.msra.mxu0 %v2112
    %4037 = vmatpush.bf16.msra.mxu0 %v2110
    %4038 = vmatpush.bf16.msra.mxu0 %v2108
    %4039 = vmatpush.bf16.msra.mxu0 %v2106
    %4040 = vmatpush.bf16.msra.mxu0 %v2104
    %4041 = vmatmul.bf16.gmra.mxu0 %v3410
    %v4042 = vpop.f32.mrf.mxu0
    %v4043 = vadd.f32 %v4030, %v4042
    %v4044 = vpop.f32.mrf.mxu0
    %4045 = vdwg.mxu0
    %4046 = vmatpush.bf16.msra.mxu0 %v2134
    %4047 = vmatpush.bf16.msra.mxu0 %v2132
    %4048 = vmatpush.bf16.msra.mxu0 %v2130
    %4049 = vmatpush.bf16.msra.mxu0 %v2128
    %4050 = vmatpush.bf16.msra.mxu0 %v2126
    %4051 = vmatpush.bf16.msra.mxu0 %v2124
    %4052 = vmatpush.bf16.msra.mxu0 %v2122
    %4053 = vmatpush.bf16.msra.mxu0 %v2120
    %4054 = vmatmul.bf16.gmra.mxu0 %v3411
    %v4055 = vpop.f32.mrf.mxu0
    %v4056 = vadd.f32 %v4043, %v4055
    %v4057 = vpop.f32.mrf.mxu0
    %4058 = vdwg.mxu0
    %4059 = vmatpush.bf16.msra.mxu0 %v2150
    %4060 = vmatpush.bf16.msra.mxu0 %v2148
    %4061 = vmatpush.bf16.msra.mxu0 %v2146
    %4062 = vmatpush.bf16.msra.mxu0 %v2144
    %4063 = vmatpush.bf16.msra.mxu0 %v2142
    %4064 = vmatpush.bf16.msra.mxu0 %v2140
    %4065 = vmatpush.bf16.msra.mxu0 %v2138
    %4066 = vmatpush.bf16.msra.mxu0 %v2136
    %4067 = vmatmul.bf16.gmra.mxu0 %v3412
    %v4068 = vpop.f32.mrf.mxu0
    %v4069 = vadd.f32 %v4056, %v4068
    %v4070 = vpop.f32.mrf.mxu0
    %4071 = vdwg.mxu0
    %4072 = vmatpush.bf16.msra.mxu0 %v2166
    %4073 = vmatpush.bf16.msra.mxu0 %v2164
    %4074 = vmatpush.bf16.msra.mxu0 %v2162
    %4075 = vmatpush.bf16.msra.mxu0 %v2160
    %4076 = vmatpush.bf16.msra.mxu0 %v2158
    %4077 = vmatpush.bf16.msra.mxu0 %v2156
    %4078 = vmatpush.bf16.msra.mxu0 %v2154
    %4079 = vmatpush.bf16.msra.mxu0 %v2152
    %4080 = vmatmul.bf16.gmra.mxu0 %v3413
    %v4081 = vpop.f32.mrf.mxu0
    %v4082 = vadd.f32 %v4069, %v4081
    %v4083 = vpop.f32.mrf.mxu0
    %4084 = vdwg.mxu0
    %4085 = vmatpush.bf16.msra.mxu0 %v2182
    %4086 = vmatpush.bf16.msra.mxu0 %v2180
    %4087 = vmatpush.bf16.msra.mxu0 %v2178
    %4088 = vmatpush.bf16.msra.mxu0 %v2176
    %4089 = vmatpush.bf16.msra.mxu0 %v2174
    %4090 = vmatpush.bf16.msra.mxu0 %v2172
    %4091 = vmatpush.bf16.msra.mxu0 %v2170
    %4092 = vmatpush.bf16.msra.mxu0 %v2168
    %4093 = vmatmul.bf16.gmra.mxu0 %v3414
    %v4094 = vpop.f32.mrf.mxu0
    %v4095 = vadd.f32 %v4082, %v4094
    %v4096 = vpop.f32.mrf.mxu0
    %4097 = vdwg.mxu0
    %4098 = vmatpush.bf16.msra.mxu0 %v2198
    %4099 = vmatpush.bf16.msra.mxu0 %v2196
    %4100 = vmatpush.bf16.msra.mxu0 %v2194
    %4101 = vmatpush.bf16.msra.mxu0 %v2192
    %4102 = vmatpush.bf16.msra.mxu0 %v2190
    %4103 = vmatpush.bf16.msra.mxu0 %v2188
    %4104 = vmatpush.bf16.msra.mxu0 %v2186
    %4105 = vmatpush.bf16.msra.mxu0 %v2184
    %4106 = vmatmul.bf16.gmra.mxu0 %v3415
    %v4107 = vpop.f32.mrf.mxu0
    %v4108 = vadd.f32 %v4095, %v4107
    %v4109 = vpop.f32.mrf.mxu0
    %4110 = vdwg.mxu0
    %4111 = vmatpush.bf16.msra.mxu0 %v2214
    %4112 = vmatpush.bf16.msra.mxu0 %v2212
    %4113 = vmatpush.bf16.msra.mxu0 %v2210
    %4114 = vmatpush.bf16.msra.mxu0 %v2208
    %4115 = vmatpush.bf16.msra.mxu0 %v2206
    %4116 = vmatpush.bf16.msra.mxu0 %v2204
    %4117 = vmatpush.bf16.msra.mxu0 %v2202
    %4118 = vmatpush.bf16.msra.mxu0 %v2200
    %4119 = vmatmul.bf16.gmra.mxu0 %v3418
    %v4120 = vpop.f32.mrf.mxu0
    %v4121 = vadd.f32 %v4108, %v4120
    %v4122 = vpop.f32.mrf.mxu0
    %4123 = vdwg.mxu0
    %4124 = vmatpush.bf16.msra.mxu0 %v2230
    %4125 = vmatpush.bf16.msra.mxu0 %v2228
    %4126 = vmatpush.bf16.msra.mxu0 %v2226
    %4127 = vmatpush.bf16.msra.mxu0 %v2224
    %4128 = vmatpush.bf16.msra.mxu0 %v2222
    %4129 = vmatpush.bf16.msra.mxu0 %v2220
    %4130 = vmatpush.bf16.msra.mxu0 %v2218
    %4131 = vmatpush.bf16.msra.mxu0 %v2216
    %4132 = vmatmul.bf16.gmra.mxu0 %v3419
    %v4133 = vpop.f32.mrf.mxu0
    %v4134 = vadd.f32 %v4121, %v4133
    %v4135 = vpop.f32.mrf.mxu0
    %4136 = vdwg.mxu0
    %4137 = vmatpush.bf16.msra.mxu0 %v2246
    %4138 = vmatpush.bf16.msra.mxu0 %v2244
    %4139 = vmatpush.bf16.msra.mxu0 %v2242
    %4140 = vmatpush.bf16.msra.mxu0 %v2240
    %4141 = vmatpush.bf16.msra.mxu0 %v2238
    %4142 = vmatpush.bf16.msra.mxu0 %v2236
    %4143 = vmatpush.bf16.msra.mxu0 %v2234
    %4144 = vmatpush.bf16.msra.mxu0 %v2232
    %4145 = vmatmul.bf16.gmra.mxu0 %v3420
    %v4146 = vpop.f32.mrf.mxu0
    %v4147 = vadd.f32 %v4134, %v4146
    %v4148 = vpop.f32.mrf.mxu0
    %4149 = vdwg.mxu0
    %v4150 = vmax.f32 %v3027, %v3796
    %v4151 = vmax.f32 %v3378, %v4147
    %s4152 = scalar_lea.vmem %s0, 54
    %v4153 = vld [vmem:[%s4152] sm:$0xff]
    %v4154 = vld [vmem:[%s4152 + $0x8] sm:$0xff]
    %v4155 = vld [vmem:[%s4152 + $0x10] sm:$0xff]
    %v4156 = vld [vmem:[%s4152 + $0x18] sm:$0x7]
    %4158 = vst [vmem:[#allocation1] ss:$9 sm:$0xff] %v4153
    %v4159 = vld [vmem:[#allocation1] sm:$0xff]
    %v4160 = vld [vmem:[#allocation1 + $0x9] sm:$0xff]
    %v4161 = vld [vmem:[#allocation1 + $0x12] sm:$0xff]
    %v4162 = vld [vmem:[#allocation1 + $0x1b] sm:$0xff]
    %v4163 = vld [vmem:[#allocation1 + $0x24] sm:$0xff]
    %v4164 = vld [vmem:[#allocation1 + $0x2d] sm:$0xff]
    %v4165 = vld [vmem:[#allocation1 + $0x36] sm:$0xff]
    %v4166 = vld [vmem:[#allocation1 + $0x3f] sm:$0xff]
    %4168 = vst [vmem:[#allocation1] ss:$9 sm:$0xff] %v4154
    %v4169 = vld [vmem:[#allocation1] sm:$0xff]
    %v4170 = vld [vmem:[#allocation1 + $0x9] sm:$0xff]
    %v4171 = vld [vmem:[#allocation1 + $0x12] sm:$0xff]
    %v4172 = vld [vmem:[#allocation1 + $0x1b] sm:$0xff]
    %v4173 = vld [vmem:[#allocation1 + $0x24] sm:$0xff]
    %v4174 = vld [vmem:[#allocation1 + $0x2d] sm:$0xff]
    %v4175 = vld [vmem:[#allocation1 + $0x36] sm:$0xff]
    %v4176 = vld [vmem:[#allocation1 + $0x3f] sm:$0xff]
    %4178 = vst [vmem:[#allocation1] ss:$9 sm:$0xff] %v4155
    %v4179 = vld [vmem:[#allocation1] sm:$0xff]
    %v4180 = vld [vmem:[#allocation1 + $0x9] sm:$0xff]
    %v4181 = vld [vmem:[#allocation1 + $0x12] sm:$0xff]
    %v4182 = vld [vmem:[#allocation1 + $0x1b] sm:$0xff]
    %v4183 = vld [vmem:[#allocation1 + $0x24] sm:$0xff]
    %v4184 = vld [vmem:[#allocation1 + $0x2d] sm:$0xff]
    %v4185 = vld [vmem:[#allocation1 + $0x36] sm:$0xff]
    %v4186 = vld [vmem:[#allocation1 + $0x3f] sm:$0xff]
    %4188 = vst [vmem:[#allocation1] ss:$9 sm:$0xff] %v4156
    %v4189 = vld [vmem:[#allocation1] sm:$0xff]
    %v4190 = vld [vmem:[#allocation1 + $0x9] sm:$0xff]
    %v4191 = vld [vmem:[#allocation1 + $0x12] sm:$0xff]
    %4219 = vmatpush.bf16.msra.mxu0 %v1829
    %4220 = vmatpush.bf16.msra.mxu0 %v1827
    %4221 = vmatpush.bf16.msra.mxu0 %v1825
    %4222 = vmatpush.bf16.msra.mxu0 %v1823
    %4223 = vmatpush.bf16.msra.mxu0 %v1821
    %4224 = vmatpush.bf16.msra.mxu0 %v1819
    %4225 = vmatpush.bf16.msra.mxu0 %v1817
    %4226 = vmatpush.bf16.msra.mxu0 %v1815
    %4227 = vmatmul.bf16.gmra.mxu0 %v4159
    %v4228 = vpop.f32.mrf.mxu0
    %v4229 = vadd.f32 0.0, %v4228
    %v4230 = vpop.f32.mrf.mxu0
    %4231 = vdwg.mxu0
    %4232 = vmatpush.bf16.msra.mxu0 %v1845
    %4233 = vmatpush.bf16.msra.mxu0 %v1843
    %4234 = vmatpush.bf16.msra.mxu0 %v1841
    %4235 = vmatpush.bf16.msra.mxu0 %v1839
    %4236 = vmatpush.bf16.msra.mxu0 %v1837
    %4237 = vmatpush.bf16.msra.mxu0 %v1835
    %4238 = vmatpush.bf16.msra.mxu0 %v1833
    %4239 = vmatpush.bf16.msra.mxu0 %v1831
    %4240 = vmatmul.bf16.gmra.mxu0 %v4160
    %v4241 = vpop.f32.mrf.mxu0
    %v4242 = vadd.f32 %v4229, %v4241
    %v4243 = vpop.f32.mrf.mxu0
    %4244 = vdwg.mxu0
    %4245 = vmatpush.bf16.msra.mxu0 %v1861
    %4246 = vmatpush.bf16.msra.mxu0 %v1859
    %4247 = vmatpush.bf16.msra.mxu0 %v1857
    %4248 = vmatpush.bf16.msra.mxu0 %v1855
    %4249 = vmatpush.bf16.msra.mxu0 %v1853
    %4250 = vmatpush.bf16.msra.mxu0 %v1851
    %4251 = vmatpush.bf16.msra.mxu0 %v1849
    %4252 = vmatpush.bf16.msra.mxu0 %v1847
    %4253 = vmatmul.bf16.gmra.mxu0 %v4161
    %v4254 = vpop.f32.mrf.mxu0
    %v4255 = vadd.f32 %v4242, %v4254
    %v4256 = vpop.f32.mrf.mxu0
    %4257 = vdwg.mxu0
    %4258 = vmatpush.bf16.msra.mxu0 %v1877
    %4259 = vmatpush.bf16.msra.mxu0 %v1875
    %4260 = vmatpush.bf16.msra.mxu0 %v1873
    %4261 = vmatpush.bf16.msra.mxu0 %v1871
    %4262 = vmatpush.bf16.msra.mxu0 %v1869
    %4263 = vmatpush.bf16.msra.mxu0 %v1867
    %4264 = vmatpush.bf16.msra.mxu0 %v1865
    %4265 = vmatpush.bf16.msra.mxu0 %v1863
    %4266 = vmatmul.bf16.gmra.mxu0 %v4162
    %v4267 = vpop.f32.mrf.mxu0
    %v4268 = vadd.f32 %v4255, %v4267
    %v4269 = vpop.f32.mrf.mxu0
    %4270 = vdwg.mxu0
    %4271 = vmatpush.bf16.msra.mxu0 %v1893
    %4272 = vmatpush.bf16.msra.mxu0 %v1891
    %4273 = vmatpush.bf16.msra.mxu0 %v1889
    %4274 = vmatpush.bf16.msra.mxu0 %v1887
    %4275 = vmatpush.bf16.msra.mxu0 %v1885
    %4276 = vmatpush.bf16.msra.mxu0 %v1883
    %4277 = vmatpush.bf16.msra.mxu0 %v1881
    %4278 = vmatpush.bf16.msra.mxu0 %v1879
    %4279 = vmatmul.bf16.gmra.mxu0 %v4163
    %v4280 = vpop.f32.mrf.mxu0
    %v4281 = vadd.f32 %v4268, %v4280
    %v4282 = vpop.f32.mrf.mxu0
    %4283 = vdwg.mxu0
    %4284 = vmatpush.bf16.msra.mxu0 %v1909
    %4285 = vmatpush.bf16.msra.mxu0 %v1907
    %4286 = vmatpush.bf16.msra.mxu0 %v1905
    %4287 = vmatpush.bf16.msra.mxu0 %v1903
    %4288 = vmatpush.bf16.msra.mxu0 %v1901
    %4289 = vmatpush.bf16.msra.mxu0 %v1899
    %4290 = vmatpush.bf16.msra.mxu0 %v1897
    %4291 = vmatpush.bf16.msra.mxu0 %v1895
    %4292 = vmatmul.bf16.gmra.mxu0 %v4164
    %v4293 = vpop.f32.mrf.mxu0
    %v4294 = vadd.f32 %v4281, %v4293
    %v4295 = vpop.f32.mrf.mxu0
    %4296 = vdwg.mxu0
    %4297 = vmatpush.bf16.msra.mxu0 %v1925
    %4298 = vmatpush.bf16.msra.mxu0 %v1923
    %4299 = vmatpush.bf16.msra.mxu0 %v1921
    %4300 = vmatpush.bf16.msra.mxu0 %v1919
    %4301 = vmatpush.bf16.msra.mxu0 %v1917
    %4302 = vmatpush.bf16.msra.mxu0 %v1915
    %4303 = vmatpush.bf16.msra.mxu0 %v1913
    %4304 = vmatpush.bf16.msra.mxu0 %v1911
    %4305 = vmatmul.bf16.gmra.mxu0 %v4165
    %v4306 = vpop.f32.mrf.mxu0
    %v4307 = vadd.f32 %v4294, %v4306
    %v4308 = vpop.f32.mrf.mxu0
    %4309 = vdwg.mxu0
    %4310 = vmatpush.bf16.msra.mxu0 %v1941
    %4311 = vmatpush.bf16.msra.mxu0 %v1939
    %4312 = vmatpush.bf16.msra.mxu0 %v1937
    %4313 = vmatpush.bf16.msra.mxu0 %v1935
    %4314 = vmatpush.bf16.msra.mxu0 %v1933
    %4315 = vmatpush.bf16.msra.mxu0 %v1931
    %4316 = vmatpush.bf16.msra.mxu0 %v1929
    %4317 = vmatpush.bf16.msra.mxu0 %v1927
    %4318 = vmatmul.bf16.gmra.mxu0 %v4166
    %v4319 = vpop.f32.mrf.mxu0
    %v4320 = vadd.f32 %v4307, %v4319
    %v4321 = vpop.f32.mrf.mxu0
    %4322 = vdwg.mxu0
    %4323 = vmatpush.bf16.msra.mxu0 %v1957
    %4324 = vmatpush.bf16.msra.mxu0 %v1955
    %4325 = vmatpush.bf16.msra.mxu0 %v1953
    %4326 = vmatpush.bf16.msra.mxu0 %v1951
    %4327 = vmatpush.bf16.msra.mxu0 %v1949
    %4328 = vmatpush.bf16.msra.mxu0 %v1947
    %4329 = vmatpush.bf16.msra.mxu0 %v1945
    %4330 = vmatpush.bf16.msra.mxu0 %v1943
    %4331 = vmatmul.bf16.gmra.mxu0 %v4169
    %v4332 = vpop.f32.mrf.mxu0
    %v4333 = vadd.f32 %v4320, %v4332
    %v4334 = vpop.f32.mrf.mxu0
    %4335 = vdwg.mxu0
    %4336 = vmatpush.bf16.msra.mxu0 %v1973
    %4337 = vmatpush.bf16.msra.mxu0 %v1971
    %4338 = vmatpush.bf16.msra.mxu0 %v1969
    %4339 = vmatpush.bf16.msra.mxu0 %v1967
    %4340 = vmatpush.bf16.msra.mxu0 %v1965
    %4341 = vmatpush.bf16.msra.mxu0 %v1963
    %4342 = vmatpush.bf16.msra.mxu0 %v1961
    %4343 = vmatpush.bf16.msra.mxu0 %v1959
    %4344 = vmatmul.bf16.gmra.mxu0 %v4170
    %v4345 = vpop.f32.mrf.mxu0
    %v4346 = vadd.f32 %v4333, %v4345
    %v4347 = vpop.f32.mrf.mxu0
    %4348 = vdwg.mxu0
    %4349 = vmatpush.bf16.msra.mxu0 %v1989
    %4350 = vmatpush.bf16.msra.mxu0 %v1987
    %4351 = vmatpush.bf16.msra.mxu0 %v1985
    %4352 = vmatpush.bf16.msra.mxu0 %v1983
    %4353 = vmatpush.bf16.msra.mxu0 %v1981
    %4354 = vmatpush.bf16.msra.mxu0 %v1979
    %4355 = vmatpush.bf16.msra.mxu0 %v1977
    %4356 = vmatpush.bf16.msra.mxu0 %v1975
    %4357 = vmatmul.bf16.gmra.mxu0 %v4171
    %v4358 = vpop.f32.mrf.mxu0
    %v4359 = vadd.f32 %v4346, %v4358
    %v4360 = vpop.f32.mrf.mxu0
    %4361 = vdwg.mxu0
    %4362 = vmatpush.bf16.msra.mxu0 %v2005
    %4363 = vmatpush.bf16.msra.mxu0 %v2003
    %4364 = vmatpush.bf16.msra.mxu0 %v2001
    %4365 = vmatpush.bf16.msra.mxu0 %v1999
    %4366 = vmatpush.bf16.msra.mxu0 %v1997
    %4367 = vmatpush.bf16.msra.mxu0 %v1995
    %4368 = vmatpush.bf16.msra.mxu0 %v1993
    %4369 = vmatpush.bf16.msra.mxu0 %v1991
    %4370 = vmatmul.bf16.gmra.mxu0 %v4172
    %v4371 = vpop.f32.mrf.mxu0
    %v4372 = vadd.f32 %v4359, %v4371
    %v4373 = vpop.f32.mrf.mxu0
    %4374 = vdwg.mxu0
    %4375 = vmatpush.bf16.msra.mxu0 %v2021
    %4376 = vmatpush.bf16.msra.mxu0 %v2019
    %4377 = vmatpush.bf16.msra.mxu0 %v2017
    %4378 = vmatpush.bf16.msra.mxu0 %v2015
    %4379 = vmatpush.bf16.msra.mxu0 %v2013
    %4380 = vmatpush.bf16.msra.mxu0 %v2011
    %4381 = vmatpush.bf16.msra.mxu0 %v2009
    %4382 = vmatpush.bf16.msra.mxu0 %v2007
    %4383 = vmatmul.bf16.gmra.mxu0 %v4173
    %v4384 = vpop.f32.mrf.mxu0
    %v4385 = vadd.f32 %v4372, %v4384
    %v4386 = vpop.f32.mrf.mxu0
    %4387 = vdwg.mxu0
    %4388 = vmatpush.bf16.msra.mxu0 %v2037
    %4389 = vmatpush.bf16.msra.mxu0 %v2035
    %4390 = vmatpush.bf16.msra.mxu0 %v2033
    %4391 = vmatpush.bf16.msra.mxu0 %v2031
    %4392 = vmatpush.bf16.msra.mxu0 %v2029
    %4393 = vmatpush.bf16.msra.mxu0 %v2027
    %4394 = vmatpush.bf16.msra.mxu0 %v2025
    %4395 = vmatpush.bf16.msra.mxu0 %v2023
    %4396 = vmatmul.bf16.gmra.mxu0 %v4174
    %v4397 = vpop.f32.mrf.mxu0
    %v4398 = vadd.f32 %v4385, %v4397
    %v4399 = vpop.f32.mrf.mxu0
    %4400 = vdwg.mxu0
    %4401 = vmatpush.bf16.msra.mxu0 %v2053
    %4402 = vmatpush.bf16.msra.mxu0 %v2051
    %4403 = vmatpush.bf16.msra.mxu0 %v2049
    %4404 = vmatpush.bf16.msra.mxu0 %v2047
    %4405 = vmatpush.bf16.msra.mxu0 %v2045
    %4406 = vmatpush.bf16.msra.mxu0 %v2043
    %4407 = vmatpush.bf16.msra.mxu0 %v2041
    %4408 = vmatpush.bf16.msra.mxu0 %v2039
    %4409 = vmatmul.bf16.gmra.mxu0 %v4175
    %v4410 = vpop.f32.mrf.mxu0
    %v4411 = vadd.f32 %v4398, %v4410
    %v4412 = vpop.f32.mrf.mxu0
    %4413 = vdwg.mxu0
    %4414 = vmatpush.bf16.msra.mxu0 %v2069
    %4415 = vmatpush.bf16.msra.mxu0 %v2067
    %4416 = vmatpush.bf16.msra.mxu0 %v2065
    %4417 = vmatpush.bf16.msra.mxu0 %v2063
    %4418 = vmatpush.bf16.msra.mxu0 %v2061
    %4419 = vmatpush.bf16.msra.mxu0 %v2059
    %4420 = vmatpush.bf16.msra.mxu0 %v2057
    %4421 = vmatpush.bf16.msra.mxu0 %v2055
    %4422 = vmatmul.bf16.gmra.mxu0 %v4176
    %v4423 = vpop.f32.mrf.mxu0
    %v4424 = vadd.f32 %v4411, %v4423
    %v4425 = vpop.f32.mrf.mxu0
    %4426 = vdwg.mxu0
    %4427 = vmatpush.bf16.msra.mxu0 %v2085
    %4428 = vmatpush.bf16.msra.mxu0 %v2083
    %4429 = vmatpush.bf16.msra.mxu0 %v2081
    %4430 = vmatpush.bf16.msra.mxu0 %v2079
    %4431 = vmatpush.bf16.msra.mxu0 %v2077
    %4432 = vmatpush.bf16.msra.mxu0 %v2075
    %4433 = vmatpush.bf16.msra.mxu0 %v2073
    %4434 = vmatpush.bf16.msra.mxu0 %v2071
    %4435 = vmatmul.bf16.gmra.mxu0 %v4179
    %v4436 = vpop.f32.mrf.mxu0
    %v4437 = vadd.f32 %v4424, %v4436
    %v4438 = vpop.f32.mrf.mxu0
    %4439 = vdwg.mxu0
    %4440 = vmatpush.bf16.msra.mxu0 %v2101
    %4441 = vmatpush.bf16.msra.mxu0 %v2099
    %4442 = vmatpush.bf16.msra.mxu0 %v2097
    %4443 = vmatpush.bf16.msra.mxu0 %v2095
    %4444 = vmatpush.bf16.msra.mxu0 %v2093
    %4445 = vmatpush.bf16.msra.mxu0 %v2091
    %4446 = vmatpush.bf16.msra.mxu0 %v2089
    %4447 = vmatpush.bf16.msra.mxu0 %v2087
    %4448 = vmatmul.bf16.gmra.mxu0 %v4180
    %v4449 = vpop.f32.mrf.mxu0
    %v4450 = vadd.f32 %v4437, %v4449
    %v4451 = vpop.f32.mrf.mxu0
    %4452 = vdwg.mxu0
    %4453 = vmatpush.bf16.msra.mxu0 %v2117
    %4454 = vmatpush.bf16.msra.mxu0 %v2115
    %4455 = vmatpush.bf16.msra.mxu0 %v2113
    %4456 = vmatpush.bf16.msra.mxu0 %v2111
    %4457 = vmatpush.bf16.msra.mxu0 %v2109
    %4458 = vmatpush.bf16.msra.mxu0 %v2107
    %4459 = vmatpush.bf16.msra.mxu0 %v2105
    %4460 = vmatpush.bf16.msra.mxu0 %v2103
    %4461 = vmatmul.bf16.gmra.mxu0 %v4181
    %v4462 = vpop.f32.mrf.mxu0
    %v4463 = vadd.f32 %v4450, %v4462
    %v4464 = vpop.f32.mrf.mxu0
    %4465 = vdwg.mxu0
    %4466 = vmatpush.bf16.msra.mxu0 %v2133
    %4467 = vmatpush.bf16.msra.mxu0 %v2131
    %4468 = vmatpush.bf16.msra.mxu0 %v2129
    %4469 = vmatpush.bf16.msra.mxu0 %v2127
    %4470 = vmatpush.bf16.msra.mxu0 %v2125
    %4471 = vmatpush.bf16.msra.mxu0 %v2123
    %4472 = vmatpush.bf16.msra.mxu0 %v2121
    %4473 = vmatpush.bf16.msra.mxu0 %v2119
    %4474 = vmatmul.bf16.gmra.mxu0 %v4182
    %v4475 = vpop.f32.mrf.mxu0
    %v4476 = vadd.f32 %v4463, %v4475
    %v4477 = vpop.f32.mrf.mxu0
    %4478 = vdwg.mxu0
    %4479 = vmatpush.bf16.msra.mxu0 %v2149
    %4480 = vmatpush.bf16.msra.mxu0 %v2147
    %4481 = vmatpush.bf16.msra.mxu0 %v2145
    %4482 = vmatpush.bf16.msra.mxu0 %v2143
    %4483 = vmatpush.bf16.msra.mxu0 %v2141
    %4484 = vmatpush.bf16.msra.mxu0 %v2139
    %4485 = vmatpush.bf16.msra.mxu0 %v2137
    %4486 = vmatpush.bf16.msra.mxu0 %v2135
    %4487 = vmatmul.bf16.gmra.mxu0 %v4183
    %v4488 = vpop.f32.mrf.mxu0
    %v4489 = vadd.f32 %v4476, %v4488
    %v4490 = vpop.f32.mrf.mxu0
    %4491 = vdwg.mxu0
    %4492 = vmatpush.bf16.msra.mxu0 %v2165
    %4493 = vmatpush.bf16.msra.mxu0 %v2163
    %4494 = vmatpush.bf16.msra.mxu0 %v2161
    %4495 = vmatpush.bf16.msra.mxu0 %v2159
    %4496 = vmatpush.bf16.msra.mxu0 %v2157
    %4497 = vmatpush.bf16.msra.mxu0 %v2155
    %4498 = vmatpush.bf16.msra.mxu0 %v2153
    %4499 = vmatpush.bf16.msra.mxu0 %v2151
    %4500 = vmatmul.bf16.gmra.mxu0 %v4184
    %v4501 = vpop.f32.mrf.mxu0
    %v4502 = vadd.f32 %v4489, %v4501
    %v4503 = vpop.f32.mrf.mxu0
    %4504 = vdwg.mxu0
    %4505 = vmatpush.bf16.msra.mxu0 %v2181
    %4506 = vmatpush.bf16.msra.mxu0 %v2179
    %4507 = vmatpush.bf16.msra.mxu0 %v2177
    %4508 = vmatpush.bf16.msra.mxu0 %v2175
    %4509 = vmatpush.bf16.msra.mxu0 %v2173
    %4510 = vmatpush.bf16.msra.mxu0 %v2171
    %4511 = vmatpush.bf16.msra.mxu0 %v2169
    %4512 = vmatpush.bf16.msra.mxu0 %v2167
    %4513 = vmatmul.bf16.gmra.mxu0 %v4185
    %v4514 = vpop.f32.mrf.mxu0
    %v4515 = vadd.f32 %v4502, %v4514
    %v4516 = vpop.f32.mrf.mxu0
    %4517 = vdwg.mxu0
    %4518 = vmatpush.bf16.msra.mxu0 %v2197
    %4519 = vmatpush.bf16.msra.mxu0 %v2195
    %4520 = vmatpush.bf16.msra.mxu0 %v2193
    %4521 = vmatpush.bf16.msra.mxu0 %v2191
    %4522 = vmatpush.bf16.msra.mxu0 %v2189
    %4523 = vmatpush.bf16.msra.mxu0 %v2187
    %4524 = vmatpush.bf16.msra.mxu0 %v2185
    %4525 = vmatpush.bf16.msra.mxu0 %v2183
    %4526 = vmatmul.bf16.gmra.mxu0 %v4186
    %v4527 = vpop.f32.mrf.mxu0
    %v4528 = vadd.f32 %v4515, %v4527
    %v4529 = vpop.f32.mrf.mxu0
    %4530 = vdwg.mxu0
    %4531 = vmatpush.bf16.msra.mxu0 %v2213
    %4532 = vmatpush.bf16.msra.mxu0 %v2211
    %4533 = vmatpush.bf16.msra.mxu0 %v2209
    %4534 = vmatpush.bf16.msra.mxu0 %v2207
    %4535 = vmatpush.bf16.msra.mxu0 %v2205
    %4536 = vmatpush.bf16.msra.mxu0 %v2203
    %4537 = vmatpush.bf16.msra.mxu0 %v2201
    %4538 = vmatpush.bf16.msra.mxu0 %v2199
    %4539 = vmatmul.bf16.gmra.mxu0 %v4189
    %v4540 = vpop.f32.mrf.mxu0
    %v4541 = vadd.f32 %v4528, %v4540
    %v4542 = vpop.f32.mrf.mxu0
    %4543 = vdwg.mxu0
    %4544 = vmatpush.bf16.msra.mxu0 %v2229
    %4545 = vmatpush.bf16.msra.mxu0 %v2227
    %4546 = vmatpush.bf16.msra.mxu0 %v2225
    %4547 = vmatpush.bf16.msra.mxu0 %v2223
    %4548 = vmatpush.bf16.msra.mxu0 %v2221
    %4549 = vmatpush.bf16.msra.mxu0 %v2219
    %4550 = vmatpush.bf16.msra.mxu0 %v2217
    %4551 = vmatpush.bf16.msra.mxu0 %v2215
    %4552 = vmatmul.bf16.gmra.mxu0 %v4190
    %v4553 = vpop.f32.mrf.mxu0
    %v4554 = vadd.f32 %v4541, %v4553
    %v4555 = vpop.f32.mrf.mxu0
    %4556 = vdwg.mxu0
    %4557 = vmatpush.bf16.msra.mxu0 %v2245
    %4558 = vmatpush.bf16.msra.mxu0 %v2243
    %4559 = vmatpush.bf16.msra.mxu0 %v2241
    %4560 = vmatpush.bf16.msra.mxu0 %v2239
    %4561 = vmatpush.bf16.msra.mxu0 %v2237
    %4562 = vmatpush.bf16.msra.mxu0 %v2235
    %4563 = vmatpush.bf16.msra.mxu0 %v2233
    %4564 = vmatpush.bf16.msra.mxu0 %v2231
    %4565 = vmatmul.bf16.gmra.mxu0 %v4191
    %v4566 = vpop.f32.mrf.mxu0
    %v4567 = vadd.f32 %v4554, %v4566
    %v4568 = vpop.f32.mrf.mxu0
    %4569 = vdwg.mxu0
    %4570 = vmatpush.bf16.msra.mxu0 %v1830
    %4571 = vmatpush.bf16.msra.mxu0 %v1828
    %4572 = vmatpush.bf16.msra.mxu0 %v1826
    %4573 = vmatpush.bf16.msra.mxu0 %v1824
    %4574 = vmatpush.bf16.msra.mxu0 %v1822
    %4575 = vmatpush.bf16.msra.mxu0 %v1820
    %4576 = vmatpush.bf16.msra.mxu0 %v1818
    %4577 = vmatpush.bf16.msra.mxu0 %v1816
    %4578 = vmatmul.bf16.gmra.mxu0 %v4159
    %v4579 = vpop.f32.mrf.mxu0
    %v4580 = vadd.f32 0.0, %v4579
    %v4581 = vpop.f32.mrf.mxu0
    %4582 = vdwg.mxu0
    %4583 = vmatpush.bf16.msra.mxu0 %v1846
    %4584 = vmatpush.bf16.msra.mxu0 %v1844
    %4585 = vmatpush.bf16.msra.mxu0 %v1842
    %4586 = vmatpush.bf16.msra.mxu0 %v1840
    %4587 = vmatpush.bf16.msra.mxu0 %v1838
    %4588 = vmatpush.bf16.msra.mxu0 %v1836
    %4589 = vmatpush.bf16.msra.mxu0 %v1834
    %4590 = vmatpush.bf16.msra.mxu0 %v1832
    %4591 = vmatmul.bf16.gmra.mxu0 %v4160
    %v4592 = vpop.f32.mrf.mxu0
    %v4593 = vadd.f32 %v4580, %v4592
    %v4594 = vpop.f32.mrf.mxu0
    %4595 = vdwg.mxu0
    %4596 = vmatpush.bf16.msra.mxu0 %v1862
    %4597 = vmatpush.bf16.msra.mxu0 %v1860
    %4598 = vmatpush.bf16.msra.mxu0 %v1858
    %4599 = vmatpush.bf16.msra.mxu0 %v1856
    %4600 = vmatpush.bf16.msra.mxu0 %v1854
    %4601 = vmatpush.bf16.msra.mxu0 %v1852
    %4602 = vmatpush.bf16.msra.mxu0 %v1850
    %4603 = vmatpush.bf16.msra.mxu0 %v1848
    %4604 = vmatmul.bf16.gmra.mxu0 %v4161
    %v4605 = vpop.f32.mrf.mxu0
    %v4606 = vadd.f32 %v4593, %v4605
    %v4607 = vpop.f32.mrf.mxu0
    %4608 = vdwg.mxu0
    %4609 = vmatpush.bf16.msra.mxu0 %v1878
    %4610 = vmatpush.bf16.msra.mxu0 %v1876
    %4611 = vmatpush.bf16.msra.mxu0 %v1874
    %4612 = vmatpush.bf16.msra.mxu0 %v1872
    %4613 = vmatpush.bf16.msra.mxu0 %v1870
    %4614 = vmatpush.bf16.msra.mxu0 %v1868
    %4615 = vmatpush.bf16.msra.mxu0 %v1866
    %4616 = vmatpush.bf16.msra.mxu0 %v1864
    %4617 = vmatmul.bf16.gmra.mxu0 %v4162
    %v4618 = vpop.f32.mrf.mxu0
    %v4619 = vadd.f32 %v4606, %v4618
    %v4620 = vpop.f32.mrf.mxu0
    %4621 = vdwg.mxu0
    %4622 = vmatpush.bf16.msra.mxu0 %v1894
    %4623 = vmatpush.bf16.msra.mxu0 %v1892
    %4624 = vmatpush.bf16.msra.mxu0 %v1890
    %4625 = vmatpush.bf16.msra.mxu0 %v1888
    %4626 = vmatpush.bf16.msra.mxu0 %v1886
    %4627 = vmatpush.bf16.msra.mxu0 %v1884
    %4628 = vmatpush.bf16.msra.mxu0 %v1882
    %4629 = vmatpush.bf16.msra.mxu0 %v1880
    %4630 = vmatmul.bf16.gmra.mxu0 %v4163
    %v4631 = vpop.f32.mrf.mxu0
    %v4632 = vadd.f32 %v4619, %v4631
    %v4633 = vpop.f32.mrf.mxu0
    %4634 = vdwg.mxu0
    %4635 = vmatpush.bf16.msra.mxu0 %v1910
    %4636 = vmatpush.bf16.msra.mxu0 %v1908
    %4637 = vmatpush.bf16.msra.mxu0 %v1906
    %4638 = vmatpush.bf16.msra.mxu0 %v1904
    %4639 = vmatpush.bf16.msra.mxu0 %v1902
    %4640 = vmatpush.bf16.msra.mxu0 %v1900
    %4641 = vmatpush.bf16.msra.mxu0 %v1898
    %4642 = vmatpush.bf16.msra.mxu0 %v1896
    %4643 = vmatmul.bf16.gmra.mxu0 %v4164
    %v4644 = vpop.f32.mrf.mxu0
    %v4645 = vadd.f32 %v4632, %v4644
    %v4646 = vpop.f32.mrf.mxu0
    %4647 = vdwg.mxu0
    %4648 = vmatpush.bf16.msra.mxu0 %v1926
    %4649 = vmatpush.bf16.msra.mxu0 %v1924
    %4650 = vmatpush.bf16.msra.mxu0 %v1922
    %4651 = vmatpush.bf16.msra.mxu0 %v1920
    %4652 = vmatpush.bf16.msra.mxu0 %v1918
    %4653 = vmatpush.bf16.msra.mxu0 %v1916
    %4654 = vmatpush.bf16.msra.mxu0 %v1914
    %4655 = vmatpush.bf16.msra.mxu0 %v1912
    %4656 = vmatmul.bf16.gmra.mxu0 %v4165
    %v4657 = vpop.f32.mrf.mxu0
    %v4658 = vadd.f32 %v4645, %v4657
    %v4659 = vpop.f32.mrf.mxu0
    %4660 = vdwg.mxu0
    %4661 = vmatpush.bf16.msra.mxu0 %v1942
    %4662 = vmatpush.bf16.msra.mxu0 %v1940
    %4663 = vmatpush.bf16.msra.mxu0 %v1938
    %4664 = vmatpush.bf16.msra.mxu0 %v1936
    %4665 = vmatpush.bf16.msra.mxu0 %v1934
    %4666 = vmatpush.bf16.msra.mxu0 %v1932
    %4667 = vmatpush.bf16.msra.mxu0 %v1930
    %4668 = vmatpush.bf16.msra.mxu0 %v1928
    %4669 = vmatmul.bf16.gmra.mxu0 %v4166
    %v4670 = vpop.f32.mrf.mxu0
    %v4671 = vadd.f32 %v4658, %v4670
    %v4672 = vpop.f32.mrf.mxu0
    %4673 = vdwg.mxu0
    %4674 = vmatpush.bf16.msra.mxu0 %v1958
    %4675 = vmatpush.bf16.msra.mxu0 %v1956
    %4676 = vmatpush.bf16.msra.mxu0 %v1954
    %4677 = vmatpush.bf16.msra.mxu0 %v1952
    %4678 = vmatpush.bf16.msra.mxu0 %v1950
    %4679 = vmatpush.bf16.msra.mxu0 %v1948
    %4680 = vmatpush.bf16.msra.mxu0 %v1946
    %4681 = vmatpush.bf16.msra.mxu0 %v1944
    %4682 = vmatmul.bf16.gmra.mxu0 %v4169
    %v4683 = vpop.f32.mrf.mxu0
    %v4684 = vadd.f32 %v4671, %v4683
    %v4685 = vpop.f32.mrf.mxu0
    %4686 = vdwg.mxu0
    %4687 = vmatpush.bf16.msra.mxu0 %v1974
    %4688 = vmatpush.bf16.msra.mxu0 %v1972
    %4689 = vmatpush.bf16.msra.mxu0 %v1970
    %4690 = vmatpush.bf16.msra.mxu0 %v1968
    %4691 = vmatpush.bf16.msra.mxu0 %v1966
    %4692 = vmatpush.bf16.msra.mxu0 %v1964
    %4693 = vmatpush.bf16.msra.mxu0 %v1962
    %4694 = vmatpush.bf16.msra.mxu0 %v1960
    %4695 = vmatmul.bf16.gmra.mxu0 %v4170
    %v4696 = vpop.f32.mrf.mxu0
    %v4697 = vadd.f32 %v4684, %v4696
    %v4698 = vpop.f32.mrf.mxu0
    %4699 = vdwg.mxu0
    %4700 = vmatpush.bf16.msra.mxu0 %v1990
    %4701 = vmatpush.bf16.msra.mxu0 %v1988
    %4702 = vmatpush.bf16.msra.mxu0 %v1986
    %4703 = vmatpush.bf16.msra.mxu0 %v1984
    %4704 = vmatpush.bf16.msra.mxu0 %v1982
    %4705 = vmatpush.bf16.msra.mxu0 %v1980
    %4706 = vmatpush.bf16.msra.mxu0 %v1978
    %4707 = vmatpush.bf16.msra.mxu0 %v1976
    %4708 = vmatmul.bf16.gmra.mxu0 %v4171
    %v4709 = vpop.f32.mrf.mxu0
    %v4710 = vadd.f32 %v4697, %v4709
    %v4711 = vpop.f32.mrf.mxu0
    %4712 = vdwg.mxu0
    %4713 = vmatpush.bf16.msra.mxu0 %v2006
    %4714 = vmatpush.bf16.msra.mxu0 %v2004
    %4715 = vmatpush.bf16.msra.mxu0 %v2002
    %4716 = vmatpush.bf16.msra.mxu0 %v2000
    %4717 = vmatpush.bf16.msra.mxu0 %v1998
    %4718 = vmatpush.bf16.msra.mxu0 %v1996
    %4719 = vmatpush.bf16.msra.mxu0 %v1994
    %4720 = vmatpush.bf16.msra.mxu0 %v1992
    %4721 = vmatmul.bf16.gmra.mxu0 %v4172
    %v4722 = vpop.f32.mrf.mxu0
    %v4723 = vadd.f32 %v4710, %v4722
    %v4724 = vpop.f32.mrf.mxu0
    %4725 = vdwg.mxu0
    %4726 = vmatpush.bf16.msra.mxu0 %v2022
    %4727 = vmatpush.bf16.msra.mxu0 %v2020
    %4728 = vmatpush.bf16.msra.mxu0 %v2018
    %4729 = vmatpush.bf16.msra.mxu0 %v2016
    %4730 = vmatpush.bf16.msra.mxu0 %v2014
    %4731 = vmatpush.bf16.msra.mxu0 %v2012
    %4732 = vmatpush.bf16.msra.mxu0 %v2010
    %4733 = vmatpush.bf16.msra.mxu0 %v2008
    %4734 = vmatmul.bf16.gmra.mxu0 %v4173
    %v4735 = vpop.f32.mrf.mxu0
    %v4736 = vadd.f32 %v4723, %v4735
    %v4737 = vpop.f32.mrf.mxu0
    %4738 = vdwg.mxu0
    %4739 = vmatpush.bf16.msra.mxu0 %v2038
    %4740 = vmatpush.bf16.msra.mxu0 %v2036
    %4741 = vmatpush.bf16.msra.mxu0 %v2034
    %4742 = vmatpush.bf16.msra.mxu0 %v2032
    %4743 = vmatpush.bf16.msra.mxu0 %v2030
    %4744 = vmatpush.bf16.msra.mxu0 %v2028
    %4745 = vmatpush.bf16.msra.mxu0 %v2026
    %4746 = vmatpush.bf16.msra.mxu0 %v2024
    %4747 = vmatmul.bf16.gmra.mxu0 %v4174
    %v4748 = vpop.f32.mrf.mxu0
    %v4749 = vadd.f32 %v4736, %v4748
    %v4750 = vpop.f32.mrf.mxu0
    %4751 = vdwg.mxu0
    %4752 = vmatpush.bf16.msra.mxu0 %v2054
    %4753 = vmatpush.bf16.msra.mxu0 %v2052
    %4754 = vmatpush.bf16.msra.mxu0 %v2050
    %4755 = vmatpush.bf16.msra.mxu0 %v2048
    %4756 = vmatpush.bf16.msra.mxu0 %v2046
    %4757 = vmatpush.bf16.msra.mxu0 %v2044
    %4758 = vmatpush.bf16.msra.mxu0 %v2042
    %4759 = vmatpush.bf16.msra.mxu0 %v2040
    %4760 = vmatmul.bf16.gmra.mxu0 %v4175
    %v4761 = vpop.f32.mrf.mxu0
    %v4762 = vadd.f32 %v4749, %v4761
    %v4763 = vpop.f32.mrf.mxu0
    %4764 = vdwg.mxu0
    %4765 = vmatpush.bf16.msra.mxu0 %v2070
    %4766 = vmatpush.bf16.msra.mxu0 %v2068
    %4767 = vmatpush.bf16.msra.mxu0 %v2066
    %4768 = vmatpush.bf16.msra.mxu0 %v2064
    %4769 = vmatpush.bf16.msra.mxu0 %v2062
    %4770 = vmatpush.bf16.msra.mxu0 %v2060
    %4771 = vmatpush.bf16.msra.mxu0 %v2058
    %4772 = vmatpush.bf16.msra.mxu0 %v2056
    %4773 = vmatmul.bf16.gmra.mxu0 %v4176
    %v4774 = vpop.f32.mrf.mxu0
    %v4775 = vadd.f32 %v4762, %v4774
    %v4776 = vpop.f32.mrf.mxu0
    %4777 = vdwg.mxu0
    %4778 = vmatpush.bf16.msra.mxu0 %v2086
    %4779 = vmatpush.bf16.msra.mxu0 %v2084
    %4780 = vmatpush.bf16.msra.mxu0 %v2082
    %4781 = vmatpush.bf16.msra.mxu0 %v2080
    %4782 = vmatpush.bf16.msra.mxu0 %v2078
    %4783 = vmatpush.bf16.msra.mxu0 %v2076
    %4784 = vmatpush.bf16.msra.mxu0 %v2074
    %4785 = vmatpush.bf16.msra.mxu0 %v2072
    %4786 = vmatmul.bf16.gmra.mxu0 %v4179
    %v4787 = vpop.f32.mrf.mxu0
    %v4788 = vadd.f32 %v4775, %v4787
    %v4789 = vpop.f32.mrf.mxu0
    %4790 = vdwg.mxu0
    %4791 = vmatpush.bf16.msra.mxu0 %v2102
    %4792 = vmatpush.bf16.msra.mxu0 %v2100
    %4793 = vmatpush.bf16.msra.mxu0 %v2098
    %4794 = vmatpush.bf16.msra.mxu0 %v2096
    %4795 = vmatpush.bf16.msra.mxu0 %v2094
    %4796 = vmatpush.bf16.msra.mxu0 %v2092
    %4797 = vmatpush.bf16.msra.mxu0 %v2090
    %4798 = vmatpush.bf16.msra.mxu0 %v2088
    %4799 = vmatmul.bf16.gmra.mxu0 %v4180
    %v4800 = vpop.f32.mrf.mxu0
    %v4801 = vadd.f32 %v4788, %v4800
    %v4802 = vpop.f32.mrf.mxu0
    %4803 = vdwg.mxu0
    %4804 = vmatpush.bf16.msra.mxu0 %v2118
    %4805 = vmatpush.bf16.msra.mxu0 %v2116
    %4806 = vmatpush.bf16.msra.mxu0 %v2114
    %4807 = vmatpush.bf16.msra.mxu0 %v2112
    %4808 = vmatpush.bf16.msra.mxu0 %v2110
    %4809 = vmatpush.bf16.msra.mxu0 %v2108
    %4810 = vmatpush.bf16.msra.mxu0 %v2106
    %4811 = vmatpush.bf16.msra.mxu0 %v2104
    %4812 = vmatmul.bf16.gmra.mxu0 %v4181
    %v4813 = vpop.f32.mrf.mxu0
    %v4814 = vadd.f32 %v4801, %v4813
    %v4815 = vpop.f32.mrf.mxu0
    %4816 = vdwg.mxu0
    %4817 = vmatpush.bf16.msra.mxu0 %v2134
    %4818 = vmatpush.bf16.msra.mxu0 %v2132
    %4819 = vmatpush.bf16.msra.mxu0 %v2130
    %4820 = vmatpush.bf16.msra.mxu0 %v2128
    %4821 = vmatpush.bf16.msra.mxu0 %v2126
    %4822 = vmatpush.bf16.msra.mxu0 %v2124
    %4823 = vmatpush.bf16.msra.mxu0 %v2122
    %4824 = vmatpush.bf16.msra.mxu0 %v2120
    %4825 = vmatmul.bf16.gmra.mxu0 %v4182
    %v4826 = vpop.f32.mrf.mxu0
    %v4827 = vadd.f32 %v4814, %v4826
    %v4828 = vpop.f32.mrf.mxu0
    %4829 = vdwg.mxu0
    %4830 = vmatpush.bf16.msra.mxu0 %v2150
    %4831 = vmatpush.bf16.msra.mxu0 %v2148
    %4832 = vmatpush.bf16.msra.mxu0 %v2146
    %4833 = vmatpush.bf16.msra.mxu0 %v2144
    %4834 = vmatpush.bf16.msra.mxu0 %v2142
    %4835 = vmatpush.bf16.msra.mxu0 %v2140
    %4836 = vmatpush.bf16.msra.mxu0 %v2138
    %4837 = vmatpush.bf16.msra.mxu0 %v2136
    %4838 = vmatmul.bf16.gmra.mxu0 %v4183
    %v4839 = vpop.f32.mrf.mxu0
    %v4840 = vadd.f32 %v4827, %v4839
    %v4841 = vpop.f32.mrf.mxu0
    %4842 = vdwg.mxu0
    %4843 = vmatpush.bf16.msra.mxu0 %v2166
    %4844 = vmatpush.bf16.msra.mxu0 %v2164
    %4845 = vmatpush.bf16.msra.mxu0 %v2162
    %4846 = vmatpush.bf16.msra.mxu0 %v2160
    %4847 = vmatpush.bf16.msra.mxu0 %v2158
    %4848 = vmatpush.bf16.msra.mxu0 %v2156
    %4849 = vmatpush.bf16.msra.mxu0 %v2154
    %4850 = vmatpush.bf16.msra.mxu0 %v2152
    %4851 = vmatmul.bf16.gmra.mxu0 %v4184
    %v4852 = vpop.f32.mrf.mxu0
    %v4853 = vadd.f32 %v4840, %v4852
    %v4854 = vpop.f32.mrf.mxu0
    %4855 = vdwg.mxu0
    %4856 = vmatpush.bf16.msra.mxu0 %v2182
    %4857 = vmatpush.bf16.msra.mxu0 %v2180
    %4858 = vmatpush.bf16.msra.mxu0 %v2178
    %4859 = vmatpush.bf16.msra.mxu0 %v2176
    %4860 = vmatpush.bf16.msra.mxu0 %v2174
    %4861 = vmatpush.bf16.msra.mxu0 %v2172
    %4862 = vmatpush.bf16.msra.mxu0 %v2170
    %4863 = vmatpush.bf16.msra.mxu0 %v2168
    %4864 = vmatmul.bf16.gmra.mxu0 %v4185
    %v4865 = vpop.f32.mrf.mxu0
    %v4866 = vadd.f32 %v4853, %v4865
    %v4867 = vpop.f32.mrf.mxu0
    %4868 = vdwg.mxu0
    %4869 = vmatpush.bf16.msra.mxu0 %v2198
    %4870 = vmatpush.bf16.msra.mxu0 %v2196
    %4871 = vmatpush.bf16.msra.mxu0 %v2194
    %4872 = vmatpush.bf16.msra.mxu0 %v2192
    %4873 = vmatpush.bf16.msra.mxu0 %v2190
    %4874 = vmatpush.bf16.msra.mxu0 %v2188
    %4875 = vmatpush.bf16.msra.mxu0 %v2186
    %4876 = vmatpush.bf16.msra.mxu0 %v2184
    %4877 = vmatmul.bf16.gmra.mxu0 %v4186
    %v4878 = vpop.f32.mrf.mxu0
    %v4879 = vadd.f32 %v4866, %v4878
    %v4880 = vpop.f32.mrf.mxu0
    %4881 = vdwg.mxu0
    %4882 = vmatpush.bf16.msra.mxu0 %v2214
    %4883 = vmatpush.bf16.msra.mxu0 %v2212
    %4884 = vmatpush.bf16.msra.mxu0 %v2210
    %4885 = vmatpush.bf16.msra.mxu0 %v2208
    %4886 = vmatpush.bf16.msra.mxu0 %v2206
    %4887 = vmatpush.bf16.msra.mxu0 %v2204
    %4888 = vmatpush.bf16.msra.mxu0 %v2202
    %4889 = vmatpush.bf16.msra.mxu0 %v2200
    %4890 = vmatmul.bf16.gmra.mxu0 %v4189
    %v4891 = vpop.f32.mrf.mxu0
    %v4892 = vadd.f32 %v4879, %v4891
    %v4893 = vpop.f32.mrf.mxu0
    %4894 = vdwg.mxu0
    %4895 = vmatpush.bf16.msra.mxu0 %v2230
    %4896 = vmatpush.bf16.msra.mxu0 %v2228
    %4897 = vmatpush.bf16.msra.mxu0 %v2226
    %4898 = vmatpush.bf16.msra.mxu0 %v2224
    %4899 = vmatpush.bf16.msra.mxu0 %v2222
    %4900 = vmatpush.bf16.msra.mxu0 %v2220
    %4901 = vmatpush.bf16.msra.mxu0 %v2218
    %4902 = vmatpush.bf16.msra.mxu0 %v2216
    %4903 = vmatmul.bf16.gmra.mxu0 %v4190
    %v4904 = vpop.f32.mrf.mxu0
    %v4905 = vadd.f32 %v4892, %v4904
    %v4906 = vpop.f32.mrf.mxu0
    %4907 = vdwg.mxu0
    %4908 = vmatpush.bf16.msra.mxu0 %v2246
    %4909 = vmatpush.bf16.msra.mxu0 %v2244
    %4910 = vmatpush.bf16.msra.mxu0 %v2242
    %4911 = vmatpush.bf16.msra.mxu0 %v2240
    %4912 = vmatpush.bf16.msra.mxu0 %v2238
    %4913 = vmatpush.bf16.msra.mxu0 %v2236
    %4914 = vmatpush.bf16.msra.mxu0 %v2234
    %4915 = vmatpush.bf16.msra.mxu0 %v2232
    %4916 = vmatmul.bf16.gmra.mxu0 %v4191
    %v4917 = vpop.f32.mrf.mxu0
    %v4918 = vadd.f32 %v4905, %v4917
    %v4919 = vpop.f32.mrf.mxu0
    %4920 = vdwg.mxu0
    %v4921 = vmax.f32 %v4150, %v4567
    %v4922 = vmax.f32 %v4151, %v4918
    %s4923 = scalar_lea.vmem %s0, 81
    %v4924 = vld [vmem:[%s4923] sm:$0xff]
    %v4925 = vld [vmem:[%s4923 + $0x8] sm:$0xff]
    %v4926 = vld [vmem:[%s4923 + $0x10] sm:$0xff]
    %v4927 = vld [vmem:[%s4923 + $0x18] sm:$0x7]
    %4929 = vst [vmem:[#allocation1] ss:$9 sm:$0xff] %v4924
    %v4930 = vld [vmem:[#allocation1] sm:$0xff]
    %v4931 = vld [vmem:[#allocation1 + $0x9] sm:$0xff]
    %v4932 = vld [vmem:[#allocation1 + $0x12] sm:$0xff]
    %v4933 = vld [vmem:[#allocation1 + $0x1b] sm:$0xff]
    %v4934 = vld [vmem:[#allocation1 + $0x24] sm:$0xff]
    %v4935 = vld [vmem:[#allocation1 + $0x2d] sm:$0xff]
    %v4936 = vld [vmem:[#allocation1 + $0x36] sm:$0xff]
    %v4937 = vld [vmem:[#allocation1 + $0x3f] sm:$0xff]
    %4939 = vst [vmem:[#allocation1] ss:$9 sm:$0xff] %v4925
    %v4940 = vld [vmem:[#allocation1] sm:$0xff]
    %v4941 = vld [vmem:[#allocation1 + $0x9] sm:$0xff]
    %v4942 = vld [vmem:[#allocation1 + $0x12] sm:$0xff]
    %v4943 = vld [vmem:[#allocation1 + $0x1b] sm:$0xff]
    %v4944 = vld [vmem:[#allocation1 + $0x24] sm:$0xff]
    %v4945 = vld [vmem:[#allocation1 + $0x2d] sm:$0xff]
    %v4946 = vld [vmem:[#allocation1 + $0x36] sm:$0xff]
    %v4947 = vld [vmem:[#allocation1 + $0x3f] sm:$0xff]
    %4949 = vst [vmem:[#allocation1] ss:$9 sm:$0xff] %v4926
    %v4950 = vld [vmem:[#allocation1] sm:$0xff]
    %v4951 = vld [vmem:[#allocation1 + $0x9] sm:$0xff]
    %v4952 = vld [vmem:[#allocation1 + $0x12] sm:$0xff]
    %v4953 = vld [vmem:[#allocation1 + $0x1b] sm:$0xff]
    %v4954 = vld [vmem:[#allocation1 + $0x24] sm:$0xff]
    %v4955 = vld [vmem:[#allocation1 + $0x2d] sm:$0xff]
    %v4956 = vld [vmem:[#allocation1 + $0x36] sm:$0xff]
    %v4957 = vld [vmem:[#allocation1 + $0x3f] sm:$0xff]
    %4959 = vst [vmem:[#allocation1] ss:$9 sm:$0xff] %v4927
    %v4960 = vld [vmem:[#allocation1] sm:$0xff]
    %v4961 = vld [vmem:[#allocation1 + $0x9] sm:$0xff]
    %v4962 = vld [vmem:[#allocation1 + $0x12] sm:$0xff]
    %4990 = vmatpush.bf16.msra.mxu0 %v1829
    %4991 = vmatpush.bf16.msra.mxu0 %v1827
    %4992 = vmatpush.bf16.msra.mxu0 %v1825
    %4993 = vmatpush.bf16.msra.mxu0 %v1823
    %4994 = vmatpush.bf16.msra.mxu0 %v1821
    %4995 = vmatpush.bf16.msra.mxu0 %v1819
    %4996 = vmatpush.bf16.msra.mxu0 %v1817
    %4997 = vmatpush.bf16.msra.mxu0 %v1815
    %4998 = vmatmul.bf16.gmra.mxu0 %v4930
    %v4999 = vpop.f32.mrf.mxu0
    %v5000 = vadd.f32 0.0, %v4999
    %v5001 = vpop.f32.mrf.mxu0
    %5002 = vdwg.mxu0
    %5003 = vmatpush.bf16.msra.mxu0 %v1845
    %5004 = vmatpush.bf16.msra.mxu0 %v1843
    %5005 = vmatpush.bf16.msra.mxu0 %v1841
    %5006 = vmatpush.bf16.msra.mxu0 %v1839
    %5007 = vmatpush.bf16.msra.mxu0 %v1837
    %5008 = vmatpush.bf16.msra.mxu0 %v1835
    %5009 = vmatpush.bf16.msra.mxu0 %v1833
    %5010 = vmatpush.bf16.msra.mxu0 %v1831
    %5011 = vmatmul.bf16.gmra.mxu0 %v4931
    %v5012 = vpop.f32.mrf.mxu0
    %v5013 = vadd.f32 %v5000, %v5012
    %v5014 = vpop.f32.mrf.mxu0
    %5015 = vdwg.mxu0
    %5016 = vmatpush.bf16.msra.mxu0 %v1861
    %5017 = vmatpush.bf16.msra.mxu0 %v1859
    %5018 = vmatpush.bf16.msra.mxu0 %v1857
    %5019 = vmatpush.bf16.msra.mxu0 %v1855
    %5020 = vmatpush.bf16.msra.mxu0 %v1853
    %5021 = vmatpush.bf16.msra.mxu0 %v1851
    %5022 = vmatpush.bf16.msra.mxu0 %v1849
    %5023 = vmatpush.bf16.msra.mxu0 %v1847
    %5024 = vmatmul.bf16.gmra.mxu0 %v4932
    %v5025 = vpop.f32.mrf.mxu0
    %v5026 = vadd.f32 %v5013, %v5025
    %v5027 = vpop.f32.mrf.mxu0
    %5028 = vdwg.mxu0
    %5029 = vmatpush.bf16.msra.mxu0 %v1877
    %5030 = vmatpush.bf16.msra.mxu0 %v1875
    %5031 = vmatpush.bf16.msra.mxu0 %v1873
    %5032 = vmatpush.bf16.msra.mxu0 %v1871
    %5033 = vmatpush.bf16.msra.mxu0 %v1869
    %5034 = vmatpush.bf16.msra.mxu0 %v1867
    %5035 = vmatpush.bf16.msra.mxu0 %v1865
    %5036 = vmatpush.bf16.msra.mxu0 %v1863
    %5037 = vmatmul.bf16.gmra.mxu0 %v4933
    %v5038 = vpop.f32.mrf.mxu0
    %v5039 = vadd.f32 %v5026, %v5038
    %v5040 = vpop.f32.mrf.mxu0
    %5041 = vdwg.mxu0
    %5042 = vmatpush.bf16.msra.mxu0 %v1893
    %5043 = vmatpush.bf16.msra.mxu0 %v1891
    %5044 = vmatpush.bf16.msra.mxu0 %v1889
    %5045 = vmatpush.bf16.msra.mxu0 %v1887
    %5046 = vmatpush.bf16.msra.mxu0 %v1885
    %5047 = vmatpush.bf16.msra.mxu0 %v1883
    %5048 = vmatpush.bf16.msra.mxu0 %v1881
    %5049 = vmatpush.bf16.msra.mxu0 %v1879
    %5050 = vmatmul.bf16.gmra.mxu0 %v4934
    %v5051 = vpop.f32.mrf.mxu0
    %v5052 = vadd.f32 %v5039, %v5051
    %v5053 = vpop.f32.mrf.mxu0
    %5054 = vdwg.mxu0
    %5055 = vmatpush.bf16.msra.mxu0 %v1909
    %5056 = vmatpush.bf16.msra.mxu0 %v1907
    %5057 = vmatpush.bf16.msra.mxu0 %v1905
    %5058 = vmatpush.bf16.msra.mxu0 %v1903
    %5059 = vmatpush.bf16.msra.mxu0 %v1901
    %5060 = vmatpush.bf16.msra.mxu0 %v1899
    %5061 = vmatpush.bf16.msra.mxu0 %v1897
    %5062 = vmatpush.bf16.msra.mxu0 %v1895
    %5063 = vmatmul.bf16.gmra.mxu0 %v4935
    %v5064 = vpop.f32.mrf.mxu0
    %v5065 = vadd.f32 %v5052, %v5064
    %v5066 = vpop.f32.mrf.mxu0
    %5067 = vdwg.mxu0
    %5068 = vmatpush.bf16.msra.mxu0 %v1925
    %5069 = vmatpush.bf16.msra.mxu0 %v1923
    %5070 = vmatpush.bf16.msra.mxu0 %v1921
    %5071 = vmatpush.bf16.msra.mxu0 %v1919
    %5072 = vmatpush.bf16.msra.mxu0 %v1917
    %5073 = vmatpush.bf16.msra.mxu0 %v1915
    %5074 = vmatpush.bf16.msra.mxu0 %v1913
    %5075 = vmatpush.bf16.msra.mxu0 %v1911
    %5076 = vmatmul.bf16.gmra.mxu0 %v4936
    %v5077 = vpop.f32.mrf.mxu0
    %v5078 = vadd.f32 %v5065, %v5077
    %v5079 = vpop.f32.mrf.mxu0
    %5080 = vdwg.mxu0
    %5081 = vmatpush.bf16.msra.mxu0 %v1941
    %5082 = vmatpush.bf16.msra.mxu0 %v1939
    %5083 = vmatpush.bf16.msra.mxu0 %v1937
    %5084 = vmatpush.bf16.msra.mxu0 %v1935
    %5085 = vmatpush.bf16.msra.mxu0 %v1933
    %5086 = vmatpush.bf16.msra.mxu0 %v1931
    %5087 = vmatpush.bf16.msra.mxu0 %v1929
    %5088 = vmatpush.bf16.msra.mxu0 %v1927
    %5089 = vmatmul.bf16.gmra.mxu0 %v4937
    %v5090 = vpop.f32.mrf.mxu0
    %v5091 = vadd.f32 %v5078, %v5090
    %v5092 = vpop.f32.mrf.mxu0
    %5093 = vdwg.mxu0
    %5094 = vmatpush.bf16.msra.mxu0 %v1957
    %5095 = vmatpush.bf16.msra.mxu0 %v1955
    %5096 = vmatpush.bf16.msra.mxu0 %v1953
    %5097 = vmatpush.bf16.msra.mxu0 %v1951
    %5098 = vmatpush.bf16.msra.mxu0 %v1949
    %5099 = vmatpush.bf16.msra.mxu0 %v1947
    %5100 = vmatpush.bf16.msra.mxu0 %v1945
    %5101 = vmatpush.bf16.msra.mxu0 %v1943
    %5102 = vmatmul.bf16.gmra.mxu0 %v4940
    %v5103 = vpop.f32.mrf.mxu0
    %v5104 = vadd.f32 %v5091, %v5103
    %v5105 = vpop.f32.mrf.mxu0
    %5106 = vdwg.mxu0
    %5107 = vmatpush.bf16.msra.mxu0 %v1973
    %5108 = vmatpush.bf16.msra.mxu0 %v1971
    %5109 = vmatpush.bf16.msra.mxu0 %v1969
    %5110 = vmatpush.bf16.msra.mxu0 %v1967
    %5111 = vmatpush.bf16.msra.mxu0 %v1965
    %5112 = vmatpush.bf16.msra.mxu0 %v1963
    %5113 = vmatpush.bf16.msra.mxu0 %v1961
    %5114 = vmatpush.bf16.msra.mxu0 %v1959
    %5115 = vmatmul.bf16.gmra.mxu0 %v4941
    %v5116 = vpop.f32.mrf.mxu0
    %v5117 = vadd.f32 %v5104, %v5116
    %v5118 = vpop.f32.mrf.mxu0
    %5119 = vdwg.mxu0
    %5120 = vmatpush.bf16.msra.mxu0 %v1989
    %5121 = vmatpush.bf16.msra.mxu0 %v1987
    %5122 = vmatpush.bf16.msra.mxu0 %v1985
    %5123 = vmatpush.bf16.msra.mxu0 %v1983
    %5124 = vmatpush.bf16.msra.mxu0 %v1981
    %5125 = vmatpush.bf16.msra.mxu0 %v1979
    %5126 = vmatpush.bf16.msra.mxu0 %v1977
    %5127 = vmatpush.bf16.msra.mxu0 %v1975
    %5128 = vmatmul.bf16.gmra.mxu0 %v4942
    %v5129 = vpop.f32.mrf.mxu0
    %v5130 = vadd.f32 %v5117, %v5129
    %v5131 = vpop.f32.mrf.mxu0
    %5132 = vdwg.mxu0
    %5133 = vmatpush.bf16.msra.mxu0 %v2005
    %5134 = vmatpush.bf16.msra.mxu0 %v2003
    %5135 = vmatpush.bf16.msra.mxu0 %v2001
    %5136 = vmatpush.bf16.msra.mxu0 %v1999
    %5137 = vmatpush.bf16.msra.mxu0 %v1997
    %5138 = vmatpush.bf16.msra.mxu0 %v1995
    %5139 = vmatpush.bf16.msra.mxu0 %v1993
    %5140 = vmatpush.bf16.msra.mxu0 %v1991
    %5141 = vmatmul.bf16.gmra.mxu0 %v4943
    %v5142 = vpop.f32.mrf.mxu0
    %v5143 = vadd.f32 %v5130, %v5142
    %v5144 = vpop.f32.mrf.mxu0
    %5145 = vdwg.mxu0
    %5146 = vmatpush.bf16.msra.mxu0 %v2021
    %5147 = vmatpush.bf16.msra.mxu0 %v2019
    %5148 = vmatpush.bf16.msra.mxu0 %v2017
    %5149 = vmatpush.bf16.msra.mxu0 %v2015
    %5150 = vmatpush.bf16.msra.mxu0 %v2013
    %5151 = vmatpush.bf16.msra.mxu0 %v2011
    %5152 = vmatpush.bf16.msra.mxu0 %v2009
    %5153 = vmatpush.bf16.msra.mxu0 %v2007
    %5154 = vmatmul.bf16.gmra.mxu0 %v4944
    %v5155 = vpop.f32.mrf.mxu0
    %v5156 = vadd.f32 %v5143, %v5155
    %v5157 = vpop.f32.mrf.mxu0
    %5158 = vdwg.mxu0
    %5159 = vmatpush.bf16.msra.mxu0 %v2037
    %5160 = vmatpush.bf16.msra.mxu0 %v2035
    %5161 = vmatpush.bf16.msra.mxu0 %v2033
    %5162 = vmatpush.bf16.msra.mxu0 %v2031
    %5163 = vmatpush.bf16.msra.mxu0 %v2029
    %5164 = vmatpush.bf16.msra.mxu0 %v2027
    %5165 = vmatpush.bf16.msra.mxu0 %v2025
    %5166 = vmatpush.bf16.msra.mxu0 %v2023
    %5167 = vmatmul.bf16.gmra.mxu0 %v4945
    %v5168 = vpop.f32.mrf.mxu0
    %v5169 = vadd.f32 %v5156, %v5168
    %v5170 = vpop.f32.mrf.mxu0
    %5171 = vdwg.mxu0
    %5172 = vmatpush.bf16.msra.mxu0 %v2053
    %5173 = vmatpush.bf16.msra.mxu0 %v2051
    %5174 = vmatpush.bf16.msra.mxu0 %v2049
    %5175 = vmatpush.bf16.msra.mxu0 %v2047
    %5176 = vmatpush.bf16.msra.mxu0 %v2045
    %5177 = vmatpush.bf16.msra.mxu0 %v2043
    %5178 = vmatpush.bf16.msra.mxu0 %v2041
    %5179 = vmatpush.bf16.msra.mxu0 %v2039
    %5180 = vmatmul.bf16.gmra.mxu0 %v4946
    %v5181 = vpop.f32.mrf.mxu0
    %v5182 = vadd.f32 %v5169, %v5181
    %v5183 = vpop.f32.mrf.mxu0
    %5184 = vdwg.mxu0
    %5185 = vmatpush.bf16.msra.mxu0 %v2069
    %5186 = vmatpush.bf16.msra.mxu0 %v2067
    %5187 = vmatpush.bf16.msra.mxu0 %v2065
    %5188 = vmatpush.bf16.msra.mxu0 %v2063
    %5189 = vmatpush.bf16.msra.mxu0 %v2061
    %5190 = vmatpush.bf16.msra.mxu0 %v2059
    %5191 = vmatpush.bf16.msra.mxu0 %v2057
    %5192 = vmatpush.bf16.msra.mxu0 %v2055
    %5193 = vmatmul.bf16.gmra.mxu0 %v4947
    %v5194 = vpop.f32.mrf.mxu0
    %v5195 = vadd.f32 %v5182, %v5194
    %v5196 = vpop.f32.mrf.mxu0
    %5197 = vdwg.mxu0
    %5198 = vmatpush.bf16.msra.mxu0 %v2085
    %5199 = vmatpush.bf16.msra.mxu0 %v2083
    %5200 = vmatpush.bf16.msra.mxu0 %v2081
    %5201 = vmatpush.bf16.msra.mxu0 %v2079
    %5202 = vmatpush.bf16.msra.mxu0 %v2077
    %5203 = vmatpush.bf16.msra.mxu0 %v2075
    %5204 = vmatpush.bf16.msra.mxu0 %v2073
    %5205 = vmatpush.bf16.msra.mxu0 %v2071
    %5206 = vmatmul.bf16.gmra.mxu0 %v4950
    %v5207 = vpop.f32.mrf.mxu0
    %v5208 = vadd.f32 %v5195, %v5207
    %v5209 = vpop.f32.mrf.mxu0
    %5210 = vdwg.mxu0
    %5211 = vmatpush.bf16.msra.mxu0 %v2101
    %5212 = vmatpush.bf16.msra.mxu0 %v2099
    %5213 = vmatpush.bf16.msra.mxu0 %v2097
    %5214 = vmatpush.bf16.msra.mxu0 %v2095
    %5215 = vmatpush.bf16.msra.mxu0 %v2093
    %5216 = vmatpush.bf16.msra.mxu0 %v2091
    %5217 = vmatpush.bf16.msra.mxu0 %v2089
    %5218 = vmatpush.bf16.msra.mxu0 %v2087
    %5219 = vmatmul.bf16.gmra.mxu0 %v4951
    %v5220 = vpop.f32.mrf.mxu0
    %v5221 = vadd.f32 %v5208, %v5220
    %v5222 = vpop.f32.mrf.mxu0
    %5223 = vdwg.mxu0
    %5224 = vmatpush.bf16.msra.mxu0 %v2117
    %5225 = vmatpush.bf16.msra.mxu0 %v2115
    %5226 = vmatpush.bf16.msra.mxu0 %v2113
    %5227 = vmatpush.bf16.msra.mxu0 %v2111
    %5228 = vmatpush.bf16.msra.mxu0 %v2109
    %5229 = vmatpush.bf16.msra.mxu0 %v2107
    %5230 = vmatpush.bf16.msra.mxu0 %v2105
    %5231 = vmatpush.bf16.msra.mxu0 %v2103
    %5232 = vmatmul.bf16.gmra.mxu0 %v4952
    %v5233 = vpop.f32.mrf.mxu0
    %v5234 = vadd.f32 %v5221, %v5233
    %v5235 = vpop.f32.mrf.mxu0
    %5236 = vdwg.mxu0
    %5237 = vmatpush.bf16.msra.mxu0 %v2133
    %5238 = vmatpush.bf16.msra.mxu0 %v2131
    %5239 = vmatpush.bf16.msra.mxu0 %v2129
    %5240 = vmatpush.bf16.msra.mxu0 %v2127
    %5241 = vmatpush.bf16.msra.mxu0 %v2125
    %5242 = vmatpush.bf16.msra.mxu0 %v2123
    %5243 = vmatpush.bf16.msra.mxu0 %v2121
    %5244 = vmatpush.bf16.msra.mxu0 %v2119
    %5245 = vmatmul.bf16.gmra.mxu0 %v4953
    %v5246 = vpop.f32.mrf.mxu0
    %v5247 = vadd.f32 %v5234, %v5246
    %v5248 = vpop.f32.mrf.mxu0
    %5249 = vdwg.mxu0
    %5250 = vmatpush.bf16.msra.mxu0 %v2149
    %5251 = vmatpush.bf16.msra.mxu0 %v2147
    %5252 = vmatpush.bf16.msra.mxu0 %v2145
    %5253 = vmatpush.bf16.msra.mxu0 %v2143
    %5254 = vmatpush.bf16.msra.mxu0 %v2141
    %5255 = vmatpush.bf16.msra.mxu0 %v2139
    %5256 = vmatpush.bf16.msra.mxu0 %v2137
    %5257 = vmatpush.bf16.msra.mxu0 %v2135
    %5258 = vmatmul.bf16.gmra.mxu0 %v4954
    %v5259 = vpop.f32.mrf.mxu0
    %v5260 = vadd.f32 %v5247, %v5259
    %v5261 = vpop.f32.mrf.mxu0
    %5262 = vdwg.mxu0
    %5263 = vmatpush.bf16.msra.mxu0 %v2165
    %5264 = vmatpush.bf16.msra.mxu0 %v2163
    %5265 = vmatpush.bf16.msra.mxu0 %v2161
    %5266 = vmatpush.bf16.msra.mxu0 %v2159
    %5267 = vmatpush.bf16.msra.mxu0 %v2157
    %5268 = vmatpush.bf16.msra.mxu0 %v2155
    %5269 = vmatpush.bf16.msra.mxu0 %v2153
    %5270 = vmatpush.bf16.msra.mxu0 %v2151
    %5271 = vmatmul.bf16.gmra.mxu0 %v4955
    %v5272 = vpop.f32.mrf.mxu0
    %v5273 = vadd.f32 %v5260, %v5272
    %v5274 = vpop.f32.mrf.mxu0
    %5275 = vdwg.mxu0
    %5276 = vmatpush.bf16.msra.mxu0 %v2181
    %5277 = vmatpush.bf16.msra.mxu0 %v2179
    %5278 = vmatpush.bf16.msra.mxu0 %v2177
    %5279 = vmatpush.bf16.msra.mxu0 %v2175
    %5280 = vmatpush.bf16.msra.mxu0 %v2173
    %5281 = vmatpush.bf16.msra.mxu0 %v2171
    %5282 = vmatpush.bf16.msra.mxu0 %v2169
    %5283 = vmatpush.bf16.msra.mxu0 %v2167
    %5284 = vmatmul.bf16.gmra.mxu0 %v4956
    %v5285 = vpop.f32.mrf.mxu0
    %v5286 = vadd.f32 %v5273, %v5285
    %v5287 = vpop.f32.mrf.mxu0
    %5288 = vdwg.mxu0
    %5289 = vmatpush.bf16.msra.mxu0 %v2197
    %5290 = vmatpush.bf16.msra.mxu0 %v2195
    %5291 = vmatpush.bf16.msra.mxu0 %v2193
    %5292 = vmatpush.bf16.msra.mxu0 %v2191
    %5293 = vmatpush.bf16.msra.mxu0 %v2189
    %5294 = vmatpush.bf16.msra.mxu0 %v2187
    %5295 = vmatpush.bf16.msra.mxu0 %v2185
    %5296 = vmatpush.bf16.msra.mxu0 %v2183
    %5297 = vmatmul.bf16.gmra.mxu0 %v4957
    %v5298 = vpop.f32.mrf.mxu0
    %v5299 = vadd.f32 %v5286, %v5298
    %v5300 = vpop.f32.mrf.mxu0
    %5301 = vdwg.mxu0
    %5302 = vmatpush.bf16.msra.mxu0 %v2213
    %5303 = vmatpush.bf16.msra.mxu0 %v2211
    %5304 = vmatpush.bf16.msra.mxu0 %v2209
    %5305 = vmatpush.bf16.msra.mxu0 %v2207
    %5306 = vmatpush.bf16.msra.mxu0 %v2205
    %5307 = vmatpush.bf16.msra.mxu0 %v2203
    %5308 = vmatpush.bf16.msra.mxu0 %v2201
    %5309 = vmatpush.bf16.msra.mxu0 %v2199
    %5310 = vmatmul.bf16.gmra.mxu0 %v4960
    %v5311 = vpop.f32.mrf.mxu0
    %v5312 = vadd.f32 %v5299, %v5311
    %v5313 = vpop.f32.mrf.mxu0
    %5314 = vdwg.mxu0
    %5315 = vmatpush.bf16.msra.mxu0 %v2229
    %5316 = vmatpush.bf16.msra.mxu0 %v2227
    %5317 = vmatpush.bf16.msra.mxu0 %v2225
    %5318 = vmatpush.bf16.msra.mxu0 %v2223
    %5319 = vmatpush.bf16.msra.mxu0 %v2221
    %5320 = vmatpush.bf16.msra.mxu0 %v2219
    %5321 = vmatpush.bf16.msra.mxu0 %v2217
    %5322 = vmatpush.bf16.msra.mxu0 %v2215
    %5323 = vmatmul.bf16.gmra.mxu0 %v4961
    %v5324 = vpop.f32.mrf.mxu0
    %v5325 = vadd.f32 %v5312, %v5324
    %v5326 = vpop.f32.mrf.mxu0
    %5327 = vdwg.mxu0
    %5328 = vmatpush.bf16.msra.mxu0 %v2245
    %5329 = vmatpush.bf16.msra.mxu0 %v2243
    %5330 = vmatpush.bf16.msra.mxu0 %v2241
    %5331 = vmatpush.bf16.msra.mxu0 %v2239
    %5332 = vmatpush.bf16.msra.mxu0 %v2237
    %5333 = vmatpush.bf16.msra.mxu0 %v2235
    %5334 = vmatpush.bf16.msra.mxu0 %v2233
    %5335 = vmatpush.bf16.msra.mxu0 %v2231
    %5336 = vmatmul.bf16.gmra.mxu0 %v4962
    %v5337 = vpop.f32.mrf.mxu0
    %v5338 = vadd.f32 %v5325, %v5337
    %v5339 = vpop.f32.mrf.mxu0
    %5340 = vdwg.mxu0
    %5341 = vmatpush.bf16.msra.mxu0 %v1830
    %5342 = vmatpush.bf16.msra.mxu0 %v1828
    %5343 = vmatpush.bf16.msra.mxu0 %v1826
    %5344 = vmatpush.bf16.msra.mxu0 %v1824
    %5345 = vmatpush.bf16.msra.mxu0 %v1822
    %5346 = vmatpush.bf16.msra.mxu0 %v1820
    %5347 = vmatpush.bf16.msra.mxu0 %v1818
    %5348 = vmatpush.bf16.msra.mxu0 %v1816
    %5349 = vmatmul.bf16.gmra.mxu0 %v4930
    %v5350 = vpop.f32.mrf.mxu0
    %v5351 = vadd.f32 0.0, %v5350
    %v5352 = vpop.f32.mrf.mxu0
    %5353 = vdwg.mxu0
    %5354 = vmatpush.bf16.msra.mxu0 %v1846
    %5355 = vmatpush.bf16.msra.mxu0 %v1844
    %5356 = vmatpush.bf16.msra.mxu0 %v1842
    %5357 = vmatpush.bf16.msra.mxu0 %v1840
    %5358 = vmatpush.bf16.msra.mxu0 %v1838
    %5359 = vmatpush.bf16.msra.mxu0 %v1836
    %5360 = vmatpush.bf16.msra.mxu0 %v1834
    %5361 = vmatpush.bf16.msra.mxu0 %v1832
    %5362 = vmatmul.bf16.gmra.mxu0 %v4931
    %v5363 = vpop.f32.mrf.mxu0
    %v5364 = vadd.f32 %v5351, %v5363
    %v5365 = vpop.f32.mrf.mxu0
    %5366 = vdwg.mxu0
    %5367 = vmatpush.bf16.msra.mxu0 %v1862
    %5368 = vmatpush.bf16.msra.mxu0 %v1860
    %5369 = vmatpush.bf16.msra.mxu0 %v1858
    %5370 = vmatpush.bf16.msra.mxu0 %v1856
    %5371 = vmatpush.bf16.msra.mxu0 %v1854
    %5372 = vmatpush.bf16.msra.mxu0 %v1852
    %5373 = vmatpush.bf16.msra.mxu0 %v1850
    %5374 = vmatpush.bf16.msra.mxu0 %v1848
    %5375 = vmatmul.bf16.gmra.mxu0 %v4932
    %v5376 = vpop.f32.mrf.mxu0
    %v5377 = vadd.f32 %v5364, %v5376
    %v5378 = vpop.f32.mrf.mxu0
    %5379 = vdwg.mxu0
    %5380 = vmatpush.bf16.msra.mxu0 %v1878
    %5381 = vmatpush.bf16.msra.mxu0 %v1876
    %5382 = vmatpush.bf16.msra.mxu0 %v1874
    %5383 = vmatpush.bf16.msra.mxu0 %v1872
    %5384 = vmatpush.bf16.msra.mxu0 %v1870
    %5385 = vmatpush.bf16.msra.mxu0 %v1868
    %5386 = vmatpush.bf16.msra.mxu0 %v1866
    %5387 = vmatpush.bf16.msra.mxu0 %v1864
    %5388 = vmatmul.bf16.gmra.mxu0 %v4933
    %v5389 = vpop.f32.mrf.mxu0
    %v5390 = vadd.f32 %v5377, %v5389
    %v5391 = vpop.f32.mrf.mxu0
    %5392 = vdwg.mxu0
    %5393 = vmatpush.bf16.msra.mxu0 %v1894
    %5394 = vmatpush.bf16.msra.mxu0 %v1892
    %5395 = vmatpush.bf16.msra.mxu0 %v1890
    %5396 = vmatpush.bf16.msra.mxu0 %v1888
    %5397 = vmatpush.bf16.msra.mxu0 %v1886
    %5398 = vmatpush.bf16.msra.mxu0 %v1884
    %5399 = vmatpush.bf16.msra.mxu0 %v1882
    %5400 = vmatpush.bf16.msra.mxu0 %v1880
    %5401 = vmatmul.bf16.gmra.mxu0 %v4934
    %v5402 = vpop.f32.mrf.mxu0
    %v5403 = vadd.f32 %v5390, %v5402
    %v5404 = vpop.f32.mrf.mxu0
    %5405 = vdwg.mxu0
    %5406 = vmatpush.bf16.msra.mxu0 %v1910
    %5407 = vmatpush.bf16.msra.mxu0 %v1908
    %5408 = vmatpush.bf16.msra.mxu0 %v1906
    %5409 = vmatpush.bf16.msra.mxu0 %v1904
    %5410 = vmatpush.bf16.msra.mxu0 %v1902
    %5411 = vmatpush.bf16.msra.mxu0 %v1900
    %5412 = vmatpush.bf16.msra.mxu0 %v1898
    %5413 = vmatpush.bf16.msra.mxu0 %v1896
    %5414 = vmatmul.bf16.gmra.mxu0 %v4935
    %v5415 = vpop.f32.mrf.mxu0
    %v5416 = vadd.f32 %v5403, %v5415
    %v5417 = vpop.f32.mrf.mxu0
    %5418 = vdwg.mxu0
    %5419 = vmatpush.bf16.msra.mxu0 %v1926
    %5420 = vmatpush.bf16.msra.mxu0 %v1924
    %5421 = vmatpush.bf16.msra.mxu0 %v1922
    %5422 = vmatpush.bf16.msra.mxu0 %v1920
    %5423 = vmatpush.bf16.msra.mxu0 %v1918
    %5424 = vmatpush.bf16.msra.mxu0 %v1916
    %5425 = vmatpush.bf16.msra.mxu0 %v1914
    %5426 = vmatpush.bf16.msra.mxu0 %v1912
    %5427 = vmatmul.bf16.gmra.mxu0 %v4936
    %v5428 = vpop.f32.mrf.mxu0
    %v5429 = vadd.f32 %v5416, %v5428
    %v5430 = vpop.f32.mrf.mxu0
    %5431 = vdwg.mxu0
    %5432 = vmatpush.bf16.msra.mxu0 %v1942
    %5433 = vmatpush.bf16.msra.mxu0 %v1940
    %5434 = vmatpush.bf16.msra.mxu0 %v1938
    %5435 = vmatpush.bf16.msra.mxu0 %v1936
    %5436 = vmatpush.bf16.msra.mxu0 %v1934
    %5437 = vmatpush.bf16.msra.mxu0 %v1932
    %5438 = vmatpush.bf16.msra.mxu0 %v1930
    %5439 = vmatpush.bf16.msra.mxu0 %v1928
    %5440 = vmatmul.bf16.gmra.mxu0 %v4937
    %v5441 = vpop.f32.mrf.mxu0
    %v5442 = vadd.f32 %v5429, %v5441
    %v5443 = vpop.f32.mrf.mxu0
    %5444 = vdwg.mxu0
    %5445 = vmatpush.bf16.msra.mxu0 %v1958
    %5446 = vmatpush.bf16.msra.mxu0 %v1956
    %5447 = vmatpush.bf16.msra.mxu0 %v1954
    %5448 = vmatpush.bf16.msra.mxu0 %v1952
    %5449 = vmatpush.bf16.msra.mxu0 %v1950
    %5450 = vmatpush.bf16.msra.mxu0 %v1948
    %5451 = vmatpush.bf16.msra.mxu0 %v1946
    %5452 = vmatpush.bf16.msra.mxu0 %v1944
    %5453 = vmatmul.bf16.gmra.mxu0 %v4940
    %v5454 = vpop.f32.mrf.mxu0
    %v5455 = vadd.f32 %v5442, %v5454
    %v5456 = vpop.f32.mrf.mxu0
    %5457 = vdwg.mxu0
    %5458 = vmatpush.bf16.msra.mxu0 %v1974
    %5459 = vmatpush.bf16.msra.mxu0 %v1972
    %5460 = vmatpush.bf16.msra.mxu0 %v1970
    %5461 = vmatpush.bf16.msra.mxu0 %v1968
    %5462 = vmatpush.bf16.msra.mxu0 %v1966
    %5463 = vmatpush.bf16.msra.mxu0 %v1964
    %5464 = vmatpush.bf16.msra.mxu0 %v1962
    %5465 = vmatpush.bf16.msra.mxu0 %v1960
    %5466 = vmatmul.bf16.gmra.mxu0 %v4941
    %v5467 = vpop.f32.mrf.mxu0
    %v5468 = vadd.f32 %v5455, %v5467
    %v5469 = vpop.f32.mrf.mxu0
    %5470 = vdwg.mxu0
    %5471 = vmatpush.bf16.msra.mxu0 %v1990
    %5472 = vmatpush.bf16.msra.mxu0 %v1988
    %5473 = vmatpush.bf16.msra.mxu0 %v1986
    %5474 = vmatpush.bf16.msra.mxu0 %v1984
    %5475 = vmatpush.bf16.msra.mxu0 %v1982
    %5476 = vmatpush.bf16.msra.mxu0 %v1980
    %5477 = vmatpush.bf16.msra.mxu0 %v1978
    %5478 = vmatpush.bf16.msra.mxu0 %v1976
    %5479 = vmatmul.bf16.gmra.mxu0 %v4942
    %v5480 = vpop.f32.mrf.mxu0
    %v5481 = vadd.f32 %v5468, %v5480
    %v5482 = vpop.f32.mrf.mxu0
    %5483 = vdwg.mxu0
    %5484 = vmatpush.bf16.msra.mxu0 %v2006
    %5485 = vmatpush.bf16.msra.mxu0 %v2004
    %5486 = vmatpush.bf16.msra.mxu0 %v2002
    %5487 = vmatpush.bf16.msra.mxu0 %v2000
    %5488 = vmatpush.bf16.msra.mxu0 %v1998
    %5489 = vmatpush.bf16.msra.mxu0 %v1996
    %5490 = vmatpush.bf16.msra.mxu0 %v1994
    %5491 = vmatpush.bf16.msra.mxu0 %v1992
    %5492 = vmatmul.bf16.gmra.mxu0 %v4943
    %v5493 = vpop.f32.mrf.mxu0
    %v5494 = vadd.f32 %v5481, %v5493
    %v5495 = vpop.f32.mrf.mxu0
    %5496 = vdwg.mxu0
    %5497 = vmatpush.bf16.msra.mxu0 %v2022
    %5498 = vmatpush.bf16.msra.mxu0 %v2020
    %5499 = vmatpush.bf16.msra.mxu0 %v2018
    %5500 = vmatpush.bf16.msra.mxu0 %v2016
    %5501 = vmatpush.bf16.msra.mxu0 %v2014
    %5502 = vmatpush.bf16.msra.mxu0 %v2012
    %5503 = vmatpush.bf16.msra.mxu0 %v2010
    %5504 = vmatpush.bf16.msra.mxu0 %v2008
    %5505 = vmatmul.bf16.gmra.mxu0 %v4944
    %v5506 = vpop.f32.mrf.mxu0
    %v5507 = vadd.f32 %v5494, %v5506
    %v5508 = vpop.f32.mrf.mxu0
    %5509 = vdwg.mxu0
    %5510 = vmatpush.bf16.msra.mxu0 %v2038
    %5511 = vmatpush.bf16.msra.mxu0 %v2036
    %5512 = vmatpush.bf16.msra.mxu0 %v2034
    %5513 = vmatpush.bf16.msra.mxu0 %v2032
    %5514 = vmatpush.bf16.msra.mxu0 %v2030
    %5515 = vmatpush.bf16.msra.mxu0 %v2028
    %5516 = vmatpush.bf16.msra.mxu0 %v2026
    %5517 = vmatpush.bf16.msra.mxu0 %v2024
    %5518 = vmatmul.bf16.gmra.mxu0 %v4945
    %v5519 = vpop.f32.mrf.mxu0
    %v5520 = vadd.f32 %v5507, %v5519
    %v5521 = vpop.f32.mrf.mxu0
    %5522 = vdwg.mxu0
    %5523 = vmatpush.bf16.msra.mxu0 %v2054
    %5524 = vmatpush.bf16.msra.mxu0 %v2052
    %5525 = vmatpush.bf16.msra.mxu0 %v2050
    %5526 = vmatpush.bf16.msra.mxu0 %v2048
    %5527 = vmatpush.bf16.msra.mxu0 %v2046
    %5528 = vmatpush.bf16.msra.mxu0 %v2044
    %5529 = vmatpush.bf16.msra.mxu0 %v2042
    %5530 = vmatpush.bf16.msra.mxu0 %v2040
    %5531 = vmatmul.bf16.gmra.mxu0 %v4946
    %v5532 = vpop.f32.mrf.mxu0
    %v5533 = vadd.f32 %v5520, %v5532
    %v5534 = vpop.f32.mrf.mxu0
    %5535 = vdwg.mxu0
    %5536 = vmatpush.bf16.msra.mxu0 %v2070
    %5537 = vmatpush.bf16.msra.mxu0 %v2068
    %5538 = vmatpush.bf16.msra.mxu0 %v2066
    %5539 = vmatpush.bf16.msra.mxu0 %v2064
    %5540 = vmatpush.bf16.msra.mxu0 %v2062
    %5541 = vmatpush.bf16.msra.mxu0 %v2060
    %5542 = vmatpush.bf16.msra.mxu0 %v2058
    %5543 = vmatpush.bf16.msra.mxu0 %v2056
    %5544 = vmatmul.bf16.gmra.mxu0 %v4947
    %v5545 = vpop.f32.mrf.mxu0
    %v5546 = vadd.f32 %v5533, %v5545
    %v5547 = vpop.f32.mrf.mxu0
    %5548 = vdwg.mxu0
    %5549 = vmatpush.bf16.msra.mxu0 %v2086
    %5550 = vmatpush.bf16.msra.mxu0 %v2084
    %5551 = vmatpush.bf16.msra.mxu0 %v2082
    %5552 = vmatpush.bf16.msra.mxu0 %v2080
    %5553 = vmatpush.bf16.msra.mxu0 %v2078
    %5554 = vmatpush.bf16.msra.mxu0 %v2076
    %5555 = vmatpush.bf16.msra.mxu0 %v2074
    %5556 = vmatpush.bf16.msra.mxu0 %v2072
    %5557 = vmatmul.bf16.gmra.mxu0 %v4950
    %v5558 = vpop.f32.mrf.mxu0
    %v5559 = vadd.f32 %v5546, %v5558
    %v5560 = vpop.f32.mrf.mxu0
    %5561 = vdwg.mxu0
    %5562 = vmatpush.bf16.msra.mxu0 %v2102
    %5563 = vmatpush.bf16.msra.mxu0 %v2100
    %5564 = vmatpush.bf16.msra.mxu0 %v2098
    %5565 = vmatpush.bf16.msra.mxu0 %v2096
    %5566 = vmatpush.bf16.msra.mxu0 %v2094
    %5567 = vmatpush.bf16.msra.mxu0 %v2092
    %5568 = vmatpush.bf16.msra.mxu0 %v2090
    %5569 = vmatpush.bf16.msra.mxu0 %v2088
    %5570 = vmatmul.bf16.gmra.mxu0 %v4951
    %v5571 = vpop.f32.mrf.mxu0
    %v5572 = vadd.f32 %v5559, %v5571
    %v5573 = vpop.f32.mrf.mxu0
    %5574 = vdwg.mxu0
    %5575 = vmatpush.bf16.msra.mxu0 %v2118
    %5576 = vmatpush.bf16.msra.mxu0 %v2116
    %5577 = vmatpush.bf16.msra.mxu0 %v2114
    %5578 = vmatpush.bf16.msra.mxu0 %v2112
    %5579 = vmatpush.bf16.msra.mxu0 %v2110
    %5580 = vmatpush.bf16.msra.mxu0 %v2108
    %5581 = vmatpush.bf16.msra.mxu0 %v2106
    %5582 = vmatpush.bf16.msra.mxu0 %v2104
    %5583 = vmatmul.bf16.gmra.mxu0 %v4952
    %v5584 = vpop.f32.mrf.mxu0
    %v5585 = vadd.f32 %v5572, %v5584
    %v5586 = vpop.f32.mrf.mxu0
    %5587 = vdwg.mxu0
    %5588 = vmatpush.bf16.msra.mxu0 %v2134
    %5589 = vmatpush.bf16.msra.mxu0 %v2132
    %5590 = vmatpush.bf16.msra.mxu0 %v2130
    %5591 = vmatpush.bf16.msra.mxu0 %v2128
    %5592 = vmatpush.bf16.msra.mxu0 %v2126
    %5593 = vmatpush.bf16.msra.mxu0 %v2124
    %5594 = vmatpush.bf16.msra.mxu0 %v2122
    %5595 = vmatpush.bf16.msra.mxu0 %v2120
    %5596 = vmatmul.bf16.gmra.mxu0 %v4953
    %v5597 = vpop.f32.mrf.mxu0
    %v5598 = vadd.f32 %v5585, %v5597
    %v5599 = vpop.f32.mrf.mxu0
    %5600 = vdwg.mxu0
    %5601 = vmatpush.bf16.msra.mxu0 %v2150
    %5602 = vmatpush.bf16.msra.mxu0 %v2148
    %5603 = vmatpush.bf16.msra.mxu0 %v2146
    %5604 = vmatpush.bf16.msra.mxu0 %v2144
    %5605 = vmatpush.bf16.msra.mxu0 %v2142
    %5606 = vmatpush.bf16.msra.mxu0 %v2140
    %5607 = vmatpush.bf16.msra.mxu0 %v2138
    %5608 = vmatpush.bf16.msra.mxu0 %v2136
    %5609 = vmatmul.bf16.gmra.mxu0 %v4954
    %v5610 = vpop.f32.mrf.mxu0
    %v5611 = vadd.f32 %v5598, %v5610
    %v5612 = vpop.f32.mrf.mxu0
    %5613 = vdwg.mxu0
    %5614 = vmatpush.bf16.msra.mxu0 %v2166
    %5615 = vmatpush.bf16.msra.mxu0 %v2164
    %5616 = vmatpush.bf16.msra.mxu0 %v2162
    %5617 = vmatpush.bf16.msra.mxu0 %v2160
    %5618 = vmatpush.bf16.msra.mxu0 %v2158
    %5619 = vmatpush.bf16.msra.mxu0 %v2156
    %5620 = vmatpush.bf16.msra.mxu0 %v2154
    %5621 = vmatpush.bf16.msra.mxu0 %v2152
    %5622 = vmatmul.bf16.gmra.mxu0 %v4955
    %v5623 = vpop.f32.mrf.mxu0
    %v5624 = vadd.f32 %v5611, %v5623
    %v5625 = vpop.f32.mrf.mxu0
    %5626 = vdwg.mxu0
    %5627 = vmatpush.bf16.msra.mxu0 %v2182
    %5628 = vmatpush.bf16.msra.mxu0 %v2180
    %5629 = vmatpush.bf16.msra.mxu0 %v2178
    %5630 = vmatpush.bf16.msra.mxu0 %v2176
    %5631 = vmatpush.bf16.msra.mxu0 %v2174
    %5632 = vmatpush.bf16.msra.mxu0 %v2172
    %5633 = vmatpush.bf16.msra.mxu0 %v2170
    %5634 = vmatpush.bf16.msra.mxu0 %v2168
    %5635 = vmatmul.bf16.gmra.mxu0 %v4956
    %v5636 = vpop.f32.mrf.mxu0
    %v5637 = vadd.f32 %v5624, %v5636
    %v5638 = vpop.f32.mrf.mxu0
    %5639 = vdwg.mxu0
    %5640 = vmatpush.bf16.msra.mxu0 %v2198
    %5641 = vmatpush.bf16.msra.mxu0 %v2196
    %5642 = vmatpush.bf16.msra.mxu0 %v2194
    %5643 = vmatpush.bf16.msra.mxu0 %v2192
    %5644 = vmatpush.bf16.msra.mxu0 %v2190
    %5645 = vmatpush.bf16.msra.mxu0 %v2188
    %5646 = vmatpush.bf16.msra.mxu0 %v2186
    %5647 = vmatpush.bf16.msra.mxu0 %v2184
    %5648 = vmatmul.bf16.gmra.mxu0 %v4957
    %v5649 = vpop.f32.mrf.mxu0
    %v5650 = vadd.f32 %v5637, %v5649
    %v5651 = vpop.f32.mrf.mxu0
    %5652 = vdwg.mxu0
    %5653 = vmatpush.bf16.msra.mxu0 %v2214
    %5654 = vmatpush.bf16.msra.mxu0 %v2212
    %5655 = vmatpush.bf16.msra.mxu0 %v2210
    %5656 = vmatpush.bf16.msra.mxu0 %v2208
    %5657 = vmatpush.bf16.msra.mxu0 %v2206
    %5658 = vmatpush.bf16.msra.mxu0 %v2204
    %5659 = vmatpush.bf16.msra.mxu0 %v2202
    %5660 = vmatpush.bf16.msra.mxu0 %v2200
    %5661 = vmatmul.bf16.gmra.mxu0 %v4960
    %v5662 = vpop.f32.mrf.mxu0
    %v5663 = vadd.f32 %v5650, %v5662
    %v5664 = vpop.f32.mrf.mxu0
    %5665 = vdwg.mxu0
    %5666 = vmatpush.bf16.msra.mxu0 %v2230
    %5667 = vmatpush.bf16.msra.mxu0 %v2228
    %5668 = vmatpush.bf16.msra.mxu0 %v2226
    %5669 = vmatpush.bf16.msra.mxu0 %v2224
    %5670 = vmatpush.bf16.msra.mxu0 %v2222
    %5671 = vmatpush.bf16.msra.mxu0 %v2220
    %5672 = vmatpush.bf16.msra.mxu0 %v2218
    %5673 = vmatpush.bf16.msra.mxu0 %v2216
    %5674 = vmatmul.bf16.gmra.mxu0 %v4961
    %v5675 = vpop.f32.mrf.mxu0
    %v5676 = vadd.f32 %v5663, %v5675
    %v5677 = vpop.f32.mrf.mxu0
    %5678 = vdwg.mxu0
    %5679 = vmatpush.bf16.msra.mxu0 %v2246
    %5680 = vmatpush.bf16.msra.mxu0 %v2244
    %5681 = vmatpush.bf16.msra.mxu0 %v2242
    %5682 = vmatpush.bf16.msra.mxu0 %v2240
    %5683 = vmatpush.bf16.msra.mxu0 %v2238
    %5684 = vmatpush.bf16.msra.mxu0 %v2236
    %5685 = vmatpush.bf16.msra.mxu0 %v2234
    %5686 = vmatpush.bf16.msra.mxu0 %v2232
    %5687 = vmatmul.bf16.gmra.mxu0 %v4962
    %v5688 = vpop.f32.mrf.mxu0
    %v5689 = vadd.f32 %v5676, %v5688
    %v5690 = vpop.f32.mrf.mxu0
    %5691 = vdwg.mxu0
    %v5692 = vmax.f32 %v4921, %v5338
    %v5693 = vmax.f32 %v4922, %v5689
    %v5694 = vld [vmem:[%s2] sm:$0x3]
    %v5696 = vperm.slane %v5694, 0
    %v5697 = vperm.slane %v5694, 1
    %v5700 = vadd.f32 %v5692, %v5696
    %v5701 = vadd.f32 %v5693, %v5697
    %v5702 = vmax.f32 %v5700, 0.0
    %v5703 = vmax.f32 %v5701, 0.0
    %v5704 = vld [vmem:[%s3] sm:$0xff]
    %v5705 = vld [vmem:[%s3 + $0x8] sm:$0xff]
    %v5706 = vld [vmem:[%s3 + $0x10] sm:$0xff]
    %v5707 = vld [vmem:[%s3 + $0x18] sm:$0xff]
    %v5708 = vld [vmem:[%s3 + $0x20] sm:$0xff]
    %v5709 = vld [vmem:[%s3 + $0x28] sm:$0xff]
    %v5710 = vld [vmem:[%s3 + $0x30] sm:$0xff]
    %v5711 = vld [vmem:[%s3 + $0x38] sm:$0xff]
    %v5712 = vld [vmem:[%s3 + $0x40] sm:$0xff]
    %v5713 = vld [vmem:[%s3 + $0x48] sm:$0xff]
    %v5714 = vld [vmem:[%s3 + $0x50] sm:$0xff]
    %v5715 = vld [vmem:[%s3 + $0x58] sm:$0xff]
    %v5716 = vld [vmem:[%s3 + $0x60] sm:$0xff]
    %v5717 = vld [vmem:[%s3 + $0x68] sm:$0xff]
    %v5718 = vld [vmem:[%s3 + $0x70] sm:$0xff]
    %v5719 = vld [vmem:[%s3 + $0x78] sm:$0xff]
    %v5720 = vld [vmem:[%s3 + $0x80] sm:$0xff]
    %v5721 = vld [vmem:[%s3 + $0x88] sm:$0xff]
    %v5722 = vld [vmem:[%s3 + $0x90] sm:$0xff]
    %v5723 = vld [vmem:[%s3 + $0x98] sm:$0xff]
    %v5724 = vld [vmem:[%s3 + $0xa0] sm:$0xff]
    %v5725 = vld [vmem:[%s3 + $0xa8] sm:$0xff]
    %v5726 = vld [vmem:[%s3 + $0xb0] sm:$0xff]
    %v5727 = vld [vmem:[%s3 + $0xb8] sm:$0xff]
    %v5728 = vld [vmem:[%s3 + $0xc0] sm:$0xff]
    %v5729 = vld [vmem:[%s3 + $0xc8] sm:$0xff]
    %v5730 = vld [vmem:[%s3 + $0xd0] sm:$0xff]
    %v5731 = vld [vmem:[%s3 + $0xd8] sm:$0xff]
    %v5732 = vld [vmem:[%s3 + $0xe0] sm:$0xff]
    %v5733 = vld [vmem:[%s3 + $0xe8] sm:$0xff]
    %v5734 = vld [vmem:[%s3 + $0xf0] sm:$0xff]
    %v5735 = vld [vmem:[%s3 + $0xf8] sm:$0xff]
    %v5736 = vld [vmem:[%s4] sm:$0x1]
    %v5738 = vperm.slane %v5736, 0
    %5740 = vmatpush.msra.mxu0 %v5719
    %5741 = vmatpush.msra.mxu0 %v5718
    %5742 = vmatpush.msra.mxu0 %v5717
    %5743 = vmatpush.msra.mxu0 %v5716
    %5744 = vmatpush.msra.mxu0 %v5715
    %5745 = vmatpush.msra.mxu0 %v5714
    %5746 = vmatpush.msra.mxu0 %v5713
    %5747 = vmatpush.msra.mxu0 %v5712
    %5748 = vmatpush.msra.mxu0 %v5711
    %5749 = vmatpush.msra.mxu0 %v5710
    %5750 = vmatpush.msra.mxu0 %v5709
    %5751 = vmatpush.msra.mxu0 %v5708
    %5752 = vmatpush.msra.mxu0 %v5707
    %5753 = vmatpush.msra.mxu0 %v5706
    %5754 = vmatpush.msra.mxu0 %v5705
    %5755 = vmatpush.msra.mxu0 %v5704
    %5756 = vmatmul.f32.gmra.mxu0 %v5702
    %v5757 = vpop.f32.mrf.mxu0
    %v5758 = vadd.f32 %v5738, %v5757
    %5759 = vdwg.mxu0
    %5760 = vmatpush.msra.mxu0 %v5735
    %5761 = vmatpush.msra.mxu0 %v5734
    %5762 = vmatpush.msra.mxu0 %v5733
    %5763 = vmatpush.msra.mxu0 %v5732
    %5764 = vmatpush.msra.mxu0 %v5731
    %5765 = vmatpush.msra.mxu0 %v5730
    %5766 = vmatpush.msra.mxu0 %v5729
    %5767 = vmatpush.msra.mxu0 %v5728
    %5768 = vmatpush.msra.mxu0 %v5727
    %5769 = vmatpush.msra.mxu0 %v5726
    %5770 = vmatpush.msra.mxu0 %v5725
    %5771 = vmatpush.msra.mxu0 %v5724
    %5772 = vmatpush.msra.mxu0 %v5723
    %5773 = vmatpush.msra.mxu0 %v5722
    %5774 = vmatpush.msra.mxu0 %v5721
    %5775 = vmatpush.msra.mxu0 %v5720
    %5776 = vmatmul.f32.gmra.mxu0 %v5703
    %v5777 = vpop.f32.mrf.mxu0
    %v5778 = vadd.f32 %v5758, %v5777
    %5779 = vdwg.mxu0
    %vm5780 = vcmask 74752
    %5781 = vst.msk [vmem:[#allocation2] sm:$0x3] %vm5780, %v5778
    // Predicated region
    $region22: #{alexnet_forward.7} parent=1 // pred_check
      _
    $region23: #{alexnet_forward.7} parent=1 // pred_check_branch
      %5783 = sbr.rel (0) target = $region25
    $region24: #{alexnet_forward.7} parent=1 // pred_region
      %5785 = vsyncadd [#allocation3], 0
      %s5787 = sshll.u32 [#allocation2], 4
      %s5788 = int_to_ptr.vmem [resolvable:$true] %s5787
      %s5789 = sshll.u32 %s5, 4
      %s5790 = int_to_ptr.hbm [resolvable:$true] %s5789
      %5792 = dma.vmem_to_hbm [thread:$0]  %s5788, 32, %s5790, [#allocation3]
    $region25: #{alexnet_forward.7} parent=1 // pred_fallthru
      _
    // Predicated region
    $region26: #{alexnet_forward.7} parent=1 // pred_check
      _
    $region27: #{alexnet_forward.7} parent=1 // pred_check_branch
      %5794 = sbr.rel (0) target = $region29
    $region28: #{alexnet_forward.7} parent=1 // pred_region
      %5796 = dma.done [#allocation3], 32
    $region29: #{alexnet_forward.7} parent=1 // pred_fallthru
      _
    %5797 = vsyncpa [#allocation3], 1

</llo_original>
